<compile_context>
chip_gen: v7x
topology: tpu7x:2x2x1
jax: 0.10.0
libtpu: 0.0.40
codegen_flags: <defaults>
</compile_context>

<pallas_src>
import functools
import math

import jax
import jax.numpy as jnp
from jax.experimental import pallas as pl
from jax.experimental.pallas import tpu as pltpu

# Ordered parameter names for one cross block (Read / Compute / Write).
PKEYS = [
    "ln_q_g", "ln_q_b",       # LayerNorm on the query stream
    "ln_kv_g", "ln_kv_b",     # LayerNorm on the key/value stream
    "wq", "wk", "wv",         # (Dq,Dq), (Dkv,Dq), (Dkv,Dq)   [x @ W convention]
    "wp", "bp",               # output projection (Dq,Dq), (1,Dq)
    "ln2_g", "ln2_b",         # LayerNorm before MLP
    "w1", "b1", "w2", "b2",   # MLP: (Dq,H), (1,H), (H,Dq), (1,Dq)
]
MATRIX_KEYS = ("wq", "wk", "wv", "wp", "w1", "w2")   # stored as bf16 in HBM

_F32 = jnp.float32
_BF16 = jnp.bfloat16


# ---------------------------------------------------------------------------
# In-kernel math (operates on VMEM-resident values)
# ---------------------------------------------------------------------------
def _layer_norm(x, g, b):
    mu = jnp.mean(x, axis=-1, keepdims=True)
    var = jnp.mean(jnp.square(x - mu), axis=-1, keepdims=True)
    return (x - mu) * jax.lax.rsqrt(var + 1e-5) * g + b


def _erf(x):
    # Abramowitz & Stegun 7.1.26 (|error| <= 1.5e-7).  Keeps nn.GELU(exact)
    # semantics using only exp / mul / div (no erf primitive needed).
    a1, a2, a3, a4, a5 = (0.254829592, -0.284496736, 1.421413741,
                          -1.453152027, 1.061405429)
    ax = jnp.abs(x)
    t = 1.0 / (1.0 + 0.3275911 * ax)
    poly = ((((a5 * t + a4) * t + a3) * t + a2) * t + a1) * t
    y = 1.0 - poly * jnp.exp(-ax * ax)
    return jnp.where(x < 0.0, -y, y)


def _gelu_exact(x):
    return 0.5 * x * (1.0 + _erf(x * 0.7071067811865476))


def _attention(q, k, v, wp, bp, num_heads, bblk, nq, nkv):
    """Multi-head attention on flattened (Bblk*N, D) q/k/v (q pre-scaled)."""
    dq = q.shape[-1]
    hd = dq // num_heads
    q3 = q.reshape(bblk, nq, dq)
    k3 = k.reshape(bblk, nkv, dq)
    v3 = v.reshape(bblk, nkv, dq)
    # TODO(synk): at production head_dim (>=128 lanes) lay heads on the
    # sublane axis / one batched dot_general instead of these sub-128-lane
    # slices; at demo hd=8/16 nothing is lane-dense.
    heads = []
    for h in range(num_heads):
        sl = slice(h * hd, (h + 1) * hd)
        qh = q3[:, :, sl].astype(_BF16)
        kh = k3[:, :, sl].astype(_BF16)
        vh = v3[:, :, sl].astype(_BF16)
        # Q.K^T contracts the last dim of BOTH operands (no key transpose).
        s = jnp.einsum("bqd,bkd->bqk", qh, kh, preferred_element_type=_F32)
        s = s - jnp.max(s, axis=-1, keepdims=True)
        p = jnp.exp(s)
        p = p * pl.reciprocal(jnp.sum(p, axis=-1, keepdims=True), approx=True)
        heads.append(jnp.einsum("bqk,bkd->bqd", p.astype(_BF16), vh,
                                preferred_element_type=_F32))
    # Concatenate heads, then ONE full-K projection + bias (no per-head
    # K=head_dim matmuls, no per-head accumulate adds).
    o = jnp.concatenate(heads, axis=-1).reshape(bblk * nq, dq)
    return jnp.dot(o.astype(_BF16), wp, preferred_element_type=_F32) + bp


def _cross_block(q_in, kv_in, p, num_heads, bblk, nq, nkv, self_kv=False):
    """LN -> cross-attention -> residual -> LN -> GELU MLP -> residual.

    q_in/kv_in are flattened (Bblk*N, D).  Weights p[wq..w2] are bf16.
    """
    dq = q_in.shape[-1]
    hd = dq // num_heads
    scale = hd ** -0.5

    zn = _layer_norm(q_in, p["ln_q_g"], p["ln_q_b"])
    # Compute_Block applies ONE shared norm (norm_z1) to both streams.
    kvn = zn if self_kv else _layer_norm(kv_in, p["ln_kv_g"], p["ln_kv_b"])

    q = jnp.dot(zn.astype(_BF16), p["wq"], preferred_element_type=_F32) * scale
    k = jnp.dot(kvn.astype(_BF16), p["wk"], preferred_element_type=_F32)
    v = jnp.dot(kvn.astype(_BF16), p["wv"], preferred_element_type=_F32)

    att = _attention(q, k, v, p["wp"], p["bp"], num_heads, bblk, nq, nkv)
    z1 = q_in + att                                    # first residual

    zn2 = _layer_norm(z1, p["ln2_g"], p["ln2_b"])
    h1 = jnp.dot(zn2.astype(_BF16), p["w1"], preferred_element_type=_F32) + p["b1"]
    h1 = _gelu_exact(h1)                               # exact GELU (nn.GELU)
    m = jnp.dot(h1.astype(_BF16), p["w2"], preferred_element_type=_F32) + p["b2"]
    return z1 + m                                      # second residual


def make_rcw_kernel(num_layers, num_heads, bblk, nz, dz, nx, dx):
    """grid = (batch_blocks, num_layers); z carried in a VMEM scratch."""
    npar = len(PKEYS)

    def kernel(*refs):
        z_ref, x_ref = refs[0], refs[1]
        read_refs = refs[2:2 + npar]
        comp_refs = refs[2 + npar:2 + 2 * npar]        # ONE layer's weights
        write_refs = refs[2 + 2 * npar:2 + 3 * npar]
        z_out_ref = refs[2 + 3 * npar]
        x_out_ref = refs[3 + 3 * npar]
        z_acc = refs[4 + 3 * npar]                     # persistent f32 scratch

        layer = pl.program_id(1)

        def load(prefs):
            return {key: r[...] for key, r in zip(PKEYS, prefs)}

        # ---- Read_Block: z attends to x (first layer step only) ----
        @pl.when(layer == 0)
        def _():
            z0 = z_ref[...].reshape(bblk * nz, dz)
            x0 = x_ref[...].reshape(bblk * nx, dx)
            z_acc[...] = _cross_block(z0, x0, load(read_refs), num_heads,
                                      bblk, nz, nx)

        # ---- Compute_Block `layer`: self cross-attention on z (shared LN) ----
        zc = z_acc[...]
        z_acc[...] = _cross_block(zc, zc, load(comp_refs), num_heads,
                                  bblk, nz, nz, self_kv=True)

        # ---- Write_Block: x attends to updated z (last layer step only) ----
        @pl.when(layer == num_layers - 1)
        def _():
            zf = z_acc[...]
            xf = x_ref[...].reshape(bblk * nx, dx)
            x_new = _cross_block(xf, zf, load(write_refs), num_heads,
                                 bblk, nx, nz)
            z_out_ref[...] = zf.reshape(bblk, nz, dz)
            x_out_ref[...] = x_new.reshape(bblk, nx, dx)

    return kernel


# ---------------------------------------------------------------------------
# Wrapper: one pallas_call for the whole RCW forward
# ---------------------------------------------------------------------------
def rcw_forward(z, x, params, num_heads, batch_block=None):
    B, Nz, Dz = z.shape
    _, Nx, Dx = x.shape
    L = int(params["compute"]["wq"].shape[0])
    assert Dz % num_heads == 0 and Dx % num_heads == 0

    if batch_block is None:
        batch_block = math.gcd(B, 8)      # block batch elements per grid step
    bblk = batch_block
    assert B % bblk == 0

    # Weights live in HBM pre-cast to bf16 (matrices) / f32 (LN + biases).
    def prep(w, name):
        return w.astype(_BF16) if name in MATRIX_KEYS else w.astype(_F32)

    read_w = [prep(params["read"][k], k) for k in PKEYS]
    comp_w = [prep(params["compute"][k], k) for k in PKEYS]   # stacked (L, ...)
    write_w = [prep(params["write"][k], k) for k in PKEYS]

    def const_spec(w):
        nd = w.ndim
        # TODO(synk): pipeline_mode=pl.Buffered(1) would halve the VMEM of
        # these never-changing blocks; kept at default buffering for lowering
        # portability (weights are tiny at demo shapes).
        return pl.BlockSpec(w.shape, lambda b, l, _n=nd: (0,) * _n)

    def layer_spec(w):
        nd = w.ndim
        return pl.BlockSpec((None,) + tuple(w.shape[1:]),
                            lambda b, l, _n=nd: (l,) + (0,) * (_n - 1))

    in_specs = (
        [pl.BlockSpec((bblk, Nz, Dz), lambda b, l: (b, 0, 0)),
         pl.BlockSpec((bblk, Nx, Dx), lambda b, l: (b, 0, 0))]
        + [const_spec(w) for w in read_w]
        + [layer_spec(w) for w in comp_w]     # streamed: one layer per step
        + [const_spec(w) for w in write_w])

    # TODO(synk): at demo Dz=32/Dx=64 (<128) the 2 output stores per batch
    # block are masked; at production D>=128 they are lane-dense automatically.
    out_specs = (pl.BlockSpec((bblk, Nz, Dz), lambda b, l: (b, 0, 0)),
                 pl.BlockSpec((bblk, Nx, Dx), lambda b, l: (b, 0, 0)))

    out_shape = (jax.ShapeDtypeStruct((B, Nz, Dz), _F32),
                 jax.ShapeDtypeStruct((B, Nx, Dx), _F32))

    # Explicit VMEM budget from buffer math (double buffers) + headroom.
    def nbytes(a):
        return int(a.size) * a.dtype.itemsize
    io_bytes = 2 * 4 * bblk * (Nz * Dz + Nx * Dx)              # z/x in + out
    wt_bytes = (sum(nbytes(w) for w in read_w + write_w)
                + sum(nbytes(w) // L for w in comp_w))         # 1 layer slice
    scratch_bytes = 4 * bblk * Nz * Dz
    vmem_limit = int(2 * (io_bytes + wt_bytes) + scratch_bytes + (32 << 20))
    vmem_limit = min(vmem_limit, 100 << 20)

    kernel = make_rcw_kernel(L, num_heads, bblk, Nz, Dz, Nx, Dx)
    return pl.pallas_call(
        kernel,
        out_shape=out_shape,
        grid=(B // bblk, L),
        in_specs=in_specs,
        out_specs=out_specs,
        scratch_shapes=[pltpu.VMEM((bblk * Nz, Dz), _F32)],
        compiler_params=pltpu.CompilerParams(
            dimension_semantics=("parallel", "arbitrary"),
            vmem_limit_bytes=vmem_limit),
    )(z, x, *read_w, *comp_w, *write_w)


# ---------------------------------------------------------------------------
# Parameter construction (deterministic, synthetic)
# ---------------------------------------------------------------------------
def init_block_params(key, q_dim, kv_dim, mlp_ratio=4.0, std=0.02,
                      tie_q_kv_norm=False):
    hidden = int(q_dim * mlp_ratio)
    ks = jax.random.split(key, 7)
    f32 = jnp.float32
    ln_q_g = jnp.ones((1, q_dim), f32)
    ln_q_b = jnp.zeros((1, q_dim), f32)
    if tie_q_kv_norm:
        # Compute_Block: a single norm_z1 is applied to both q and kv streams.
        ln_kv_g, ln_kv_b = ln_q_g, ln_q_b
    else:
        ln_kv_g = jnp.ones((1, kv_dim), f32)
        ln_kv_b = jnp.zeros((1, kv_dim), f32)
    return {
        "ln_q_g": ln_q_g, "ln_q_b": ln_q_b,
        "ln_kv_g": ln_kv_g, "ln_kv_b": ln_kv_b,
        "wq": (jax.random.normal(ks[0], (q_dim, q_dim)) * std).astype(f32),
        "wk": (jax.random.normal(ks[1], (kv_dim, q_dim)) * std).astype(f32),
        "wv": (jax.random.normal(ks[2], (kv_dim, q_dim)) * std).astype(f32),
        "wp": (jax.random.normal(ks[3], (q_dim, q_dim)) * std).astype(f32),
        "bp": (jax.random.normal(ks[4], (1, q_dim)) * std).astype(f32),
        "ln2_g": jnp.ones((1, q_dim), f32),
        "ln2_b": jnp.zeros((1, q_dim), f32),
        "w1": (jax.random.normal(ks[5], (q_dim, hidden)) * std).astype(f32),
        "b1": jnp.zeros((1, hidden), f32),
        "w2": (jax.random.normal(ks[6], (hidden, q_dim)) * std).astype(f32),
        "b2": jnp.zeros((1, q_dim), f32),
    }


def init_rcw_params(key, z_dim, x_dim, num_compute_layers, mlp_ratio=4.0):
    keys = jax.random.split(key, num_compute_layers + 2)
    # Compute blocks tie ln_kv to ln_q (matches PyTorch's single norm_z1).
    compute = [init_block_params(keys[1 + i], z_dim, z_dim, mlp_ratio,
                                 tie_q_kv_norm=True)
               for i in range(num_compute_layers)]
    compute_stacked = {k: jnp.stack([cp[k] for cp in compute], axis=0)
                       for k in PKEYS}
    return {
        # Read:  q-stream = z (dim z_dim), kv-stream = x (dim x_dim)
        "read": init_block_params(keys[0], z_dim, x_dim, mlp_ratio),
        "compute": compute_stacked,
        # Write: q-stream = x (dim x_dim), kv-stream = z (dim z_dim)
        "write": init_block_params(keys[-1], x_dim, z_dim, mlp_ratio),
    }


# ---------------------------------------------------------------------------
# Pure-JAX reference (mirrors the PyTorch forward, full f32) for verification
# ---------------------------------------------------------------------------
def _ref_ln(x, g, b):
    mu = jnp.mean(x, axis=-1, keepdims=True)
    var = jnp.mean(jnp.square(x - mu), axis=-1, keepdims=True)
    return (x - mu) / jnp.sqrt(var + 1e-5) * g + b


def ref_cross_block(q_in, kv_in, p, num_heads):
    B, Nq, Dq = q_in.shape
    _, Nkv, _ = kv_in.shape
    hd = Dq // num_heads
    zn = _ref_ln(q_in, p["ln_q_g"], p["ln_q_b"])
    kvn = _ref_ln(kv_in, p["ln_kv_g"], p["ln_kv_b"])
    q = zn @ p["wq"]
    k = kvn @ p["wk"]
    v = kvn @ p["wv"]
    qh = q.reshape(B, Nq, num_heads, hd).transpose(0, 2, 1, 3)
    kh = k.reshape(B, Nkv, num_heads, hd).transpose(0, 2, 1, 3)
    vh = v.reshape(B, Nkv, num_heads, hd).transpose(0, 2, 1, 3)
    attn = jnp.einsum("bhqd,bhkd->bhqk", qh, kh) * (hd ** -0.5)
    attn = jax.nn.softmax(attn, axis=-1)
    o = jnp.einsum("bhqk,bhkd->bhqd", attn, vh)
    o = o.transpose(0, 2, 1, 3).reshape(B, Nq, Dq)
    o = o @ p["wp"] + p["bp"]
    z1 = q_in + o
    zn2 = _ref_ln(z1, p["ln2_g"], p["ln2_b"])
    m = jax.nn.gelu(zn2 @ p["w1"] + p["b1"], approximate=False) @ p["w2"] + p["b2"]
    return z1 + m


def ref_rcw_forward(z, x, params, num_heads):
    z = ref_cross_block(z, x, params["read"], num_heads)
    L = params["compute"]["wq"].shape[0]
    for layer in range(L):
        cp = {k: params["compute"][k][layer] for k in PKEYS}
        z = ref_cross_block(z, z, cp, num_heads)
    x = ref_cross_block(x, z, params["write"], num_heads)
    return z, x


# ---------------------------------------------------------------------------
if __name__ == "__main__":
    # Small, forward-consistent shapes.
    B = 2
    N_Z, Z_DIM = 8, 32        # latent tokens
    N_X, X_DIM = 16, 64       # input tokens
    NUM_HEADS = 4             # must divide both z_dim and x_dim
    NUM_COMPUTE = 4
    MLP_RATIO = 4.0

    key = jax.random.PRNGKey(0)
    kz, kx, kp = jax.random.split(key, 3)
    z = jax.random.normal(kz, (B, N_Z, Z_DIM), dtype=jnp.float32)
    x = jax.random.normal(kx, (B, N_X, X_DIM), dtype=jnp.float32)
    params = init_rcw_params(kp, Z_DIM, X_DIM, NUM_COMPUTE, MLP_RATIO)

    fwd = jax.jit(functools.partial(rcw_forward, num_heads=NUM_HEADS))
    z_out, x_out = fwd(z, x, params)
    jax.block_until_ready((z_out, x_out))

    # Verify against the pure-JAX (f32) reference of the PyTorch forward.
    z_ref, x_ref = ref_rcw_forward(z, x, params, NUM_HEADS)
    assert z_out.shape == (B, N_Z, Z_DIM) and x_out.shape == (B, N_X, X_DIM)
    # bf16 MXU operands (f32 accumulation) -> slightly relaxed tolerance.
    assert jnp.allclose(z_out, z_ref, atol=2e-2, rtol=2e-2), \
        float(jnp.max(jnp.abs(z_out - z_ref)))
    assert jnp.allclose(x_out, x_ref, atol=2e-2, rtol=2e-2), \
        float(jnp.max(jnp.abs(x_out - x_ref)))

    print("KERNEL_OK")
</pallas_src>

<mosaic_0001>
module attributes {stable_mosaic.version = 11 : i64} {
  func.func @kernel(%arg0: i32, %arg1: i32, %arg2: memref<2x8x32xf32, #tpu.memory_space<vmem>>, %arg3: memref<2x16x64xf32, #tpu.memory_space<vmem>>, %arg4: memref<1x32xf32, #tpu.memory_space<vmem>>, %arg5: memref<1x32xf32, #tpu.memory_space<vmem>>, %arg6: memref<1x64xf32, #tpu.memory_space<vmem>>, %arg7: memref<1x64xf32, #tpu.memory_space<vmem>>, %arg8: memref<32x32xbf16, #tpu.memory_space<vmem>>, %arg9: memref<64x32xbf16, #tpu.memory_space<vmem>>, %arg10: memref<64x32xbf16, #tpu.memory_space<vmem>>, %arg11: memref<32x32xbf16, #tpu.memory_space<vmem>>, %arg12: memref<1x32xf32, #tpu.memory_space<vmem>>, %arg13: memref<1x32xf32, #tpu.memory_space<vmem>>, %arg14: memref<1x32xf32, #tpu.memory_space<vmem>>, %arg15: memref<32x128xbf16, #tpu.memory_space<vmem>>, %arg16: memref<1x128xf32, #tpu.memory_space<vmem>>, %arg17: memref<128x32xbf16, #tpu.memory_space<vmem>>, %arg18: memref<1x32xf32, #tpu.memory_space<vmem>>, %arg19: memref<1x1x32xf32, #tpu.memory_space<vmem>>, %arg20: memref<1x1x32xf32, #tpu.memory_space<vmem>>, %arg21: memref<1x1x32xf32, #tpu.memory_space<vmem>>, %arg22: memref<1x1x32xf32, #tpu.memory_space<vmem>>, %arg23: memref<1x32x32xbf16, #tpu.memory_space<vmem>>, %arg24: memref<1x32x32xbf16, #tpu.memory_space<vmem>>, %arg25: memref<1x32x32xbf16, #tpu.memory_space<vmem>>, %arg26: memref<1x32x32xbf16, #tpu.memory_space<vmem>>, %arg27: memref<1x1x32xf32, #tpu.memory_space<vmem>>, %arg28: memref<1x1x32xf32, #tpu.memory_space<vmem>>, %arg29: memref<1x1x32xf32, #tpu.memory_space<vmem>>, %arg30: memref<1x32x128xbf16, #tpu.memory_space<vmem>>, %arg31: memref<1x1x128xf32, #tpu.memory_space<vmem>>, %arg32: memref<1x128x32xbf16, #tpu.memory_space<vmem>>, %arg33: memref<1x1x32xf32, #tpu.memory_space<vmem>>, %arg34: memref<1x64xf32, #tpu.memory_space<vmem>>, %arg35: memref<1x64xf32, #tpu.memory_space<vmem>>, %arg36: memref<1x32xf32, #tpu.memory_space<vmem>>, %arg37: memref<1x32xf32, #tpu.memory_space<vmem>>, %arg38: memref<64x64xbf16, #tpu.memory_space<vmem>>, %arg39: memref<32x64xbf16, #tpu.memory_space<vmem>>, %arg40: memref<32x64xbf16, #tpu.memory_space<vmem>>, %arg41: memref<64x64xbf16, #tpu.memory_space<vmem>>, %arg42: memref<1x64xf32, #tpu.memory_space<vmem>>, %arg43: memref<1x64xf32, #tpu.memory_space<vmem>>, %arg44: memref<1x64xf32, #tpu.memory_space<vmem>>, %arg45: memref<64x256xbf16, #tpu.memory_space<vmem>>, %arg46: memref<1x256xf32, #tpu.memory_space<vmem>>, %arg47: memref<256x64xbf16, #tpu.memory_space<vmem>>, %arg48: memref<1x64xf32, #tpu.memory_space<vmem>>, %arg49: memref<2x8x32xf32, #tpu.memory_space<vmem>>, %arg50: memref<2x16x64xf32, #tpu.memory_space<vmem>>, %arg51: memref<16x32xf32, #tpu.memory_space<vmem>>) attributes {dimension_semantics = [#tpu.dimension_semantics<parallel>, #tpu.dimension_semantics<arbitrary>], iteration_bounds = array<i64: 1, 4>, scalar_prefetch = 0 : i64, scratch_operands = 1 : i64, tpu.core_type = #tpu.core_type<tc>, window_params = [{transform_indices = @transform_0, window_bounds = array<i64: 2, 8, 32>}, {transform_indices = @transform_1, window_bounds = array<i64: 2, 16, 64>}, {pipeline_mode = #tpu.pipeline_mode<synchronous>, transform_indices = @transform_2, window_bounds = array<i64: 1, 32>}, {pipeline_mode = #tpu.pipeline_mode<synchronous>, transform_indices = @transform_3, window_bounds = array<i64: 1, 32>}, {pipeline_mode = #tpu.pipeline_mode<synchronous>, transform_indices = @transform_4, window_bounds = array<i64: 1, 64>}, {pipeline_mode = #tpu.pipeline_mode<synchronous>, transform_indices = @transform_5, window_bounds = array<i64: 1, 64>}, {pipeline_mode = #tpu.pipeline_mode<synchronous>, transform_indices = @transform_6, window_bounds = array<i64: 32, 32>}, {pipeline_mode = #tpu.pipeline_mode<synchronous>, transform_indices = @transform_7, window_bounds = array<i64: 64, 32>}, {pipeline_mode = #tpu.pipeline_mode<synchronous>, transform_indices = @transform_8, window_bounds = array<i64: 64, 32>}, {pipeline_mode = #tpu.pipeline_mode<synchronous>, transform_indices = @transform_9, window_bounds = array<i64: 32, 32>}, {pipeline_mode = #tpu.pipeline_mode<synchronous>, transform_indices = @transform_10, window_bounds = array<i64: 1, 32>}, {pipeline_mode = #tpu.pipeline_mode<synchronous>, transform_indices = @transform_11, window_bounds = array<i64: 1, 32>}, {pipeline_mode = #tpu.pipeline_mode<synchronous>, transform_indices = @transform_12, window_bounds = array<i64: 1, 32>}, {pipeline_mode = #tpu.pipeline_mode<synchronous>, transform_indices = @transform_13, window_bounds = array<i64: 32, 128>}, {pipeline_mode = #tpu.pipeline_mode<synchronous>, transform_indices = @transform_14, window_bounds = array<i64: 1, 128>}, {pipeline_mode = #tpu.pipeline_mode<synchronous>, transform_indices = @transform_15, window_bounds = array<i64: 128, 32>}, {pipeline_mode = #tpu.pipeline_mode<synchronous>, transform_indices = @transform_16, window_bounds = array<i64: 1, 32>}, {transform_indices = @transform_17, window_bounds = array<i64: 1, 1, 32>}, {transform_indices = @transform_18, window_bounds = array<i64: 1, 1, 32>}, {transform_indices = @transform_19, window_bounds = array<i64: 1, 1, 32>}, {transform_indices = @transform_20, window_bounds = array<i64: 1, 1, 32>}, {transform_indices = @transform_21, window_bounds = array<i64: 1, 32, 32>}, {transform_indices = @transform_22, window_bounds = array<i64: 1, 32, 32>}, {transform_indices = @transform_23, window_bounds = array<i64: 1, 32, 32>}, {transform_indices = @transform_24, window_bounds = array<i64: 1, 32, 32>}, {transform_indices = @transform_25, window_bounds = array<i64: 1, 1, 32>}, {transform_indices = @transform_26, window_bounds = array<i64: 1, 1, 32>}, {transform_indices = @transform_27, window_bounds = array<i64: 1, 1, 32>}, {transform_indices = @transform_28, window_bounds = array<i64: 1, 32, 128>}, {transform_indices = @transform_29, window_bounds = array<i64: 1, 1, 128>}, {transform_indices = @transform_30, window_bounds = array<i64: 1, 128, 32>}, {transform_indices = @transform_31, window_bounds = array<i64: 1, 1, 32>}, {pipeline_mode = #tpu.pipeline_mode<synchronous>, transform_indices = @transform_32, window_bounds = array<i64: 1, 64>}, {pipeline_mode = #tpu.pipeline_mode<synchronous>, transform_indices = @transform_33, window_bounds = array<i64: 1, 64>}, {pipeline_mode = #tpu.pipeline_mode<synchronous>, transform_indices = @transform_34, window_bounds = array<i64: 1, 32>}, {pipeline_mode = #tpu.pipeline_mode<synchronous>, transform_indices = @transform_35, window_bounds = array<i64: 1, 32>}, {pipeline_mode = #tpu.pipeline_mode<synchronous>, transform_indices = @transform_36, window_bounds = array<i64: 64, 64>}, {pipeline_mode = #tpu.pipeline_mode<synchronous>, transform_indices = @transform_37, window_bounds = array<i64: 32, 64>}, {pipeline_mode = #tpu.pipeline_mode<synchronous>, transform_indices = @transform_38, window_bounds = array<i64: 32, 64>}, {pipeline_mode = #tpu.pipeline_mode<synchronous>, transform_indices = @transform_39, window_bounds = array<i64: 64, 64>}, {pipeline_mode = #tpu.pipeline_mode<synchronous>, transform_indices = @transform_40, window_bounds = array<i64: 1, 64>}, {pipeline_mode = #tpu.pipeline_mode<synchronous>, transform_indices = @transform_41, window_bounds = array<i64: 1, 64>}, {pipeline_mode = #tpu.pipeline_mode<synchronous>, transform_indices = @transform_42, window_bounds = array<i64: 1, 64>}, {pipeline_mode = #tpu.pipeline_mode<synchronous>, transform_indices = @transform_43, window_bounds = array<i64: 64, 256>}, {pipeline_mode = #tpu.pipeline_mode<synchronous>, transform_indices = @transform_44, window_bounds = array<i64: 1, 256>}, {pipeline_mode = #tpu.pipeline_mode<synchronous>, transform_indices = @transform_45, window_bounds = array<i64: 256, 64>}, {pipeline_mode = #tpu.pipeline_mode<synchronous>, transform_indices = @transform_46, window_bounds = array<i64: 1, 64>}, {transform_indices = @transform_47, window_bounds = array<i64: 2, 8, 32>}, {transform_indices = @transform_48, window_bounds = array<i64: 2, 16, 64>}]} {
    %c0_i32 = arith.constant 0 : i32
    %0 = arith.cmpi eq, %arg1, %c0_i32 : i32
    %1 = arith.extui %0 : i1 to i32
    %c0_i32_0 = arith.constant 0 : i32
    %2 = arith.cmpi ne, %1, %c0_i32_0 : i32
    scf.if %2 {
      %c0_91 = arith.constant 0 : index
      %c0_92 = arith.constant 0 : index
      %c0_93 = arith.constant 0 : index
      %221 = vector.load %arg2[%c0_91, %c0_92, %c0_93] : memref<2x8x32xf32, #tpu.memory_space<vmem>>, vector<2x8x32xf32>
      %222 = vector.shape_cast %221 : vector<2x8x32xf32> to vector<16x32xf32>
      %c0_94 = arith.constant 0 : index
      %c0_95 = arith.constant 0 : index
      %c0_96 = arith.constant 0 : index
      %223 = vector.load %arg3[%c0_94, %c0_95, %c0_96] : memref<2x16x64xf32, #tpu.memory_space<vmem>>, vector<2x16x64xf32>
      %224 = vector.shape_cast %223 : vector<2x16x64xf32> to vector<32x64xf32>
      %c0_97 = arith.constant 0 : index
      %c0_98 = arith.constant 0 : index
      %225 = vector.load %arg4[%c0_97, %c0_98] : memref<1x32xf32, #tpu.memory_space<vmem>>, vector<1x32xf32>
      %c0_99 = arith.constant 0 : index
      %c0_100 = arith.constant 0 : index
      %226 = vector.load %arg5[%c0_99, %c0_100] : memref<1x32xf32, #tpu.memory_space<vmem>>, vector<1x32xf32>
      %c0_101 = arith.constant 0 : index
      %c0_102 = arith.constant 0 : index
      %227 = vector.load %arg6[%c0_101, %c0_102] : memref<1x64xf32, #tpu.memory_space<vmem>>, vector<1x64xf32>
      %c0_103 = arith.constant 0 : index
      %c0_104 = arith.constant 0 : index
      %228 = vector.load %arg7[%c0_103, %c0_104] : memref<1x64xf32, #tpu.memory_space<vmem>>, vector<1x64xf32>
      %c0_105 = arith.constant 0 : index
      %c0_106 = arith.constant 0 : index
      %229 = vector.load %arg8[%c0_105, %c0_106] : memref<32x32xbf16, #tpu.memory_space<vmem>>, vector<32x32xbf16>
      %c0_107 = arith.constant 0 : index
      %c0_108 = arith.constant 0 : index
      %230 = vector.load %arg9[%c0_107, %c0_108] : memref<64x32xbf16, #tpu.memory_space<vmem>>, vector<64x32xbf16>
      %c0_109 = arith.constant 0 : index
      %c0_110 = arith.constant 0 : index
      %231 = vector.load %arg10[%c0_109, %c0_110] : memref<64x32xbf16, #tpu.memory_space<vmem>>, vector<64x32xbf16>
      %c0_111 = arith.constant 0 : index
      %c0_112 = arith.constant 0 : index
      %232 = vector.load %arg11[%c0_111, %c0_112] : memref<32x32xbf16, #tpu.memory_space<vmem>>, vector<32x32xbf16>
      %c0_113 = arith.constant 0 : index
      %c0_114 = arith.constant 0 : index
      %233 = vector.load %arg12[%c0_113, %c0_114] : memref<1x32xf32, #tpu.memory_space<vmem>>, vector<1x32xf32>
      %c0_115 = arith.constant 0 : index
      %c0_116 = arith.constant 0 : index
      %234 = vector.load %arg13[%c0_115, %c0_116] : memref<1x32xf32, #tpu.memory_space<vmem>>, vector<1x32xf32>
      %c0_117 = arith.constant 0 : index
      %c0_118 = arith.constant 0 : index
      %235 = vector.load %arg14[%c0_117, %c0_118] : memref<1x32xf32, #tpu.memory_space<vmem>>, vector<1x32xf32>
      %c0_119 = arith.constant 0 : index
      %c0_120 = arith.constant 0 : index
      %236 = vector.load %arg15[%c0_119, %c0_120] : memref<32x128xbf16, #tpu.memory_space<vmem>>, vector<32x128xbf16>
      %c0_121 = arith.constant 0 : index
      %c0_122 = arith.constant 0 : index
      %237 = vector.load %arg16[%c0_121, %c0_122] : memref<1x128xf32, #tpu.memory_space<vmem>>, vector<1x128xf32>
      %c0_123 = arith.constant 0 : index
      %c0_124 = arith.constant 0 : index
      %238 = vector.load %arg17[%c0_123, %c0_124] : memref<128x32xbf16, #tpu.memory_space<vmem>>, vector<128x32xbf16>
      %c0_125 = arith.constant 0 : index
      %c0_126 = arith.constant 0 : index
      %239 = vector.load %arg18[%c0_125, %c0_126] : memref<1x32xf32, #tpu.memory_space<vmem>>, vector<1x32xf32>
      %cst_127 = arith.constant dense<0.000000e+00> : vector<16xf32>
      %240 = vector.multi_reduction <add>, %222, %cst_127 [1] : vector<16x32xf32> to vector<16xf32>
      %241 = vector.shape_cast %240 : vector<16xf32> to vector<16x1xf32>
      %cst_128 = arith.constant 3.200000e+01 : f32
      %242 = vector.broadcast %cst_128 : f32 to vector<16x1xf32>
      %243 = arith.divf %241, %242 : vector<16x1xf32>
      %244 = vector.broadcast %243 : vector<16x1xf32> to vector<16x32xf32>
      %245 = arith.subf %222, %244 : vector<16x32xf32>
      %246 = arith.mulf %245, %245 : vector<16x32xf32>
      %cst_129 = arith.constant dense<0.000000e+00> : vector<16xf32>
      %247 = vector.multi_reduction <add>, %246, %cst_129 [1] : vector<16x32xf32> to vector<16xf32>
      %248 = vector.shape_cast %247 : vector<16xf32> to vector<16x1xf32>
      %cst_130 = arith.constant 3.200000e+01 : f32
      %249 = vector.broadcast %cst_130 : f32 to vector<16x1xf32>
      %250 = arith.divf %248, %249 : vector<16x1xf32>
      %251 = vector.broadcast %243 : vector<16x1xf32> to vector<16x32xf32>
      %252 = arith.subf %222, %251 : vector<16x32xf32>
      %cst_131 = arith.constant 9.99999974E-6 : f32
      %253 = vector.broadcast %cst_131 : f32 to vector<16x1xf32>
      %254 = arith.addf %250, %253 : vector<16x1xf32>
      %255 = math.rsqrt %254 : vector<16x1xf32>
      %256 = vector.broadcast %255 : vector<16x1xf32> to vector<16x32xf32>
      %257 = arith.mulf %252, %256 : vector<16x32xf32>
      %258 = vector.broadcast %225 : vector<1x32xf32> to vector<16x32xf32>
      %259 = arith.mulf %257, %258 : vector<16x32xf32>
      %260 = vector.broadcast %226 : vector<1x32xf32> to vector<16x32xf32>
      %261 = arith.addf %259, %260 : vector<16x32xf32>
      %cst_132 = arith.constant dense<0.000000e+00> : vector<32xf32>
      %262 = vector.multi_reduction <add>, %224, %cst_132 [1] : vector<32x64xf32> to vector<32xf32>
      %263 = vector.shape_cast %262 : vector<32xf32> to vector<32x1xf32>
      %cst_133 = arith.constant 6.400000e+01 : f32
      %264 = vector.broadcast %cst_133 : f32 to vector<32x1xf32>
      %265 = arith.divf %263, %264 : vector<32x1xf32>
      %266 = vector.broadcast %265 : vector<32x1xf32> to vector<32x64xf32>
      %267 = arith.subf %224, %266 : vector<32x64xf32>
      %268 = arith.mulf %267, %267 : vector<32x64xf32>
      %cst_134 = arith.constant dense<0.000000e+00> : vector<32xf32>
      %269 = vector.multi_reduction <add>, %268, %cst_134 [1] : vector<32x64xf32> to vector<32xf32>
      %270 = vector.shape_cast %269 : vector<32xf32> to vector<32x1xf32>
      %cst_135 = arith.constant 6.400000e+01 : f32
      %271 = vector.broadcast %cst_135 : f32 to vector<32x1xf32>
      %272 = arith.divf %270, %271 : vector<32x1xf32>
      %273 = vector.broadcast %265 : vector<32x1xf32> to vector<32x64xf32>
      %274 = arith.subf %224, %273 : vector<32x64xf32>
      %cst_136 = arith.constant 9.99999974E-6 : f32
      %275 = vector.broadcast %cst_136 : f32 to vector<32x1xf32>
      %276 = arith.addf %272, %275 : vector<32x1xf32>
      %277 = math.rsqrt %276 : vector<32x1xf32>
      %278 = vector.broadcast %277 : vector<32x1xf32> to vector<32x64xf32>
      %279 = arith.mulf %274, %278 : vector<32x64xf32>
      %280 = vector.broadcast %227 : vector<1x64xf32> to vector<32x64xf32>
      %281 = arith.mulf %279, %280 : vector<32x64xf32>
      %282 = vector.broadcast %228 : vector<1x64xf32> to vector<32x64xf32>
      %283 = arith.addf %281, %282 : vector<32x64xf32>
      %284 = arith.truncf %261 : vector<16x32xf32> to vector<16x32xbf16>
      %cst_137 = arith.constant dense<0.000000e+00> : vector<16x32xf32>
      %285 = tpu.matmul %284, %229, %cst_137 {dimension_numbers = #tpu.dot_dimension_numbers<[1], [0], [0], [1], [0, 0, 1, 1], [], []>} : vector<16x32xbf16>, vector<32x32xbf16>, vector<16x32xf32> -> vector<16x32xf32>
      %cst_138 = arith.constant 0.353553385 : f32
      %286 = vector.broadcast %cst_138 : f32 to vector<16x32xf32>
      %287 = arith.mulf %285, %286 : vector<16x32xf32>
      %288 = arith.truncf %283 : vector<32x64xf32> to vector<32x64xbf16>
      %cst_139 = arith.constant dense<0.000000e+00> : vector<32x32xf32>
      %289 = tpu.matmul %288, %230, %cst_139 {dimension_numbers = #tpu.dot_dimension_numbers<[1], [0], [0], [1], [0, 0, 1, 1], [], []>} : vector<32x64xbf16>, vector<64x32xbf16>, vector<32x32xf32> -> vector<32x32xf32>
      %290 = arith.truncf %283 : vector<32x64xf32> to vector<32x64xbf16>
      %cst_140 = arith.constant dense<0.000000e+00> : vector<32x32xf32>
      %291 = tpu.matmul %290, %231, %cst_140 {dimension_numbers = #tpu.dot_dimension_numbers<[1], [0], [0], [1], [0, 0, 1, 1], [], []>} : vector<32x64xbf16>, vector<64x32xbf16>, vector<32x32xf32> -> vector<32x32xf32>
      %292 = vector.shape_cast %287 : vector<16x32xf32> to vector<2x8x32xf32>
      %293 = vector.shape_cast %289 : vector<32x32xf32> to vector<2x16x32xf32>
      %294 = vector.shape_cast %291 : vector<32x32xf32> to vector<2x16x32xf32>
      %295 = vector.extract_strided_slice %292 {offsets = [0, 0, 0], sizes = [2, 8, 8], strides = [1, 1, 1]} : vector<2x8x32xf32> to vector<2x8x8xf32>
      %296 = arith.truncf %295 : vector<2x8x8xf32> to vector<2x8x8xbf16>
      %297 = vector.extract_strided_slice %293 {offsets = [0, 0, 0], sizes = [2, 16, 8], strides = [1, 1, 1]} : vector<2x16x32xf32> to vector<2x16x8xf32>
      %298 = arith.truncf %297 : vector<2x16x8xf32> to vector<2x16x8xbf16>
      %299 = vector.extract_strided_slice %294 {offsets = [0, 0, 0], sizes = [2, 16, 8], strides = [1, 1, 1]} : vector<2x16x32xf32> to vector<2x16x8xf32>
      %300 = arith.truncf %299 : vector<2x16x8xf32> to vector<2x16x8xbf16>
      "tpu.trace_start"() <{level = 10 : i32, message = "bqd,bkd->bqk"}> : () -> ()
      %cst_141 = arith.constant dense<0.000000e+00> : vector<2x8x16xf32>
      %301 = tpu.matmul %296, %298, %cst_141 {dimension_numbers = #tpu.dot_dimension_numbers<[2], [2], [1], [1], [0, 0, 0, 1, 1, 1], [0], [0]>} : vector<2x8x8xbf16>, vector<2x16x8xbf16>, vector<2x8x16xf32> -> vector<2x8x16xf32>
      "tpu.trace_stop"() : () -> ()
      %cst_142 = arith.constant dense<0xFF800000> : vector<2x8xf32>
      %302 = vector.multi_reduction <maximumf>, %301, %cst_142 [2] : vector<2x8x16xf32> to vector<2x8xf32>
      %303 = vector.shape_cast %302 : vector<2x8xf32> to vector<2x8x1xf32>
      %304 = vector.broadcast %303 : vector<2x8x1xf32> to vector<2x8x16xf32>
      %305 = arith.subf %301, %304 : vector<2x8x16xf32>
      %306 = math.exp %305 : vector<2x8x16xf32>
      %cst_143 = arith.constant dense<0.000000e+00> : vector<2x8xf32>
      %307 = vector.multi_reduction <add>, %306, %cst_143 [2] : vector<2x8x16xf32> to vector<2x8xf32>
      %308 = vector.shape_cast %307 : vector<2x8xf32> to vector<2x8x1xf32>
      %309 = tpu.reciprocal %308 {approx = true} : vector<2x8x1xf32> -> vector<2x8x1xf32>
      %310 = vector.broadcast %309 : vector<2x8x1xf32> to vector<2x8x16xf32>
      %311 = arith.mulf %306, %310 : vector<2x8x16xf32>
      %312 = arith.truncf %311 : vector<2x8x16xf32> to vector<2x8x16xbf16>
      "tpu.trace_start"() <{level = 10 : i32, message = "bqk,bkd->bqd"}> : () -> ()
      %cst_144 = arith.constant dense<0.000000e+00> : vector<2x8x8xf32>
      %313 = tpu.matmul %312, %300, %cst_144 {dimension_numbers = #tpu.dot_dimension_numbers<[2], [1], [1], [2], [0, 0, 0, 1, 1, 2], [0], [0]>} : vector<2x8x16xbf16>, vector<2x16x8xbf16>, vector<2x8x8xf32> -> vector<2x8x8xf32>
      "tpu.trace_stop"() : () -> ()
      %314 = vector.extract_strided_slice %292 {offsets = [0, 0, 8], sizes = [2, 8, 8], strides = [1, 1, 1]} : vector<2x8x32xf32> to vector<2x8x8xf32>
      %315 = arith.truncf %314 : vector<2x8x8xf32> to vector<2x8x8xbf16>
      %316 = vector.extract_strided_slice %293 {offsets = [0, 0, 8], sizes = [2, 16, 8], strides = [1, 1, 1]} : vector<2x16x32xf32> to vector<2x16x8xf32>
      %317 = arith.truncf %316 : vector<2x16x8xf32> to vector<2x16x8xbf16>
      %318 = vector.extract_strided_slice %294 {offsets = [0, 0, 8], sizes = [2, 16, 8], strides = [1, 1, 1]} : vector<2x16x32xf32> to vector<2x16x8xf32>
      %319 = arith.truncf %318 : vector<2x16x8xf32> to vector<2x16x8xbf16>
      "tpu.trace_start"() <{level = 10 : i32, message = "bqd,bkd->bqk"}> : () -> ()
      %cst_145 = arith.constant dense<0.000000e+00> : vector<2x8x16xf32>
      %320 = tpu.matmul %315, %317, %cst_145 {dimension_numbers = #tpu.dot_dimension_numbers<[2], [2], [1], [1], [0, 0, 0, 1, 1, 1], [0], [0]>} : vector<2x8x8xbf16>, vector<2x16x8xbf16>, vector<2x8x16xf32> -> vector<2x8x16xf32>
      "tpu.trace_stop"() : () -> ()
      %cst_146 = arith.constant dense<0xFF800000> : vector<2x8xf32>
      %321 = vector.multi_reduction <maximumf>, %320, %cst_146 [2] : vector<2x8x16xf32> to vector<2x8xf32>
      %322 = vector.shape_cast %321 : vector<2x8xf32> to vector<2x8x1xf32>
      %323 = vector.broadcast %322 : vector<2x8x1xf32> to vector<2x8x16xf32>
      %324 = arith.subf %320, %323 : vector<2x8x16xf32>
      %325 = math.exp %324 : vector<2x8x16xf32>
      %cst_147 = arith.constant dense<0.000000e+00> : vector<2x8xf32>
      %326 = vector.multi_reduction <add>, %325, %cst_147 [2] : vector<2x8x16xf32> to vector<2x8xf32>
      %327 = vector.shape_cast %326 : vector<2x8xf32> to vector<2x8x1xf32>
      %328 = tpu.reciprocal %327 {approx = true} : vector<2x8x1xf32> -> vector<2x8x1xf32>
      %329 = vector.broadcast %328 : vector<2x8x1xf32> to vector<2x8x16xf32>
      %330 = arith.mulf %325, %329 : vector<2x8x16xf32>
      %331 = arith.truncf %330 : vector<2x8x16xf32> to vector<2x8x16xbf16>
      "tpu.trace_start"() <{level = 10 : i32, message = "bqk,bkd->bqd"}> : () -> ()
      %cst_148 = arith.constant dense<0.000000e+00> : vector<2x8x8xf32>
      %332 = tpu.matmul %331, %319, %cst_148 {dimension_numbers = #tpu.dot_dimension_numbers<[2], [1], [1], [2], [0, 0, 0, 1, 1, 2], [0], [0]>} : vector<2x8x16xbf16>, vector<2x16x8xbf16>, vector<2x8x8xf32> -> vector<2x8x8xf32>
      "tpu.trace_stop"() : () -> ()
      %333 = vector.extract_strided_slice %292 {offsets = [0, 0, 16], sizes = [2, 8, 8], strides = [1, 1, 1]} : vector<2x8x32xf32> to vector<2x8x8xf32>
      %334 = arith.truncf %333 : vector<2x8x8xf32> to vector<2x8x8xbf16>
      %335 = vector.extract_strided_slice %293 {offsets = [0, 0, 16], sizes = [2, 16, 8], strides = [1, 1, 1]} : vector<2x16x32xf32> to vector<2x16x8xf32>
      %336 = arith.truncf %335 : vector<2x16x8xf32> to vector<2x16x8xbf16>
      %337 = vector.extract_strided_slice %294 {offsets = [0, 0, 16], sizes = [2, 16, 8], strides = [1, 1, 1]} : vector<2x16x32xf32> to vector<2x16x8xf32>
      %338 = arith.truncf %337 : vector<2x16x8xf32> to vector<2x16x8xbf16>
      "tpu.trace_start"() <{level = 10 : i32, message = "bqd,bkd->bqk"}> : () -> ()
      %cst_149 = arith.constant dense<0.000000e+00> : vector<2x8x16xf32>
      %339 = tpu.matmul %334, %336, %cst_149 {dimension_numbers = #tpu.dot_dimension_numbers<[2], [2], [1], [1], [0, 0, 0, 1, 1, 1], [0], [0]>} : vector<2x8x8xbf16>, vector<2x16x8xbf16>, vector<2x8x16xf32> -> vector<2x8x16xf32>
      "tpu.trace_stop"() : () -> ()
      %cst_150 = arith.constant dense<0xFF800000> : vector<2x8xf32>
      %340 = vector.multi_reduction <maximumf>, %339, %cst_150 [2] : vector<2x8x16xf32> to vector<2x8xf32>
      %341 = vector.shape_cast %340 : vector<2x8xf32> to vector<2x8x1xf32>
      %342 = vector.broadcast %341 : vector<2x8x1xf32> to vector<2x8x16xf32>
      %343 = arith.subf %339, %342 : vector<2x8x16xf32>
      %344 = math.exp %343 : vector<2x8x16xf32>
      %cst_151 = arith.constant dense<0.000000e+00> : vector<2x8xf32>
      %345 = vector.multi_reduction <add>, %344, %cst_151 [2] : vector<2x8x16xf32> to vector<2x8xf32>
      %346 = vector.shape_cast %345 : vector<2x8xf32> to vector<2x8x1xf32>
      %347 = tpu.reciprocal %346 {approx = true} : vector<2x8x1xf32> -> vector<2x8x1xf32>
      %348 = vector.broadcast %347 : vector<2x8x1xf32> to vector<2x8x16xf32>
      %349 = arith.mulf %344, %348 : vector<2x8x16xf32>
      %350 = arith.truncf %349 : vector<2x8x16xf32> to vector<2x8x16xbf16>
      "tpu.trace_start"() <{level = 10 : i32, message = "bqk,bkd->bqd"}> : () -> ()
      %cst_152 = arith.constant dense<0.000000e+00> : vector<2x8x8xf32>
      %351 = tpu.matmul %350, %338, %cst_152 {dimension_numbers = #tpu.dot_dimension_numbers<[2], [1], [1], [2], [0, 0, 0, 1, 1, 2], [0], [0]>} : vector<2x8x16xbf16>, vector<2x16x8xbf16>, vector<2x8x8xf32> -> vector<2x8x8xf32>
      "tpu.trace_stop"() : () -> ()
      %352 = vector.extract_strided_slice %292 {offsets = [0, 0, 24], sizes = [2, 8, 8], strides = [1, 1, 1]} : vector<2x8x32xf32> to vector<2x8x8xf32>
      %353 = arith.truncf %352 : vector<2x8x8xf32> to vector<2x8x8xbf16>
      %354 = vector.extract_strided_slice %293 {offsets = [0, 0, 24], sizes = [2, 16, 8], strides = [1, 1, 1]} : vector<2x16x32xf32> to vector<2x16x8xf32>
      %355 = arith.truncf %354 : vector<2x16x8xf32> to vector<2x16x8xbf16>
      %356 = vector.extract_strided_slice %294 {offsets = [0, 0, 24], sizes = [2, 16, 8], strides = [1, 1, 1]} : vector<2x16x32xf32> to vector<2x16x8xf32>
      %357 = arith.truncf %356 : vector<2x16x8xf32> to vector<2x16x8xbf16>
      "tpu.trace_start"() <{level = 10 : i32, message = "bqd,bkd->bqk"}> : () -> ()
      %cst_153 = arith.constant dense<0.000000e+00> : vector<2x8x16xf32>
      %358 = tpu.matmul %353, %355, %cst_153 {dimension_numbers = #tpu.dot_dimension_numbers<[2], [2], [1], [1], [0, 0, 0, 1, 1, 1], [0], [0]>} : vector<2x8x8xbf16>, vector<2x16x8xbf16>, vector<2x8x16xf32> -> vector<2x8x16xf32>
      "tpu.trace_stop"() : () -> ()
      %cst_154 = arith.constant dense<0xFF800000> : vector<2x8xf32>
      %359 = vector.multi_reduction <maximumf>, %358, %cst_154 [2] : vector<2x8x16xf32> to vector<2x8xf32>
      %360 = vector.shape_cast %359 : vector<2x8xf32> to vector<2x8x1xf32>
      %361 = vector.broadcast %360 : vector<2x8x1xf32> to vector<2x8x16xf32>
      %362 = arith.subf %358, %361 : vector<2x8x16xf32>
      %363 = math.exp %362 : vector<2x8x16xf32>
      %cst_155 = arith.constant dense<0.000000e+00> : vector<2x8xf32>
      %364 = vector.multi_reduction <add>, %363, %cst_155 [2] : vector<2x8x16xf32> to vector<2x8xf32>
      %365 = vector.shape_cast %364 : vector<2x8xf32> to vector<2x8x1xf32>
      %366 = tpu.reciprocal %365 {approx = true} : vector<2x8x1xf32> -> vector<2x8x1xf32>
      %367 = vector.broadcast %366 : vector<2x8x1xf32> to vector<2x8x16xf32>
      %368 = arith.mulf %363, %367 : vector<2x8x16xf32>
      %369 = arith.truncf %368 : vector<2x8x16xf32> to vector<2x8x16xbf16>
      "tpu.trace_start"() <{level = 10 : i32, message = "bqk,bkd->bqd"}> : () -> ()
      %cst_156 = arith.constant dense<0.000000e+00> : vector<2x8x8xf32>
      %370 = tpu.matmul %369, %357, %cst_156 {dimension_numbers = #tpu.dot_dimension_numbers<[2], [1], [1], [2], [0, 0, 0, 1, 1, 2], [0], [0]>} : vector<2x8x16xbf16>, vector<2x16x8xbf16>, vector<2x8x8xf32> -> vector<2x8x8xf32>
      "tpu.trace_stop"() : () -> ()
      %371 = tpu.concatenate %313, %332, %351, %370 in 2 : vector<2x8x8xf32>, vector<2x8x8xf32>, vector<2x8x8xf32>, vector<2x8x8xf32> -> vector<2x8x32xf32>
      %372 = vector.shape_cast %371 : vector<2x8x32xf32> to vector<16x32xf32>
      %373 = arith.truncf %372 : vector<16x32xf32> to vector<16x32xbf16>
      %cst_157 = arith.constant dense<0.000000e+00> : vector<16x32xf32>
      %374 = tpu.matmul %373, %232, %cst_157 {dimension_numbers = #tpu.dot_dimension_numbers<[1], [0], [0], [1], [0, 0, 1, 1], [], []>} : vector<16x32xbf16>, vector<32x32xbf16>, vector<16x32xf32> -> vector<16x32xf32>
      %375 = vector.broadcast %233 : vector<1x32xf32> to vector<16x32xf32>
      %376 = arith.addf %374, %375 : vector<16x32xf32>
      %377 = arith.addf %222, %376 : vector<16x32xf32>
      %cst_158 = arith.constant dense<0.000000e+00> : vector<16xf32>
      %378 = vector.multi_reduction <add>, %377, %cst_158 [1] : vector<16x32xf32> to vector<16xf32>
      %379 = vector.shape_cast %378 : vector<16xf32> to vector<16x1xf32>
      %cst_159 = arith.constant 3.200000e+01 : f32
      %380 = vector.broadcast %cst_159 : f32 to vector<16x1xf32>
      %381 = arith.divf %379, %380 : vector<16x1xf32>
      %382 = vector.broadcast %381 : vector<16x1xf32> to vector<16x32xf32>
      %383 = arith.subf %377, %382 : vector<16x32xf32>
      %384 = arith.mulf %383, %383 : vector<16x32xf32>
      %cst_160 = arith.constant dense<0.000000e+00> : vector<16xf32>
      %385 = vector.multi_reduction <add>, %384, %cst_160 [1] : vector<16x32xf32> to vector<16xf32>
      %386 = vector.shape_cast %385 : vector<16xf32> to vector<16x1xf32>
      %cst_161 = arith.constant 3.200000e+01 : f32
      %387 = vector.broadcast %cst_161 : f32 to vector<16x1xf32>
      %388 = arith.divf %386, %387 : vector<16x1xf32>
      %389 = vector.broadcast %381 : vector<16x1xf32> to vector<16x32xf32>
      %390 = arith.subf %377, %389 : vector<16x32xf32>
      %cst_162 = arith.constant 9.99999974E-6 : f32
      %391 = vector.broadcast %cst_162 : f32 to vector<16x1xf32>
      %392 = arith.addf %388, %391 : vector<16x1xf32>
      %393 = math.rsqrt %392 : vector<16x1xf32>
      %394 = vector.broadcast %393 : vector<16x1xf32> to vector<16x32xf32>
      %395 = arith.mulf %390, %394 : vector<16x32xf32>
      %396 = vector.broadcast %234 : vector<1x32xf32> to vector<16x32xf32>
      %397 = arith.mulf %395, %396 : vector<16x32xf32>
      %398 = vector.broadcast %235 : vector<1x32xf32> to vector<16x32xf32>
      %399 = arith.addf %397, %398 : vector<16x32xf32>
      %400 = arith.truncf %399 : vector<16x32xf32> to vector<16x32xbf16>
      %cst_163 = arith.constant dense<0.000000e+00> : vector<16x128xf32>
      %401 = tpu.matmul %400, %236, %cst_163 {dimension_numbers = #tpu.dot_dimension_numbers<[1], [0], [0], [1], [0, 0, 1, 1], [], []>} : vector<16x32xbf16>, vector<32x128xbf16>, vector<16x128xf32> -> vector<16x128xf32>
      %402 = vector.broadcast %237 : vector<1x128xf32> to vector<16x128xf32>
      %403 = arith.addf %401, %402 : vector<16x128xf32>
      %cst_164 = arith.constant 5.000000e-01 : f32
      %404 = vector.broadcast %cst_164 : f32 to vector<16x128xf32>
      %405 = arith.mulf %404, %403 : vector<16x128xf32>
      %cst_165 = arith.constant 0.707106769 : f32
      %406 = vector.broadcast %cst_165 : f32 to vector<16x128xf32>
      %407 = arith.mulf %403, %406 : vector<16x128xf32>
      %408 = math.absf %407 : vector<16x128xf32>
      %cst_166 = arith.constant 0.327591091 : f32
      %409 = vector.broadcast %cst_166 : f32 to vector<16x128xf32>
      %410 = arith.mulf %409, %408 : vector<16x128xf32>
      %cst_167 = arith.constant 1.000000e+00 : f32
      %411 = vector.broadcast %cst_167 : f32 to vector<16x128xf32>
      %412 = arith.addf %411, %410 : vector<16x128xf32>
      %cst_168 = arith.constant 1.000000e+00 : f32
      %413 = vector.broadcast %cst_168 : f32 to vector<16x128xf32>
      %414 = arith.divf %413, %412 : vector<16x128xf32>
      %cst_169 = arith.constant 1.06140542 : f32
      %415 = vector.broadcast %cst_169 : f32 to vector<16x128xf32>
      %416 = arith.mulf %415, %414 : vector<16x128xf32>
      %cst_170 = arith.constant -1.45315206 : f32
      %417 = vector.broadcast %cst_170 : f32 to vector<16x128xf32>
      %418 = arith.addf %416, %417 : vector<16x128xf32>
      %419 = arith.mulf %418, %414 : vector<16x128xf32>
      %cst_171 = arith.constant 1.42141378 : f32
      %420 = vector.broadcast %cst_171 : f32 to vector<16x128xf32>
      %421 = arith.addf %419, %420 : vector<16x128xf32>
      %422 = arith.mulf %421, %414 : vector<16x128xf32>
      %cst_172 = arith.constant -0.284496725 : f32
      %423 = vector.broadcast %cst_172 : f32 to vector<16x128xf32>
      %424 = arith.addf %422, %423 : vector<16x128xf32>
      %425 = arith.mulf %424, %414 : vector<16x128xf32>
      %cst_173 = arith.constant 0.254829586 : f32
      %426 = vector.broadcast %cst_173 : f32 to vector<16x128xf32>
      %427 = arith.addf %425, %426 : vector<16x128xf32>
      %428 = arith.mulf %427, %414 : vector<16x128xf32>
      %cst_174 = arith.constant 0.000000e+00 : f32
      %429 = vector.broadcast %cst_174 : f32 to vector<16x128xf32>
      %430 = arith.subf %429, %408 : vector<16x128xf32>
      %431 = arith.mulf %430, %408 : vector<16x128xf32>
      %432 = math.exp %431 : vector<16x128xf32>
      %433 = arith.mulf %428, %432 : vector<16x128xf32>
      %cst_175 = arith.constant 1.000000e+00 : f32
      %434 = vector.broadcast %cst_175 : f32 to vector<16x128xf32>
      %435 = arith.subf %434, %433 : vector<16x128xf32>
      %cst_176 = arith.constant 0.000000e+00 : f32
      %436 = vector.broadcast %cst_176 : f32 to vector<16x128xf32>
      %437 = arith.cmpf olt, %407, %436 : vector<16x128xf32>
      %cst_177 = arith.constant 0.000000e+00 : f32
      %438 = vector.broadcast %cst_177 : f32 to vector<16x128xf32>
      %439 = arith.subf %438, %435 : vector<16x128xf32>
      %440 = arith.select %437, %439, %435 : vector<16x128xi1>, vector<16x128xf32>
      %cst_178 = arith.constant 1.000000e+00 : f32
      %441 = vector.broadcast %cst_178 : f32 to vector<16x128xf32>
      %442 = arith.addf %441, %440 : vector<16x128xf32>
      %443 = arith.mulf %405, %442 : vector<16x128xf32>
      %444 = arith.truncf %443 : vector<16x128xf32> to vector<16x128xbf16>
      %cst_179 = arith.constant dense<0.000000e+00> : vector<16x32xf32>
      %445 = tpu.matmul %444, %238, %cst_179 {dimension_numbers = #tpu.dot_dimension_numbers<[1], [0], [0], [1], [0, 0, 1, 1], [], []>} : vector<16x128xbf16>, vector<128x32xbf16>, vector<16x32xf32> -> vector<16x32xf32>
      %446 = vector.broadcast %239 : vector<1x32xf32> to vector<16x32xf32>
      %447 = arith.addf %445, %446 : vector<16x32xf32>
      %448 = arith.addf %377, %447 : vector<16x32xf32>
      %c0_180 = arith.constant 0 : index
      %c0_181 = arith.constant 0 : index
      %449 = vector.load %arg51[%c0_180, %c0_181] : memref<16x32xf32, #tpu.memory_space<vmem>>, vector<16x32xf32>
      tpu.vector_store %arg51[%c0_180, %c0_181], %448 {strides = array<i32>} : memref<16x32xf32, #tpu.memory_space<vmem>>, vector<16x32xf32>,
    } else {
    }
    %c0 = arith.constant 0 : index
    %c0_1 = arith.constant 0 : index
    %3 = vector.load %arg51[%c0, %c0_1] : memref<16x32xf32, #tpu.memory_space<vmem>>, vector<16x32xf32>
    %c0_2 = arith.constant 0 : index
    %c0_3 = arith.constant 0 : index
    %c0_4 = arith.constant 0 : index
    %4 = vector.load %arg19[%c0_2, %c0_3, %c0_4] : memref<1x1x32xf32, #tpu.memory_space<vmem>>, vector<1x1x32xf32>
    %5 = vector.shape_cast %4 : vector<1x1x32xf32> to vector<1x32xf32>
    %c0_5 = arith.constant 0 : index
    %c0_6 = arith.constant 0 : index
    %c0_7 = arith.constant 0 : index
    %6 = vector.load %arg20[%c0_5, %c0_6, %c0_7] : memref<1x1x32xf32, #tpu.memory_space<vmem>>, vector<1x1x32xf32>
    %7 = vector.shape_cast %6 : vector<1x1x32xf32> to vector<1x32xf32>
    %c0_8 = arith.constant 0 : index
    %c0_9 = arith.constant 0 : index
    %c0_10 = arith.constant 0 : index
    %8 = vector.load %arg23[%c0_8, %c0_9, %c0_10] : memref<1x32x32xbf16, #tpu.memory_space<vmem>>, vector<1x32x32xbf16>
    %9 = vector.shape_cast %8 : vector<1x32x32xbf16> to vector<32x32xbf16>
    %c0_11 = arith.constant 0 : index
    %c0_12 = arith.constant 0 : index
    %c0_13 = arith.constant 0 : index
    %10 = vector.load %arg24[%c0_11, %c0_12, %c0_13] : memref<1x32x32xbf16, #tpu.memory_space<vmem>>, vector<1x32x32xbf16>
    %11 = vector.shape_cast %10 : vector<1x32x32xbf16> to vector<32x32xbf16>
    %c0_14 = arith.constant 0 : index
    %c0_15 = arith.constant 0 : index
    %c0_16 = arith.constant 0 : index
    %12 = vector.load %arg25[%c0_14, %c0_15, %c0_16] : memref<1x32x32xbf16, #tpu.memory_space<vmem>>, vector<1x32x32xbf16>
    %13 = vector.shape_cast %12 : vector<1x32x32xbf16> to vector<32x32xbf16>
    %c0_17 = arith.constant 0 : index
    %c0_18 = arith.constant 0 : index
    %c0_19 = arith.constant 0 : index
    %14 = vector.load %arg26[%c0_17, %c0_18, %c0_19] : memref<1x32x32xbf16, #tpu.memory_space<vmem>>, vector<1x32x32xbf16>
    %15 = vector.shape_cast %14 : vector<1x32x32xbf16> to vector<32x32xbf16>
    %c0_20 = arith.constant 0 : index
    %c0_21 = arith.constant 0 : index
    %c0_22 = arith.constant 0 : index
    %16 = vector.load %arg27[%c0_20, %c0_21, %c0_22] : memref<1x1x32xf32, #tpu.memory_space<vmem>>, vector<1x1x32xf32>
    %17 = vector.shape_cast %16 : vector<1x1x32xf32> to vector<1x32xf32>
    %c0_23 = arith.constant 0 : index
    %c0_24 = arith.constant 0 : index
    %c0_25 = arith.constant 0 : index
    %18 = vector.load %arg28[%c0_23, %c0_24, %c0_25] : memref<1x1x32xf32, #tpu.memory_space<vmem>>, vector<1x1x32xf32>
    %19 = vector.shape_cast %18 : vector<1x1x32xf32> to vector<1x32xf32>
    %c0_26 = arith.constant 0 : index
    %c0_27 = arith.constant 0 : index
    %c0_28 = arith.constant 0 : index
    %20 = vector.load %arg29[%c0_26, %c0_27, %c0_28] : memref<1x1x32xf32, #tpu.memory_space<vmem>>, vector<1x1x32xf32>
    %21 = vector.shape_cast %20 : vector<1x1x32xf32> to vector<1x32xf32>
    %c0_29 = arith.constant 0 : index
    %c0_30 = arith.constant 0 : index
    %c0_31 = arith.constant 0 : index
    %22 = vector.load %arg30[%c0_29, %c0_30, %c0_31] : memref<1x32x128xbf16, #tpu.memory_space<vmem>>, vector<1x32x128xbf16>
    %23 = vector.shape_cast %22 : vector<1x32x128xbf16> to vector<32x128xbf16>
    %c0_32 = arith.constant 0 : index
    %c0_33 = arith.constant 0 : index
    %c0_34 = arith.constant 0 : index
    %24 = vector.load %arg31[%c0_32, %c0_33, %c0_34] : memref<1x1x128xf32, #tpu.memory_space<vmem>>, vector<1x1x128xf32>
    %25 = vector.shape_cast %24 : vector<1x1x128xf32> to vector<1x128xf32>
    %c0_35 = arith.constant 0 : index
    %c0_36 = arith.constant 0 : index
    %c0_37 = arith.constant 0 : index
    %26 = vector.load %arg32[%c0_35, %c0_36, %c0_37] : memref<1x128x32xbf16, #tpu.memory_space<vmem>>, vector<1x128x32xbf16>
    %27 = vector.shape_cast %26 : vector<1x128x32xbf16> to vector<128x32xbf16>
    %c0_38 = arith.constant 0 : index
    %c0_39 = arith.constant 0 : index
    %c0_40 = arith.constant 0 : index
    %28 = vector.load %arg33[%c0_38, %c0_39, %c0_40] : memref<1x1x32xf32, #tpu.memory_space<vmem>>, vector<1x1x32xf32>
    %29 = vector.shape_cast %28 : vector<1x1x32xf32> to vector<1x32xf32>
    %cst = arith.constant dense<0.000000e+00> : vector<16xf32>
    %30 = vector.multi_reduction <add>, %3, %cst [1] : vector<16x32xf32> to vector<16xf32>
    %31 = vector.shape_cast %30 : vector<16xf32> to vector<16x1xf32>
    %cst_41 = arith.constant 3.200000e+01 : f32
    %32 = vector.broadcast %cst_41 : f32 to vector<16x1xf32>
    %33 = arith.divf %31, %32 : vector<16x1xf32>
    %34 = vector.broadcast %33 : vector<16x1xf32> to vector<16x32xf32>
    %35 = arith.subf %3, %34 : vector<16x32xf32>
    %36 = arith.mulf %35, %35 : vector<16x32xf32>
    %cst_42 = arith.constant dense<0.000000e+00> : vector<16xf32>
    %37 = vector.multi_reduction <add>, %36, %cst_42 [1] : vector<16x32xf32> to vector<16xf32>
    %38 = vector.shape_cast %37 : vector<16xf32> to vector<16x1xf32>
    %cst_43 = arith.constant 3.200000e+01 : f32
    %39 = vector.broadcast %cst_43 : f32 to vector<16x1xf32>
    %40 = arith.divf %38, %39 : vector<16x1xf32>
    %41 = vector.broadcast %33 : vector<16x1xf32> to vector<16x32xf32>
    %42 = arith.subf %3, %41 : vector<16x32xf32>
    %cst_44 = arith.constant 9.99999974E-6 : f32
    %43 = vector.broadcast %cst_44 : f32 to vector<16x1xf32>
    %44 = arith.addf %40, %43 : vector<16x1xf32>
    %45 = math.rsqrt %44 : vector<16x1xf32>
    %46 = vector.broadcast %45 : vector<16x1xf32> to vector<16x32xf32>
    %47 = arith.mulf %42, %46 : vector<16x32xf32>
    %48 = vector.broadcast %5 : vector<1x32xf32> to vector<16x32xf32>
    %49 = arith.mulf %47, %48 : vector<16x32xf32>
    %50 = vector.broadcast %7 : vector<1x32xf32> to vector<16x32xf32>
    %51 = arith.addf %49, %50 : vector<16x32xf32>
    %52 = arith.truncf %51 : vector<16x32xf32> to vector<16x32xbf16>
    %cst_45 = arith.constant dense<0.000000e+00> : vector<16x32xf32>
    %53 = tpu.matmul %52, %9, %cst_45 {dimension_numbers = #tpu.dot_dimension_numbers<[1], [0], [0], [1], [0, 0, 1, 1], [], []>} : vector<16x32xbf16>, vector<32x32xbf16>, vector<16x32xf32> -> vector<16x32xf32>
    %cst_46 = arith.constant 0.353553385 : f32
    %54 = vector.broadcast %cst_46 : f32 to vector<16x32xf32>
    %55 = arith.mulf %53, %54 : vector<16x32xf32>
    %56 = arith.truncf %51 : vector<16x32xf32> to vector<16x32xbf16>
    %cst_47 = arith.constant dense<0.000000e+00> : vector<16x32xf32>
    %57 = tpu.matmul %56, %11, %cst_47 {dimension_numbers = #tpu.dot_dimension_numbers<[1], [0], [0], [1], [0, 0, 1, 1], [], []>} : vector<16x32xbf16>, vector<32x32xbf16>, vector<16x32xf32> -> vector<16x32xf32>
    %58 = arith.truncf %51 : vector<16x32xf32> to vector<16x32xbf16>
    %cst_48 = arith.constant dense<0.000000e+00> : vector<16x32xf32>
    %59 = tpu.matmul %58, %13, %cst_48 {dimension_numbers = #tpu.dot_dimension_numbers<[1], [0], [0], [1], [0, 0, 1, 1], [], []>} : vector<16x32xbf16>, vector<32x32xbf16>, vector<16x32xf32> -> vector<16x32xf32>
    %60 = vector.shape_cast %55 : vector<16x32xf32> to vector<2x8x32xf32>
    %61 = vector.shape_cast %57 : vector<16x32xf32> to vector<2x8x32xf32>
    %62 = vector.shape_cast %59 : vector<16x32xf32> to vector<2x8x32xf32>
    %63 = vector.extract_strided_slice %60 {offsets = [0, 0, 0], sizes = [2, 8, 8], strides = [1, 1, 1]} : vector<2x8x32xf32> to vector<2x8x8xf32>
    %64 = arith.truncf %63 : vector<2x8x8xf32> to vector<2x8x8xbf16>
    %65 = vector.extract_strided_slice %61 {offsets = [0, 0, 0], sizes = [2, 8, 8], strides = [1, 1, 1]} : vector<2x8x32xf32> to vector<2x8x8xf32>
    %66 = arith.truncf %65 : vector<2x8x8xf32> to vector<2x8x8xbf16>
    %67 = vector.extract_strided_slice %62 {offsets = [0, 0, 0], sizes = [2, 8, 8], strides = [1, 1, 1]} : vector<2x8x32xf32> to vector<2x8x8xf32>
    %68 = arith.truncf %67 : vector<2x8x8xf32> to vector<2x8x8xbf16>
    "tpu.trace_start"() <{level = 10 : i32, message = "bqd,bkd->bqk"}> : () -> ()
    %cst_49 = arith.constant dense<0.000000e+00> : vector<2x8x8xf32>
    %69 = tpu.matmul %64, %66, %cst_49 {dimension_numbers = #tpu.dot_dimension_numbers<[2], [2], [1], [1], [0, 0, 0, 1, 1, 1], [0], [0]>} : vector<2x8x8xbf16>, vector<2x8x8xbf16>, vector<2x8x8xf32> -> vector<2x8x8xf32>
    "tpu.trace_stop"() : () -> ()
    %cst_50 = arith.constant dense<0xFF800000> : vector<2x8xf32>
    %70 = vector.multi_reduction <maximumf>, %69, %cst_50 [2] : vector<2x8x8xf32> to vector<2x8xf32>
    %71 = vector.shape_cast %70 : vector<2x8xf32> to vector<2x8x1xf32>
    %72 = vector.broadcast %71 : vector<2x8x1xf32> to vector<2x8x8xf32>
    %73 = arith.subf %69, %72 : vector<2x8x8xf32>
    %74 = math.exp %73 : vector<2x8x8xf32>
    %cst_51 = arith.constant dense<0.000000e+00> : vector<2x8xf32>
    %75 = vector.multi_reduction <add>, %74, %cst_51 [2] : vector<2x8x8xf32> to vector<2x8xf32>
    %76 = vector.shape_cast %75 : vector<2x8xf32> to vector<2x8x1xf32>
    %77 = tpu.reciprocal %76 {approx = true} : vector<2x8x1xf32> -> vector<2x8x1xf32>
    %78 = vector.broadcast %77 : vector<2x8x1xf32> to vector<2x8x8xf32>
    %79 = arith.mulf %74, %78 : vector<2x8x8xf32>
    %80 = arith.truncf %79 : vector<2x8x8xf32> to vector<2x8x8xbf16>
    "tpu.trace_start"() <{level = 10 : i32, message = "bqk,bkd->bqd"}> : () -> ()
    %cst_52 = arith.constant dense<0.000000e+00> : vector<2x8x8xf32>
    %81 = tpu.matmul %80, %68, %cst_52 {dimension_numbers = #tpu.dot_dimension_numbers<[2], [1], [1], [2], [0, 0, 0, 1, 1, 2], [0], [0]>} : vector<2x8x8xbf16>, vector<2x8x8xbf16>, vector<2x8x8xf32> -> vector<2x8x8xf32>
    "tpu.trace_stop"() : () -> ()
    %82 = vector.extract_strided_slice %60 {offsets = [0, 0, 8], sizes = [2, 8, 8], strides = [1, 1, 1]} : vector<2x8x32xf32> to vector<2x8x8xf32>
    %83 = arith.truncf %82 : vector<2x8x8xf32> to vector<2x8x8xbf16>
    %84 = vector.extract_strided_slice %61 {offsets = [0, 0, 8], sizes = [2, 8, 8], strides = [1, 1, 1]} : vector<2x8x32xf32> to vector<2x8x8xf32>
    %85 = arith.truncf %84 : vector<2x8x8xf32> to vector<2x8x8xbf16>
    %86 = vector.extract_strided_slice %62 {offsets = [0, 0, 8], sizes = [2, 8, 8], strides = [1, 1, 1]} : vector<2x8x32xf32> to vector<2x8x8xf32>
    %87 = arith.truncf %86 : vector<2x8x8xf32> to vector<2x8x8xbf16>
    "tpu.trace_start"() <{level = 10 : i32, message = "bqd,bkd->bqk"}> : () -> ()
    %cst_53 = arith.constant dense<0.000000e+00> : vector<2x8x8xf32>
    %88 = tpu.matmul %83, %85, %cst_53 {dimension_numbers = #tpu.dot_dimension_numbers<[2], [2], [1], [1], [0, 0, 0, 1, 1, 1], [0], [0]>} : vector<2x8x8xbf16>, vector<2x8x8xbf16>, vector<2x8x8xf32> -> vector<2x8x8xf32>
    "tpu.trace_stop"() : () -> ()
    %cst_54 = arith.constant dense<0xFF800000> : vector<2x8xf32>
    %89 = vector.multi_reduction <maximumf>, %88, %cst_54 [2] : vector<2x8x8xf32> to vector<2x8xf32>
    %90 = vector.shape_cast %89 : vector<2x8xf32> to vector<2x8x1xf32>
    %91 = vector.broadcast %90 : vector<2x8x1xf32> to vector<2x8x8xf32>
    %92 = arith.subf %88, %91 : vector<2x8x8xf32>
    %93 = math.exp %92 : vector<2x8x8xf32>
    %cst_55 = arith.constant dense<0.000000e+00> : vector<2x8xf32>
    %94 = vector.multi_reduction <add>, %93, %cst_55 [2] : vector<2x8x8xf32> to vector<2x8xf32>
    %95 = vector.shape_cast %94 : vector<2x8xf32> to vector<2x8x1xf32>
    %96 = tpu.reciprocal %95 {approx = true} : vector<2x8x1xf32> -> vector<2x8x1xf32>
    %97 = vector.broadcast %96 : vector<2x8x1xf32> to vector<2x8x8xf32>
    %98 = arith.mulf %93, %97 : vector<2x8x8xf32>
    %99 = arith.truncf %98 : vector<2x8x8xf32> to vector<2x8x8xbf16>
    "tpu.trace_start"() <{level = 10 : i32, message = "bqk,bkd->bqd"}> : () -> ()
    %cst_56 = arith.constant dense<0.000000e+00> : vector<2x8x8xf32>
    %100 = tpu.matmul %99, %87, %cst_56 {dimension_numbers = #tpu.dot_dimension_numbers<[2], [1], [1], [2], [0, 0, 0, 1, 1, 2], [0], [0]>} : vector<2x8x8xbf16>, vector<2x8x8xbf16>, vector<2x8x8xf32> -> vector<2x8x8xf32>
    "tpu.trace_stop"() : () -> ()
    %101 = vector.extract_strided_slice %60 {offsets = [0, 0, 16], sizes = [2, 8, 8], strides = [1, 1, 1]} : vector<2x8x32xf32> to vector<2x8x8xf32>
    %102 = arith.truncf %101 : vector<2x8x8xf32> to vector<2x8x8xbf16>
    %103 = vector.extract_strided_slice %61 {offsets = [0, 0, 16], sizes = [2, 8, 8], strides = [1, 1, 1]} : vector<2x8x32xf32> to vector<2x8x8xf32>
    %104 = arith.truncf %103 : vector<2x8x8xf32> to vector<2x8x8xbf16>
    %105 = vector.extract_strided_slice %62 {offsets = [0, 0, 16], sizes = [2, 8, 8], strides = [1, 1, 1]} : vector<2x8x32xf32> to vector<2x8x8xf32>
    %106 = arith.truncf %105 : vector<2x8x8xf32> to vector<2x8x8xbf16>
    "tpu.trace_start"() <{level = 10 : i32, message = "bqd,bkd->bqk"}> : () -> ()
    %cst_57 = arith.constant dense<0.000000e+00> : vector<2x8x8xf32>
    %107 = tpu.matmul %102, %104, %cst_57 {dimension_numbers = #tpu.dot_dimension_numbers<[2], [2], [1], [1], [0, 0, 0, 1, 1, 1], [0], [0]>} : vector<2x8x8xbf16>, vector<2x8x8xbf16>, vector<2x8x8xf32> -> vector<2x8x8xf32>
    "tpu.trace_stop"() : () -> ()
    %cst_58 = arith.constant dense<0xFF800000> : vector<2x8xf32>
    %108 = vector.multi_reduction <maximumf>, %107, %cst_58 [2] : vector<2x8x8xf32> to vector<2x8xf32>
    %109 = vector.shape_cast %108 : vector<2x8xf32> to vector<2x8x1xf32>
    %110 = vector.broadcast %109 : vector<2x8x1xf32> to vector<2x8x8xf32>
    %111 = arith.subf %107, %110 : vector<2x8x8xf32>
    %112 = math.exp %111 : vector<2x8x8xf32>
    %cst_59 = arith.constant dense<0.000000e+00> : vector<2x8xf32>
    %113 = vector.multi_reduction <add>, %112, %cst_59 [2] : vector<2x8x8xf32> to vector<2x8xf32>
    %114 = vector.shape_cast %113 : vector<2x8xf32> to vector<2x8x1xf32>
    %115 = tpu.reciprocal %114 {approx = true} : vector<2x8x1xf32> -> vector<2x8x1xf32>
    %116 = vector.broadcast %115 : vector<2x8x1xf32> to vector<2x8x8xf32>
    %117 = arith.mulf %112, %116 : vector<2x8x8xf32>
    %118 = arith.truncf %117 : vector<2x8x8xf32> to vector<2x8x8xbf16>
    "tpu.trace_start"() <{level = 10 : i32, message = "bqk,bkd->bqd"}> : () -> ()
    %cst_60 = arith.constant dense<0.000000e+00> : vector<2x8x8xf32>
    %119 = tpu.matmul %118, %106, %cst_60 {dimension_numbers = #tpu.dot_dimension_numbers<[2], [1], [1], [2], [0, 0, 0, 1, 1, 2], [0], [0]>} : vector<2x8x8xbf16>, vector<2x8x8xbf16>, vector<2x8x8xf32> -> vector<2x8x8xf32>
    "tpu.trace_stop"() : () -> ()
    %120 = vector.extract_strided_slice %60 {offsets = [0, 0, 24], sizes = [2, 8, 8], strides = [1, 1, 1]} : vector<2x8x32xf32> to vector<2x8x8xf32>
    %121 = arith.truncf %120 : vector<2x8x8xf32> to vector<2x8x8xbf16>
    %122 = vector.extract_strided_slice %61 {offsets = [0, 0, 24], sizes = [2, 8, 8], strides = [1, 1, 1]} : vector<2x8x32xf32> to vector<2x8x8xf32>
    %123 = arith.truncf %122 : vector<2x8x8xf32> to vector<2x8x8xbf16>
    %124 = vector.extract_strided_slice %62 {offsets = [0, 0, 24], sizes = [2, 8, 8], strides = [1, 1, 1]} : vector<2x8x32xf32> to vector<2x8x8xf32>
    %125 = arith.truncf %124 : vector<2x8x8xf32> to vector<2x8x8xbf16>
    "tpu.trace_start"() <{level = 10 : i32, message = "bqd,bkd->bqk"}> : () -> ()
    %cst_61 = arith.constant dense<0.000000e+00> : vector<2x8x8xf32>
    %126 = tpu.matmul %121, %123, %cst_61 {dimension_numbers = #tpu.dot_dimension_numbers<[2], [2], [1], [1], [0, 0, 0, 1, 1, 1], [0], [0]>} : vector<2x8x8xbf16>, vector<2x8x8xbf16>, vector<2x8x8xf32> -> vector<2x8x8xf32>
    "tpu.trace_stop"() : () -> ()
    %cst_62 = arith.constant dense<0xFF800000> : vector<2x8xf32>
    %127 = vector.multi_reduction <maximumf>, %126, %cst_62 [2] : vector<2x8x8xf32> to vector<2x8xf32>
    %128 = vector.shape_cast %127 : vector<2x8xf32> to vector<2x8x1xf32>
    %129 = vector.broadcast %128 : vector<2x8x1xf32> to vector<2x8x8xf32>
    %130 = arith.subf %126, %129 : vector<2x8x8xf32>
    %131 = math.exp %130 : vector<2x8x8xf32>
    %cst_63 = arith.constant dense<0.000000e+00> : vector<2x8xf32>
    %132 = vector.multi_reduction <add>, %131, %cst_63 [2] : vector<2x8x8xf32> to vector<2x8xf32>
    %133 = vector.shape_cast %132 : vector<2x8xf32> to vector<2x8x1xf32>
    %134 = tpu.reciprocal %133 {approx = true} : vector<2x8x1xf32> -> vector<2x8x1xf32>
    %135 = vector.broadcast %134 : vector<2x8x1xf32> to vector<2x8x8xf32>
    %136 = arith.mulf %131, %135 : vector<2x8x8xf32>
    %137 = arith.truncf %136 : vector<2x8x8xf32> to vector<2x8x8xbf16>
    "tpu.trace_start"() <{level = 10 : i32, message = "bqk,bkd->bqd"}> : () -> ()
    %cst_64 = arith.constant dense<0.000000e+00> : vector<2x8x8xf32>
    %138 = tpu.matmul %137, %125, %cst_64 {dimension_numbers = #tpu.dot_dimension_numbers<[2], [1], [1], [2], [0, 0, 0, 1, 1, 2], [0], [0]>} : vector<2x8x8xbf16>, vector<2x8x8xbf16>, vector<2x8x8xf32> -> vector<2x8x8xf32>
    "tpu.trace_stop"() : () -> ()
    %139 = tpu.concatenate %81, %100, %119, %138 in 2 : vector<2x8x8xf32>, vector<2x8x8xf32>, vector<2x8x8xf32>, vector<2x8x8xf32> -> vector<2x8x32xf32>
    %140 = vector.shape_cast %139 : vector<2x8x32xf32> to vector<16x32xf32>
    %141 = arith.truncf %140 : vector<16x32xf32> to vector<16x32xbf16>
    %cst_65 = arith.constant dense<0.000000e+00> : vector<16x32xf32>
    %142 = tpu.matmul %141, %15, %cst_65 {dimension_numbers = #tpu.dot_dimension_numbers<[1], [0], [0], [1], [0, 0, 1, 1], [], []>} : vector<16x32xbf16>, vector<32x32xbf16>, vector<16x32xf32> -> vector<16x32xf32>
    %143 = vector.broadcast %17 : vector<1x32xf32> to vector<16x32xf32>
    %144 = arith.addf %142, %143 : vector<16x32xf32>
    %145 = arith.addf %3, %144 : vector<16x32xf32>
    %cst_66 = arith.constant dense<0.000000e+00> : vector<16xf32>
    %146 = vector.multi_reduction <add>, %145, %cst_66 [1] : vector<16x32xf32> to vector<16xf32>
    %147 = vector.shape_cast %146 : vector<16xf32> to vector<16x1xf32>
    %cst_67 = arith.constant 3.200000e+01 : f32
    %148 = vector.broadcast %cst_67 : f32 to vector<16x1xf32>
    %149 = arith.divf %147, %148 : vector<16x1xf32>
    %150 = vector.broadcast %149 : vector<16x1xf32> to vector<16x32xf32>
    %151 = arith.subf %145, %150 : vector<16x32xf32>
    %152 = arith.mulf %151, %151 : vector<16x32xf32>
    %cst_68 = arith.constant dense<0.000000e+00> : vector<16xf32>
    %153 = vector.multi_reduction <add>, %152, %cst_68 [1] : vector<16x32xf32> to vector<16xf32>
    %154 = vector.shape_cast %153 : vector<16xf32> to vector<16x1xf32>
    %cst_69 = arith.constant 3.200000e+01 : f32
    %155 = vector.broadcast %cst_69 : f32 to vector<16x1xf32>
    %156 = arith.divf %154, %155 : vector<16x1xf32>
    %157 = vector.broadcast %149 : vector<16x1xf32> to vector<16x32xf32>
    %158 = arith.subf %145, %157 : vector<16x32xf32>
    %cst_70 = arith.constant 9.99999974E-6 : f32
    %159 = vector.broadcast %cst_70 : f32 to vector<16x1xf32>
    %160 = arith.addf %156, %159 : vector<16x1xf32>
    %161 = math.rsqrt %160 : vector<16x1xf32>
    %162 = vector.broadcast %161 : vector<16x1xf32> to vector<16x32xf32>
    %163 = arith.mulf %158, %162 : vector<16x32xf32>
    %164 = vector.broadcast %19 : vector<1x32xf32> to vector<16x32xf32>
    %165 = arith.mulf %163, %164 : vector<16x32xf32>
    %166 = vector.broadcast %21 : vector<1x32xf32> to vector<16x32xf32>
    %167 = arith.addf %165, %166 : vector<16x32xf32>
    %168 = arith.truncf %167 : vector<16x32xf32> to vector<16x32xbf16>
    %cst_71 = arith.constant dense<0.000000e+00> : vector<16x128xf32>
    %169 = tpu.matmul %168, %23, %cst_71 {dimension_numbers = #tpu.dot_dimension_numbers<[1], [0], [0], [1], [0, 0, 1, 1], [], []>} : vector<16x32xbf16>, vector<32x128xbf16>, vector<16x128xf32> -> vector<16x128xf32>
    %170 = vector.broadcast %25 : vector<1x128xf32> to vector<16x128xf32>
    %171 = arith.addf %169, %170 : vector<16x128xf32>
    %cst_72 = arith.constant 5.000000e-01 : f32
    %172 = vector.broadcast %cst_72 : f32 to vector<16x128xf32>
    %173 = arith.mulf %172, %171 : vector<16x128xf32>
    %cst_73 = arith.constant 0.707106769 : f32
    %174 = vector.broadcast %cst_73 : f32 to vector<16x128xf32>
    %175 = arith.mulf %171, %174 : vector<16x128xf32>
    %176 = math.absf %175 : vector<16x128xf32>
    %cst_74 = arith.constant 0.327591091 : f32
    %177 = vector.broadcast %cst_74 : f32 to vector<16x128xf32>
    %178 = arith.mulf %177, %176 : vector<16x128xf32>
    %cst_75 = arith.constant 1.000000e+00 : f32
    %179 = vector.broadcast %cst_75 : f32 to vector<16x128xf32>
    %180 = arith.addf %179, %178 : vector<16x128xf32>
    %cst_76 = arith.constant 1.000000e+00 : f32
    %181 = vector.broadcast %cst_76 : f32 to vector<16x128xf32>
    %182 = arith.divf %181, %180 : vector<16x128xf32>
    %cst_77 = arith.constant 1.06140542 : f32
    %183 = vector.broadcast %cst_77 : f32 to vector<16x128xf32>
    %184 = arith.mulf %183, %182 : vector<16x128xf32>
    %cst_78 = arith.constant -1.45315206 : f32
    %185 = vector.broadcast %cst_78 : f32 to vector<16x128xf32>
    %186 = arith.addf %184, %185 : vector<16x128xf32>
    %187 = arith.mulf %186, %182 : vector<16x128xf32>
    %cst_79 = arith.constant 1.42141378 : f32
    %188 = vector.broadcast %cst_79 : f32 to vector<16x128xf32>
    %189 = arith.addf %187, %188 : vector<16x128xf32>
    %190 = arith.mulf %189, %182 : vector<16x128xf32>
    %cst_80 = arith.constant -0.284496725 : f32
    %191 = vector.broadcast %cst_80 : f32 to vector<16x128xf32>
    %192 = arith.addf %190, %191 : vector<16x128xf32>
    %193 = arith.mulf %192, %182 : vector<16x128xf32>
    %cst_81 = arith.constant 0.254829586 : f32
    %194 = vector.broadcast %cst_81 : f32 to vector<16x128xf32>
    %195 = arith.addf %193, %194 : vector<16x128xf32>
    %196 = arith.mulf %195, %182 : vector<16x128xf32>
    %cst_82 = arith.constant 0.000000e+00 : f32
    %197 = vector.broadcast %cst_82 : f32 to vector<16x128xf32>
    %198 = arith.subf %197, %176 : vector<16x128xf32>
    %199 = arith.mulf %198, %176 : vector<16x128xf32>
    %200 = math.exp %199 : vector<16x128xf32>
    %201 = arith.mulf %196, %200 : vector<16x128xf32>
    %cst_83 = arith.constant 1.000000e+00 : f32
    %202 = vector.broadcast %cst_83 : f32 to vector<16x128xf32>
    %203 = arith.subf %202, %201 : vector<16x128xf32>
    %cst_84 = arith.constant 0.000000e+00 : f32
    %204 = vector.broadcast %cst_84 : f32 to vector<16x128xf32>
    %205 = arith.cmpf olt, %175, %204 : vector<16x128xf32>
    %cst_85 = arith.constant 0.000000e+00 : f32
    %206 = vector.broadcast %cst_85 : f32 to vector<16x128xf32>
    %207 = arith.subf %206, %203 : vector<16x128xf32>
    %208 = arith.select %205, %207, %203 : vector<16x128xi1>, vector<16x128xf32>
    %cst_86 = arith.constant 1.000000e+00 : f32
    %209 = vector.broadcast %cst_86 : f32 to vector<16x128xf32>
    %210 = arith.addf %209, %208 : vector<16x128xf32>
    %211 = arith.mulf %173, %210 : vector<16x128xf32>
    %212 = arith.truncf %211 : vector<16x128xf32> to vector<16x128xbf16>
    %cst_87 = arith.constant dense<0.000000e+00> : vector<16x32xf32>
    %213 = tpu.matmul %212, %27, %cst_87 {dimension_numbers = #tpu.dot_dimension_numbers<[1], [0], [0], [1], [0, 0, 1, 1], [], []>} : vector<16x128xbf16>, vector<128x32xbf16>, vector<16x32xf32> -> vector<16x32xf32>
    %214 = vector.broadcast %29 : vector<1x32xf32> to vector<16x32xf32>
    %215 = arith.addf %213, %214 : vector<16x32xf32>
    %216 = arith.addf %145, %215 : vector<16x32xf32>
    %c0_88 = arith.constant 0 : index
    %c0_89 = arith.constant 0 : index
    %217 = vector.load %arg51[%c0_88, %c0_89] : memref<16x32xf32, #tpu.memory_space<vmem>>, vector<16x32xf32>
    tpu.vector_store %arg51[%c0_88, %c0_89], %216 {strides = array<i32>} : memref<16x32xf32, #tpu.memory_space<vmem>>, vector<16x32xf32>,
    %c3_i32 = arith.constant 3 : i32
    %218 = arith.cmpi eq, %arg1, %c3_i32 : i32
    %219 = arith.extui %218 : i1 to i32
    %c0_i32_90 = arith.constant 0 : i32
    %220 = arith.cmpi ne, %219, %c0_i32_90 : i32
    scf.if %220 {
      %c0_91 = arith.constant 0 : index
      %c0_92 = arith.constant 0 : index
      %221 = vector.load %arg51[%c0_91, %c0_92] : memref<16x32xf32, #tpu.memory_space<vmem>>, vector<16x32xf32>
      %c0_93 = arith.constant 0 : index
      %c0_94 = arith.constant 0 : index
      %c0_95 = arith.constant 0 : index
      %222 = vector.load %arg3[%c0_93, %c0_94, %c0_95] : memref<2x16x64xf32, #tpu.memory_space<vmem>>, vector<2x16x64xf32>
      %223 = vector.shape_cast %222 : vector<2x16x64xf32> to vector<32x64xf32>
      %c0_96 = arith.constant 0 : index
      %c0_97 = arith.constant 0 : index
      %224 = vector.load %arg34[%c0_96, %c0_97] : memref<1x64xf32, #tpu.memory_space<vmem>>, vector<1x64xf32>
      %c0_98 = arith.constant 0 : index
      %c0_99 = arith.constant 0 : index
      %225 = vector.load %arg35[%c0_98, %c0_99] : memref<1x64xf32, #tpu.memory_space<vmem>>, vector<1x64xf32>
      %c0_100 = arith.constant 0 : index
      %c0_101 = arith.constant 0 : index
      %226 = vector.load %arg36[%c0_100, %c0_101] : memref<1x32xf32, #tpu.memory_space<vmem>>, vector<1x32xf32>
      %c0_102 = arith.constant 0 : index
      %c0_103 = arith.constant 0 : index
      %227 = vector.load %arg37[%c0_102, %c0_103] : memref<1x32xf32, #tpu.memory_space<vmem>>, vector<1x32xf32>
      %c0_104 = arith.constant 0 : index
      %c0_105 = arith.constant 0 : index
      %228 = vector.load %arg38[%c0_104, %c0_105] : memref<64x64xbf16, #tpu.memory_space<vmem>>, vector<64x64xbf16>
      %c0_106 = arith.constant 0 : index
      %c0_107 = arith.constant 0 : index
      %229 = vector.load %arg39[%c0_106, %c0_107] : memref<32x64xbf16, #tpu.memory_space<vmem>>, vector<32x64xbf16>
      %c0_108 = arith.constant 0 : index
      %c0_109 = arith.constant 0 : index
      %230 = vector.load %arg40[%c0_108, %c0_109] : memref<32x64xbf16, #tpu.memory_space<vmem>>, vector<32x64xbf16>
      %c0_110 = arith.constant 0 : index
      %c0_111 = arith.constant 0 : index
      %231 = vector.load %arg41[%c0_110, %c0_111] : memref<64x64xbf16, #tpu.memory_space<vmem>>, vector<64x64xbf16>
      %c0_112 = arith.constant 0 : index
      %c0_113 = arith.constant 0 : index
      %232 = vector.load %arg42[%c0_112, %c0_113] : memref<1x64xf32, #tpu.memory_space<vmem>>, vector<1x64xf32>
      %c0_114 = arith.constant 0 : index
      %c0_115 = arith.constant 0 : index
      %233 = vector.load %arg43[%c0_114, %c0_115] : memref<1x64xf32, #tpu.memory_space<vmem>>, vector<1x64xf32>
      %c0_116 = arith.constant 0 : index
      %c0_117 = arith.constant 0 : index
      %234 = vector.load %arg44[%c0_116, %c0_117] : memref<1x64xf32, #tpu.memory_space<vmem>>, vector<1x64xf32>
      %c0_118 = arith.constant 0 : index
      %c0_119 = arith.constant 0 : index
      %235 = vector.load %arg45[%c0_118, %c0_119] : memref<64x256xbf16, #tpu.memory_space<vmem>>, vector<64x256xbf16>
      %c0_120 = arith.constant 0 : index
      %c0_121 = arith.constant 0 : index
      %236 = vector.load %arg46[%c0_120, %c0_121] : memref<1x256xf32, #tpu.memory_space<vmem>>, vector<1x256xf32>
      %c0_122 = arith.constant 0 : index
      %c0_123 = arith.constant 0 : index
      %237 = vector.load %arg47[%c0_122, %c0_123] : memref<256x64xbf16, #tpu.memory_space<vmem>>, vector<256x64xbf16>
      %c0_124 = arith.constant 0 : index
      %c0_125 = arith.constant 0 : index
      %238 = vector.load %arg48[%c0_124, %c0_125] : memref<1x64xf32, #tpu.memory_space<vmem>>, vector<1x64xf32>
      %cst_126 = arith.constant dense<0.000000e+00> : vector<32xf32>
      %239 = vector.multi_reduction <add>, %223, %cst_126 [1] : vector<32x64xf32> to vector<32xf32>
      %240 = vector.shape_cast %239 : vector<32xf32> to vector<32x1xf32>
      %cst_127 = arith.constant 6.400000e+01 : f32
      %241 = vector.broadcast %cst_127 : f32 to vector<32x1xf32>
      %242 = arith.divf %240, %241 : vector<32x1xf32>
      %243 = vector.broadcast %242 : vector<32x1xf32> to vector<32x64xf32>
      %244 = arith.subf %223, %243 : vector<32x64xf32>
      %245 = arith.mulf %244, %244 : vector<32x64xf32>
      %cst_128 = arith.constant dense<0.000000e+00> : vector<32xf32>
      %246 = vector.multi_reduction <add>, %245, %cst_128 [1] : vector<32x64xf32> to vector<32xf32>
      %247 = vector.shape_cast %246 : vector<32xf32> to vector<32x1xf32>
      %cst_129 = arith.constant 6.400000e+01 : f32
      %248 = vector.broadcast %cst_129 : f32 to vector<32x1xf32>
      %249 = arith.divf %247, %248 : vector<32x1xf32>
      %250 = vector.broadcast %242 : vector<32x1xf32> to vector<32x64xf32>
      %251 = arith.subf %223, %250 : vector<32x64xf32>
      %cst_130 = arith.constant 9.99999974E-6 : f32
      %252 = vector.broadcast %cst_130 : f32 to vector<32x1xf32>
      %253 = arith.addf %249, %252 : vector<32x1xf32>
      %254 = math.rsqrt %253 : vector<32x1xf32>
      %255 = vector.broadcast %254 : vector<32x1xf32> to vector<32x64xf32>
      %256 = arith.mulf %251, %255 : vector<32x64xf32>
      %257 = vector.broadcast %224 : vector<1x64xf32> to vector<32x64xf32>
      %258 = arith.mulf %256, %257 : vector<32x64xf32>
      %259 = vector.broadcast %225 : vector<1x64xf32> to vector<32x64xf32>
      %260 = arith.addf %258, %259 : vector<32x64xf32>
      %cst_131 = arith.constant dense<0.000000e+00> : vector<16xf32>
      %261 = vector.multi_reduction <add>, %221, %cst_131 [1] : vector<16x32xf32> to vector<16xf32>
      %262 = vector.shape_cast %261 : vector<16xf32> to vector<16x1xf32>
      %cst_132 = arith.constant 3.200000e+01 : f32
      %263 = vector.broadcast %cst_132 : f32 to vector<16x1xf32>
      %264 = arith.divf %262, %263 : vector<16x1xf32>
      %265 = vector.broadcast %264 : vector<16x1xf32> to vector<16x32xf32>
      %266 = arith.subf %221, %265 : vector<16x32xf32>
      %267 = arith.mulf %266, %266 : vector<16x32xf32>
      %cst_133 = arith.constant dense<0.000000e+00> : vector<16xf32>
      %268 = vector.multi_reduction <add>, %267, %cst_133 [1] : vector<16x32xf32> to vector<16xf32>
      %269 = vector.shape_cast %268 : vector<16xf32> to vector<16x1xf32>
      %cst_134 = arith.constant 3.200000e+01 : f32
      %270 = vector.broadcast %cst_134 : f32 to vector<16x1xf32>
      %271 = arith.divf %269, %270 : vector<16x1xf32>
      %272 = vector.broadcast %264 : vector<16x1xf32> to vector<16x32xf32>
      %273 = arith.subf %221, %272 : vector<16x32xf32>
      %cst_135 = arith.constant 9.99999974E-6 : f32
      %274 = vector.broadcast %cst_135 : f32 to vector<16x1xf32>
      %275 = arith.addf %271, %274 : vector<16x1xf32>
      %276 = math.rsqrt %275 : vector<16x1xf32>
      %277 = vector.broadcast %276 : vector<16x1xf32> to vector<16x32xf32>
      %278 = arith.mulf %273, %277 : vector<16x32xf32>
      %279 = vector.broadcast %226 : vector<1x32xf32> to vector<16x32xf32>
      %280 = arith.mulf %278, %279 : vector<16x32xf32>
      %281 = vector.broadcast %227 : vector<1x32xf32> to vector<16x32xf32>
      %282 = arith.addf %280, %281 : vector<16x32xf32>
      %283 = arith.truncf %260 : vector<32x64xf32> to vector<32x64xbf16>
      %cst_136 = arith.constant dense<0.000000e+00> : vector<32x64xf32>
      %284 = tpu.matmul %283, %228, %cst_136 {dimension_numbers = #tpu.dot_dimension_numbers<[1], [0], [0], [1], [0, 0, 1, 1], [], []>} : vector<32x64xbf16>, vector<64x64xbf16>, vector<32x64xf32> -> vector<32x64xf32>
      %cst_137 = arith.constant 2.500000e-01 : f32
      %285 = vector.broadcast %cst_137 : f32 to vector<32x64xf32>
      %286 = arith.mulf %284, %285 : vector<32x64xf32>
      %287 = arith.truncf %282 : vector<16x32xf32> to vector<16x32xbf16>
      %cst_138 = arith.constant dense<0.000000e+00> : vector<16x64xf32>
      %288 = tpu.matmul %287, %229, %cst_138 {dimension_numbers = #tpu.dot_dimension_numbers<[1], [0], [0], [1], [0, 0, 1, 1], [], []>} : vector<16x32xbf16>, vector<32x64xbf16>, vector<16x64xf32> -> vector<16x64xf32>
      %289 = arith.truncf %282 : vector<16x32xf32> to vector<16x32xbf16>
      %cst_139 = arith.constant dense<0.000000e+00> : vector<16x64xf32>
      %290 = tpu.matmul %289, %230, %cst_139 {dimension_numbers = #tpu.dot_dimension_numbers<[1], [0], [0], [1], [0, 0, 1, 1], [], []>} : vector<16x32xbf16>, vector<32x64xbf16>, vector<16x64xf32> -> vector<16x64xf32>
      %291 = vector.shape_cast %286 : vector<32x64xf32> to vector<2x16x64xf32>
      %292 = vector.shape_cast %288 : vector<16x64xf32> to vector<2x8x64xf32>
      %293 = vector.shape_cast %290 : vector<16x64xf32> to vector<2x8x64xf32>
      %294 = vector.extract_strided_slice %291 {offsets = [0, 0, 0], sizes = [2, 16, 16], strides = [1, 1, 1]} : vector<2x16x64xf32> to vector<2x16x16xf32>
      %295 = arith.truncf %294 : vector<2x16x16xf32> to vector<2x16x16xbf16>
      %296 = vector.extract_strided_slice %292 {offsets = [0, 0, 0], sizes = [2, 8, 16], strides = [1, 1, 1]} : vector<2x8x64xf32> to vector<2x8x16xf32>
      %297 = arith.truncf %296 : vector<2x8x16xf32> to vector<2x8x16xbf16>
      %298 = vector.extract_strided_slice %293 {offsets = [0, 0, 0], sizes = [2, 8, 16], strides = [1, 1, 1]} : vector<2x8x64xf32> to vector<2x8x16xf32>
      %299 = arith.truncf %298 : vector<2x8x16xf32> to vector<2x8x16xbf16>
      "tpu.trace_start"() <{level = 10 : i32, message = "bqd,bkd->bqk"}> : () -> ()
      %cst_140 = arith.constant dense<0.000000e+00> : vector<2x16x8xf32>
      %300 = tpu.matmul %295, %297, %cst_140 {dimension_numbers = #tpu.dot_dimension_numbers<[2], [2], [1], [1], [0, 0, 0, 1, 1, 1], [0], [0]>} : vector<2x16x16xbf16>, vector<2x8x16xbf16>, vector<2x16x8xf32> -> vector<2x16x8xf32>
      "tpu.trace_stop"() : () -> ()
      %cst_141 = arith.constant dense<0xFF800000> : vector<2x16xf32>
      %301 = vector.multi_reduction <maximumf>, %300, %cst_141 [2] : vector<2x16x8xf32> to vector<2x16xf32>
      %302 = vector.shape_cast %301 : vector<2x16xf32> to vector<2x16x1xf32>
      %303 = vector.broadcast %302 : vector<2x16x1xf32> to vector<2x16x8xf32>
      %304 = arith.subf %300, %303 : vector<2x16x8xf32>
      %305 = math.exp %304 : vector<2x16x8xf32>
      %cst_142 = arith.constant dense<0.000000e+00> : vector<2x16xf32>
      %306 = vector.multi_reduction <add>, %305, %cst_142 [2] : vector<2x16x8xf32> to vector<2x16xf32>
      %307 = vector.shape_cast %306 : vector<2x16xf32> to vector<2x16x1xf32>
      %308 = tpu.reciprocal %307 {approx = true} : vector<2x16x1xf32> -> vector<2x16x1xf32>
      %309 = vector.broadcast %308 : vector<2x16x1xf32> to vector<2x16x8xf32>
      %310 = arith.mulf %305, %309 : vector<2x16x8xf32>
      %311 = arith.truncf %310 : vector<2x16x8xf32> to vector<2x16x8xbf16>
      "tpu.trace_start"() <{level = 10 : i32, message = "bqk,bkd->bqd"}> : () -> ()
      %cst_143 = arith.constant dense<0.000000e+00> : vector<2x16x16xf32>
      %312 = tpu.matmul %311, %299, %cst_143 {dimension_numbers = #tpu.dot_dimension_numbers<[2], [1], [1], [2], [0, 0, 0, 1, 1, 2], [0], [0]>} : vector<2x16x8xbf16>, vector<2x8x16xbf16>, vector<2x16x16xf32> -> vector<2x16x16xf32>
      "tpu.trace_stop"() : () -> ()
      %313 = vector.extract_strided_slice %291 {offsets = [0, 0, 16], sizes = [2, 16, 16], strides = [1, 1, 1]} : vector<2x16x64xf32> to vector<2x16x16xf32>
      %314 = arith.truncf %313 : vector<2x16x16xf32> to vector<2x16x16xbf16>
      %315 = vector.extract_strided_slice %292 {offsets = [0, 0, 16], sizes = [2, 8, 16], strides = [1, 1, 1]} : vector<2x8x64xf32> to vector<2x8x16xf32>
      %316 = arith.truncf %315 : vector<2x8x16xf32> to vector<2x8x16xbf16>
      %317 = vector.extract_strided_slice %293 {offsets = [0, 0, 16], sizes = [2, 8, 16], strides = [1, 1, 1]} : vector<2x8x64xf32> to vector<2x8x16xf32>
      %318 = arith.truncf %317 : vector<2x8x16xf32> to vector<2x8x16xbf16>
      "tpu.trace_start"() <{level = 10 : i32, message = "bqd,bkd->bqk"}> : () -> ()
      %cst_144 = arith.constant dense<0.000000e+00> : vector<2x16x8xf32>
      %319 = tpu.matmul %314, %316, %cst_144 {dimension_numbers = #tpu.dot_dimension_numbers<[2], [2], [1], [1], [0, 0, 0, 1, 1, 1], [0], [0]>} : vector<2x16x16xbf16>, vector<2x8x16xbf16>, vector<2x16x8xf32> -> vector<2x16x8xf32>
      "tpu.trace_stop"() : () -> ()
      %cst_145 = arith.constant dense<0xFF800000> : vector<2x16xf32>
      %320 = vector.multi_reduction <maximumf>, %319, %cst_145 [2] : vector<2x16x8xf32> to vector<2x16xf32>
      %321 = vector.shape_cast %320 : vector<2x16xf32> to vector<2x16x1xf32>
      %322 = vector.broadcast %321 : vector<2x16x1xf32> to vector<2x16x8xf32>
      %323 = arith.subf %319, %322 : vector<2x16x8xf32>
      %324 = math.exp %323 : vector<2x16x8xf32>
      %cst_146 = arith.constant dense<0.000000e+00> : vector<2x16xf32>
      %325 = vector.multi_reduction <add>, %324, %cst_146 [2] : vector<2x16x8xf32> to vector<2x16xf32>
      %326 = vector.shape_cast %325 : vector<2x16xf32> to vector<2x16x1xf32>
      %327 = tpu.reciprocal %326 {approx = true} : vector<2x16x1xf32> -> vector<2x16x1xf32>
      %328 = vector.broadcast %327 : vector<2x16x1xf32> to vector<2x16x8xf32>
      %329 = arith.mulf %324, %328 : vector<2x16x8xf32>
      %330 = arith.truncf %329 : vector<2x16x8xf32> to vector<2x16x8xbf16>
      "tpu.trace_start"() <{level = 10 : i32, message = "bqk,bkd->bqd"}> : () -> ()
      %cst_147 = arith.constant dense<0.000000e+00> : vector<2x16x16xf32>
      %331 = tpu.matmul %330, %318, %cst_147 {dimension_numbers = #tpu.dot_dimension_numbers<[2], [1], [1], [2], [0, 0, 0, 1, 1, 2], [0], [0]>} : vector<2x16x8xbf16>, vector<2x8x16xbf16>, vector<2x16x16xf32> -> vector<2x16x16xf32>
      "tpu.trace_stop"() : () -> ()
      %332 = vector.extract_strided_slice %291 {offsets = [0, 0, 32], sizes = [2, 16, 16], strides = [1, 1, 1]} : vector<2x16x64xf32> to vector<2x16x16xf32>
      %333 = arith.truncf %332 : vector<2x16x16xf32> to vector<2x16x16xbf16>
      %334 = vector.extract_strided_slice %292 {offsets = [0, 0, 32], sizes = [2, 8, 16], strides = [1, 1, 1]} : vector<2x8x64xf32> to vector<2x8x16xf32>
      %335 = arith.truncf %334 : vector<2x8x16xf32> to vector<2x8x16xbf16>
      %336 = vector.extract_strided_slice %293 {offsets = [0, 0, 32], sizes = [2, 8, 16], strides = [1, 1, 1]} : vector<2x8x64xf32> to vector<2x8x16xf32>
      %337 = arith.truncf %336 : vector<2x8x16xf32> to vector<2x8x16xbf16>
      "tpu.trace_start"() <{level = 10 : i32, message = "bqd,bkd->bqk"}> : () -> ()
      %cst_148 = arith.constant dense<0.000000e+00> : vector<2x16x8xf32>
      %338 = tpu.matmul %333, %335, %cst_148 {dimension_numbers = #tpu.dot_dimension_numbers<[2], [2], [1], [1], [0, 0, 0, 1, 1, 1], [0], [0]>} : vector<2x16x16xbf16>, vector<2x8x16xbf16>, vector<2x16x8xf32> -> vector<2x16x8xf32>
      "tpu.trace_stop"() : () -> ()
      %cst_149 = arith.constant dense<0xFF800000> : vector<2x16xf32>
      %339 = vector.multi_reduction <maximumf>, %338, %cst_149 [2] : vector<2x16x8xf32> to vector<2x16xf32>
      %340 = vector.shape_cast %339 : vector<2x16xf32> to vector<2x16x1xf32>
      %341 = vector.broadcast %340 : vector<2x16x1xf32> to vector<2x16x8xf32>
      %342 = arith.subf %338, %341 : vector<2x16x8xf32>
      %343 = math.exp %342 : vector<2x16x8xf32>
      %cst_150 = arith.constant dense<0.000000e+00> : vector<2x16xf32>
      %344 = vector.multi_reduction <add>, %343, %cst_150 [2] : vector<2x16x8xf32> to vector<2x16xf32>
      %345 = vector.shape_cast %344 : vector<2x16xf32> to vector<2x16x1xf32>
      %346 = tpu.reciprocal %345 {approx = true} : vector<2x16x1xf32> -> vector<2x16x1xf32>
      %347 = vector.broadcast %346 : vector<2x16x1xf32> to vector<2x16x8xf32>
      %348 = arith.mulf %343, %347 : vector<2x16x8xf32>
      %349 = arith.truncf %348 : vector<2x16x8xf32> to vector<2x16x8xbf16>
      "tpu.trace_start"() <{level = 10 : i32, message = "bqk,bkd->bqd"}> : () -> ()
      %cst_151 = arith.constant dense<0.000000e+00> : vector<2x16x16xf32>
      %350 = tpu.matmul %349, %337, %cst_151 {dimension_numbers = #tpu.dot_dimension_numbers<[2], [1], [1], [2], [0, 0, 0, 1, 1, 2], [0], [0]>} : vector<2x16x8xbf16>, vector<2x8x16xbf16>, vector<2x16x16xf32> -> vector<2x16x16xf32>
      "tpu.trace_stop"() : () -> ()
      %351 = vector.extract_strided_slice %291 {offsets = [0, 0, 48], sizes = [2, 16, 16], strides = [1, 1, 1]} : vector<2x16x64xf32> to vector<2x16x16xf32>
      %352 = arith.truncf %351 : vector<2x16x16xf32> to vector<2x16x16xbf16>
      %353 = vector.extract_strided_slice %292 {offsets = [0, 0, 48], sizes = [2, 8, 16], strides = [1, 1, 1]} : vector<2x8x64xf32> to vector<2x8x16xf32>
      %354 = arith.truncf %353 : vector<2x8x16xf32> to vector<2x8x16xbf16>
      %355 = vector.extract_strided_slice %293 {offsets = [0, 0, 48], sizes = [2, 8, 16], strides = [1, 1, 1]} : vector<2x8x64xf32> to vector<2x8x16xf32>
      %356 = arith.truncf %355 : vector<2x8x16xf32> to vector<2x8x16xbf16>
      "tpu.trace_start"() <{level = 10 : i32, message = "bqd,bkd->bqk"}> : () -> ()
      %cst_152 = arith.constant dense<0.000000e+00> : vector<2x16x8xf32>
      %357 = tpu.matmul %352, %354, %cst_152 {dimension_numbers = #tpu.dot_dimension_numbers<[2], [2], [1], [1], [0, 0, 0, 1, 1, 1], [0], [0]>} : vector<2x16x16xbf16>, vector<2x8x16xbf16>, vector<2x16x8xf32> -> vector<2x16x8xf32>
      "tpu.trace_stop"() : () -> ()
      %cst_153 = arith.constant dense<0xFF800000> : vector<2x16xf32>
      %358 = vector.multi_reduction <maximumf>, %357, %cst_153 [2] : vector<2x16x8xf32> to vector<2x16xf32>
      %359 = vector.shape_cast %358 : vector<2x16xf32> to vector<2x16x1xf32>
      %360 = vector.broadcast %359 : vector<2x16x1xf32> to vector<2x16x8xf32>
      %361 = arith.subf %357, %360 : vector<2x16x8xf32>
      %362 = math.exp %361 : vector<2x16x8xf32>
      %cst_154 = arith.constant dense<0.000000e+00> : vector<2x16xf32>
      %363 = vector.multi_reduction <add>, %362, %cst_154 [2] : vector<2x16x8xf32> to vector<2x16xf32>
      %364 = vector.shape_cast %363 : vector<2x16xf32> to vector<2x16x1xf32>
      %365 = tpu.reciprocal %364 {approx = true} : vector<2x16x1xf32> -> vector<2x16x1xf32>
      %366 = vector.broadcast %365 : vector<2x16x1xf32> to vector<2x16x8xf32>
      %367 = arith.mulf %362, %366 : vector<2x16x8xf32>
      %368 = arith.truncf %367 : vector<2x16x8xf32> to vector<2x16x8xbf16>
      "tpu.trace_start"() <{level = 10 : i32, message = "bqk,bkd->bqd"}> : () -> ()
      %cst_155 = arith.constant dense<0.000000e+00> : vector<2x16x16xf32>
      %369 = tpu.matmul %368, %356, %cst_155 {dimension_numbers = #tpu.dot_dimension_numbers<[2], [1], [1], [2], [0, 0, 0, 1, 1, 2], [0], [0]>} : vector<2x16x8xbf16>, vector<2x8x16xbf16>, vector<2x16x16xf32> -> vector<2x16x16xf32>
      "tpu.trace_stop"() : () -> ()
      %370 = tpu.concatenate %312, %331, %350, %369 in 2 : vector<2x16x16xf32>, vector<2x16x16xf32>, vector<2x16x16xf32>, vector<2x16x16xf32> -> vector<2x16x64xf32>
      %371 = vector.shape_cast %370 : vector<2x16x64xf32> to vector<32x64xf32>
      %372 = arith.truncf %371 : vector<32x64xf32> to vector<32x64xbf16>
      %cst_156 = arith.constant dense<0.000000e+00> : vector<32x64xf32>
      %373 = tpu.matmul %372, %231, %cst_156 {dimension_numbers = #tpu.dot_dimension_numbers<[1], [0], [0], [1], [0, 0, 1, 1], [], []>} : vector<32x64xbf16>, vector<64x64xbf16>, vector<32x64xf32> -> vector<32x64xf32>
      %374 = vector.broadcast %232 : vector<1x64xf32> to vector<32x64xf32>
      %375 = arith.addf %373, %374 : vector<32x64xf32>
      %376 = arith.addf %223, %375 : vector<32x64xf32>
      %cst_157 = arith.constant dense<0.000000e+00> : vector<32xf32>
      %377 = vector.multi_reduction <add>, %376, %cst_157 [1] : vector<32x64xf32> to vector<32xf32>
      %378 = vector.shape_cast %377 : vector<32xf32> to vector<32x1xf32>
      %cst_158 = arith.constant 6.400000e+01 : f32
      %379 = vector.broadcast %cst_158 : f32 to vector<32x1xf32>
      %380 = arith.divf %378, %379 : vector<32x1xf32>
      %381 = vector.broadcast %380 : vector<32x1xf32> to vector<32x64xf32>
      %382 = arith.subf %376, %381 : vector<32x64xf32>
      %383 = arith.mulf %382, %382 : vector<32x64xf32>
      %cst_159 = arith.constant dense<0.000000e+00> : vector<32xf32>
      %384 = vector.multi_reduction <add>, %383, %cst_159 [1] : vector<32x64xf32> to vector<32xf32>
      %385 = vector.shape_cast %384 : vector<32xf32> to vector<32x1xf32>
      %cst_160 = arith.constant 6.400000e+01 : f32
      %386 = vector.broadcast %cst_160 : f32 to vector<32x1xf32>
      %387 = arith.divf %385, %386 : vector<32x1xf32>
      %388 = vector.broadcast %380 : vector<32x1xf32> to vector<32x64xf32>
      %389 = arith.subf %376, %388 : vector<32x64xf32>
      %cst_161 = arith.constant 9.99999974E-6 : f32
      %390 = vector.broadcast %cst_161 : f32 to vector<32x1xf32>
      %391 = arith.addf %387, %390 : vector<32x1xf32>
      %392 = math.rsqrt %391 : vector<32x1xf32>
      %393 = vector.broadcast %392 : vector<32x1xf32> to vector<32x64xf32>
      %394 = arith.mulf %389, %393 : vector<32x64xf32>
      %395 = vector.broadcast %233 : vector<1x64xf32> to vector<32x64xf32>
      %396 = arith.mulf %394, %395 : vector<32x64xf32>
      %397 = vector.broadcast %234 : vector<1x64xf32> to vector<32x64xf32>
      %398 = arith.addf %396, %397 : vector<32x64xf32>
      %399 = arith.truncf %398 : vector<32x64xf32> to vector<32x64xbf16>
      %cst_162 = arith.constant dense<0.000000e+00> : vector<32x256xf32>
      %400 = tpu.matmul %399, %235, %cst_162 {dimension_numbers = #tpu.dot_dimension_numbers<[1], [0], [0], [1], [0, 0, 1, 1], [], []>} : vector<32x64xbf16>, vector<64x256xbf16>, vector<32x256xf32> -> vector<32x256xf32>
      %401 = vector.broadcast %236 : vector<1x256xf32> to vector<32x256xf32>
      %402 = arith.addf %400, %401 : vector<32x256xf32>
      %cst_163 = arith.constant 5.000000e-01 : f32
      %403 = vector.broadcast %cst_163 : f32 to vector<32x256xf32>
      %404 = arith.mulf %403, %402 : vector<32x256xf32>
      %cst_164 = arith.constant 0.707106769 : f32
      %405 = vector.broadcast %cst_164 : f32 to vector<32x256xf32>
      %406 = arith.mulf %402, %405 : vector<32x256xf32>
      %407 = math.absf %406 : vector<32x256xf32>
      %cst_165 = arith.constant 0.327591091 : f32
      %408 = vector.broadcast %cst_165 : f32 to vector<32x256xf32>
      %409 = arith.mulf %408, %407 : vector<32x256xf32>
      %cst_166 = arith.constant 1.000000e+00 : f32
      %410 = vector.broadcast %cst_166 : f32 to vector<32x256xf32>
      %411 = arith.addf %410, %409 : vector<32x256xf32>
      %cst_167 = arith.constant 1.000000e+00 : f32
      %412 = vector.broadcast %cst_167 : f32 to vector<32x256xf32>
      %413 = arith.divf %412, %411 : vector<32x256xf32>
      %cst_168 = arith.constant 1.06140542 : f32
      %414 = vector.broadcast %cst_168 : f32 to vector<32x256xf32>
      %415 = arith.mulf %414, %413 : vector<32x256xf32>
      %cst_169 = arith.constant -1.45315206 : f32
      %416 = vector.broadcast %cst_169 : f32 to vector<32x256xf32>
      %417 = arith.addf %415, %416 : vector<32x256xf32>
      %418 = arith.mulf %417, %413 : vector<32x256xf32>
      %cst_170 = arith.constant 1.42141378 : f32
      %419 = vector.broadcast %cst_170 : f32 to vector<32x256xf32>
      %420 = arith.addf %418, %419 : vector<32x256xf32>
      %421 = arith.mulf %420, %413 : vector<32x256xf32>
      %cst_171 = arith.constant -0.284496725 : f32
      %422 = vector.broadcast %cst_171 : f32 to vector<32x256xf32>
      %423 = arith.addf %421, %422 : vector<32x256xf32>
      %424 = arith.mulf %423, %413 : vector<32x256xf32>
      %cst_172 = arith.constant 0.254829586 : f32
      %425 = vector.broadcast %cst_172 : f32 to vector<32x256xf32>
      %426 = arith.addf %424, %425 : vector<32x256xf32>
      %427 = arith.mulf %426, %413 : vector<32x256xf32>
      %cst_173 = arith.constant 0.000000e+00 : f32
      %428 = vector.broadcast %cst_173 : f32 to vector<32x256xf32>
      %429 = arith.subf %428, %407 : vector<32x256xf32>
      %430 = arith.mulf %429, %407 : vector<32x256xf32>
      %431 = math.exp %430 : vector<32x256xf32>
      %432 = arith.mulf %427, %431 : vector<32x256xf32>
      %cst_174 = arith.constant 1.000000e+00 : f32
      %433 = vector.broadcast %cst_174 : f32 to vector<32x256xf32>
      %434 = arith.subf %433, %432 : vector<32x256xf32>
      %cst_175 = arith.constant 0.000000e+00 : f32
      %435 = vector.broadcast %cst_175 : f32 to vector<32x256xf32>
      %436 = arith.cmpf olt, %406, %435 : vector<32x256xf32>
      %cst_176 = arith.constant 0.000000e+00 : f32
      %437 = vector.broadcast %cst_176 : f32 to vector<32x256xf32>
      %438 = arith.subf %437, %434 : vector<32x256xf32>
      %439 = arith.select %436, %438, %434 : vector<32x256xi1>, vector<32x256xf32>
      %cst_177 = arith.constant 1.000000e+00 : f32
      %440 = vector.broadcast %cst_177 : f32 to vector<32x256xf32>
      %441 = arith.addf %440, %439 : vector<32x256xf32>
      %442 = arith.mulf %404, %441 : vector<32x256xf32>
      %443 = arith.truncf %442 : vector<32x256xf32> to vector<32x256xbf16>
      %cst_178 = arith.constant dense<0.000000e+00> : vector<32x64xf32>
      %444 = tpu.matmul %443, %237, %cst_178 {dimension_numbers = #tpu.dot_dimension_numbers<[1], [0], [0], [1], [0, 0, 1, 1], [], []>} : vector<32x256xbf16>, vector<256x64xbf16>, vector<32x64xf32> -> vector<32x64xf32>
      %445 = vector.broadcast %238 : vector<1x64xf32> to vector<32x64xf32>
      %446 = arith.addf %444, %445 : vector<32x64xf32>
      %447 = arith.addf %376, %446 : vector<32x64xf32>
      %448 = vector.shape_cast %221 : vector<16x32xf32> to vector<2x8x32xf32>
      %c0_179 = arith.constant 0 : index
      %c0_180 = arith.constant 0 : index
      %c0_181 = arith.constant 0 : index
      %449 = vector.load %arg49[%c0_179, %c0_180, %c0_181] : memref<2x8x32xf32, #tpu.memory_space<vmem>>, vector<2x8x32xf32>
      tpu.vector_store %arg49[%c0_179, %c0_180, %c0_181], %448 {strides = array<i32>} : memref<2x8x32xf32, #tpu.memory_space<vmem>>, vector<2x8x32xf32>,
      %450 = vector.shape_cast %447 : vector<32x64xf32> to vector<2x16x64xf32>
      %c0_182 = arith.constant 0 : index
      %c0_183 = arith.constant 0 : index
      %c0_184 = arith.constant 0 : index
      %451 = vector.load %arg50[%c0_182, %c0_183, %c0_184] : memref<2x16x64xf32, #tpu.memory_space<vmem>>, vector<2x16x64xf32>
      tpu.vector_store %arg50[%c0_182, %c0_183, %c0_184], %450 {strides = array<i32>} : memref<2x16x64xf32, #tpu.memory_space<vmem>>, vector<2x16x64xf32>,
    } else {
    }
    return
  }
  func.func @transform_0(%arg0: i32, %arg1: i32) -> (i32, i32, i32) {
    %c0_i32 = arith.constant 0 : i32
    %c0_i32_0 = arith.constant 0 : i32
    %c0_i32_1 = arith.constant 0 : i32
    return %arg0, %c0_i32, %c0_i32_0 : i32, i32, i32
  }
  func.func @transform_1(%arg0: i32, %arg1: i32) -> (i32, i32, i32) {
    %c0_i32 = arith.constant 0 : i32
    %c0_i32_0 = arith.constant 0 : i32
    %c0_i32_1 = arith.constant 0 : i32
    return %arg0, %c0_i32, %c0_i32_0 : i32, i32, i32
  }
  func.func @transform_2(%arg0: i32, %arg1: i32) -> (i32, i32) {
    %c0_i32 = arith.constant 0 : i32
    %c0_i32_0 = arith.constant 0 : i32
    %c0_i32_1 = arith.constant 0 : i32
    return %c0_i32, %c0_i32_0 : i32, i32
  }
  func.func @transform_3(%arg0: i32, %arg1: i32) -> (i32, i32) {
    %c0_i32 = arith.constant 0 : i32
    %c0_i32_0 = arith.constant 0 : i32
    %c0_i32_1 = arith.constant 0 : i32
    return %c0_i32, %c0_i32_0 : i32, i32
  }
  func.func @transform_4(%arg0: i32, %arg1: i32) -> (i32, i32) {
    %c0_i32 = arith.constant 0 : i32
    %c0_i32_0 = arith.constant 0 : i32
    %c0_i32_1 = arith.constant 0 : i32
    return %c0_i32, %c0_i32_0 : i32, i32
  }
  func.func @transform_5(%arg0: i32, %arg1: i32) -> (i32, i32) {
    %c0_i32 = arith.constant 0 : i32
    %c0_i32_0 = arith.constant 0 : i32
    %c0_i32_1 = arith.constant 0 : i32
    return %c0_i32, %c0_i32_0 : i32, i32
  }
  func.func @transform_6(%arg0: i32, %arg1: i32) -> (i32, i32) {
    %c0_i32 = arith.constant 0 : i32
    %c0_i32_0 = arith.constant 0 : i32
    %c0_i32_1 = arith.constant 0 : i32
    return %c0_i32, %c0_i32_0 : i32, i32
  }
  func.func @transform_7(%arg0: i32, %arg1: i32) -> (i32, i32) {
    %c0_i32 = arith.constant 0 : i32
    %c0_i32_0 = arith.constant 0 : i32
    %c0_i32_1 = arith.constant 0 : i32
    return %c0_i32, %c0_i32_0 : i32, i32
  }
  func.func @transform_8(%arg0: i32, %arg1: i32) -> (i32, i32) {
    %c0_i32 = arith.constant 0 : i32
    %c0_i32_0 = arith.constant 0 : i32
    %c0_i32_1 = arith.constant 0 : i32
    return %c0_i32, %c0_i32_0 : i32, i32
  }
  func.func @transform_9(%arg0: i32, %arg1: i32) -> (i32, i32) {
    %c0_i32 = arith.constant 0 : i32
    %c0_i32_0 = arith.constant 0 : i32
    %c0_i32_1 = arith.constant 0 : i32
    return %c0_i32, %c0_i32_0 : i32, i32
  }
  func.func @transform_10(%arg0: i32, %arg1: i32) -> (i32, i32) {
    %c0_i32 = arith.constant 0 : i32
    %c0_i32_0 = arith.constant 0 : i32
    %c0_i32_1 = arith.constant 0 : i32
    return %c0_i32, %c0_i32_0 : i32, i32
  }
  func.func @transform_11(%arg0: i32, %arg1: i32) -> (i32, i32) {
    %c0_i32 = arith.constant 0 : i32
    %c0_i32_0 = arith.constant 0 : i32
    %c0_i32_1 = arith.constant 0 : i32
    return %c0_i32, %c0_i32_0 : i32, i32
  }
  func.func @transform_12(%arg0: i32, %arg1: i32) -> (i32, i32) {
    %c0_i32 = arith.constant 0 : i32
    %c0_i32_0 = arith.constant 0 : i32
    %c0_i32_1 = arith.constant 0 : i32
    return %c0_i32, %c0_i32_0 : i32, i32
  }
  func.func @transform_13(%arg0: i32, %arg1: i32) -> (i32, i32) {
    %c0_i32 = arith.constant 0 : i32
    %c0_i32_0 = arith.constant 0 : i32
    %c0_i32_1 = arith.constant 0 : i32
    return %c0_i32, %c0_i32_0 : i32, i32
  }
  func.func @transform_14(%arg0: i32, %arg1: i32) -> (i32, i32) {
    %c0_i32 = arith.constant 0 : i32
    %c0_i32_0 = arith.constant 0 : i32
    %c0_i32_1 = arith.constant 0 : i32
    return %c0_i32, %c0_i32_0 : i32, i32
  }
  func.func @transform_15(%arg0: i32, %arg1: i32) -> (i32, i32) {
    %c0_i32 = arith.constant 0 : i32
    %c0_i32_0 = arith.constant 0 : i32
    %c0_i32_1 = arith.constant 0 : i32
    return %c0_i32, %c0_i32_0 : i32, i32
  }
  func.func @transform_16(%arg0: i32, %arg1: i32) -> (i32, i32) {
    %c0_i32 = arith.constant 0 : i32
    %c0_i32_0 = arith.constant 0 : i32
    %c0_i32_1 = arith.constant 0 : i32
    return %c0_i32, %c0_i32_0 : i32, i32
  }
  func.func @transform_17(%arg0: i32, %arg1: i32) -> (i32, i32, i32) {
    %c0_i32 = arith.constant 0 : i32
    %c0_i32_0 = arith.constant 0 : i32
    %c0_i32_1 = arith.constant 0 : i32
    return %arg1, %c0_i32, %c0_i32_0 : i32, i32, i32
  }
  func.func @transform_18(%arg0: i32, %arg1: i32) -> (i32, i32, i32) {
    %c0_i32 = arith.constant 0 : i32
    %c0_i32_0 = arith.constant 0 : i32
    %c0_i32_1 = arith.constant 0 : i32
    return %arg1, %c0_i32, %c0_i32_0 : i32, i32, i32
  }
  func.func @transform_19(%arg0: i32, %arg1: i32) -> (i32, i32, i32) {
    %c0_i32 = arith.constant 0 : i32
    %c0_i32_0 = arith.constant 0 : i32
    %c0_i32_1 = arith.constant 0 : i32
    return %arg1, %c0_i32, %c0_i32_0 : i32, i32, i32
  }
  func.func @transform_20(%arg0: i32, %arg1: i32) -> (i32, i32, i32) {
    %c0_i32 = arith.constant 0 : i32
    %c0_i32_0 = arith.constant 0 : i32
    %c0_i32_1 = arith.constant 0 : i32
    return %arg1, %c0_i32, %c0_i32_0 : i32, i32, i32
  }
  func.func @transform_21(%arg0: i32, %arg1: i32) -> (i32, i32, i32) {
    %c0_i32 = arith.constant 0 : i32
    %c0_i32_0 = arith.constant 0 : i32
    %c0_i32_1 = arith.constant 0 : i32
    return %arg1, %c0_i32, %c0_i32_0 : i32, i32, i32
  }
  func.func @transform_22(%arg0: i32, %arg1: i32) -> (i32, i32, i32) {
    %c0_i32 = arith.constant 0 : i32
    %c0_i32_0 = arith.constant 0 : i32
    %c0_i32_1 = arith.constant 0 : i32
    return %arg1, %c0_i32, %c0_i32_0 : i32, i32, i32
  }
  func.func @transform_23(%arg0: i32, %arg1: i32) -> (i32, i32, i32) {
    %c0_i32 = arith.constant 0 : i32
    %c0_i32_0 = arith.constant 0 : i32
    %c0_i32_1 = arith.constant 0 : i32
    return %arg1, %c0_i32, %c0_i32_0 : i32, i32, i32
  }
  func.func @transform_24(%arg0: i32, %arg1: i32) -> (i32, i32, i32) {
    %c0_i32 = arith.constant 0 : i32
    %c0_i32_0 = arith.constant 0 : i32
    %c0_i32_1 = arith.constant 0 : i32
    return %arg1, %c0_i32, %c0_i32_0 : i32, i32, i32
  }
  func.func @transform_25(%arg0: i32, %arg1: i32) -> (i32, i32, i32) {
    %c0_i32 = arith.constant 0 : i32
    %c0_i32_0 = arith.constant 0 : i32
    %c0_i32_1 = arith.constant 0 : i32
    return %arg1, %c0_i32, %c0_i32_0 : i32, i32, i32
  }
  func.func @transform_26(%arg0: i32, %arg1: i32) -> (i32, i32, i32) {
    %c0_i32 = arith.constant 0 : i32
    %c0_i32_0 = arith.constant 0 : i32
    %c0_i32_1 = arith.constant 0 : i32
    return %arg1, %c0_i32, %c0_i32_0 : i32, i32, i32
  }
  func.func @transform_27(%arg0: i32, %arg1: i32) -> (i32, i32, i32) {
    %c0_i32 = arith.constant 0 : i32
    %c0_i32_0 = arith.constant 0 : i32
    %c0_i32_1 = arith.constant 0 : i32
    return %arg1, %c0_i32, %c0_i32_0 : i32, i32, i32
  }
  func.func @transform_28(%arg0: i32, %arg1: i32) -> (i32, i32, i32) {
    %c0_i32 = arith.constant 0 : i32
    %c0_i32_0 = arith.constant 0 : i32
    %c0_i32_1 = arith.constant 0 : i32
    return %arg1, %c0_i32, %c0_i32_0 : i32, i32, i32
  }
  func.func @transform_29(%arg0: i32, %arg1: i32) -> (i32, i32, i32) {
    %c0_i32 = arith.constant 0 : i32
    %c0_i32_0 = arith.constant 0 : i32
    %c0_i32_1 = arith.constant 0 : i32
    return %arg1, %c0_i32, %c0_i32_0 : i32, i32, i32
  }
  func.func @transform_30(%arg0: i32, %arg1: i32) -> (i32, i32, i32) {
    %c0_i32 = arith.constant 0 : i32
    %c0_i32_0 = arith.constant 0 : i32
    %c0_i32_1 = arith.constant 0 : i32
    return %arg1, %c0_i32, %c0_i32_0 : i32, i32, i32
  }
  func.func @transform_31(%arg0: i32, %arg1: i32) -> (i32, i32, i32) {
    %c0_i32 = arith.constant 0 : i32
    %c0_i32_0 = arith.constant 0 : i32
    %c0_i32_1 = arith.constant 0 : i32
    return %arg1, %c0_i32, %c0_i32_0 : i32, i32, i32
  }
  func.func @transform_32(%arg0: i32, %arg1: i32) -> (i32, i32) {
    %c0_i32 = arith.constant 0 : i32
    %c0_i32_0 = arith.constant 0 : i32
    %c0_i32_1 = arith.constant 0 : i32
    return %c0_i32, %c0_i32_0 : i32, i32
  }
  func.func @transform_33(%arg0: i32, %arg1: i32) -> (i32, i32) {
    %c0_i32 = arith.constant 0 : i32
    %c0_i32_0 = arith.constant 0 : i32
    %c0_i32_1 = arith.constant 0 : i32
    return %c0_i32, %c0_i32_0 : i32, i32
  }
  func.func @transform_34(%arg0: i32, %arg1: i32) -> (i32, i32) {
    %c0_i32 = arith.constant 0 : i32
    %c0_i32_0 = arith.constant 0 : i32
    %c0_i32_1 = arith.constant 0 : i32
    return %c0_i32, %c0_i32_0 : i32, i32
  }
  func.func @transform_35(%arg0: i32, %arg1: i32) -> (i32, i32) {
    %c0_i32 = arith.constant 0 : i32
    %c0_i32_0 = arith.constant 0 : i32
    %c0_i32_1 = arith.constant 0 : i32
    return %c0_i32, %c0_i32_0 : i32, i32
  }
  func.func @transform_36(%arg0: i32, %arg1: i32) -> (i32, i32) {
    %c0_i32 = arith.constant 0 : i32
    %c0_i32_0 = arith.constant 0 : i32
    %c0_i32_1 = arith.constant 0 : i32
    return %c0_i32, %c0_i32_0 : i32, i32
  }
  func.func @transform_37(%arg0: i32, %arg1: i32) -> (i32, i32) {
    %c0_i32 = arith.constant 0 : i32
    %c0_i32_0 = arith.constant 0 : i32
    %c0_i32_1 = arith.constant 0 : i32
    return %c0_i32, %c0_i32_0 : i32, i32
  }
  func.func @transform_38(%arg0: i32, %arg1: i32) -> (i32, i32) {
    %c0_i32 = arith.constant 0 : i32
    %c0_i32_0 = arith.constant 0 : i32
    %c0_i32_1 = arith.constant 0 : i32
    return %c0_i32, %c0_i32_0 : i32, i32
  }
  func.func @transform_39(%arg0: i32, %arg1: i32) -> (i32, i32) {
    %c0_i32 = arith.constant 0 : i32
    %c0_i32_0 = arith.constant 0 : i32
    %c0_i32_1 = arith.constant 0 : i32
    return %c0_i32, %c0_i32_0 : i32, i32
  }
  func.func @transform_40(%arg0: i32, %arg1: i32) -> (i32, i32) {
    %c0_i32 = arith.constant 0 : i32
    %c0_i32_0 = arith.constant 0 : i32
    %c0_i32_1 = arith.constant 0 : i32
    return %c0_i32, %c0_i32_0 : i32, i32
  }
  func.func @transform_41(%arg0: i32, %arg1: i32) -> (i32, i32) {
    %c0_i32 = arith.constant 0 : i32
    %c0_i32_0 = arith.constant 0 : i32
    %c0_i32_1 = arith.constant 0 : i32
    return %c0_i32, %c0_i32_0 : i32, i32
  }
  func.func @transform_42(%arg0: i32, %arg1: i32) -> (i32, i32) {
    %c0_i32 = arith.constant 0 : i32
    %c0_i32_0 = arith.constant 0 : i32
    %c0_i32_1 = arith.constant 0 : i32
    return %c0_i32, %c0_i32_0 : i32, i32
  }
  func.func @transform_43(%arg0: i32, %arg1: i32) -> (i32, i32) {
    %c0_i32 = arith.constant 0 : i32
    %c0_i32_0 = arith.constant 0 : i32
    %c0_i32_1 = arith.constant 0 : i32
    return %c0_i32, %c0_i32_0 : i32, i32
  }
  func.func @transform_44(%arg0: i32, %arg1: i32) -> (i32, i32) {
    %c0_i32 = arith.constant 0 : i32
    %c0_i32_0 = arith.constant 0 : i32
    %c0_i32_1 = arith.constant 0 : i32
    return %c0_i32, %c0_i32_0 : i32, i32
  }
  func.func @transform_45(%arg0: i32, %arg1: i32) -> (i32, i32) {
    %c0_i32 = arith.constant 0 : i32
    %c0_i32_0 = arith.constant 0 : i32
    %c0_i32_1 = arith.constant 0 : i32
    return %c0_i32, %c0_i32_0 : i32, i32
  }
  func.func @transform_46(%arg0: i32, %arg1: i32) -> (i32, i32) {
    %c0_i32 = arith.constant 0 : i32
    %c0_i32_0 = arith.constant 0 : i32
    %c0_i32_1 = arith.constant 0 : i32
    return %c0_i32, %c0_i32_0 : i32, i32
  }
  func.func @transform_47(%arg0: i32, %arg1: i32) -> (i32, i32, i32) {
    %c0_i32 = arith.constant 0 : i32
    %c0_i32_0 = arith.constant 0 : i32
    %c0_i32_1 = arith.constant 0 : i32
    return %arg0, %c0_i32, %c0_i32_0 : i32, i32, i32
  }
  func.func @transform_48(%arg0: i32, %arg1: i32) -> (i32, i32, i32) {
    %c0_i32 = arith.constant 0 : i32
    %c0_i32_0 = arith.constant 0 : i32
    %c0_i32_1 = arith.constant 0 : i32
    return %arg0, %c0_i32, %c0_i32_0 : i32, i32, i32
  }
}

</mosaic_0001>

<llo_original>
// kernel: rcw_forward.1
$region0: #{rcw_forward.1}
  #allocation0 [shape = 'u32[]', space=smem, size = 0x4, offset = 0x4, fixed_abs, tag = 'smem constant byte address 0x4 - core index']
  #allocation1 [shape = 'u32[144,128]{1,0:T(1,128)}', space=vmem, size = 0x12000, scoped, tag = 'internal scratch']
  #allocation2 [shape = 'f32[16,32]{1,0:T(8,128)}', space=vmem, size = 0x2000, scoped, tag = 'scratch operand']
  %s0 = inlined_call_operand.smem [shape: u32[49], index: -1, kind: input, shape index: {}]
  %s1 = sld [smem:[%s0]]
  %s2 = scalar_lea.smem %s0, 1
  %s3 = sld [smem:[%s2]]
  %s4 = scalar_lea.smem %s0, 2
  %s5 = sld [smem:[%s4]]
  %s6 = scalar_lea.smem %s0, 3
  %s7 = sld [smem:[%s6]]
  %s8 = scalar_lea.smem %s0, 4
  %s9 = sld [smem:[%s8]]
  %s10 = scalar_lea.smem %s0, 5
  %s11 = sld [smem:[%s10]]
  %s12 = scalar_lea.smem %s0, 6
  %s13 = sld [smem:[%s12]]
  %s14 = scalar_lea.smem %s0, 7
  %s15 = sld [smem:[%s14]]
  %s16 = scalar_lea.smem %s0, 8
  %s17 = sld [smem:[%s16]]
  %s18 = scalar_lea.smem %s0, 9
  %s19 = sld [smem:[%s18]]
  %s20 = scalar_lea.smem %s0, 10
  %s21 = sld [smem:[%s20]]
  %s22 = scalar_lea.smem %s0, 11
  %s23 = sld [smem:[%s22]]
  %s24 = scalar_lea.smem %s0, 12
  %s25 = sld [smem:[%s24]]
  %s26 = scalar_lea.smem %s0, 13
  %s27 = sld [smem:[%s26]]
  %s28 = scalar_lea.smem %s0, 14
  %s29 = sld [smem:[%s28]]
  %s30 = scalar_lea.smem %s0, 15
  %s31 = sld [smem:[%s30]]
  %s32 = scalar_lea.smem %s0, 16
  %s33 = sld [smem:[%s32]]
  %s34 = scalar_lea.smem %s0, 17
  %s35 = sld [smem:[%s34]]
  %s36 = scalar_lea.smem %s0, 18
  %s37 = sld [smem:[%s36]]
  %s38 = scalar_lea.smem %s0, 19
  %s39 = sld [smem:[%s38]]
  %s40 = scalar_lea.smem %s0, 20
  %s41 = sld [smem:[%s40]]
  %s42 = scalar_lea.smem %s0, 21
  %s43 = sld [smem:[%s42]]
  %s44 = scalar_lea.smem %s0, 22
  %s45 = sld [smem:[%s44]]
  %s46 = scalar_lea.smem %s0, 23
  %s47 = sld [smem:[%s46]]
  %s48 = scalar_lea.smem %s0, 24
  %s49 = sld [smem:[%s48]]
  %s50 = scalar_lea.smem %s0, 25
  %s51 = sld [smem:[%s50]]
  %s52 = scalar_lea.smem %s0, 26
  %s53 = sld [smem:[%s52]]
  %s54 = scalar_lea.smem %s0, 27
  %s55 = sld [smem:[%s54]]
  %s56 = scalar_lea.smem %s0, 28
  %s57 = sld [smem:[%s56]]
  %s58 = scalar_lea.smem %s0, 29
  %s59 = sld [smem:[%s58]]
  %s60 = scalar_lea.smem %s0, 30
  %s61 = sld [smem:[%s60]]
  %s62 = scalar_lea.smem %s0, 31
  %s63 = sld [smem:[%s62]]
  %s64 = scalar_lea.smem %s0, 32
  %s65 = sld [smem:[%s64]]
  %s66 = scalar_lea.smem %s0, 33
  %s67 = sld [smem:[%s66]]
  %s68 = scalar_lea.smem %s0, 34
  %s69 = sld [smem:[%s68]]
  %s70 = scalar_lea.smem %s0, 35
  %s71 = sld [smem:[%s70]]
  %s72 = scalar_lea.smem %s0, 36
  %s73 = sld [smem:[%s72]]
  %s74 = scalar_lea.smem %s0, 37
  %s75 = sld [smem:[%s74]]
  %s76 = scalar_lea.smem %s0, 38
  %s77 = sld [smem:[%s76]]
  %s78 = scalar_lea.smem %s0, 39
  %s79 = sld [smem:[%s78]]
  %s80 = scalar_lea.smem %s0, 40
  %s81 = sld [smem:[%s80]]
  %s82 = scalar_lea.smem %s0, 41
  %s83 = sld [smem:[%s82]]
  %s84 = scalar_lea.smem %s0, 42
  %s85 = sld [smem:[%s84]]
  %s86 = scalar_lea.smem %s0, 43
  %s87 = sld [smem:[%s86]]
  %s88 = scalar_lea.smem %s0, 44
  %s89 = sld [smem:[%s88]]
  %s90 = scalar_lea.smem %s0, 45
  %s91 = sld [smem:[%s90]]
  %s92 = scalar_lea.smem %s0, 46
  %s93 = sld [smem:[%s92]]
  %s94 = scalar_lea.smem %s0, 47
  %s95 = sld [smem:[%s94]]
  %s96 = scalar_lea.smem %s0, 48
  %s97 = sld [smem:[%s96]]
  %98 = xla_tuple %s95, %s97
  %s99 = sld [smem:[#allocation0]]
  $region237: #{rcw_forward.1} parent=0
    _
  %s101 = ssub.s32 1, %s99
  %s102 = scalar_select 0, %s101, %s99
  $region1: #{rcw_forward.1} parent=0
    #allocation3 [shape = 'u8[8192]{0}', space=vmem, size = 0x2000, scoped, tag = 'output window, operand 0, single buffered']
    #allocation4 [shape = 's32[2]{0}', space=sflag, size = 0x8, scoped, tag = 'scoped memory for rcw_forward.1']
    #allocation5 [shape = 'u8[16384]{0}', space=vmem, size = 0x4000, scoped, tag = 'output window, operand 1, single buffered']
    #allocation6 [shape = 's32[1]{0}', space=sflag, size = 0x4, scoped, tag = 'scoped memory for rcw_forward.1']
    %103 = vsyncpa [#allocation4], 0
    %104 = vsyncpa [#allocation6], 0
    loop: start=0, step=1, limit=6
    $region2: #{rcw_forward.1} parent=1 // loop_pre_header
      _
    $region3: #{rcw_forward.1} parent=1 // loop_header
      %s106 = sphi 0, %s110
      %p107 = scmp.ge.s32.totalorder %s106, 6
      %s113 = sphi 0, %s125
      %s114 = sphi 0, %s121
      %s115 = sphi 0, %s113
      %s116 = sphi 0, %s114
      %s117 = sphi 0, %s115
      %s118 = sphi 0, %s116
      %s128 = sphi 0, %s130
      %s131 = sphi 0, %s128
      %s132 = sphi 0, %s131
      %s148 = sphi 0, %s132
      %s154 = sphi 0, %s156
      %s157 = sphi 0, %s154
      %s158 = sphi 0, %s157
      %s174 = sphi 0, %s158
      %s178 = sphi 0, %s178
      %s180 = sphi 0, %s178
      %s181 = sphi 0, %s180
      %s195 = sphi 0, %s181
      %s199 = sphi 0, %s199
      %s201 = sphi 0, %s199
      %s202 = sphi 0, %s201
      %s216 = sphi 0, %s202
      %s220 = sphi 0, %s220
      %s222 = sphi 0, %s220
      %s223 = sphi 0, %s222
      %s237 = sphi 0, %s223
      %s241 = sphi 0, %s241
      %s243 = sphi 0, %s241
      %s244 = sphi 0, %s243
      %s258 = sphi 0, %s244
      %s262 = sphi 0, %s262
      %s264 = sphi 0, %s262
      %s265 = sphi 0, %s264
      %s279 = sphi 0, %s265
      %s283 = sphi 0, %s283
      %s285 = sphi 0, %s283
      %s286 = sphi 0, %s285
      %s300 = sphi 0, %s286
      %s304 = sphi 0, %s304
      %s306 = sphi 0, %s304
      %s307 = sphi 0, %s306
      %s321 = sphi 0, %s307
      %s325 = sphi 0, %s325
      %s327 = sphi 0, %s325
      %s328 = sphi 0, %s327
      %s342 = sphi 0, %s328
      %s346 = sphi 0, %s346
      %s348 = sphi 0, %s346
      %s349 = sphi 0, %s348
      %s363 = sphi 0, %s349
      %s367 = sphi 0, %s367
      %s369 = sphi 0, %s367
      %s370 = sphi 0, %s369
      %s384 = sphi 0, %s370
      %s388 = sphi 0, %s388
      %s390 = sphi 0, %s388
      %s391 = sphi 0, %s390
      %s405 = sphi 0, %s391
      %s409 = sphi 0, %s409
      %s411 = sphi 0, %s409
      %s412 = sphi 0, %s411
      %s426 = sphi 0, %s412
      %s430 = sphi 0, %s430
      %s432 = sphi 0, %s430
      %s433 = sphi 0, %s432
      %s447 = sphi 0, %s433
      %s451 = sphi 0, %s451
      %s453 = sphi 0, %s451
      %s454 = sphi 0, %s453
      %s468 = sphi 0, %s454
      %s472 = sphi 0, %s472
      %s474 = sphi 0, %s472
      %s475 = sphi 0, %s474
      %s489 = sphi 0, %s475
      %s495 = sphi 0, %s497
      %s498 = sphi 0, %s495
      %s499 = sphi 0, %s498
      %s515 = sphi 0, %s499
      %s521 = sphi 0, %s523
      %s524 = sphi 0, %s521
      %s525 = sphi 0, %s524
      %s541 = sphi 0, %s525
      %s547 = sphi 0, %s549
      %s550 = sphi 0, %s547
      %s551 = sphi 0, %s550
      %s567 = sphi 0, %s551
      %s573 = sphi 0, %s575
      %s576 = sphi 0, %s573
      %s577 = sphi 0, %s576
      %s593 = sphi 0, %s577
      %s599 = sphi 0, %s601
      %s602 = sphi 0, %s599
      %s603 = sphi 0, %s602
      %s619 = sphi 0, %s603
      %s625 = sphi 0, %s627
      %s628 = sphi 0, %s625
      %s629 = sphi 0, %s628
      %s645 = sphi 0, %s629
      %s651 = sphi 0, %s653
      %s654 = sphi 0, %s651
      %s655 = sphi 0, %s654
      %s671 = sphi 0, %s655
      %s677 = sphi 0, %s679
      %s680 = sphi 0, %s677
      %s681 = sphi 0, %s680
      %s697 = sphi 0, %s681
      %s703 = sphi 0, %s705
      %s706 = sphi 0, %s703
      %s707 = sphi 0, %s706
      %s723 = sphi 0, %s707
      %s729 = sphi 0, %s731
      %s732 = sphi 0, %s729
      %s733 = sphi 0, %s732
      %s749 = sphi 0, %s733
      %s755 = sphi 0, %s757
      %s758 = sphi 0, %s755
      %s759 = sphi 0, %s758
      %s775 = sphi 0, %s759
      %s781 = sphi 0, %s783
      %s784 = sphi 0, %s781
      %s785 = sphi 0, %s784
      %s801 = sphi 0, %s785
      %s807 = sphi 0, %s809
      %s810 = sphi 0, %s807
      %s811 = sphi 0, %s810
      %s827 = sphi 0, %s811
      %s833 = sphi 0, %s835
      %s836 = sphi 0, %s833
      %s837 = sphi 0, %s836
      %s853 = sphi 0, %s837
      %s859 = sphi 0, %s861
      %s862 = sphi 0, %s859
      %s863 = sphi 0, %s862
      %s879 = sphi 0, %s863
      %s883 = sphi 0, %s883
      %s885 = sphi 0, %s883
      %s886 = sphi 0, %s885
      %s900 = sphi 0, %s886
      %s904 = sphi 0, %s904
      %s906 = sphi 0, %s904
      %s907 = sphi 0, %s906
      %s921 = sphi 0, %s907
      %s925 = sphi 0, %s925
      %s927 = sphi 0, %s925
      %s928 = sphi 0, %s927
      %s942 = sphi 0, %s928
      %s946 = sphi 0, %s946
      %s948 = sphi 0, %s946
      %s949 = sphi 0, %s948
      %s963 = sphi 0, %s949
      %s967 = sphi 0, %s967
      %s969 = sphi 0, %s967
      %s970 = sphi 0, %s969
      %s984 = sphi 0, %s970
      %s988 = sphi 0, %s988
      %s990 = sphi 0, %s988
      %s991 = sphi 0, %s990
      %s1005 = sphi 0, %s991
      %s1009 = sphi 0, %s1009
      %s1011 = sphi 0, %s1009
      %s1012 = sphi 0, %s1011
      %s1026 = sphi 0, %s1012
      %s1030 = sphi 0, %s1030
      %s1032 = sphi 0, %s1030
      %s1033 = sphi 0, %s1032
      %s1047 = sphi 0, %s1033
      %s1051 = sphi 0, %s1051
      %s1053 = sphi 0, %s1051
      %s1054 = sphi 0, %s1053
      %s1068 = sphi 0, %s1054
      %s1072 = sphi 0, %s1072
      %s1074 = sphi 0, %s1072
      %s1075 = sphi 0, %s1074
      %s1089 = sphi 0, %s1075
      %s1093 = sphi 0, %s1093
      %s1095 = sphi 0, %s1093
      %s1096 = sphi 0, %s1095
      %s1110 = sphi 0, %s1096
      %s1114 = sphi 0, %s1114
      %s1116 = sphi 0, %s1114
      %s1117 = sphi 0, %s1116
      %s1131 = sphi 0, %s1117
      %s1135 = sphi 0, %s1135
      %s1137 = sphi 0, %s1135
      %s1138 = sphi 0, %s1137
      %s1152 = sphi 0, %s1138
      %s1156 = sphi 0, %s1156
      %s1158 = sphi 0, %s1156
      %s1159 = sphi 0, %s1158
      %s1173 = sphi 0, %s1159
      %s1177 = sphi 0, %s1177
      %s1179 = sphi 0, %s1177
      %s1180 = sphi 0, %s1179
      %s1194 = sphi 0, %s1180
      %s1200 = sphi 0, %s1202
      %s1203 = sphi 0, %s1200
      %s1204 = sphi 0, %s1203
      %s1220 = sphi 0, %s1204
      %s1226 = sphi 0, %s1228
      %s1229 = sphi 0, %s1226
      %s1230 = sphi 0, %s1229
      %s1246 = sphi 0, %s1230
    $region4: #{rcw_forward.1} parent=1 // loop_header_branch
      %109 = sbr.rel (%p107) target = $region8
    $region5: #{rcw_forward.1} parent=1 // loop_body
      %s111 = ssub.s32 %s106, 1
      %s112 = ssub.s32 %s106, 2
      %s119 = sadd.s32 1, %s114
      %p120 = scmp.ge.s32.totalorder %s119, 4
      %s121 = scalar_select %p120, 0, %s119
      %s122 = sadd.s32 1, %s113
      %s123 = scalar_select %p120, %s122, %s113
      %p124 = scmp.ge.s32.totalorder %s123, 1
      %s125 = scalar_select %p124, 0, %s123
      %s126 = ssub.s32 %s113, %s125
      %p127 = scmp.eq.s32.totalorder %s126, 0
      %s129 = sadd.s32 %s128, 1
      %s130 = scalar_select %p127, %s128, %s129
      %p133 = pneg %p127
      %p134 = scmp.eq.s32.totalorder %s106, 3
      %p135 = por %p133, %p134
      %p136 = scmp.ne.s32.totalorder %s128, %s131
      %p137 = scmp.eq.s32.totalorder %s106, 0
      %p138 = por %p136, %p137
      %p139 = scmp.ne.s32.totalorder %s128, %s131
      %p140 = scmp.eq.s32.totalorder %s111, 3
      %p141 = por %p139, %p140
      %p142 = scmp.ne.s32.totalorder %s131, %s132
      %p143 = scmp.eq.s32.totalorder %s111, 0
      %p144 = por %p142, %p143
      %p145 = scmp.ne.s32.totalorder %s131, %s132
      %p146 = scmp.eq.s32.totalorder %s112, 3
      %p147 = por %p145, %p146
      %p149 = scmp.ne.s32.totalorder %s132, %s148
      %p150 = scmp.eq.s32.totalorder %s112, 0
      %p151 = por %p149, %p150
      %s152 = ssub.s32 %s113, %s125
      %p153 = scmp.eq.s32.totalorder %s152, 0
      %s155 = sadd.s32 %s154, 1
      %s156 = scalar_select %p153, %s154, %s155
      %p159 = pneg %p153
      %p160 = scmp.eq.s32.totalorder %s106, 3
      %p161 = por %p159, %p160
      %p162 = scmp.ne.s32.totalorder %s154, %s157
      %p163 = scmp.eq.s32.totalorder %s106, 0
      %p164 = por %p162, %p163
      %p165 = scmp.ne.s32.totalorder %s154, %s157
      %p166 = scmp.eq.s32.totalorder %s111, 3
      %p167 = por %p165, %p166
      %p168 = scmp.ne.s32.totalorder %s157, %s158
      %p169 = scmp.eq.s32.totalorder %s111, 0
      %p170 = por %p168, %p169
      %p171 = scmp.ne.s32.totalorder %s157, %s158
      %p172 = scmp.eq.s32.totalorder %s112, 3
      %p173 = por %p171, %p172
      %p175 = scmp.ne.s32.totalorder %s158, %s174
      %p176 = scmp.eq.s32.totalorder %s112, 0
      %p177 = por %p175, %p176
      %s179 = sadd.s32 %s178, 1
      %p182 = scmp.eq.s32.totalorder %s106, 3
      %p183 = scmp.ne.s32.totalorder %s178, %s180
      %p184 = scmp.eq.s32.totalorder %s106, 0
      %p185 = por %p183, %p184
      %p186 = scmp.ne.s32.totalorder %s178, %s180
      %p187 = scmp.eq.s32.totalorder %s111, 3
      %p188 = por %p186, %p187
      %p189 = scmp.ne.s32.totalorder %s180, %s181
      %p190 = scmp.eq.s32.totalorder %s111, 0
      %p191 = por %p189, %p190
      %p192 = scmp.ne.s32.totalorder %s180, %s181
      %p193 = scmp.eq.s32.totalorder %s112, 3
      %p194 = por %p192, %p193
      %p196 = scmp.ne.s32.totalorder %s181, %s195
      %p197 = scmp.eq.s32.totalorder %s112, 0
      %p198 = por %p196, %p197
      %s200 = sadd.s32 %s199, 1
      %p203 = scmp.eq.s32.totalorder %s106, 3
      %p204 = scmp.ne.s32.totalorder %s199, %s201
      %p205 = scmp.eq.s32.totalorder %s106, 0
      %p206 = por %p204, %p205
      %p207 = scmp.ne.s32.totalorder %s199, %s201
      %p208 = scmp.eq.s32.totalorder %s111, 3
      %p209 = por %p207, %p208
      %p210 = scmp.ne.s32.totalorder %s201, %s202
      %p211 = scmp.eq.s32.totalorder %s111, 0
      %p212 = por %p210, %p211
      %p213 = scmp.ne.s32.totalorder %s201, %s202
      %p214 = scmp.eq.s32.totalorder %s112, 3
      %p215 = por %p213, %p214
      %p217 = scmp.ne.s32.totalorder %s202, %s216
      %p218 = scmp.eq.s32.totalorder %s112, 0
      %p219 = por %p217, %p218
      %s221 = sadd.s32 %s220, 1
      %p224 = scmp.eq.s32.totalorder %s106, 3
      %p225 = scmp.ne.s32.totalorder %s220, %s222
      %p226 = scmp.eq.s32.totalorder %s106, 0
      %p227 = por %p225, %p226
      %p228 = scmp.ne.s32.totalorder %s220, %s222
      %p229 = scmp.eq.s32.totalorder %s111, 3
      %p230 = por %p228, %p229
      %p231 = scmp.ne.s32.totalorder %s222, %s223
      %p232 = scmp.eq.s32.totalorder %s111, 0
      %p233 = por %p231, %p232
      %p234 = scmp.ne.s32.totalorder %s222, %s223
      %p235 = scmp.eq.s32.totalorder %s112, 3
      %p236 = por %p234, %p235
      %p238 = scmp.ne.s32.totalorder %s223, %s237
      %p239 = scmp.eq.s32.totalorder %s112, 0
      %p240 = por %p238, %p239
      %s242 = sadd.s32 %s241, 1
      %p245 = scmp.eq.s32.totalorder %s106, 3
      %p246 = scmp.ne.s32.totalorder %s241, %s243
      %p247 = scmp.eq.s32.totalorder %s106, 0
      %p248 = por %p246, %p247
      %p249 = scmp.ne.s32.totalorder %s241, %s243
      %p250 = scmp.eq.s32.totalorder %s111, 3
      %p251 = por %p249, %p250
      %p252 = scmp.ne.s32.totalorder %s243, %s244
      %p253 = scmp.eq.s32.totalorder %s111, 0
      %p254 = por %p252, %p253
      %p255 = scmp.ne.s32.totalorder %s243, %s244
      %p256 = scmp.eq.s32.totalorder %s112, 3
      %p257 = por %p255, %p256
      %p259 = scmp.ne.s32.totalorder %s244, %s258
      %p260 = scmp.eq.s32.totalorder %s112, 0
      %p261 = por %p259, %p260
      %s263 = sadd.s32 %s262, 1
      %p266 = scmp.eq.s32.totalorder %s106, 3
      %p267 = scmp.ne.s32.totalorder %s262, %s264
      %p268 = scmp.eq.s32.totalorder %s106, 0
      %p269 = por %p267, %p268
      %p270 = scmp.ne.s32.totalorder %s262, %s264
      %p271 = scmp.eq.s32.totalorder %s111, 3
      %p272 = por %p270, %p271
      %p273 = scmp.ne.s32.totalorder %s264, %s265
      %p274 = scmp.eq.s32.totalorder %s111, 0
      %p275 = por %p273, %p274
      %p276 = scmp.ne.s32.totalorder %s264, %s265
      %p277 = scmp.eq.s32.totalorder %s112, 3
      %p278 = por %p276, %p277
      %p280 = scmp.ne.s32.totalorder %s265, %s279
      %p281 = scmp.eq.s32.totalorder %s112, 0
      %p282 = por %p280, %p281
      %s284 = sadd.s32 %s283, 1
      %p287 = scmp.eq.s32.totalorder %s106, 3
      %p288 = scmp.ne.s32.totalorder %s283, %s285
      %p289 = scmp.eq.s32.totalorder %s106, 0
      %p290 = por %p288, %p289
      %p291 = scmp.ne.s32.totalorder %s283, %s285
      %p292 = scmp.eq.s32.totalorder %s111, 3
      %p293 = por %p291, %p292
      %p294 = scmp.ne.s32.totalorder %s285, %s286
      %p295 = scmp.eq.s32.totalorder %s111, 0
      %p296 = por %p294, %p295
      %p297 = scmp.ne.s32.totalorder %s285, %s286
      %p298 = scmp.eq.s32.totalorder %s112, 3
      %p299 = por %p297, %p298
      %p301 = scmp.ne.s32.totalorder %s286, %s300
      %p302 = scmp.eq.s32.totalorder %s112, 0
      %p303 = por %p301, %p302
      %s305 = sadd.s32 %s304, 1
      %p308 = scmp.eq.s32.totalorder %s106, 3
      %p309 = scmp.ne.s32.totalorder %s304, %s306
      %p310 = scmp.eq.s32.totalorder %s106, 0
      %p311 = por %p309, %p310
      %p312 = scmp.ne.s32.totalorder %s304, %s306
      %p313 = scmp.eq.s32.totalorder %s111, 3
      %p314 = por %p312, %p313
      %p315 = scmp.ne.s32.totalorder %s306, %s307
      %p316 = scmp.eq.s32.totalorder %s111, 0
      %p317 = por %p315, %p316
      %p318 = scmp.ne.s32.totalorder %s306, %s307
      %p319 = scmp.eq.s32.totalorder %s112, 3
      %p320 = por %p318, %p319
      %p322 = scmp.ne.s32.totalorder %s307, %s321
      %p323 = scmp.eq.s32.totalorder %s112, 0
      %p324 = por %p322, %p323
      %s326 = sadd.s32 %s325, 1
      %p329 = scmp.eq.s32.totalorder %s106, 3
      %p330 = scmp.ne.s32.totalorder %s325, %s327
      %p331 = scmp.eq.s32.totalorder %s106, 0
      %p332 = por %p330, %p331
      %p333 = scmp.ne.s32.totalorder %s325, %s327
      %p334 = scmp.eq.s32.totalorder %s111, 3
      %p335 = por %p333, %p334
      %p336 = scmp.ne.s32.totalorder %s327, %s328
      %p337 = scmp.eq.s32.totalorder %s111, 0
      %p338 = por %p336, %p337
      %p339 = scmp.ne.s32.totalorder %s327, %s328
      %p340 = scmp.eq.s32.totalorder %s112, 3
      %p341 = por %p339, %p340
      %p343 = scmp.ne.s32.totalorder %s328, %s342
      %p344 = scmp.eq.s32.totalorder %s112, 0
      %p345 = por %p343, %p344
      %s347 = sadd.s32 %s346, 1
      %p350 = scmp.eq.s32.totalorder %s106, 3
      %p351 = scmp.ne.s32.totalorder %s346, %s348
      %p352 = scmp.eq.s32.totalorder %s106, 0
      %p353 = por %p351, %p352
      %p354 = scmp.ne.s32.totalorder %s346, %s348
      %p355 = scmp.eq.s32.totalorder %s111, 3
      %p356 = por %p354, %p355
      %p357 = scmp.ne.s32.totalorder %s348, %s349
      %p358 = scmp.eq.s32.totalorder %s111, 0
      %p359 = por %p357, %p358
      %p360 = scmp.ne.s32.totalorder %s348, %s349
      %p361 = scmp.eq.s32.totalorder %s112, 3
      %p362 = por %p360, %p361
      %p364 = scmp.ne.s32.totalorder %s349, %s363
      %p365 = scmp.eq.s32.totalorder %s112, 0
      %p366 = por %p364, %p365
      %s368 = sadd.s32 %s367, 1
      %p371 = scmp.eq.s32.totalorder %s106, 3
      %p372 = scmp.ne.s32.totalorder %s367, %s369
      %p373 = scmp.eq.s32.totalorder %s106, 0
      %p374 = por %p372, %p373
      %p375 = scmp.ne.s32.totalorder %s367, %s369
      %p376 = scmp.eq.s32.totalorder %s111, 3
      %p377 = por %p375, %p376
      %p378 = scmp.ne.s32.totalorder %s369, %s370
      %p379 = scmp.eq.s32.totalorder %s111, 0
      %p380 = por %p378, %p379
      %p381 = scmp.ne.s32.totalorder %s369, %s370
      %p382 = scmp.eq.s32.totalorder %s112, 3
      %p383 = por %p381, %p382
      %p385 = scmp.ne.s32.totalorder %s370, %s384
      %p386 = scmp.eq.s32.totalorder %s112, 0
      %p387 = por %p385, %p386
      %s389 = sadd.s32 %s388, 1
      %p392 = scmp.eq.s32.totalorder %s106, 3
      %p393 = scmp.ne.s32.totalorder %s388, %s390
      %p394 = scmp.eq.s32.totalorder %s106, 0
      %p395 = por %p393, %p394
      %p396 = scmp.ne.s32.totalorder %s388, %s390
      %p397 = scmp.eq.s32.totalorder %s111, 3
      %p398 = por %p396, %p397
      %p399 = scmp.ne.s32.totalorder %s390, %s391
      %p400 = scmp.eq.s32.totalorder %s111, 0
      %p401 = por %p399, %p400
      %p402 = scmp.ne.s32.totalorder %s390, %s391
      %p403 = scmp.eq.s32.totalorder %s112, 3
      %p404 = por %p402, %p403
      %p406 = scmp.ne.s32.totalorder %s391, %s405
      %p407 = scmp.eq.s32.totalorder %s112, 0
      %p408 = por %p406, %p407
      %s410 = sadd.s32 %s409, 1
      %p413 = scmp.eq.s32.totalorder %s106, 3
      %p414 = scmp.ne.s32.totalorder %s409, %s411
      %p415 = scmp.eq.s32.totalorder %s106, 0
      %p416 = por %p414, %p415
      %p417 = scmp.ne.s32.totalorder %s409, %s411
      %p418 = scmp.eq.s32.totalorder %s111, 3
      %p419 = por %p417, %p418
      %p420 = scmp.ne.s32.totalorder %s411, %s412
      %p421 = scmp.eq.s32.totalorder %s111, 0
      %p422 = por %p420, %p421
      %p423 = scmp.ne.s32.totalorder %s411, %s412
      %p424 = scmp.eq.s32.totalorder %s112, 3
      %p425 = por %p423, %p424
      %p427 = scmp.ne.s32.totalorder %s412, %s426
      %p428 = scmp.eq.s32.totalorder %s112, 0
      %p429 = por %p427, %p428
      %s431 = sadd.s32 %s430, 1
      %p434 = scmp.eq.s32.totalorder %s106, 3
      %p435 = scmp.ne.s32.totalorder %s430, %s432
      %p436 = scmp.eq.s32.totalorder %s106, 0
      %p437 = por %p435, %p436
      %p438 = scmp.ne.s32.totalorder %s430, %s432
      %p439 = scmp.eq.s32.totalorder %s111, 3
      %p440 = por %p438, %p439
      %p441 = scmp.ne.s32.totalorder %s432, %s433
      %p442 = scmp.eq.s32.totalorder %s111, 0
      %p443 = por %p441, %p442
      %p444 = scmp.ne.s32.totalorder %s432, %s433
      %p445 = scmp.eq.s32.totalorder %s112, 3
      %p446 = por %p444, %p445
      %p448 = scmp.ne.s32.totalorder %s433, %s447
      %p449 = scmp.eq.s32.totalorder %s112, 0
      %p450 = por %p448, %p449
      %s452 = sadd.s32 %s451, 1
      %p455 = scmp.eq.s32.totalorder %s106, 3
      %p456 = scmp.ne.s32.totalorder %s451, %s453
      %p457 = scmp.eq.s32.totalorder %s106, 0
      %p458 = por %p456, %p457
      %p459 = scmp.ne.s32.totalorder %s451, %s453
      %p460 = scmp.eq.s32.totalorder %s111, 3
      %p461 = por %p459, %p460
      %p462 = scmp.ne.s32.totalorder %s453, %s454
      %p463 = scmp.eq.s32.totalorder %s111, 0
      %p464 = por %p462, %p463
      %p465 = scmp.ne.s32.totalorder %s453, %s454
      %p466 = scmp.eq.s32.totalorder %s112, 3
      %p467 = por %p465, %p466
      %p469 = scmp.ne.s32.totalorder %s454, %s468
      %p470 = scmp.eq.s32.totalorder %s112, 0
      %p471 = por %p469, %p470
      %s473 = sadd.s32 %s472, 1
      %p476 = scmp.eq.s32.totalorder %s106, 3
      %p477 = scmp.ne.s32.totalorder %s472, %s474
      %p478 = scmp.eq.s32.totalorder %s106, 0
      %p479 = por %p477, %p478
      %p480 = scmp.ne.s32.totalorder %s472, %s474
      %p481 = scmp.eq.s32.totalorder %s111, 3
      %p482 = por %p480, %p481
      %p483 = scmp.ne.s32.totalorder %s474, %s475
      %p484 = scmp.eq.s32.totalorder %s111, 0
      %p485 = por %p483, %p484
      %p486 = scmp.ne.s32.totalorder %s474, %s475
      %p487 = scmp.eq.s32.totalorder %s112, 3
      %p488 = por %p486, %p487
      %p490 = scmp.ne.s32.totalorder %s475, %s489
      %p491 = scmp.eq.s32.totalorder %s112, 0
      %p492 = por %p490, %p491
      %s493 = ssub.s32 %s114, %s121
      %p494 = scmp.eq.s32.totalorder %s493, 0
      %s496 = sadd.s32 %s495, 1
      %s497 = scalar_select %p494, %s495, %s496
      %p500 = pneg %p494
      %p501 = scmp.eq.s32.totalorder %s106, 3
      %p502 = por %p500, %p501
      %p503 = scmp.ne.s32.totalorder %s495, %s498
      %p504 = scmp.eq.s32.totalorder %s106, 0
      %p505 = por %p503, %p504
      %p506 = scmp.ne.s32.totalorder %s495, %s498
      %p507 = scmp.eq.s32.totalorder %s111, 3
      %p508 = por %p506, %p507
      %p509 = scmp.ne.s32.totalorder %s498, %s499
      %p510 = scmp.eq.s32.totalorder %s111, 0
      %p511 = por %p509, %p510
      %p512 = scmp.ne.s32.totalorder %s498, %s499
      %p513 = scmp.eq.s32.totalorder %s112, 3
      %p514 = por %p512, %p513
      %p516 = scmp.ne.s32.totalorder %s499, %s515
      %p517 = scmp.eq.s32.totalorder %s112, 0
      %p518 = por %p516, %p517
      %s519 = ssub.s32 %s114, %s121
      %p520 = scmp.eq.s32.totalorder %s519, 0
      %s522 = sadd.s32 %s521, 1
      %s523 = scalar_select %p520, %s521, %s522
      %p526 = pneg %p520
      %p527 = scmp.eq.s32.totalorder %s106, 3
      %p528 = por %p526, %p527
      %p529 = scmp.ne.s32.totalorder %s521, %s524
      %p530 = scmp.eq.s32.totalorder %s106, 0
      %p531 = por %p529, %p530
      %p532 = scmp.ne.s32.totalorder %s521, %s524
      %p533 = scmp.eq.s32.totalorder %s111, 3
      %p534 = por %p532, %p533
      %p535 = scmp.ne.s32.totalorder %s524, %s525
      %p536 = scmp.eq.s32.totalorder %s111, 0
      %p537 = por %p535, %p536
      %p538 = scmp.ne.s32.totalorder %s524, %s525
      %p539 = scmp.eq.s32.totalorder %s112, 3
      %p540 = por %p538, %p539
      %p542 = scmp.ne.s32.totalorder %s525, %s541
      %p543 = scmp.eq.s32.totalorder %s112, 0
      %p544 = por %p542, %p543
      %s545 = ssub.s32 %s114, %s121
      %p546 = scmp.eq.s32.totalorder %s545, 0
      %s548 = sadd.s32 %s547, 1
      %s549 = scalar_select %p546, %s547, %s548
      %p552 = pneg %p546
      %p553 = scmp.eq.s32.totalorder %s106, 3
      %p554 = por %p552, %p553
      %p555 = scmp.ne.s32.totalorder %s547, %s550
      %p556 = scmp.eq.s32.totalorder %s106, 0
      %p557 = por %p555, %p556
      %p558 = scmp.ne.s32.totalorder %s547, %s550
      %p559 = scmp.eq.s32.totalorder %s111, 3
      %p560 = por %p558, %p559
      %p561 = scmp.ne.s32.totalorder %s550, %s551
      %p562 = scmp.eq.s32.totalorder %s111, 0
      %p563 = por %p561, %p562
      %p564 = scmp.ne.s32.totalorder %s550, %s551
      %p565 = scmp.eq.s32.totalorder %s112, 3
      %p566 = por %p564, %p565
      %p568 = scmp.ne.s32.totalorder %s551, %s567
      %p569 = scmp.eq.s32.totalorder %s112, 0
      %p570 = por %p568, %p569
      %s571 = ssub.s32 %s114, %s121
      %p572 = scmp.eq.s32.totalorder %s571, 0
      %s574 = sadd.s32 %s573, 1
      %s575 = scalar_select %p572, %s573, %s574
      %p578 = pneg %p572
      %p579 = scmp.eq.s32.totalorder %s106, 3
      %p580 = por %p578, %p579
      %p581 = scmp.ne.s32.totalorder %s573, %s576
      %p582 = scmp.eq.s32.totalorder %s106, 0
      %p583 = por %p581, %p582
      %p584 = scmp.ne.s32.totalorder %s573, %s576
      %p585 = scmp.eq.s32.totalorder %s111, 3
      %p586 = por %p584, %p585
      %p587 = scmp.ne.s32.totalorder %s576, %s577
      %p588 = scmp.eq.s32.totalorder %s111, 0
      %p589 = por %p587, %p588
      %p590 = scmp.ne.s32.totalorder %s576, %s577
      %p591 = scmp.eq.s32.totalorder %s112, 3
      %p592 = por %p590, %p591
      %p594 = scmp.ne.s32.totalorder %s577, %s593
      %p595 = scmp.eq.s32.totalorder %s112, 0
      %p596 = por %p594, %p595
      %s597 = ssub.s32 %s114, %s121
      %p598 = scmp.eq.s32.totalorder %s597, 0
      %s600 = sadd.s32 %s599, 1
      %s601 = scalar_select %p598, %s599, %s600
      %p604 = pneg %p598
      %p605 = scmp.eq.s32.totalorder %s106, 3
      %p606 = por %p604, %p605
      %p607 = scmp.ne.s32.totalorder %s599, %s602
      %p608 = scmp.eq.s32.totalorder %s106, 0
      %p609 = por %p607, %p608
      %p610 = scmp.ne.s32.totalorder %s599, %s602
      %p611 = scmp.eq.s32.totalorder %s111, 3
      %p612 = por %p610, %p611
      %p613 = scmp.ne.s32.totalorder %s602, %s603
      %p614 = scmp.eq.s32.totalorder %s111, 0
      %p615 = por %p613, %p614
      %p616 = scmp.ne.s32.totalorder %s602, %s603
      %p617 = scmp.eq.s32.totalorder %s112, 3
      %p618 = por %p616, %p617
      %p620 = scmp.ne.s32.totalorder %s603, %s619
      %p621 = scmp.eq.s32.totalorder %s112, 0
      %p622 = por %p620, %p621
      %s623 = ssub.s32 %s114, %s121
      %p624 = scmp.eq.s32.totalorder %s623, 0
      %s626 = sadd.s32 %s625, 1
      %s627 = scalar_select %p624, %s625, %s626
      %p630 = pneg %p624
      %p631 = scmp.eq.s32.totalorder %s106, 3
      %p632 = por %p630, %p631
      %p633 = scmp.ne.s32.totalorder %s625, %s628
      %p634 = scmp.eq.s32.totalorder %s106, 0
      %p635 = por %p633, %p634
      %p636 = scmp.ne.s32.totalorder %s625, %s628
      %p637 = scmp.eq.s32.totalorder %s111, 3
      %p638 = por %p636, %p637
      %p639 = scmp.ne.s32.totalorder %s628, %s629
      %p640 = scmp.eq.s32.totalorder %s111, 0
      %p641 = por %p639, %p640
      %p642 = scmp.ne.s32.totalorder %s628, %s629
      %p643 = scmp.eq.s32.totalorder %s112, 3
      %p644 = por %p642, %p643
      %p646 = scmp.ne.s32.totalorder %s629, %s645
      %p647 = scmp.eq.s32.totalorder %s112, 0
      %p648 = por %p646, %p647
      %s649 = ssub.s32 %s114, %s121
      %p650 = scmp.eq.s32.totalorder %s649, 0
      %s652 = sadd.s32 %s651, 1
      %s653 = scalar_select %p650, %s651, %s652
      %p656 = pneg %p650
      %p657 = scmp.eq.s32.totalorder %s106, 3
      %p658 = por %p656, %p657
      %p659 = scmp.ne.s32.totalorder %s651, %s654
      %p660 = scmp.eq.s32.totalorder %s106, 0
      %p661 = por %p659, %p660
      %p662 = scmp.ne.s32.totalorder %s651, %s654
      %p663 = scmp.eq.s32.totalorder %s111, 3
      %p664 = por %p662, %p663
      %p665 = scmp.ne.s32.totalorder %s654, %s655
      %p666 = scmp.eq.s32.totalorder %s111, 0
      %p667 = por %p665, %p666
      %p668 = scmp.ne.s32.totalorder %s654, %s655
      %p669 = scmp.eq.s32.totalorder %s112, 3
      %p670 = por %p668, %p669
      %p672 = scmp.ne.s32.totalorder %s655, %s671
      %p673 = scmp.eq.s32.totalorder %s112, 0
      %p674 = por %p672, %p673
      %s675 = ssub.s32 %s114, %s121
      %p676 = scmp.eq.s32.totalorder %s675, 0
      %s678 = sadd.s32 %s677, 1
      %s679 = scalar_select %p676, %s677, %s678
      %p682 = pneg %p676
      %p683 = scmp.eq.s32.totalorder %s106, 3
      %p684 = por %p682, %p683
      %p685 = scmp.ne.s32.totalorder %s677, %s680
      %p686 = scmp.eq.s32.totalorder %s106, 0
      %p687 = por %p685, %p686
      %p688 = scmp.ne.s32.totalorder %s677, %s680
      %p689 = scmp.eq.s32.totalorder %s111, 3
      %p690 = por %p688, %p689
      %p691 = scmp.ne.s32.totalorder %s680, %s681
      %p692 = scmp.eq.s32.totalorder %s111, 0
      %p693 = por %p691, %p692
      %p694 = scmp.ne.s32.totalorder %s680, %s681
      %p695 = scmp.eq.s32.totalorder %s112, 3
      %p696 = por %p694, %p695
      %p698 = scmp.ne.s32.totalorder %s681, %s697
      %p699 = scmp.eq.s32.totalorder %s112, 0
      %p700 = por %p698, %p699
      %s701 = ssub.s32 %s114, %s121
      %p702 = scmp.eq.s32.totalorder %s701, 0
      %s704 = sadd.s32 %s703, 1
      %s705 = scalar_select %p702, %s703, %s704
      %p708 = pneg %p702
      %p709 = scmp.eq.s32.totalorder %s106, 3
      %p710 = por %p708, %p709
      %p711 = scmp.ne.s32.totalorder %s703, %s706
      %p712 = scmp.eq.s32.totalorder %s106, 0
      %p713 = por %p711, %p712
      %p714 = scmp.ne.s32.totalorder %s703, %s706
      %p715 = scmp.eq.s32.totalorder %s111, 3
      %p716 = por %p714, %p715
      %p717 = scmp.ne.s32.totalorder %s706, %s707
      %p718 = scmp.eq.s32.totalorder %s111, 0
      %p719 = por %p717, %p718
      %p720 = scmp.ne.s32.totalorder %s706, %s707
      %p721 = scmp.eq.s32.totalorder %s112, 3
      %p722 = por %p720, %p721
      %p724 = scmp.ne.s32.totalorder %s707, %s723
      %p725 = scmp.eq.s32.totalorder %s112, 0
      %p726 = por %p724, %p725
      %s727 = ssub.s32 %s114, %s121
      %p728 = scmp.eq.s32.totalorder %s727, 0
      %s730 = sadd.s32 %s729, 1
      %s731 = scalar_select %p728, %s729, %s730
      %p734 = pneg %p728
      %p735 = scmp.eq.s32.totalorder %s106, 3
      %p736 = por %p734, %p735
      %p737 = scmp.ne.s32.totalorder %s729, %s732
      %p738 = scmp.eq.s32.totalorder %s106, 0
      %p739 = por %p737, %p738
      %p740 = scmp.ne.s32.totalorder %s729, %s732
      %p741 = scmp.eq.s32.totalorder %s111, 3
      %p742 = por %p740, %p741
      %p743 = scmp.ne.s32.totalorder %s732, %s733
      %p744 = scmp.eq.s32.totalorder %s111, 0
      %p745 = por %p743, %p744
      %p746 = scmp.ne.s32.totalorder %s732, %s733
      %p747 = scmp.eq.s32.totalorder %s112, 3
      %p748 = por %p746, %p747
      %p750 = scmp.ne.s32.totalorder %s733, %s749
      %p751 = scmp.eq.s32.totalorder %s112, 0
      %p752 = por %p750, %p751
      %s753 = ssub.s32 %s114, %s121
      %p754 = scmp.eq.s32.totalorder %s753, 0
      %s756 = sadd.s32 %s755, 1
      %s757 = scalar_select %p754, %s755, %s756
      %p760 = pneg %p754
      %p761 = scmp.eq.s32.totalorder %s106, 3
      %p762 = por %p760, %p761
      %p763 = scmp.ne.s32.totalorder %s755, %s758
      %p764 = scmp.eq.s32.totalorder %s106, 0
      %p765 = por %p763, %p764
      %p766 = scmp.ne.s32.totalorder %s755, %s758
      %p767 = scmp.eq.s32.totalorder %s111, 3
      %p768 = por %p766, %p767
      %p769 = scmp.ne.s32.totalorder %s758, %s759
      %p770 = scmp.eq.s32.totalorder %s111, 0
      %p771 = por %p769, %p770
      %p772 = scmp.ne.s32.totalorder %s758, %s759
      %p773 = scmp.eq.s32.totalorder %s112, 3
      %p774 = por %p772, %p773
      %p776 = scmp.ne.s32.totalorder %s759, %s775
      %p777 = scmp.eq.s32.totalorder %s112, 0
      %p778 = por %p776, %p777
      %s779 = ssub.s32 %s114, %s121
      %p780 = scmp.eq.s32.totalorder %s779, 0
      %s782 = sadd.s32 %s781, 1
      %s783 = scalar_select %p780, %s781, %s782
      %p786 = pneg %p780
      %p787 = scmp.eq.s32.totalorder %s106, 3
      %p788 = por %p786, %p787
      %p789 = scmp.ne.s32.totalorder %s781, %s784
      %p790 = scmp.eq.s32.totalorder %s106, 0
      %p791 = por %p789, %p790
      %p792 = scmp.ne.s32.totalorder %s781, %s784
      %p793 = scmp.eq.s32.totalorder %s111, 3
      %p794 = por %p792, %p793
      %p795 = scmp.ne.s32.totalorder %s784, %s785
      %p796 = scmp.eq.s32.totalorder %s111, 0
      %p797 = por %p795, %p796
      %p798 = scmp.ne.s32.totalorder %s784, %s785
      %p799 = scmp.eq.s32.totalorder %s112, 3
      %p800 = por %p798, %p799
      %p802 = scmp.ne.s32.totalorder %s785, %s801
      %p803 = scmp.eq.s32.totalorder %s112, 0
      %p804 = por %p802, %p803
      %s805 = ssub.s32 %s114, %s121
      %p806 = scmp.eq.s32.totalorder %s805, 0
      %s808 = sadd.s32 %s807, 1
      %s809 = scalar_select %p806, %s807, %s808
      %p812 = pneg %p806
      %p813 = scmp.eq.s32.totalorder %s106, 3
      %p814 = por %p812, %p813
      %p815 = scmp.ne.s32.totalorder %s807, %s810
      %p816 = scmp.eq.s32.totalorder %s106, 0
      %p817 = por %p815, %p816
      %p818 = scmp.ne.s32.totalorder %s807, %s810
      %p819 = scmp.eq.s32.totalorder %s111, 3
      %p820 = por %p818, %p819
      %p821 = scmp.ne.s32.totalorder %s810, %s811
      %p822 = scmp.eq.s32.totalorder %s111, 0
      %p823 = por %p821, %p822
      %p824 = scmp.ne.s32.totalorder %s810, %s811
      %p825 = scmp.eq.s32.totalorder %s112, 3
      %p826 = por %p824, %p825
      %p828 = scmp.ne.s32.totalorder %s811, %s827
      %p829 = scmp.eq.s32.totalorder %s112, 0
      %p830 = por %p828, %p829
      %s831 = ssub.s32 %s114, %s121
      %p832 = scmp.eq.s32.totalorder %s831, 0
      %s834 = sadd.s32 %s833, 1
      %s835 = scalar_select %p832, %s833, %s834
      %p838 = pneg %p832
      %p839 = scmp.eq.s32.totalorder %s106, 3
      %p840 = por %p838, %p839
      %p841 = scmp.ne.s32.totalorder %s833, %s836
      %p842 = scmp.eq.s32.totalorder %s106, 0
      %p843 = por %p841, %p842
      %p844 = scmp.ne.s32.totalorder %s833, %s836
      %p845 = scmp.eq.s32.totalorder %s111, 3
      %p846 = por %p844, %p845
      %p847 = scmp.ne.s32.totalorder %s836, %s837
      %p848 = scmp.eq.s32.totalorder %s111, 0
      %p849 = por %p847, %p848
      %p850 = scmp.ne.s32.totalorder %s836, %s837
      %p851 = scmp.eq.s32.totalorder %s112, 3
      %p852 = por %p850, %p851
      %p854 = scmp.ne.s32.totalorder %s837, %s853
      %p855 = scmp.eq.s32.totalorder %s112, 0
      %p856 = por %p854, %p855
      %s857 = ssub.s32 %s114, %s121
      %p858 = scmp.eq.s32.totalorder %s857, 0
      %s860 = sadd.s32 %s859, 1
      %s861 = scalar_select %p858, %s859, %s860
      %p864 = pneg %p858
      %p865 = scmp.eq.s32.totalorder %s106, 3
      %p866 = por %p864, %p865
      %p867 = scmp.ne.s32.totalorder %s859, %s862
      %p868 = scmp.eq.s32.totalorder %s106, 0
      %p869 = por %p867, %p868
      %p870 = scmp.ne.s32.totalorder %s859, %s862
      %p871 = scmp.eq.s32.totalorder %s111, 3
      %p872 = por %p870, %p871
      %p873 = scmp.ne.s32.totalorder %s862, %s863
      %p874 = scmp.eq.s32.totalorder %s111, 0
      %p875 = por %p873, %p874
      %p876 = scmp.ne.s32.totalorder %s862, %s863
      %p877 = scmp.eq.s32.totalorder %s112, 3
      %p878 = por %p876, %p877
      %p880 = scmp.ne.s32.totalorder %s863, %s879
      %p881 = scmp.eq.s32.totalorder %s112, 0
      %p882 = por %p880, %p881
      %s884 = sadd.s32 %s883, 1
      %p887 = scmp.eq.s32.totalorder %s106, 3
      %p888 = scmp.ne.s32.totalorder %s883, %s885
      %p889 = scmp.eq.s32.totalorder %s106, 0
      %p890 = por %p888, %p889
      %p891 = scmp.ne.s32.totalorder %s883, %s885
      %p892 = scmp.eq.s32.totalorder %s111, 3
      %p893 = por %p891, %p892
      %p894 = scmp.ne.s32.totalorder %s885, %s886
      %p895 = scmp.eq.s32.totalorder %s111, 0
      %p896 = por %p894, %p895
      %p897 = scmp.ne.s32.totalorder %s885, %s886
      %p898 = scmp.eq.s32.totalorder %s112, 3
      %p899 = por %p897, %p898
      %p901 = scmp.ne.s32.totalorder %s886, %s900
      %p902 = scmp.eq.s32.totalorder %s112, 0
      %p903 = por %p901, %p902
      %s905 = sadd.s32 %s904, 1
      %p908 = scmp.eq.s32.totalorder %s106, 3
      %p909 = scmp.ne.s32.totalorder %s904, %s906
      %p910 = scmp.eq.s32.totalorder %s106, 0
      %p911 = por %p909, %p910
      %p912 = scmp.ne.s32.totalorder %s904, %s906
      %p913 = scmp.eq.s32.totalorder %s111, 3
      %p914 = por %p912, %p913
      %p915 = scmp.ne.s32.totalorder %s906, %s907
      %p916 = scmp.eq.s32.totalorder %s111, 0
      %p917 = por %p915, %p916
      %p918 = scmp.ne.s32.totalorder %s906, %s907
      %p919 = scmp.eq.s32.totalorder %s112, 3
      %p920 = por %p918, %p919
      %p922 = scmp.ne.s32.totalorder %s907, %s921
      %p923 = scmp.eq.s32.totalorder %s112, 0
      %p924 = por %p922, %p923
      %s926 = sadd.s32 %s925, 1
      %p929 = scmp.eq.s32.totalorder %s106, 3
      %p930 = scmp.ne.s32.totalorder %s925, %s927
      %p931 = scmp.eq.s32.totalorder %s106, 0
      %p932 = por %p930, %p931
      %p933 = scmp.ne.s32.totalorder %s925, %s927
      %p934 = scmp.eq.s32.totalorder %s111, 3
      %p935 = por %p933, %p934
      %p936 = scmp.ne.s32.totalorder %s927, %s928
      %p937 = scmp.eq.s32.totalorder %s111, 0
      %p938 = por %p936, %p937
      %p939 = scmp.ne.s32.totalorder %s927, %s928
      %p940 = scmp.eq.s32.totalorder %s112, 3
      %p941 = por %p939, %p940
      %p943 = scmp.ne.s32.totalorder %s928, %s942
      %p944 = scmp.eq.s32.totalorder %s112, 0
      %p945 = por %p943, %p944
      %s947 = sadd.s32 %s946, 1
      %p950 = scmp.eq.s32.totalorder %s106, 3
      %p951 = scmp.ne.s32.totalorder %s946, %s948
      %p952 = scmp.eq.s32.totalorder %s106, 0
      %p953 = por %p951, %p952
      %p954 = scmp.ne.s32.totalorder %s946, %s948
      %p955 = scmp.eq.s32.totalorder %s111, 3
      %p956 = por %p954, %p955
      %p957 = scmp.ne.s32.totalorder %s948, %s949
      %p958 = scmp.eq.s32.totalorder %s111, 0
      %p959 = por %p957, %p958
      %p960 = scmp.ne.s32.totalorder %s948, %s949
      %p961 = scmp.eq.s32.totalorder %s112, 3
      %p962 = por %p960, %p961
      %p964 = scmp.ne.s32.totalorder %s949, %s963
      %p965 = scmp.eq.s32.totalorder %s112, 0
      %p966 = por %p964, %p965
      %s968 = sadd.s32 %s967, 1
      %p971 = scmp.eq.s32.totalorder %s106, 3
      %p972 = scmp.ne.s32.totalorder %s967, %s969
      %p973 = scmp.eq.s32.totalorder %s106, 0
      %p974 = por %p972, %p973
      %p975 = scmp.ne.s32.totalorder %s967, %s969
      %p976 = scmp.eq.s32.totalorder %s111, 3
      %p977 = por %p975, %p976
      %p978 = scmp.ne.s32.totalorder %s969, %s970
      %p979 = scmp.eq.s32.totalorder %s111, 0
      %p980 = por %p978, %p979
      %p981 = scmp.ne.s32.totalorder %s969, %s970
      %p982 = scmp.eq.s32.totalorder %s112, 3
      %p983 = por %p981, %p982
      %p985 = scmp.ne.s32.totalorder %s970, %s984
      %p986 = scmp.eq.s32.totalorder %s112, 0
      %p987 = por %p985, %p986
      %s989 = sadd.s32 %s988, 1
      %p992 = scmp.eq.s32.totalorder %s106, 3
      %p993 = scmp.ne.s32.totalorder %s988, %s990
      %p994 = scmp.eq.s32.totalorder %s106, 0
      %p995 = por %p993, %p994
      %p996 = scmp.ne.s32.totalorder %s988, %s990
      %p997 = scmp.eq.s32.totalorder %s111, 3
      %p998 = por %p996, %p997
      %p999 = scmp.ne.s32.totalorder %s990, %s991
      %p1000 = scmp.eq.s32.totalorder %s111, 0
      %p1001 = por %p999, %p1000
      %p1002 = scmp.ne.s32.totalorder %s990, %s991
      %p1003 = scmp.eq.s32.totalorder %s112, 3
      %p1004 = por %p1002, %p1003
      %p1006 = scmp.ne.s32.totalorder %s991, %s1005
      %p1007 = scmp.eq.s32.totalorder %s112, 0
      %p1008 = por %p1006, %p1007
      %s1010 = sadd.s32 %s1009, 1
      %p1013 = scmp.eq.s32.totalorder %s106, 3
      %p1014 = scmp.ne.s32.totalorder %s1009, %s1011
      %p1015 = scmp.eq.s32.totalorder %s106, 0
      %p1016 = por %p1014, %p1015
      %p1017 = scmp.ne.s32.totalorder %s1009, %s1011
      %p1018 = scmp.eq.s32.totalorder %s111, 3
      %p1019 = por %p1017, %p1018
      %p1020 = scmp.ne.s32.totalorder %s1011, %s1012
      %p1021 = scmp.eq.s32.totalorder %s111, 0
      %p1022 = por %p1020, %p1021
      %p1023 = scmp.ne.s32.totalorder %s1011, %s1012
      %p1024 = scmp.eq.s32.totalorder %s112, 3
      %p1025 = por %p1023, %p1024
      %p1027 = scmp.ne.s32.totalorder %s1012, %s1026
      %p1028 = scmp.eq.s32.totalorder %s112, 0
      %p1029 = por %p1027, %p1028
      %s1031 = sadd.s32 %s1030, 1
      %p1034 = scmp.eq.s32.totalorder %s106, 3
      %p1035 = scmp.ne.s32.totalorder %s1030, %s1032
      %p1036 = scmp.eq.s32.totalorder %s106, 0
      %p1037 = por %p1035, %p1036
      %p1038 = scmp.ne.s32.totalorder %s1030, %s1032
      %p1039 = scmp.eq.s32.totalorder %s111, 3
      %p1040 = por %p1038, %p1039
      %p1041 = scmp.ne.s32.totalorder %s1032, %s1033
      %p1042 = scmp.eq.s32.totalorder %s111, 0
      %p1043 = por %p1041, %p1042
      %p1044 = scmp.ne.s32.totalorder %s1032, %s1033
      %p1045 = scmp.eq.s32.totalorder %s112, 3
      %p1046 = por %p1044, %p1045
      %p1048 = scmp.ne.s32.totalorder %s1033, %s1047
      %p1049 = scmp.eq.s32.totalorder %s112, 0
      %p1050 = por %p1048, %p1049
      %s1052 = sadd.s32 %s1051, 1
      %p1055 = scmp.eq.s32.totalorder %s106, 3
      %p1056 = scmp.ne.s32.totalorder %s1051, %s1053
      %p1057 = scmp.eq.s32.totalorder %s106, 0
      %p1058 = por %p1056, %p1057
      %p1059 = scmp.ne.s32.totalorder %s1051, %s1053
      %p1060 = scmp.eq.s32.totalorder %s111, 3
      %p1061 = por %p1059, %p1060
      %p1062 = scmp.ne.s32.totalorder %s1053, %s1054
      %p1063 = scmp.eq.s32.totalorder %s111, 0
      %p1064 = por %p1062, %p1063
      %p1065 = scmp.ne.s32.totalorder %s1053, %s1054
      %p1066 = scmp.eq.s32.totalorder %s112, 3
      %p1067 = por %p1065, %p1066
      %p1069 = scmp.ne.s32.totalorder %s1054, %s1068
      %p1070 = scmp.eq.s32.totalorder %s112, 0
      %p1071 = por %p1069, %p1070
      %s1073 = sadd.s32 %s1072, 1
      %p1076 = scmp.eq.s32.totalorder %s106, 3
      %p1077 = scmp.ne.s32.totalorder %s1072, %s1074
      %p1078 = scmp.eq.s32.totalorder %s106, 0
      %p1079 = por %p1077, %p1078
      %p1080 = scmp.ne.s32.totalorder %s1072, %s1074
      %p1081 = scmp.eq.s32.totalorder %s111, 3
      %p1082 = por %p1080, %p1081
      %p1083 = scmp.ne.s32.totalorder %s1074, %s1075
      %p1084 = scmp.eq.s32.totalorder %s111, 0
      %p1085 = por %p1083, %p1084
      %p1086 = scmp.ne.s32.totalorder %s1074, %s1075
      %p1087 = scmp.eq.s32.totalorder %s112, 3
      %p1088 = por %p1086, %p1087
      %p1090 = scmp.ne.s32.totalorder %s1075, %s1089
      %p1091 = scmp.eq.s32.totalorder %s112, 0
      %p1092 = por %p1090, %p1091
      %s1094 = sadd.s32 %s1093, 1
      %p1097 = scmp.eq.s32.totalorder %s106, 3
      %p1098 = scmp.ne.s32.totalorder %s1093, %s1095
      %p1099 = scmp.eq.s32.totalorder %s106, 0
      %p1100 = por %p1098, %p1099
      %p1101 = scmp.ne.s32.totalorder %s1093, %s1095
      %p1102 = scmp.eq.s32.totalorder %s111, 3
      %p1103 = por %p1101, %p1102
      %p1104 = scmp.ne.s32.totalorder %s1095, %s1096
      %p1105 = scmp.eq.s32.totalorder %s111, 0
      %p1106 = por %p1104, %p1105
      %p1107 = scmp.ne.s32.totalorder %s1095, %s1096
      %p1108 = scmp.eq.s32.totalorder %s112, 3
      %p1109 = por %p1107, %p1108
      %p1111 = scmp.ne.s32.totalorder %s1096, %s1110
      %p1112 = scmp.eq.s32.totalorder %s112, 0
      %p1113 = por %p1111, %p1112
      %s1115 = sadd.s32 %s1114, 1
      %p1118 = scmp.eq.s32.totalorder %s106, 3
      %p1119 = scmp.ne.s32.totalorder %s1114, %s1116
      %p1120 = scmp.eq.s32.totalorder %s106, 0
      %p1121 = por %p1119, %p1120
      %p1122 = scmp.ne.s32.totalorder %s1114, %s1116
      %p1123 = scmp.eq.s32.totalorder %s111, 3
      %p1124 = por %p1122, %p1123
      %p1125 = scmp.ne.s32.totalorder %s1116, %s1117
      %p1126 = scmp.eq.s32.totalorder %s111, 0
      %p1127 = por %p1125, %p1126
      %p1128 = scmp.ne.s32.totalorder %s1116, %s1117
      %p1129 = scmp.eq.s32.totalorder %s112, 3
      %p1130 = por %p1128, %p1129
      %p1132 = scmp.ne.s32.totalorder %s1117, %s1131
      %p1133 = scmp.eq.s32.totalorder %s112, 0
      %p1134 = por %p1132, %p1133
      %s1136 = sadd.s32 %s1135, 1
      %p1139 = scmp.eq.s32.totalorder %s106, 3
      %p1140 = scmp.ne.s32.totalorder %s1135, %s1137
      %p1141 = scmp.eq.s32.totalorder %s106, 0
      %p1142 = por %p1140, %p1141
      %p1143 = scmp.ne.s32.totalorder %s1135, %s1137
      %p1144 = scmp.eq.s32.totalorder %s111, 3
      %p1145 = por %p1143, %p1144
      %p1146 = scmp.ne.s32.totalorder %s1137, %s1138
      %p1147 = scmp.eq.s32.totalorder %s111, 0
      %p1148 = por %p1146, %p1147
      %p1149 = scmp.ne.s32.totalorder %s1137, %s1138
      %p1150 = scmp.eq.s32.totalorder %s112, 3
      %p1151 = por %p1149, %p1150
      %p1153 = scmp.ne.s32.totalorder %s1138, %s1152
      %p1154 = scmp.eq.s32.totalorder %s112, 0
      %p1155 = por %p1153, %p1154
      %s1157 = sadd.s32 %s1156, 1
      %p1160 = scmp.eq.s32.totalorder %s106, 3
      %p1161 = scmp.ne.s32.totalorder %s1156, %s1158
      %p1162 = scmp.eq.s32.totalorder %s106, 0
      %p1163 = por %p1161, %p1162
      %p1164 = scmp.ne.s32.totalorder %s1156, %s1158
      %p1165 = scmp.eq.s32.totalorder %s111, 3
      %p1166 = por %p1164, %p1165
      %p1167 = scmp.ne.s32.totalorder %s1158, %s1159
      %p1168 = scmp.eq.s32.totalorder %s111, 0
      %p1169 = por %p1167, %p1168
      %p1170 = scmp.ne.s32.totalorder %s1158, %s1159
      %p1171 = scmp.eq.s32.totalorder %s112, 3
      %p1172 = por %p1170, %p1171
      %p1174 = scmp.ne.s32.totalorder %s1159, %s1173
      %p1175 = scmp.eq.s32.totalorder %s112, 0
      %p1176 = por %p1174, %p1175
      %s1178 = sadd.s32 %s1177, 1
      %p1181 = scmp.eq.s32.totalorder %s106, 3
      %p1182 = scmp.ne.s32.totalorder %s1177, %s1179
      %p1183 = scmp.eq.s32.totalorder %s106, 0
      %p1184 = por %p1182, %p1183
      %p1185 = scmp.ne.s32.totalorder %s1177, %s1179
      %p1186 = scmp.eq.s32.totalorder %s111, 3
      %p1187 = por %p1185, %p1186
      %p1188 = scmp.ne.s32.totalorder %s1179, %s1180
      %p1189 = scmp.eq.s32.totalorder %s111, 0
      %p1190 = por %p1188, %p1189
      %p1191 = scmp.ne.s32.totalorder %s1179, %s1180
      %p1192 = scmp.eq.s32.totalorder %s112, 3
      %p1193 = por %p1191, %p1192
      %p1195 = scmp.ne.s32.totalorder %s1180, %s1194
      %p1196 = scmp.eq.s32.totalorder %s112, 0
      %p1197 = por %p1195, %p1196
      %s1198 = ssub.s32 %s113, %s125
      %p1199 = scmp.eq.s32.totalorder %s1198, 0
      %s1201 = sadd.s32 %s1200, 1
      %s1202 = scalar_select %p1199, %s1200, %s1201
      %p1205 = pneg %p1199
      %p1206 = scmp.eq.s32.totalorder %s106, 3
      %p1207 = por %p1205, %p1206
      %p1208 = scmp.ne.s32.totalorder %s1200, %s1203
      %p1209 = scmp.eq.s32.totalorder %s106, 0
      %p1210 = por %p1208, %p1209
      %p1211 = scmp.ne.s32.totalorder %s1200, %s1203
      %p1212 = scmp.eq.s32.totalorder %s111, 3
      %p1213 = por %p1211, %p1212
      %p1214 = scmp.ne.s32.totalorder %s1203, %s1204
      %p1215 = scmp.eq.s32.totalorder %s111, 0
      %p1216 = por %p1214, %p1215
      %p1217 = scmp.ne.s32.totalorder %s1203, %s1204
      %p1218 = scmp.eq.s32.totalorder %s112, 3
      %p1219 = por %p1217, %p1218
      %p1221 = scmp.ne.s32.totalorder %s1204, %s1220
      %p1222 = scmp.eq.s32.totalorder %s112, 0
      %p1223 = por %p1221, %p1222
      %s1224 = ssub.s32 %s113, %s125
      %p1225 = scmp.eq.s32.totalorder %s1224, 0
      %s1227 = sadd.s32 %s1226, 1
      %s1228 = scalar_select %p1225, %s1226, %s1227
      %p1231 = pneg %p1225
      %p1232 = scmp.eq.s32.totalorder %s106, 3
      %p1233 = por %p1231, %p1232
      %p1234 = scmp.ne.s32.totalorder %s1226, %s1229
      %p1235 = scmp.eq.s32.totalorder %s106, 0
      %p1236 = por %p1234, %p1235
      %p1237 = scmp.ne.s32.totalorder %s1226, %s1229
      %p1238 = scmp.eq.s32.totalorder %s111, 3
      %p1239 = por %p1237, %p1238
      %p1240 = scmp.ne.s32.totalorder %s1229, %s1230
      %p1241 = scmp.eq.s32.totalorder %s111, 0
      %p1242 = por %p1240, %p1241
      %p1243 = scmp.ne.s32.totalorder %s1229, %s1230
      %p1244 = scmp.eq.s32.totalorder %s112, 3
      %p1245 = por %p1243, %p1244
      %p1247 = scmp.ne.s32.totalorder %s1230, %s1246
      %p1248 = scmp.eq.s32.totalorder %s112, 0
      %p1249 = por %p1247, %p1248
      %p1250 = scmp.le.s32.totalorder 1, %s106
      %p1251 = scmp.lt.s32.totalorder %s106, 5
      %p1252 = pnand %p1250, %p1251
      %p1253 = pneg %p1252
      // Predicated region
      $region9: #{rcw_forward.1} parent=5 // pred_check
        _
      $region10: #{rcw_forward.1} parent=5 // pred_check_branch
        %1255 = sbr.rel (%p1252) target = $region12
      $region11: #{rcw_forward.1} parent=5 // pred_region
        %s1256 = ssub.s32 %s106, 1
        // Predicated region
        $region13: #{rcw_forward.1} parent=11 // pred_check
          %p1257 = pneg %p144
        $region14: #{rcw_forward.1} parent=11 // pred_check_branch
          %1259 = sbr.rel (%p1257) target = $region16
        $region15: #{rcw_forward.1} parent=11 // pred_region
          %s1260 = smul.u32 2, %s115
          %p1261 = scmp.lt.s32.totalorder %s1260, 1
          %s1262 = scalar_select %p1261, %s1260, 1
          %s1263 = smul.addr %s1262, 8
          %s1264 = scalar_lea.vmem %s1, %s1263
          %s1265 = smul.u32 2, %s115
        $region16: #{rcw_forward.1} parent=11 // pred_fallthru
          _
        // Predicated region
        $region17: #{rcw_forward.1} parent=11 // pred_check
          %p1266 = pneg %p170
        $region18: #{rcw_forward.1} parent=11 // pred_check_branch
          %1268 = sbr.rel (%p1266) target = $region20
        $region19: #{rcw_forward.1} parent=11 // pred_region
          %s1269 = smul.u32 2, %s115
          %p1270 = scmp.lt.s32.totalorder %s1269, 1
          %s1271 = scalar_select %p1270, %s1269, 1
          %s1272 = smul.addr %s1271, 2
          %s1273 = smul.addr %s1272, 8
          %s1274 = scalar_lea.vmem %s3, %s1273
          %s1275 = smul.u32 2, %s115
        $region20: #{rcw_forward.1} parent=11 // pred_fallthru
          _
        // Predicated region
        $region21: #{rcw_forward.1} parent=11 // pred_check
          %p1276 = pneg %p191
        $region22: #{rcw_forward.1} parent=11 // pred_check_branch
          %1278 = sbr.rel (%p1276) target = $region24
        $region23: #{rcw_forward.1} parent=11 // pred_region
          _
        $region24: #{rcw_forward.1} parent=11 // pred_fallthru
          _
        // Predicated region
        $region25: #{rcw_forward.1} parent=11 // pred_check
          %p1279 = pneg %p212
        $region26: #{rcw_forward.1} parent=11 // pred_check_branch
          %1281 = sbr.rel (%p1279) target = $region28
        $region27: #{rcw_forward.1} parent=11 // pred_region
          _
        $region28: #{rcw_forward.1} parent=11 // pred_fallthru
          _
        // Predicated region
        $region29: #{rcw_forward.1} parent=11 // pred_check
          %p1282 = pneg %p233
        $region30: #{rcw_forward.1} parent=11 // pred_check_branch
          %1284 = sbr.rel (%p1282) target = $region32
        $region31: #{rcw_forward.1} parent=11 // pred_region
          _
        $region32: #{rcw_forward.1} parent=11 // pred_fallthru
          _
        // Predicated region
        $region33: #{rcw_forward.1} parent=11 // pred_check
          %p1285 = pneg %p254
        $region34: #{rcw_forward.1} parent=11 // pred_check_branch
          %1287 = sbr.rel (%p1285) target = $region36
        $region35: #{rcw_forward.1} parent=11 // pred_region
          _
        $region36: #{rcw_forward.1} parent=11 // pred_fallthru
          _
        // Predicated region
        $region37: #{rcw_forward.1} parent=11 // pred_check
          %p1288 = pneg %p275
        $region38: #{rcw_forward.1} parent=11 // pred_check_branch
          %1290 = sbr.rel (%p1288) target = $region40
        $region39: #{rcw_forward.1} parent=11 // pred_region
          _
        $region40: #{rcw_forward.1} parent=11 // pred_fallthru
          _
        // Predicated region
        $region41: #{rcw_forward.1} parent=11 // pred_check
          %p1291 = pneg %p296
        $region42: #{rcw_forward.1} parent=11 // pred_check_branch
          %1293 = sbr.rel (%p1291) target = $region44
        $region43: #{rcw_forward.1} parent=11 // pred_region
          _
        $region44: #{rcw_forward.1} parent=11 // pred_fallthru
          _
        // Predicated region
        $region45: #{rcw_forward.1} parent=11 // pred_check
          %p1294 = pneg %p317
        $region46: #{rcw_forward.1} parent=11 // pred_check_branch
          %1296 = sbr.rel (%p1294) target = $region48
        $region47: #{rcw_forward.1} parent=11 // pred_region
          _
        $region48: #{rcw_forward.1} parent=11 // pred_fallthru
          _
        // Predicated region
        $region49: #{rcw_forward.1} parent=11 // pred_check
          %p1297 = pneg %p338
        $region50: #{rcw_forward.1} parent=11 // pred_check_branch
          %1299 = sbr.rel (%p1297) target = $region52
        $region51: #{rcw_forward.1} parent=11 // pred_region
          _
        $region52: #{rcw_forward.1} parent=11 // pred_fallthru
          _
        // Predicated region
        $region53: #{rcw_forward.1} parent=11 // pred_check
          %p1300 = pneg %p359
        $region54: #{rcw_forward.1} parent=11 // pred_check_branch
          %1302 = sbr.rel (%p1300) target = $region56
        $region55: #{rcw_forward.1} parent=11 // pred_region
          _
        $region56: #{rcw_forward.1} parent=11 // pred_fallthru
          _
        // Predicated region
        $region57: #{rcw_forward.1} parent=11 // pred_check
          %p1303 = pneg %p380
        $region58: #{rcw_forward.1} parent=11 // pred_check_branch
          %1305 = sbr.rel (%p1303) target = $region60
        $region59: #{rcw_forward.1} parent=11 // pred_region
          _
        $region60: #{rcw_forward.1} parent=11 // pred_fallthru
          _
        // Predicated region
        $region61: #{rcw_forward.1} parent=11 // pred_check
          %p1306 = pneg %p401
        $region62: #{rcw_forward.1} parent=11 // pred_check_branch
          %1308 = sbr.rel (%p1306) target = $region64
        $region63: #{rcw_forward.1} parent=11 // pred_region
          _
        $region64: #{rcw_forward.1} parent=11 // pred_fallthru
          _
        // Predicated region
        $region65: #{rcw_forward.1} parent=11 // pred_check
          %p1309 = pneg %p422
        $region66: #{rcw_forward.1} parent=11 // pred_check_branch
          %1311 = sbr.rel (%p1309) target = $region68
        $region67: #{rcw_forward.1} parent=11 // pred_region
          _
        $region68: #{rcw_forward.1} parent=11 // pred_fallthru
          _
        // Predicated region
        $region69: #{rcw_forward.1} parent=11 // pred_check
          %p1312 = pneg %p443
        $region70: #{rcw_forward.1} parent=11 // pred_check_branch
          %1314 = sbr.rel (%p1312) target = $region72
        $region71: #{rcw_forward.1} parent=11 // pred_region
          _
        $region72: #{rcw_forward.1} parent=11 // pred_fallthru
          _
        // Predicated region
        $region73: #{rcw_forward.1} parent=11 // pred_check
          %p1315 = pneg %p464
        $region74: #{rcw_forward.1} parent=11 // pred_check_branch
          %1317 = sbr.rel (%p1315) target = $region76
        $region75: #{rcw_forward.1} parent=11 // pred_region
          _
        $region76: #{rcw_forward.1} parent=11 // pred_fallthru
          _
        // Predicated region
        $region77: #{rcw_forward.1} parent=11 // pred_check
          %p1318 = pneg %p485
        $region78: #{rcw_forward.1} parent=11 // pred_check_branch
          %1320 = sbr.rel (%p1318) target = $region80
        $region79: #{rcw_forward.1} parent=11 // pred_region
          _
        $region80: #{rcw_forward.1} parent=11 // pred_fallthru
          _
        // Predicated region
        $region81: #{rcw_forward.1} parent=11 // pred_check
          %p1321 = pneg %p896
        $region82: #{rcw_forward.1} parent=11 // pred_check_branch
          %1323 = sbr.rel (%p1321) target = $region84
        $region83: #{rcw_forward.1} parent=11 // pred_region
          _
        $region84: #{rcw_forward.1} parent=11 // pred_fallthru
          _
        // Predicated region
        $region85: #{rcw_forward.1} parent=11 // pred_check
          %p1324 = pneg %p917
        $region86: #{rcw_forward.1} parent=11 // pred_check_branch
          %1326 = sbr.rel (%p1324) target = $region88
        $region87: #{rcw_forward.1} parent=11 // pred_region
          _
        $region88: #{rcw_forward.1} parent=11 // pred_fallthru
          _
        // Predicated region
        $region89: #{rcw_forward.1} parent=11 // pred_check
          %p1327 = pneg %p938
        $region90: #{rcw_forward.1} parent=11 // pred_check_branch
          %1329 = sbr.rel (%p1327) target = $region92
        $region91: #{rcw_forward.1} parent=11 // pred_region
          _
        $region92: #{rcw_forward.1} parent=11 // pred_fallthru
          _
        // Predicated region
        $region93: #{rcw_forward.1} parent=11 // pred_check
          %p1330 = pneg %p959
        $region94: #{rcw_forward.1} parent=11 // pred_check_branch
          %1332 = sbr.rel (%p1330) target = $region96
        $region95: #{rcw_forward.1} parent=11 // pred_region
          _
        $region96: #{rcw_forward.1} parent=11 // pred_fallthru
          _
        // Predicated region
        $region97: #{rcw_forward.1} parent=11 // pred_check
          %p1333 = pneg %p980
        $region98: #{rcw_forward.1} parent=11 // pred_check_branch
          %1335 = sbr.rel (%p1333) target = $region100
        $region99: #{rcw_forward.1} parent=11 // pred_region
          _
        $region100: #{rcw_forward.1} parent=11 // pred_fallthru
          _
        // Predicated region
        $region101: #{rcw_forward.1} parent=11 // pred_check
          %p1336 = pneg %p1001
        $region102: #{rcw_forward.1} parent=11 // pred_check_branch
          %1338 = sbr.rel (%p1336) target = $region104
        $region103: #{rcw_forward.1} parent=11 // pred_region
          _
        $region104: #{rcw_forward.1} parent=11 // pred_fallthru
          _
        // Predicated region
        $region105: #{rcw_forward.1} parent=11 // pred_check
          %p1339 = pneg %p1022
        $region106: #{rcw_forward.1} parent=11 // pred_check_branch
          %1341 = sbr.rel (%p1339) target = $region108
        $region107: #{rcw_forward.1} parent=11 // pred_region
          _
        $region108: #{rcw_forward.1} parent=11 // pred_fallthru
          _
        // Predicated region
        $region109: #{rcw_forward.1} parent=11 // pred_check
          %p1342 = pneg %p1043
        $region110: #{rcw_forward.1} parent=11 // pred_check_branch
          %1344 = sbr.rel (%p1342) target = $region112
        $region111: #{rcw_forward.1} parent=11 // pred_region
          _
        $region112: #{rcw_forward.1} parent=11 // pred_fallthru
          _
        // Predicated region
        $region113: #{rcw_forward.1} parent=11 // pred_check
          %p1345 = pneg %p1064
        $region114: #{rcw_forward.1} parent=11 // pred_check_branch
          %1347 = sbr.rel (%p1345) target = $region116
        $region115: #{rcw_forward.1} parent=11 // pred_region
          _
        $region116: #{rcw_forward.1} parent=11 // pred_fallthru
          _
        // Predicated region
        $region117: #{rcw_forward.1} parent=11 // pred_check
          %p1348 = pneg %p1085
        $region118: #{rcw_forward.1} parent=11 // pred_check_branch
          %1350 = sbr.rel (%p1348) target = $region120
        $region119: #{rcw_forward.1} parent=11 // pred_region
          _
        $region120: #{rcw_forward.1} parent=11 // pred_fallthru
          _
        // Predicated region
        $region121: #{rcw_forward.1} parent=11 // pred_check
          %p1351 = pneg %p1106
        $region122: #{rcw_forward.1} parent=11 // pred_check_branch
          %1353 = sbr.rel (%p1351) target = $region124
        $region123: #{rcw_forward.1} parent=11 // pred_region
          _
        $region124: #{rcw_forward.1} parent=11 // pred_fallthru
          _
        // Predicated region
        $region125: #{rcw_forward.1} parent=11 // pred_check
          %p1354 = pneg %p1127
        $region126: #{rcw_forward.1} parent=11 // pred_check_branch
          %1356 = sbr.rel (%p1354) target = $region128
        $region127: #{rcw_forward.1} parent=11 // pred_region
          _
        $region128: #{rcw_forward.1} parent=11 // pred_fallthru
          _
        // Predicated region
        $region129: #{rcw_forward.1} parent=11 // pred_check
          %p1357 = pneg %p1148
        $region130: #{rcw_forward.1} parent=11 // pred_check_branch
          %1359 = sbr.rel (%p1357) target = $region132
        $region131: #{rcw_forward.1} parent=11 // pred_region
          _
        $region132: #{rcw_forward.1} parent=11 // pred_fallthru
          _
        // Predicated region
        $region133: #{rcw_forward.1} parent=11 // pred_check
          %p1360 = pneg %p1169
        $region134: #{rcw_forward.1} parent=11 // pred_check_branch
          %1362 = sbr.rel (%p1360) target = $region136
        $region135: #{rcw_forward.1} parent=11 // pred_region
          _
        $region136: #{rcw_forward.1} parent=11 // pred_fallthru
          _
        // Predicated region
        $region137: #{rcw_forward.1} parent=11 // pred_check
          %p1363 = pneg %p1190
        $region138: #{rcw_forward.1} parent=11 // pred_check_branch
          %1365 = sbr.rel (%p1363) target = $region140
        $region139: #{rcw_forward.1} parent=11 // pred_region
          _
        $region140: #{rcw_forward.1} parent=11 // pred_fallthru
          _
      $region12: #{rcw_forward.1} parent=5 // pred_fallthru
        _
      %p1366 = scmp.lt.s32.totalorder %s106, 4
      // Predicated region
      $region141: #{rcw_forward.1} parent=5 // pred_check
        %p1367 = pneg %p1366
      $region142: #{rcw_forward.1} parent=5 // pred_check_branch
        %1369 = sbr.rel (%p1367) target = $region144
      $region143: #{rcw_forward.1} parent=5 // pred_region
        // Predicated region
        $region145: #{rcw_forward.1} parent=143 // pred_check
          %p1370 = pneg %p505
        $region146: #{rcw_forward.1} parent=143 // pred_check_branch
          %1372 = sbr.rel (%p1370) target = $region148
        $region147: #{rcw_forward.1} parent=143 // pred_region
          %p1373 = scmp.lt.s32.totalorder %s114, 3
          %s1374 = scalar_select %p1373, %s114, 3
          %s1375 = scalar_lea.vmem %s35, %s1374
        $region148: #{rcw_forward.1} parent=143 // pred_fallthru
          _
        // Predicated region
        $region149: #{rcw_forward.1} parent=143 // pred_check
          %p1376 = pneg %p531
        $region150: #{rcw_forward.1} parent=143 // pred_check_branch
          %1378 = sbr.rel (%p1376) target = $region152
        $region151: #{rcw_forward.1} parent=143 // pred_region
          %p1379 = scmp.lt.s32.totalorder %s114, 3
          %s1380 = scalar_select %p1379, %s114, 3
          %s1381 = scalar_lea.vmem %s37, %s1380
        $region152: #{rcw_forward.1} parent=143 // pred_fallthru
          _
        // Predicated region
        $region153: #{rcw_forward.1} parent=143 // pred_check
          %p1382 = pneg %p557
        $region154: #{rcw_forward.1} parent=143 // pred_check_branch
          %1384 = sbr.rel (%p1382) target = $region156
        $region155: #{rcw_forward.1} parent=143 // pred_region
          %p1385 = scmp.lt.s32.totalorder %s114, 3
          %s1386 = scalar_select %p1385, %s114, 3
          %s1387 = scalar_lea.vmem %s39, %s1386
        $region156: #{rcw_forward.1} parent=143 // pred_fallthru
          _
        // Predicated region
        $region157: #{rcw_forward.1} parent=143 // pred_check
          %p1388 = pneg %p583
        $region158: #{rcw_forward.1} parent=143 // pred_check_branch
          %1390 = sbr.rel (%p1388) target = $region160
        $region159: #{rcw_forward.1} parent=143 // pred_region
          %p1391 = scmp.lt.s32.totalorder %s114, 3
          %s1392 = scalar_select %p1391, %s114, 3
          %s1393 = scalar_lea.vmem %s41, %s1392
        $region160: #{rcw_forward.1} parent=143 // pred_fallthru
          _
        // Predicated region
        $region161: #{rcw_forward.1} parent=143 // pred_check
          %p1394 = pneg %p609
        $region162: #{rcw_forward.1} parent=143 // pred_check_branch
          %1396 = sbr.rel (%p1394) target = $region164
        $region163: #{rcw_forward.1} parent=143 // pred_region
          %p1397 = scmp.lt.s32.totalorder %s114, 3
          %s1398 = scalar_select %p1397, %s114, 3
          %s1399 = smul.addr %s1398, 4
          %s1400 = smul.addr %s1399, 4
          %s1401 = scalar_lea.vmem %s43, %s1400
        $region164: #{rcw_forward.1} parent=143 // pred_fallthru
          _
        // Predicated region
        $region165: #{rcw_forward.1} parent=143 // pred_check
          %p1402 = pneg %p635
        $region166: #{rcw_forward.1} parent=143 // pred_check_branch
          %1404 = sbr.rel (%p1402) target = $region168
        $region167: #{rcw_forward.1} parent=143 // pred_region
          %p1405 = scmp.lt.s32.totalorder %s114, 3
          %s1406 = scalar_select %p1405, %s114, 3
          %s1407 = smul.addr %s1406, 4
          %s1408 = smul.addr %s1407, 4
          %s1409 = scalar_lea.vmem %s45, %s1408
        $region168: #{rcw_forward.1} parent=143 // pred_fallthru
          _
        // Predicated region
        $region169: #{rcw_forward.1} parent=143 // pred_check
          %p1410 = pneg %p661
        $region170: #{rcw_forward.1} parent=143 // pred_check_branch
          %1412 = sbr.rel (%p1410) target = $region172
        $region171: #{rcw_forward.1} parent=143 // pred_region
          %p1413 = scmp.lt.s32.totalorder %s114, 3
          %s1414 = scalar_select %p1413, %s114, 3
          %s1415 = smul.addr %s1414, 4
          %s1416 = smul.addr %s1415, 4
          %s1417 = scalar_lea.vmem %s47, %s1416
        $region172: #{rcw_forward.1} parent=143 // pred_fallthru
          _
        // Predicated region
        $region173: #{rcw_forward.1} parent=143 // pred_check
          %p1418 = pneg %p687
        $region174: #{rcw_forward.1} parent=143 // pred_check_branch
          %1420 = sbr.rel (%p1418) target = $region176
        $region175: #{rcw_forward.1} parent=143 // pred_region
          %p1421 = scmp.lt.s32.totalorder %s114, 3
          %s1422 = scalar_select %p1421, %s114, 3
          %s1423 = smul.addr %s1422, 4
          %s1424 = smul.addr %s1423, 4
          %s1425 = scalar_lea.vmem %s49, %s1424
        $region176: #{rcw_forward.1} parent=143 // pred_fallthru
          _
        // Predicated region
        $region177: #{rcw_forward.1} parent=143 // pred_check
          %p1426 = pneg %p713
        $region178: #{rcw_forward.1} parent=143 // pred_check_branch
          %1428 = sbr.rel (%p1426) target = $region180
        $region179: #{rcw_forward.1} parent=143 // pred_region
          %p1429 = scmp.lt.s32.totalorder %s114, 3
          %s1430 = scalar_select %p1429, %s114, 3
          %s1431 = scalar_lea.vmem %s51, %s1430
        $region180: #{rcw_forward.1} parent=143 // pred_fallthru
          _
        // Predicated region
        $region181: #{rcw_forward.1} parent=143 // pred_check
          %p1432 = pneg %p739
        $region182: #{rcw_forward.1} parent=143 // pred_check_branch
          %1434 = sbr.rel (%p1432) target = $region184
        $region183: #{rcw_forward.1} parent=143 // pred_region
          %p1435 = scmp.lt.s32.totalorder %s114, 3
          %s1436 = scalar_select %p1435, %s114, 3
          %s1437 = scalar_lea.vmem %s53, %s1436
        $region184: #{rcw_forward.1} parent=143 // pred_fallthru
          _
        // Predicated region
        $region185: #{rcw_forward.1} parent=143 // pred_check
          %p1438 = pneg %p765
        $region186: #{rcw_forward.1} parent=143 // pred_check_branch
          %1440 = sbr.rel (%p1438) target = $region188
        $region187: #{rcw_forward.1} parent=143 // pred_region
          %p1441 = scmp.lt.s32.totalorder %s114, 3
          %s1442 = scalar_select %p1441, %s114, 3
          %s1443 = scalar_lea.vmem %s55, %s1442
        $region188: #{rcw_forward.1} parent=143 // pred_fallthru
          _
        // Predicated region
        $region189: #{rcw_forward.1} parent=143 // pred_check
          %p1444 = pneg %p791
        $region190: #{rcw_forward.1} parent=143 // pred_check_branch
          %1446 = sbr.rel (%p1444) target = $region192
        $region191: #{rcw_forward.1} parent=143 // pred_region
          %p1447 = scmp.lt.s32.totalorder %s114, 3
          %s1448 = scalar_select %p1447, %s114, 3
          %s1449 = smul.addr %s1448, 4
          %s1450 = smul.addr %s1449, 4
          %s1451 = scalar_lea.vmem %s57, %s1450
        $region192: #{rcw_forward.1} parent=143 // pred_fallthru
          _
        // Predicated region
        $region193: #{rcw_forward.1} parent=143 // pred_check
          %p1452 = pneg %p817
        $region194: #{rcw_forward.1} parent=143 // pred_check_branch
          %1454 = sbr.rel (%p1452) target = $region196
        $region195: #{rcw_forward.1} parent=143 // pred_region
          %p1455 = scmp.lt.s32.totalorder %s114, 3
          %s1456 = scalar_select %p1455, %s114, 3
          %s1457 = scalar_lea.vmem %s59, %s1456
        $region196: #{rcw_forward.1} parent=143 // pred_fallthru
          _
        // Predicated region
        $region197: #{rcw_forward.1} parent=143 // pred_check
          %p1458 = pneg %p843
        $region198: #{rcw_forward.1} parent=143 // pred_check_branch
          %1460 = sbr.rel (%p1458) target = $region200
        $region199: #{rcw_forward.1} parent=143 // pred_region
          %p1461 = scmp.lt.s32.totalorder %s114, 3
          %s1462 = scalar_select %p1461, %s114, 3
          %s1463 = smul.addr %s1462, 16
          %s1464 = smul.addr %s1463, 4
          %s1465 = scalar_lea.vmem %s61, %s1464
        $region200: #{rcw_forward.1} parent=143 // pred_fallthru
          _
        // Predicated region
        $region201: #{rcw_forward.1} parent=143 // pred_check
          %p1466 = pneg %p869
        $region202: #{rcw_forward.1} parent=143 // pred_check_branch
          %1468 = sbr.rel (%p1466) target = $region204
        $region203: #{rcw_forward.1} parent=143 // pred_region
          %p1469 = scmp.lt.s32.totalorder %s114, 3
          %s1470 = scalar_select %p1469, %s114, 3
          %s1471 = scalar_lea.vmem %s63, %s1470
        $region204: #{rcw_forward.1} parent=143 // pred_fallthru
          _
      $region144: #{rcw_forward.1} parent=5 // pred_fallthru
        _
      %p1472 = scmp.le.s32.totalorder 1, %s106
      %p1473 = scmp.lt.s32.totalorder %s106, 5
      %p1474 = pnand %p1472, %p1473
      %p1475 = pneg %p1474
      // Predicated region
      $region205: #{rcw_forward.1} parent=5 // pred_check
        _
      $region206: #{rcw_forward.1} parent=5 // pred_check_branch
        %1477 = sbr.rel (%p1474) target = $region208
      $region207: #{rcw_forward.1} parent=5 // pred_region
        %s1478 = ssub.s32 %s106, 1
        %s1479 = smul.u32 2, %s115
        %p1480 = scmp.lt.s32.totalorder %s1479, 1
        %s1481 = scalar_select %p1480, %s1479, 1
        %s1482 = smul.addr %s1481, 8
        %s1483 = scalar_lea.vmem %s1, %s1482
        %p1484 = pneg %p144
        %p1485 = pneg %p141
        %s1486 = smul.u32 2, %s115
        %p1487 = scmp.lt.s32.totalorder %s1486, 1
        %s1488 = scalar_select %p1487, %s1486, 1
        %s1489 = smul.addr %s1488, 2
        %s1490 = smul.addr %s1489, 8
        %s1491 = scalar_lea.vmem %s3, %s1490
        %p1492 = pneg %p170
        %p1493 = pneg %p167
        %p1494 = pneg %p191
        %p1495 = pneg %p188
        %p1496 = pneg %p212
        %p1497 = pneg %p209
        %p1498 = pneg %p233
        %p1499 = pneg %p230
        %p1500 = pneg %p254
        %p1501 = pneg %p251
        %p1502 = pneg %p275
        %p1503 = pneg %p272
        %p1504 = pneg %p296
        %p1505 = pneg %p293
        %p1506 = pneg %p317
        %p1507 = pneg %p314
        %p1508 = pneg %p338
        %p1509 = pneg %p335
        %p1510 = pneg %p359
        %p1511 = pneg %p356
        %p1512 = pneg %p380
        %p1513 = pneg %p377
        %p1514 = pneg %p401
        %p1515 = pneg %p398
        %p1516 = pneg %p422
        %p1517 = pneg %p419
        %p1518 = pneg %p443
        %p1519 = pneg %p440
        %p1520 = pneg %p464
        %p1521 = pneg %p461
        %p1522 = pneg %p485
        %p1523 = pneg %p482
        %p1524 = scmp.lt.s32.totalorder %s116, 3
        %s1525 = scalar_select %p1524, %s116, 3
        %s1526 = scalar_lea.vmem %s35, %s1525
        %p1527 = pneg %p511
        %p1528 = pneg %p508
        %p1529 = scmp.lt.s32.totalorder %s116, 3
        %s1530 = scalar_select %p1529, %s116, 3
        %s1531 = scalar_lea.vmem %s37, %s1530
        %p1532 = pneg %p537
        %p1533 = pneg %p534
        %p1534 = scmp.lt.s32.totalorder %s116, 3
        %s1535 = scalar_select %p1534, %s116, 3
        %s1536 = scalar_lea.vmem %s39, %s1535
        %p1537 = pneg %p563
        %p1538 = pneg %p560
        %p1539 = scmp.lt.s32.totalorder %s116, 3
        %s1540 = scalar_select %p1539, %s116, 3
        %s1541 = scalar_lea.vmem %s41, %s1540
        %p1542 = pneg %p589
        %p1543 = pneg %p586
        %p1544 = scmp.lt.s32.totalorder %s116, 3
        %s1545 = scalar_select %p1544, %s116, 3
        %s1546 = smul.addr %s1545, 4
        %s1547 = smul.addr %s1546, 4
        %s1548 = scalar_lea.vmem %s43, %s1547
        %p1549 = pneg %p615
        %p1550 = pneg %p612
        %p1551 = scmp.lt.s32.totalorder %s116, 3
        %s1552 = scalar_select %p1551, %s116, 3
        %s1553 = smul.addr %s1552, 4
        %s1554 = smul.addr %s1553, 4
        %s1555 = scalar_lea.vmem %s45, %s1554
        %p1556 = pneg %p641
        %p1557 = pneg %p638
        %p1558 = scmp.lt.s32.totalorder %s116, 3
        %s1559 = scalar_select %p1558, %s116, 3
        %s1560 = smul.addr %s1559, 4
        %s1561 = smul.addr %s1560, 4
        %s1562 = scalar_lea.vmem %s47, %s1561
        %p1563 = pneg %p667
        %p1564 = pneg %p664
        %p1565 = scmp.lt.s32.totalorder %s116, 3
        %s1566 = scalar_select %p1565, %s116, 3
        %s1567 = smul.addr %s1566, 4
        %s1568 = smul.addr %s1567, 4
        %s1569 = scalar_lea.vmem %s49, %s1568
        %p1570 = pneg %p693
        %p1571 = pneg %p690
        %p1572 = scmp.lt.s32.totalorder %s116, 3
        %s1573 = scalar_select %p1572, %s116, 3
        %s1574 = scalar_lea.vmem %s51, %s1573
        %p1575 = pneg %p719
        %p1576 = pneg %p716
        %p1577 = scmp.lt.s32.totalorder %s116, 3
        %s1578 = scalar_select %p1577, %s116, 3
        %s1579 = scalar_lea.vmem %s53, %s1578
        %p1580 = pneg %p745
        %p1581 = pneg %p742
        %p1582 = scmp.lt.s32.totalorder %s116, 3
        %s1583 = scalar_select %p1582, %s116, 3
        %s1584 = scalar_lea.vmem %s55, %s1583
        %p1585 = pneg %p771
        %p1586 = pneg %p768
        %p1587 = scmp.lt.s32.totalorder %s116, 3
        %s1588 = scalar_select %p1587, %s116, 3
        %s1589 = smul.addr %s1588, 4
        %s1590 = smul.addr %s1589, 4
        %s1591 = scalar_lea.vmem %s57, %s1590
        %p1592 = pneg %p797
        %p1593 = pneg %p794
        %p1594 = scmp.lt.s32.totalorder %s116, 3
        %s1595 = scalar_select %p1594, %s116, 3
        %s1596 = scalar_lea.vmem %s59, %s1595
        %p1597 = pneg %p823
        %p1598 = pneg %p820
        %p1599 = scmp.lt.s32.totalorder %s116, 3
        %s1600 = scalar_select %p1599, %s116, 3
        %s1601 = smul.addr %s1600, 16
        %s1602 = smul.addr %s1601, 4
        %s1603 = scalar_lea.vmem %s61, %s1602
        %p1604 = pneg %p849
        %p1605 = pneg %p846
        %p1606 = scmp.lt.s32.totalorder %s116, 3
        %s1607 = scalar_select %p1606, %s116, 3
        %s1608 = scalar_lea.vmem %s63, %s1607
        %p1609 = pneg %p875
        %p1610 = pneg %p872
        %p1611 = pneg %p896
        %p1612 = pneg %p893
        %p1613 = pneg %p917
        %p1614 = pneg %p914
        %p1615 = pneg %p938
        %p1616 = pneg %p935
        %p1617 = pneg %p959
        %p1618 = pneg %p956
        %p1619 = pneg %p980
        %p1620 = pneg %p977
        %p1621 = pneg %p1001
        %p1622 = pneg %p998
        %p1623 = pneg %p1022
        %p1624 = pneg %p1019
        %p1625 = pneg %p1043
        %p1626 = pneg %p1040
        %p1627 = pneg %p1064
        %p1628 = pneg %p1061
        %p1629 = pneg %p1085
        %p1630 = pneg %p1082
        %p1631 = pneg %p1106
        %p1632 = pneg %p1103
        %p1633 = pneg %p1127
        %p1634 = pneg %p1124
        %p1635 = pneg %p1148
        %p1636 = pneg %p1145
        %p1637 = pneg %p1169
        %p1638 = pneg %p1166
        %p1639 = pneg %p1190
        %p1640 = pneg %p1187
        %p1641 = pneg %p1216
        %p1642 = pneg %p1213
        %p1643 = pneg %p1242
        %p1644 = pneg %p1239
        %s1645 = smul.u32 2, %s115
        %p1646 = scmp.lt.s32.totalorder %s1645, 1
        %s1647 = scalar_select %p1646, %s1645, 1
        %s1648 = smul.addr %s1647, 8
        %s1649 = scalar_lea.vmem %s1, %s1648
        %s1650 = smul.u32 2, %s115
        %s1651 = smul.u32 2, %s115
        %p1652 = scmp.lt.s32.totalorder %s1651, 1
        %s1653 = scalar_select %p1652, %s1651, 1
        %s1654 = smul.addr %s1653, 2
        %s1655 = smul.addr %s1654, 8
        %s1656 = scalar_lea.vmem %s3, %s1655
        %s1657 = smul.u32 2, %s115
        %p1658 = scmp.lt.s32.totalorder %s116, 3
        %s1659 = scalar_select %p1658, %s116, 3
        %s1660 = scalar_lea.vmem %s35, %s1659
        %p1661 = scmp.lt.s32.totalorder %s116, 3
        %s1662 = scalar_select %p1661, %s116, 3
        %s1663 = scalar_lea.vmem %s37, %s1662
        %p1664 = scmp.lt.s32.totalorder %s116, 3
        %s1665 = scalar_select %p1664, %s116, 3
        %s1666 = scalar_lea.vmem %s39, %s1665
        %p1667 = scmp.lt.s32.totalorder %s116, 3
        %s1668 = scalar_select %p1667, %s116, 3
        %s1669 = scalar_lea.vmem %s41, %s1668
        %p1670 = scmp.lt.s32.totalorder %s116, 3
        %s1671 = scalar_select %p1670, %s116, 3
        %s1672 = smul.addr %s1671, 4
        %s1673 = smul.addr %s1672, 4
        %s1674 = scalar_lea.vmem %s43, %s1673
        %p1675 = scmp.lt.s32.totalorder %s116, 3
        %s1676 = scalar_select %p1675, %s116, 3
        %s1677 = smul.addr %s1676, 4
        %s1678 = smul.addr %s1677, 4
        %s1679 = scalar_lea.vmem %s45, %s1678
        %p1680 = scmp.lt.s32.totalorder %s116, 3
        %s1681 = scalar_select %p1680, %s116, 3
        %s1682 = smul.addr %s1681, 4
        %s1683 = smul.addr %s1682, 4
        %s1684 = scalar_lea.vmem %s47, %s1683
        %p1685 = scmp.lt.s32.totalorder %s116, 3
        %s1686 = scalar_select %p1685, %s116, 3
        %s1687 = smul.addr %s1686, 4
        %s1688 = smul.addr %s1687, 4
        %s1689 = scalar_lea.vmem %s49, %s1688
        %p1690 = scmp.lt.s32.totalorder %s116, 3
        %s1691 = scalar_select %p1690, %s116, 3
        %s1692 = scalar_lea.vmem %s51, %s1691
        %p1693 = scmp.lt.s32.totalorder %s116, 3
        %s1694 = scalar_select %p1693, %s116, 3
        %s1695 = scalar_lea.vmem %s53, %s1694
        %p1696 = scmp.lt.s32.totalorder %s116, 3
        %s1697 = scalar_select %p1696, %s116, 3
        %s1698 = scalar_lea.vmem %s55, %s1697
        %p1699 = scmp.lt.s32.totalorder %s116, 3
        %s1700 = scalar_select %p1699, %s116, 3
        %s1701 = smul.addr %s1700, 4
        %s1702 = smul.addr %s1701, 4
        %s1703 = scalar_lea.vmem %s57, %s1702
        %p1704 = scmp.lt.s32.totalorder %s116, 3
        %s1705 = scalar_select %p1704, %s116, 3
        %s1706 = scalar_lea.vmem %s59, %s1705
        %p1707 = scmp.lt.s32.totalorder %s116, 3
        %s1708 = scalar_select %p1707, %s116, 3
        %s1709 = smul.addr %s1708, 16
        %s1710 = smul.addr %s1709, 4
        %s1711 = scalar_lea.vmem %s61, %s1710
        %p1712 = scmp.lt.s32.totalorder %s116, 3
        %s1713 = scalar_select %p1712, %s116, 3
        %s1714 = scalar_lea.vmem %s63, %s1713
        %s1715 = smul.u32 2, %s115
        %s1716 = smul.u32 2, %s115
        %p1718 = scmp.eq.s32.totalorder %s116, 0
        // Predicated region
        $region209: #{rcw_forward.1} parent=207 // pred_check
          %p1719 = pneg %p1718
        $region210: #{rcw_forward.1} parent=207 // pred_check_branch
          %1721 = sbr.rel (%p1719) target = $region212
        $region211: #{rcw_forward.1} parent=207 // pred_region
          %v1722 = vld [vmem:[%s1649] sm:$0xff]
          %v1723 = vld [vmem:[%s1649 + $0x8] sm:$0xff]
          %v1724 = vld [vmem:[%s1656] sm:$0xff]
          %v1725 = vld [vmem:[%s1656 + $0x8] sm:$0xff]
          %v1726 = vld [vmem:[%s1656 + $0x10] sm:$0xff]
          %v1727 = vld [vmem:[%s1656 + $0x18] sm:$0xff]
          %v1728 = vld [vmem:[%s5] sm:$0x1]
          %v1729 = vld [vmem:[%s7] sm:$0x1]
          %v1730 = vld [vmem:[%s9] sm:$0x1]
          %v1731 = vld [vmem:[%s11] sm:$0x1]
          %v1732 = vld [vmem:[%s13] sm:$0xf]
          %v1733 = vld [vmem:[%s13 + $0x4] sm:$0xf]
          %v1734 = vld [vmem:[%s13 + $0x8] sm:$0xf]
          %v1735 = vld [vmem:[%s13 + $0xc] sm:$0xf]
          %v1736 = vld [vmem:[%s15] sm:$0xf]
          %v1737 = vld [vmem:[%s15 + $0x4] sm:$0xf]
          %v1738 = vld [vmem:[%s15 + $0x8] sm:$0xf]
          %v1739 = vld [vmem:[%s15 + $0xc] sm:$0xf]
          %v1740 = vld [vmem:[%s15 + $0x10] sm:$0xf]
          %v1741 = vld [vmem:[%s15 + $0x14] sm:$0xf]
          %v1742 = vld [vmem:[%s15 + $0x18] sm:$0xf]
          %v1743 = vld [vmem:[%s15 + $0x1c] sm:$0xf]
          %v1744 = vld [vmem:[%s17] sm:$0xf]
          %v1745 = vld [vmem:[%s17 + $0x4] sm:$0xf]
          %v1746 = vld [vmem:[%s17 + $0x8] sm:$0xf]
          %v1747 = vld [vmem:[%s17 + $0xc] sm:$0xf]
          %v1748 = vld [vmem:[%s17 + $0x10] sm:$0xf]
          %v1749 = vld [vmem:[%s17 + $0x14] sm:$0xf]
          %v1750 = vld [vmem:[%s17 + $0x18] sm:$0xf]
          %v1751 = vld [vmem:[%s17 + $0x1c] sm:$0xf]
          %v1752 = vld [vmem:[%s19] sm:$0xf]
          %v1753 = vld [vmem:[%s19 + $0x4] sm:$0xf]
          %v1754 = vld [vmem:[%s19 + $0x8] sm:$0xf]
          %v1755 = vld [vmem:[%s19 + $0xc] sm:$0xf]
          %v1756 = vld [vmem:[%s21] sm:$0x1]
          %v1757 = vld [vmem:[%s23] sm:$0x1]
          %v1758 = vld [vmem:[%s25] sm:$0x1]
          %v1759 = vld [vmem:[%s27] sm:$0xf]
          %v1760 = vld [vmem:[%s27 + $0x4] sm:$0xf]
          %v1761 = vld [vmem:[%s27 + $0x8] sm:$0xf]
          %v1762 = vld [vmem:[%s27 + $0xc] sm:$0xf]
          %v1763 = vld [vmem:[%s29] sm:$0x1]
          %v1764 = vld [vmem:[%s31] sm:$0xf]
          %v1765 = vld [vmem:[%s31 + $0x4] sm:$0xf]
          %v1766 = vld [vmem:[%s31 + $0x8] sm:$0xf]
          %v1767 = vld [vmem:[%s31 + $0xc] sm:$0xf]
          %v1768 = vld [vmem:[%s31 + $0x10] sm:$0xf]
          %v1769 = vld [vmem:[%s31 + $0x14] sm:$0xf]
          %v1770 = vld [vmem:[%s31 + $0x18] sm:$0xf]
          %v1771 = vld [vmem:[%s31 + $0x1c] sm:$0xf]
          %v1772 = vld [vmem:[%s31 + $0x20] sm:$0xf]
          %v1773 = vld [vmem:[%s31 + $0x24] sm:$0xf]
          %v1774 = vld [vmem:[%s31 + $0x28] sm:$0xf]
          %v1775 = vld [vmem:[%s31 + $0x2c] sm:$0xf]
          %v1776 = vld [vmem:[%s31 + $0x30] sm:$0xf]
          %v1777 = vld [vmem:[%s31 + $0x34] sm:$0xf]
          %v1778 = vld [vmem:[%s31 + $0x38] sm:$0xf]
          %v1779 = vld [vmem:[%s31 + $0x3c] sm:$0xf]
          %v1780 = vld [vmem:[%s33] sm:$0x1]
          %vm1781 = vcmask 261120
          %v1782 = vsel %vm1781, %v1722, 0.0
          %1783 = vadd.xlane.f32.xlu0 %v1782
          %v1784 = vpop.xlane.xlu0 %1783
          %v1785 = vsel %vm1781, %v1723, 0.0
          %1786 = vadd.xlane.f32.xlu0 %v1785
          %v1787 = vpop.xlane.xlu0 %1786
          %v1788 = vrcp.pop 32.0
          %v1789 = vmul.f32 %v1784, %v1788
          %v1790 = vmul.f32 %v1787, %v1788
          %v1791 = vsub.f32 %v1722, %v1789
          %v1792 = vsub.f32 %v1723, %v1790
          %v1793 = vmul.f32 %v1791, %v1791
          %v1794 = vmul.f32 %v1792, %v1792
          %v1795 = vsel %vm1781, %v1793, 0.0
          %1796 = vadd.xlane.f32.xlu0 %v1795
          %v1797 = vpop.xlane.xlu0 %1796
          %v1798 = vsel %vm1781, %v1794, 0.0
          %1799 = vadd.xlane.f32.xlu0 %v1798
          %v1800 = vpop.xlane.xlu0 %1799
          %v1801 = vmul.f32 %v1797, %v1788
          %v1802 = vmul.f32 %v1800, %v1788
          %v1803 = vadd.f32 %v1801, 1e-05
          %v1804 = vadd.f32 %v1802, 1e-05
          %v1805 = vrsqrt.pop %v1803
          %v1806 = vrsqrt.pop %v1804
          %v1807 = vmul.f32 %v1791, %v1805
          %v1808 = vmul.f32 %v1792, %v1806
          %v1810 = vlaneseq
          %v1811 = vshrl.u32 %v1810, 7
          %v1812 = vsub.s32 0, %v1811
          %v1813 = vrot.slane %v1728, %v1812
          %v1815 = vmul.f32 %v1807, %v1813
          %v1816 = vmul.f32 %v1808, %v1813
          %v1818 = vlaneseq
          %v1819 = vshrl.u32 %v1818, 7
          %v1820 = vsub.s32 0, %v1819
          %v1821 = vrot.slane %v1729, %v1820
          %v1823 = vadd.f32 %v1815, %v1821
          %v1824 = vadd.f32 %v1816, %v1821
          %vm1825 = vcmask 523264
          %v1826 = vsel %vm1825, %v1724, 0.0
          %1827 = vadd.xlane.f32.xlu0 %v1826
          %v1828 = vpop.xlane.xlu0 %1827
          %v1829 = vsel %vm1825, %v1725, 0.0
          %1830 = vadd.xlane.f32.xlu0 %v1829
          %v1831 = vpop.xlane.xlu0 %1830
          %v1832 = vsel %vm1825, %v1726, 0.0
          %1833 = vadd.xlane.f32.xlu0 %v1832
          %v1834 = vpop.xlane.xlu0 %1833
          %v1835 = vsel %vm1825, %v1727, 0.0
          %1836 = vadd.xlane.f32.xlu0 %v1835
          %v1837 = vpop.xlane.xlu0 %1836
          %v1838 = vrcp.pop 64.0
          %v1839 = vmul.f32 %v1828, %v1838
          %v1840 = vmul.f32 %v1831, %v1838
          %v1841 = vmul.f32 %v1834, %v1838
          %v1842 = vmul.f32 %v1837, %v1838
          %v1843 = vsub.f32 %v1724, %v1839
          %v1844 = vsub.f32 %v1725, %v1840
          %v1845 = vsub.f32 %v1726, %v1841
          %v1846 = vsub.f32 %v1727, %v1842
          %v1847 = vmul.f32 %v1843, %v1843
          %v1848 = vmul.f32 %v1844, %v1844
          %v1849 = vmul.f32 %v1845, %v1845
          %v1850 = vmul.f32 %v1846, %v1846
          %v1851 = vsel %vm1825, %v1847, 0.0
          %1852 = vadd.xlane.f32.xlu0 %v1851
          %v1853 = vpop.xlane.xlu0 %1852
          %v1854 = vsel %vm1825, %v1848, 0.0
          %1855 = vadd.xlane.f32.xlu0 %v1854
          %v1856 = vpop.xlane.xlu0 %1855
          %v1857 = vsel %vm1825, %v1849, 0.0
          %1858 = vadd.xlane.f32.xlu0 %v1857
          %v1859 = vpop.xlane.xlu0 %1858
          %v1860 = vsel %vm1825, %v1850, 0.0
          %1861 = vadd.xlane.f32.xlu0 %v1860
          %v1862 = vpop.xlane.xlu0 %1861
          %v1863 = vmul.f32 %v1853, %v1838
          %v1864 = vmul.f32 %v1856, %v1838
          %v1865 = vmul.f32 %v1859, %v1838
          %v1866 = vmul.f32 %v1862, %v1838
          %v1867 = vadd.f32 %v1863, 1e-05
          %v1868 = vadd.f32 %v1864, 1e-05
          %v1869 = vadd.f32 %v1865, 1e-05
          %v1870 = vadd.f32 %v1866, 1e-05
          %v1871 = vrsqrt.pop %v1867
          %v1872 = vrsqrt.pop %v1868
          %v1873 = vrsqrt.pop %v1869
          %v1874 = vrsqrt.pop %v1870
          %v1875 = vmul.f32 %v1843, %v1871
          %v1876 = vmul.f32 %v1844, %v1872
          %v1877 = vmul.f32 %v1845, %v1873
          %v1878 = vmul.f32 %v1846, %v1874
          %v1880 = vlaneseq
          %v1881 = vshrl.u32 %v1880, 7
          %v1882 = vsub.s32 0, %v1881
          %v1883 = vrot.slane %v1730, %v1882
          %v1885 = vmul.f32 %v1875, %v1883
          %v1886 = vmul.f32 %v1876, %v1883
          %v1887 = vmul.f32 %v1877, %v1883
          %v1888 = vmul.f32 %v1878, %v1883
          %v1890 = vlaneseq
          %v1891 = vshrl.u32 %v1890, 7
          %v1892 = vsub.s32 0, %v1891
          %v1893 = vrot.slane %v1731, %v1892
          %v1895 = vadd.f32 %v1885, %v1893
          %v1896 = vadd.f32 %v1886, %v1893
          %v1897 = vadd.f32 %v1887, %v1893
          %v1898 = vadd.f32 %v1888, %v1893
          %v1899 = vpack.c.bf16 %v1824, %v1823
          %v1904 = vunpack.c.l.b16 %v1732
          %v1905 = vunpack.c.l.b16 %v1733
          %v1906 = vunpack.c.l.b16 %v1734
          %v1907 = vunpack.c.l.b16 %v1735
          %v1908 = vpack.c.b16 %v1905, %v1904
          %v1909 = vpack.c.b16 %v1907, %v1906
          %v1913 = vsel %vm1781, %v1899, 0
          %1915 = vmatprep.subr.bf16.mxu0 0
          %1916 = vmatpush1.bf16.msra.mxu0 %v1908
          %1917 = vmatprep.subr.bf16.mxu0 0
          %1918 = vmatpush1.bf16.msra.mxu0 %v1909
          %1919 = vmatprep.subr.bf16.mxu0 0
          %1920 = vmatpush1.bf16.msra.mxu0 0
          %1921 = vmatprep.subr.bf16.mxu0 0
          %1922 = vmatpush1.bf16.msra.mxu0 0
          %1923 = vmatprep.subr.bf16.mxu0 0
          %1924 = vmatpush1.bf16.msra.mxu0 0
          %1925 = vmatprep.subr.bf16.mxu0 0
          %1926 = vmatpush1.bf16.msra.mxu0 0
          %1927 = vmatprep.subr.bf16.mxu0 0
          %1928 = vmatpush1.bf16.msra.mxu0 0
          %1929 = vmatprep.subr.bf16.mxu0 0
          %1930 = vmatpush1.bf16.msra.mxu0 0
          %1931 = vmatprep.subr.bf16.mxu0 0
          %1932 = vmatpush1.bf16.msra.mxu0 0
          %1933 = vmatprep.subr.bf16.mxu0 0
          %1934 = vmatpush1.bf16.msra.mxu0 0
          %1935 = vmatprep.subr.bf16.mxu0 0
          %1936 = vmatpush1.bf16.msra.mxu0 0
          %1937 = vmatprep.subr.bf16.mxu0 0
          %1938 = vmatpush1.bf16.msra.mxu0 0
          %1939 = vmatprep.subr.bf16.mxu0 0
          %1940 = vmatpush1.bf16.msra.mxu0 0
          %1941 = vmatprep.subr.bf16.mxu0 0
          %1942 = vmatpush1.bf16.msra.mxu0 0
          %1943 = vmatprep.subr.bf16.mxu0 0
          %1944 = vmatpush1.bf16.msra.mxu0 0
          %1945 = vmatprep.subr.bf16.mxu0 0
          %1946 = vmatpush1.bf16.msra.mxu0 0
          %1947 = vmatprep.mubr.bf16.mxu0 0
          %1948 = vmatmul.mubr.bf16.gmra.mrb[0].mxu0 %v1913
          %v1949 = vpop.f32.mrb[0].mxu0
          %v1950 = vadd.f32 0.0, %v1949
          %v1951 = vpop.f32.mrb[0].mxu0
          %v1952 = vpop.f32.mrb[0].mxu0
          %v1953 = vadd.f32 0.0, %v1952
          %v1954 = vpop.f32.mrb[0].mxu0
          %1955 = vdwg.mxu0
          %v1956 = vmul.f32 %v1950, 0.35355338
          %v1957 = vmul.f32 %v1953, 0.35355338
          %v1958 = vpack.c.bf16 %v1896, %v1895
          %v1959 = vpack.c.bf16 %v1898, %v1897
          %v1968 = vunpack.c.l.b16 %v1736
          %v1969 = vunpack.c.l.b16 %v1737
          %v1970 = vunpack.c.l.b16 %v1738
          %v1971 = vunpack.c.l.b16 %v1739
          %v1972 = vunpack.c.l.b16 %v1740
          %v1973 = vunpack.c.l.b16 %v1741
          %v1974 = vunpack.c.l.b16 %v1742
          %v1975 = vunpack.c.l.b16 %v1743
          %v1976 = vpack.c.b16 %v1969, %v1968
          %v1977 = vpack.c.b16 %v1971, %v1970
          %v1978 = vpack.c.b16 %v1973, %v1972
          %v1979 = vpack.c.b16 %v1975, %v1974
          %v1985 = vsel %vm1825, %v1958, 0
          %v1988 = vsel %vm1825, %v1959, 0
          %1990 = vmatprep.subr.bf16.mxu0 0
          %1991 = vmatpush1.bf16.msra.mxu0 %v1976
          %1992 = vmatprep.subr.bf16.mxu0 0
          %1993 = vmatpush1.bf16.msra.mxu0 %v1977
          %1994 = vmatprep.subr.bf16.mxu0 0
          %1995 = vmatpush1.bf16.msra.mxu0 %v1978
          %1996 = vmatprep.subr.bf16.mxu0 0
          %1997 = vmatpush1.bf16.msra.mxu0 %v1979
          %1998 = vmatprep.subr.bf16.mxu0 0
          %1999 = vmatpush1.bf16.msra.mxu0 0
          %2000 = vmatprep.subr.bf16.mxu0 0
          %2001 = vmatpush1.bf16.msra.mxu0 0
          %2002 = vmatprep.subr.bf16.mxu0 0
          %2003 = vmatpush1.bf16.msra.mxu0 0
          %2004 = vmatprep.subr.bf16.mxu0 0
          %2005 = vmatpush1.bf16.msra.mxu0 0
          %2006 = vmatprep.subr.bf16.mxu0 0
          %2007 = vmatpush1.bf16.msra.mxu0 0
          %2008 = vmatprep.subr.bf16.mxu0 0
          %2009 = vmatpush1.bf16.msra.mxu0 0
          %2010 = vmatprep.subr.bf16.mxu0 0
          %2011 = vmatpush1.bf16.msra.mxu0 0
          %2012 = vmatprep.subr.bf16.mxu0 0
          %2013 = vmatpush1.bf16.msra.mxu0 0
          %2014 = vmatprep.subr.bf16.mxu0 0
          %2015 = vmatpush1.bf16.msra.mxu0 0
          %2016 = vmatprep.subr.bf16.mxu0 0
          %2017 = vmatpush1.bf16.msra.mxu0 0
          %2018 = vmatprep.subr.bf16.mxu0 0
          %2019 = vmatpush1.bf16.msra.mxu0 0
          %2020 = vmatprep.subr.bf16.mxu0 0
          %2021 = vmatpush1.bf16.msra.mxu0 0
          %2022 = vmatprep.mubr.bf16.mxu0 0
          %2023 = vmatmul.mubr.bf16.gmra.mrb[0].mxu0 %v1985
          %v2024 = vpop.f32.mrb[0].mxu0
          %v2025 = vadd.f32 0.0, %v2024
          %v2026 = vpop.f32.mrb[0].mxu0
          %v2027 = vpop.f32.mrb[0].mxu0
          %v2028 = vadd.f32 0.0, %v2027
          %v2029 = vpop.f32.mrb[0].mxu0
          %2030 = vmatprep.mubr.bf16.mxu0 0
          %2031 = vmatmul.mubr.bf16.gmra.mrb[0].mxu0 %v1988
          %v2032 = vpop.f32.mrb[0].mxu0
          %v2033 = vadd.f32 0.0, %v2032
          %v2034 = vpop.f32.mrb[0].mxu0
          %v2035 = vpop.f32.mrb[0].mxu0
          %v2036 = vadd.f32 0.0, %v2035
          %v2037 = vpop.f32.mrb[0].mxu0
          %2038 = vdwg.mxu0
          %v2047 = vunpack.c.l.b16 %v1744
          %v2048 = vunpack.c.l.b16 %v1745
          %v2049 = vunpack.c.l.b16 %v1746
          %v2050 = vunpack.c.l.b16 %v1747
          %v2051 = vunpack.c.l.b16 %v1748
          %v2052 = vunpack.c.l.b16 %v1749
          %v2053 = vunpack.c.l.b16 %v1750
          %v2054 = vunpack.c.l.b16 %v1751
          %v2055 = vpack.c.b16 %v2048, %v2047
          %v2056 = vpack.c.b16 %v2050, %v2049
          %v2057 = vpack.c.b16 %v2052, %v2051
          %v2058 = vpack.c.b16 %v2054, %v2053
          %2063 = vmatprep.subr.bf16.mxu0 0
          %2064 = vmatpush1.bf16.msra.mxu0 %v2055
          %2065 = vmatprep.subr.bf16.mxu0 0
          %2066 = vmatpush1.bf16.msra.mxu0 %v2056
          %2067 = vmatprep.subr.bf16.mxu0 0
          %2068 = vmatpush1.bf16.msra.mxu0 %v2057
          %2069 = vmatprep.subr.bf16.mxu0 0
          %2070 = vmatpush1.bf16.msra.mxu0 %v2058
          %2071 = vmatprep.subr.bf16.mxu0 0
          %2072 = vmatpush1.bf16.msra.mxu0 0
          %2073 = vmatprep.subr.bf16.mxu0 0
          %2074 = vmatpush1.bf16.msra.mxu0 0
          %2075 = vmatprep.subr.bf16.mxu0 0
          %2076 = vmatpush1.bf16.msra.mxu0 0
          %2077 = vmatprep.subr.bf16.mxu0 0
          %2078 = vmatpush1.bf16.msra.mxu0 0
          %2079 = vmatprep.subr.bf16.mxu0 0
          %2080 = vmatpush1.bf16.msra.mxu0 0
          %2081 = vmatprep.subr.bf16.mxu0 0
          %2082 = vmatpush1.bf16.msra.mxu0 0
          %2083 = vmatprep.subr.bf16.mxu0 0
          %2084 = vmatpush1.bf16.msra.mxu0 0
          %2085 = vmatprep.subr.bf16.mxu0 0
          %2086 = vmatpush1.bf16.msra.mxu0 0
          %2087 = vmatprep.subr.bf16.mxu0 0
          %2088 = vmatpush1.bf16.msra.mxu0 0
          %2089 = vmatprep.subr.bf16.mxu0 0
          %2090 = vmatpush1.bf16.msra.mxu0 0
          %2091 = vmatprep.subr.bf16.mxu0 0
          %2092 = vmatpush1.bf16.msra.mxu0 0
          %2093 = vmatprep.subr.bf16.mxu0 0
          %2094 = vmatpush1.bf16.msra.mxu0 0
          %2095 = vmatprep.mubr.bf16.mxu0 0
          %2096 = vmatmul.mubr.bf16.gmra.mrb[0].mxu0 %v1985
          %v2097 = vpop.f32.mrb[0].mxu0
          %v2098 = vadd.f32 0.0, %v2097
          %v2099 = vpop.f32.mrb[0].mxu0
          %v2100 = vpop.f32.mrb[0].mxu0
          %v2101 = vadd.f32 0.0, %v2100
          %v2102 = vpop.f32.mrb[0].mxu0
          %2103 = vmatprep.mubr.bf16.mxu0 0
          %2104 = vmatmul.mubr.bf16.gmra.mrb[0].mxu0 %v1988
          %v2105 = vpop.f32.mrb[0].mxu0
          %v2106 = vadd.f32 0.0, %v2105
          %v2107 = vpop.f32.mrb[0].mxu0
          %v2108 = vpop.f32.mrb[0].mxu0
          %v2109 = vadd.f32 0.0, %v2108
          %v2110 = vpop.f32.mrb[0].mxu0
          %2111 = vdwg.mxu0
          %v2112 = vpack.c.bf16 %v1956, %v1956
          %v2113 = vpack.c.bf16 %v1957, %v1957
          %v2114 = vpack.c.bf16 %v2028, %v2025
          %v2115 = vpack.c.bf16 %v2036, %v2033
          %v2116 = vpack.c.bf16 %v2101, %v2098
          %v2117 = vpack.c.bf16 %v2109, %v2106
          %vm2118 = vcmask 64512
          %v2120 = vsel %vm2118, %v2112, 0
          %v2123 = vsel %vm2118, %v2114, 0
          %2125 = vmatprep.subr.bf16.mxu0 0
          %2126 = vmatpush1.bf16.xpose.msra.mxu0 %v2123
          %2127 = vmatprep.subr.bf16.mxu0 0
          %2128 = vmatpush1.bf16.xpose.msra.mxu0 0
          %2129 = vmatprep.subr.bf16.mxu0 0
          %2130 = vmatpush1.bf16.xpose.msra.mxu0 0
          %2131 = vmatprep.subr.bf16.mxu0 0
          %2132 = vmatpush1.bf16.xpose.msra.mxu0 0
          %2133 = vmatprep.subr.bf16.mxu0 0
          %2134 = vmatpush1.bf16.xpose.msra.mxu0 0
          %2135 = vmatprep.subr.bf16.mxu0 0
          %2136 = vmatpush1.bf16.xpose.msra.mxu0 0
          %2137 = vmatprep.subr.bf16.mxu0 0
          %2138 = vmatpush1.bf16.xpose.msra.mxu0 0
          %2139 = vmatprep.subr.bf16.mxu0 0
          %2140 = vmatpush1.bf16.xpose.msra.mxu0 0
          %2141 = vmatprep.subr.bf16.mxu0 0
          %2142 = vmatpush1.bf16.xpose.msra.mxu0 0
          %2143 = vmatprep.subr.bf16.mxu0 0
          %2144 = vmatpush1.bf16.xpose.msra.mxu0 0
          %2145 = vmatprep.subr.bf16.mxu0 0
          %2146 = vmatpush1.bf16.xpose.msra.mxu0 0
          %2147 = vmatprep.subr.bf16.mxu0 0
          %2148 = vmatpush1.bf16.xpose.msra.mxu0 0
          %2149 = vmatprep.subr.bf16.mxu0 0
          %2150 = vmatpush1.bf16.xpose.msra.mxu0 0
          %2151 = vmatprep.subr.bf16.mxu0 0
          %2152 = vmatpush1.bf16.xpose.msra.mxu0 0
          %2153 = vmatprep.subr.bf16.mxu0 0
          %2154 = vmatpush1.bf16.xpose.msra.mxu0 0
          %2155 = vmatprep.subr.bf16.mxu0 0
          %2156 = vmatpush1.bf16.xpose.msra.mxu0 0
          %2157 = vmatprep.mubr.bf16.mxu0 0
          %2158 = vmatmul.mubr.bf16.gmra.mrb[0].mxu0 %v2120
          %v2159 = vpop.f32.mrb[0].mxu0
          %v2160 = vadd.f32 0.0, %v2159
          %v2161 = vpop.f32.mrb[0].mxu0
          %v2162 = vpop.f32.mrb[0].mxu0
          %v2163 = vpop.f32.mrb[0].mxu0
          %2164 = vdwg.mxu0
          %v2166 = vsel %vm2118, %v2113, 0
          %v2169 = vsel %vm2118, %v2115, 0
          %2171 = vmatprep.subr.bf16.mxu0 0
          %2172 = vmatpush1.bf16.xpose.msra.mxu0 %v2169
          %2173 = vmatprep.subr.bf16.mxu0 0
          %2174 = vmatpush1.bf16.xpose.msra.mxu0 0
          %2175 = vmatprep.subr.bf16.mxu0 0
          %2176 = vmatpush1.bf16.xpose.msra.mxu0 0
          %2177 = vmatprep.subr.bf16.mxu0 0
          %2178 = vmatpush1.bf16.xpose.msra.mxu0 0
          %2179 = vmatprep.subr.bf16.mxu0 0
          %2180 = vmatpush1.bf16.xpose.msra.mxu0 0
          %2181 = vmatprep.subr.bf16.mxu0 0
          %2182 = vmatpush1.bf16.xpose.msra.mxu0 0
          %2183 = vmatprep.subr.bf16.mxu0 0
          %2184 = vmatpush1.bf16.xpose.msra.mxu0 0
          %2185 = vmatprep.subr.bf16.mxu0 0
          %2186 = vmatpush1.bf16.xpose.msra.mxu0 0
          %2187 = vmatprep.subr.bf16.mxu0 0
          %2188 = vmatpush1.bf16.xpose.msra.mxu0 0
          %2189 = vmatprep.subr.bf16.mxu0 0
          %2190 = vmatpush1.bf16.xpose.msra.mxu0 0
          %2191 = vmatprep.subr.bf16.mxu0 0
          %2192 = vmatpush1.bf16.xpose.msra.mxu0 0
          %2193 = vmatprep.subr.bf16.mxu0 0
          %2194 = vmatpush1.bf16.xpose.msra.mxu0 0
          %2195 = vmatprep.subr.bf16.mxu0 0
          %2196 = vmatpush1.bf16.xpose.msra.mxu0 0
          %2197 = vmatprep.subr.bf16.mxu0 0
          %2198 = vmatpush1.bf16.xpose.msra.mxu0 0
          %2199 = vmatprep.subr.bf16.mxu0 0
          %2200 = vmatpush1.bf16.xpose.msra.mxu0 0
          %2201 = vmatprep.subr.bf16.mxu0 0
          %2202 = vmatpush1.bf16.xpose.msra.mxu0 0
          %2203 = vmatprep.mubr.bf16.mxu0 0
          %2204 = vmatmul.mubr.bf16.gmra.mrb[0].mxu0 %v2166
          %v2205 = vpop.f32.mrb[0].mxu0
          %v2206 = vadd.f32 0.0, %v2205
          %v2207 = vpop.f32.mrb[0].mxu0
          %v2208 = vpop.f32.mrb[0].mxu0
          %v2209 = vpop.f32.mrb[0].mxu0
          %2210 = vdwg.mxu0
          %vm2211 = vcmask 130048
          %v2212 = vsel %vm2211, %v2160, -inf
          %2213 = vmax.xlane.f32.xlu0 %v2212
          %v2214 = vpop.xlane.xlu0 %2213
          %v2215 = vsel %vm2211, %v2206, -inf
          %2216 = vmax.xlane.f32.xlu0 %v2215
          %v2217 = vpop.xlane.xlu0 %2216
          %v2218 = vsub.f32 %v2160, %v2214
          %v2219 = vsub.f32 %v2206, %v2217
          %v2220 = vmul.f32 %v2218, 1.442695
          %v2221 = vpow.pop %v2220
          %v2222 = vmul.f32 %v2219, 1.442695
          %v2223 = vpow.pop %v2222
          %v2224 = vsel %vm2211, %v2221, 0.0
          %2225 = vadd.xlane.f32.xlu0 %v2224
          %v2226 = vpop.xlane.xlu0 %2225
          %v2227 = vsel %vm2211, %v2223, 0.0
          %2228 = vadd.xlane.f32.xlu0 %v2227
          %v2229 = vpop.xlane.xlu0 %2228
          %v2230 = vrcp.pop %v2226
          %v2231 = vrcp.pop %v2229
          %v2232 = vmul.f32 %v2221, %v2230
          %v2233 = vmul.f32 %v2223, %v2231
          %v2234 = vpack.c.bf16 %v2232, %v2232
          %v2235 = vpack.c.bf16 %v2233, %v2233
          %v2237 = vsel %vm2211, %v2234, 0
          %2239 = vmatprep.subr.bf16.mxu0 0
          %2240 = vmatpush1.bf16.msra.mxu0 %v2116
          %2241 = vmatprep.subr.bf16.mxu0 0
          %2242 = vmatpush1.bf16.msra.mxu0 0
          %2243 = vmatprep.subr.bf16.mxu0 0
          %2244 = vmatpush1.bf16.msra.mxu0 0
          %2245 = vmatprep.subr.bf16.mxu0 0
          %2246 = vmatpush1.bf16.msra.mxu0 0
          %2247 = vmatprep.subr.bf16.mxu0 0
          %2248 = vmatpush1.bf16.msra.mxu0 0
          %2249 = vmatprep.subr.bf16.mxu0 0
          %2250 = vmatpush1.bf16.msra.mxu0 0
          %2251 = vmatprep.subr.bf16.mxu0 0
          %2252 = vmatpush1.bf16.msra.mxu0 0
          %2253 = vmatprep.subr.bf16.mxu0 0
          %2254 = vmatpush1.bf16.msra.mxu0 0
          %2255 = vmatprep.subr.bf16.mxu0 0
          %2256 = vmatpush1.bf16.msra.mxu0 0
          %2257 = vmatprep.subr.bf16.mxu0 0
          %2258 = vmatpush1.bf16.msra.mxu0 0
          %2259 = vmatprep.subr.bf16.mxu0 0
          %2260 = vmatpush1.bf16.msra.mxu0 0
          %2261 = vmatprep.subr.bf16.mxu0 0
          %2262 = vmatpush1.bf16.msra.mxu0 0
          %2263 = vmatprep.subr.bf16.mxu0 0
          %2264 = vmatpush1.bf16.msra.mxu0 0
          %2265 = vmatprep.subr.bf16.mxu0 0
          %2266 = vmatpush1.bf16.msra.mxu0 0
          %2267 = vmatprep.subr.bf16.mxu0 0
          %2268 = vmatpush1.bf16.msra.mxu0 0
          %2269 = vmatprep.subr.bf16.mxu0 0
          %2270 = vmatpush1.bf16.msra.mxu0 0
          %2271 = vmatprep.mubr.bf16.mxu0 0
          %2272 = vmatmul.mubr.bf16.gmra.mrb[0].mxu0 %v2237
          %v2273 = vpop.f32.mrb[0].mxu0
          %v2274 = vadd.f32 0.0, %v2273
          %v2275 = vpop.f32.mrb[0].mxu0
          %v2276 = vpop.f32.mrb[0].mxu0
          %v2277 = vpop.f32.mrb[0].mxu0
          %2278 = vdwg.mxu0
          %v2280 = vsel %vm2211, %v2235, 0
          %2282 = vmatprep.subr.bf16.mxu0 0
          %2283 = vmatpush1.bf16.msra.mxu0 %v2117
          %2284 = vmatprep.subr.bf16.mxu0 0
          %2285 = vmatpush1.bf16.msra.mxu0 0
          %2286 = vmatprep.subr.bf16.mxu0 0
          %2287 = vmatpush1.bf16.msra.mxu0 0
          %2288 = vmatprep.subr.bf16.mxu0 0
          %2289 = vmatpush1.bf16.msra.mxu0 0
          %2290 = vmatprep.subr.bf16.mxu0 0
          %2291 = vmatpush1.bf16.msra.mxu0 0
          %2292 = vmatprep.subr.bf16.mxu0 0
          %2293 = vmatpush1.bf16.msra.mxu0 0
          %2294 = vmatprep.subr.bf16.mxu0 0
          %2295 = vmatpush1.bf16.msra.mxu0 0
          %2296 = vmatprep.subr.bf16.mxu0 0
          %2297 = vmatpush1.bf16.msra.mxu0 0
          %2298 = vmatprep.subr.bf16.mxu0 0
          %2299 = vmatpush1.bf16.msra.mxu0 0
          %2300 = vmatprep.subr.bf16.mxu0 0
          %2301 = vmatpush1.bf16.msra.mxu0 0
          %2302 = vmatprep.subr.bf16.mxu0 0
          %2303 = vmatpush1.bf16.msra.mxu0 0
          %2304 = vmatprep.subr.bf16.mxu0 0
          %2305 = vmatpush1.bf16.msra.mxu0 0
          %2306 = vmatprep.subr.bf16.mxu0 0
          %2307 = vmatpush1.bf16.msra.mxu0 0
          %2308 = vmatprep.subr.bf16.mxu0 0
          %2309 = vmatpush1.bf16.msra.mxu0 0
          %2310 = vmatprep.subr.bf16.mxu0 0
          %2311 = vmatpush1.bf16.msra.mxu0 0
          %2312 = vmatprep.subr.bf16.mxu0 0
          %2313 = vmatpush1.bf16.msra.mxu0 0
          %2314 = vmatprep.mubr.bf16.mxu0 0
          %2315 = vmatmul.mubr.bf16.gmra.mrb[0].mxu0 %v2280
          %v2316 = vpop.f32.mrb[0].mxu0
          %v2317 = vadd.f32 0.0, %v2316
          %v2318 = vpop.f32.mrb[0].mxu0
          %v2319 = vpop.f32.mrb[0].mxu0
          %v2320 = vpop.f32.mrb[0].mxu0
          %2321 = vdwg.mxu0
          %2323 = vrot.lane.b32.xlu0 %v2112, 120
          %v2324 = vpop.permute.xlu0 %2323
          %2326 = vrot.lane.b32.xlu0 %v2114, 120
          %v2327 = vpop.permute.xlu0 %2326
          %v2329 = vsel %vm2118, %v2324, 0
          %v2332 = vsel %vm2118, %v2327, 0
          %2334 = vmatprep.subr.bf16.mxu0 0
          %2335 = vmatpush1.bf16.xpose.msra.mxu0 %v2332
          %2336 = vmatprep.subr.bf16.mxu0 0
          %2337 = vmatpush1.bf16.xpose.msra.mxu0 0
          %2338 = vmatprep.subr.bf16.mxu0 0
          %2339 = vmatpush1.bf16.xpose.msra.mxu0 0
          %2340 = vmatprep.subr.bf16.mxu0 0
          %2341 = vmatpush1.bf16.xpose.msra.mxu0 0
          %2342 = vmatprep.subr.bf16.mxu0 0
          %2343 = vmatpush1.bf16.xpose.msra.mxu0 0
          %2344 = vmatprep.subr.bf16.mxu0 0
          %2345 = vmatpush1.bf16.xpose.msra.mxu0 0
          %2346 = vmatprep.subr.bf16.mxu0 0
          %2347 = vmatpush1.bf16.xpose.msra.mxu0 0
          %2348 = vmatprep.subr.bf16.mxu0 0
          %2349 = vmatpush1.bf16.xpose.msra.mxu0 0
          %2350 = vmatprep.subr.bf16.mxu0 0
          %2351 = vmatpush1.bf16.xpose.msra.mxu0 0
          %2352 = vmatprep.subr.bf16.mxu0 0
          %2353 = vmatpush1.bf16.xpose.msra.mxu0 0
          %2354 = vmatprep.subr.bf16.mxu0 0
          %2355 = vmatpush1.bf16.xpose.msra.mxu0 0
          %2356 = vmatprep.subr.bf16.mxu0 0
          %2357 = vmatpush1.bf16.xpose.msra.mxu0 0
          %2358 = vmatprep.subr.bf16.mxu0 0
          %2359 = vmatpush1.bf16.xpose.msra.mxu0 0
          %2360 = vmatprep.subr.bf16.mxu0 0
          %2361 = vmatpush1.bf16.xpose.msra.mxu0 0
          %2362 = vmatprep.subr.bf16.mxu0 0
          %2363 = vmatpush1.bf16.xpose.msra.mxu0 0
          %2364 = vmatprep.subr.bf16.mxu0 0
          %2365 = vmatpush1.bf16.xpose.msra.mxu0 0
          %2366 = vmatprep.mubr.bf16.mxu0 0
          %2367 = vmatmul.mubr.bf16.gmra.mrb[0].mxu0 %v2329
          %v2368 = vpop.f32.mrb[0].mxu0
          %v2369 = vadd.f32 0.0, %v2368
          %v2370 = vpop.f32.mrb[0].mxu0
          %v2371 = vpop.f32.mrb[0].mxu0
          %v2372 = vpop.f32.mrb[0].mxu0
          %2373 = vdwg.mxu0
          %2375 = vrot.lane.b32.xlu0 %v2113, 120
          %v2376 = vpop.permute.xlu0 %2375
          %2378 = vrot.lane.b32.xlu0 %v2115, 120
          %v2379 = vpop.permute.xlu0 %2378
          %v2381 = vsel %vm2118, %v2376, 0
          %v2384 = vsel %vm2118, %v2379, 0
          %2386 = vmatprep.subr.bf16.mxu0 0
          %2387 = vmatpush1.bf16.xpose.msra.mxu0 %v2384
          %2388 = vmatprep.subr.bf16.mxu0 0
          %2389 = vmatpush1.bf16.xpose.msra.mxu0 0
          %2390 = vmatprep.subr.bf16.mxu0 0
          %2391 = vmatpush1.bf16.xpose.msra.mxu0 0
          %2392 = vmatprep.subr.bf16.mxu0 0
          %2393 = vmatpush1.bf16.xpose.msra.mxu0 0
          %2394 = vmatprep.subr.bf16.mxu0 0
          %2395 = vmatpush1.bf16.xpose.msra.mxu0 0
          %2396 = vmatprep.subr.bf16.mxu0 0
          %2397 = vmatpush1.bf16.xpose.msra.mxu0 0
          %2398 = vmatprep.subr.bf16.mxu0 0
          %2399 = vmatpush1.bf16.xpose.msra.mxu0 0
          %2400 = vmatprep.subr.bf16.mxu0 0
          %2401 = vmatpush1.bf16.xpose.msra.mxu0 0
          %2402 = vmatprep.subr.bf16.mxu0 0
          %2403 = vmatpush1.bf16.xpose.msra.mxu0 0
          %2404 = vmatprep.subr.bf16.mxu0 0
          %2405 = vmatpush1.bf16.xpose.msra.mxu0 0
          %2406 = vmatprep.subr.bf16.mxu0 0
          %2407 = vmatpush1.bf16.xpose.msra.mxu0 0
          %2408 = vmatprep.subr.bf16.mxu0 0
          %2409 = vmatpush1.bf16.xpose.msra.mxu0 0
          %2410 = vmatprep.subr.bf16.mxu0 0
          %2411 = vmatpush1.bf16.xpose.msra.mxu0 0
          %2412 = vmatprep.subr.bf16.mxu0 0
          %2413 = vmatpush1.bf16.xpose.msra.mxu0 0
          %2414 = vmatprep.subr.bf16.mxu0 0
          %2415 = vmatpush1.bf16.xpose.msra.mxu0 0
          %2416 = vmatprep.subr.bf16.mxu0 0
          %2417 = vmatpush1.bf16.xpose.msra.mxu0 0
          %2418 = vmatprep.mubr.bf16.mxu0 0
          %2419 = vmatmul.mubr.bf16.gmra.mrb[0].mxu0 %v2381
          %v2420 = vpop.f32.mrb[0].mxu0
          %v2421 = vadd.f32 0.0, %v2420
          %v2422 = vpop.f32.mrb[0].mxu0
          %v2423 = vpop.f32.mrb[0].mxu0
          %v2424 = vpop.f32.mrb[0].mxu0
          %2425 = vdwg.mxu0
          %v2426 = vsel %vm2211, %v2369, -inf
          %2427 = vmax.xlane.f32.xlu0 %v2426
          %v2428 = vpop.xlane.xlu0 %2427
          %v2429 = vsel %vm2211, %v2421, -inf
          %2430 = vmax.xlane.f32.xlu0 %v2429
          %v2431 = vpop.xlane.xlu0 %2430
          %v2432 = vsub.f32 %v2369, %v2428
          %v2433 = vsub.f32 %v2421, %v2431
          %v2434 = vmul.f32 %v2432, 1.442695
          %v2435 = vpow.pop %v2434
          %v2436 = vmul.f32 %v2433, 1.442695
          %v2437 = vpow.pop %v2436
          %v2438 = vsel %vm2211, %v2435, 0.0
          %2439 = vadd.xlane.f32.xlu0 %v2438
          %v2440 = vpop.xlane.xlu0 %2439
          %v2441 = vsel %vm2211, %v2437, 0.0
          %2442 = vadd.xlane.f32.xlu0 %v2441
          %v2443 = vpop.xlane.xlu0 %2442
          %v2444 = vrcp.pop %v2440
          %v2445 = vrcp.pop %v2443
          %v2446 = vmul.f32 %v2435, %v2444
          %v2447 = vmul.f32 %v2437, %v2445
          %v2448 = vpack.c.bf16 %v2446, %v2446
          %v2449 = vpack.c.bf16 %v2447, %v2447
          %2451 = vrot.lane.b32.xlu0 %v2116, 120
          %v2452 = vpop.permute.xlu0 %2451
          %v2455 = vsel %vm2211, %v2448, 0
          %2457 = vmatprep.subr.bf16.mxu0 0
          %2458 = vmatpush1.bf16.msra.mxu0 %v2452
          %2459 = vmatprep.subr.bf16.mxu0 0
          %2460 = vmatpush1.bf16.msra.mxu0 0
          %2461 = vmatprep.subr.bf16.mxu0 0
          %2462 = vmatpush1.bf16.msra.mxu0 0
          %2463 = vmatprep.subr.bf16.mxu0 0
          %2464 = vmatpush1.bf16.msra.mxu0 0
          %2465 = vmatprep.subr.bf16.mxu0 0
          %2466 = vmatpush1.bf16.msra.mxu0 0
          %2467 = vmatprep.subr.bf16.mxu0 0
          %2468 = vmatpush1.bf16.msra.mxu0 0
          %2469 = vmatprep.subr.bf16.mxu0 0
          %2470 = vmatpush1.bf16.msra.mxu0 0
          %2471 = vmatprep.subr.bf16.mxu0 0
          %2472 = vmatpush1.bf16.msra.mxu0 0
          %2473 = vmatprep.subr.bf16.mxu0 0
          %2474 = vmatpush1.bf16.msra.mxu0 0
          %2475 = vmatprep.subr.bf16.mxu0 0
          %2476 = vmatpush1.bf16.msra.mxu0 0
          %2477 = vmatprep.subr.bf16.mxu0 0
          %2478 = vmatpush1.bf16.msra.mxu0 0
          %2479 = vmatprep.subr.bf16.mxu0 0
          %2480 = vmatpush1.bf16.msra.mxu0 0
          %2481 = vmatprep.subr.bf16.mxu0 0
          %2482 = vmatpush1.bf16.msra.mxu0 0
          %2483 = vmatprep.subr.bf16.mxu0 0
          %2484 = vmatpush1.bf16.msra.mxu0 0
          %2485 = vmatprep.subr.bf16.mxu0 0
          %2486 = vmatpush1.bf16.msra.mxu0 0
          %2487 = vmatprep.subr.bf16.mxu0 0
          %2488 = vmatpush1.bf16.msra.mxu0 0
          %2489 = vmatprep.mubr.bf16.mxu0 0
          %2490 = vmatmul.mubr.bf16.gmra.mrb[0].mxu0 %v2455
          %v2491 = vpop.f32.mrb[0].mxu0
          %v2492 = vadd.f32 0.0, %v2491
          %v2493 = vpop.f32.mrb[0].mxu0
          %v2494 = vpop.f32.mrb[0].mxu0
          %v2495 = vpop.f32.mrb[0].mxu0
          %2496 = vdwg.mxu0
          %2498 = vrot.lane.b32.xlu0 %v2117, 120
          %v2499 = vpop.permute.xlu0 %2498
          %v2502 = vsel %vm2211, %v2449, 0
          %2504 = vmatprep.subr.bf16.mxu0 0
          %2505 = vmatpush1.bf16.msra.mxu0 %v2499
          %2506 = vmatprep.subr.bf16.mxu0 0
          %2507 = vmatpush1.bf16.msra.mxu0 0
          %2508 = vmatprep.subr.bf16.mxu0 0
          %2509 = vmatpush1.bf16.msra.mxu0 0
          %2510 = vmatprep.subr.bf16.mxu0 0
          %2511 = vmatpush1.bf16.msra.mxu0 0
          %2512 = vmatprep.subr.bf16.mxu0 0
          %2513 = vmatpush1.bf16.msra.mxu0 0
          %2514 = vmatprep.subr.bf16.mxu0 0
          %2515 = vmatpush1.bf16.msra.mxu0 0
          %2516 = vmatprep.subr.bf16.mxu0 0
          %2517 = vmatpush1.bf16.msra.mxu0 0
          %2518 = vmatprep.subr.bf16.mxu0 0
          %2519 = vmatpush1.bf16.msra.mxu0 0
          %2520 = vmatprep.subr.bf16.mxu0 0
          %2521 = vmatpush1.bf16.msra.mxu0 0
          %2522 = vmatprep.subr.bf16.mxu0 0
          %2523 = vmatpush1.bf16.msra.mxu0 0
          %2524 = vmatprep.subr.bf16.mxu0 0
          %2525 = vmatpush1.bf16.msra.mxu0 0
          %2526 = vmatprep.subr.bf16.mxu0 0
          %2527 = vmatpush1.bf16.msra.mxu0 0
          %2528 = vmatprep.subr.bf16.mxu0 0
          %2529 = vmatpush1.bf16.msra.mxu0 0
          %2530 = vmatprep.subr.bf16.mxu0 0
          %2531 = vmatpush1.bf16.msra.mxu0 0
          %2532 = vmatprep.subr.bf16.mxu0 0
          %2533 = vmatpush1.bf16.msra.mxu0 0
          %2534 = vmatprep.subr.bf16.mxu0 0
          %2535 = vmatpush1.bf16.msra.mxu0 0
          %2536 = vmatprep.mubr.bf16.mxu0 0
          %2537 = vmatmul.mubr.bf16.gmra.mrb[0].mxu0 %v2502
          %v2538 = vpop.f32.mrb[0].mxu0
          %v2539 = vadd.f32 0.0, %v2538
          %v2540 = vpop.f32.mrb[0].mxu0
          %v2541 = vpop.f32.mrb[0].mxu0
          %v2542 = vpop.f32.mrb[0].mxu0
          %2543 = vdwg.mxu0
          %2544 = vrot.lane.b32.xlu0 %v2112, 112
          %v2545 = vpop.permute.xlu0 %2544
          %2546 = vrot.lane.b32.xlu0 %v2114, 112
          %v2547 = vpop.permute.xlu0 %2546
          %v2549 = vsel %vm2118, %v2545, 0
          %v2552 = vsel %vm2118, %v2547, 0
          %2554 = vmatprep.subr.bf16.mxu0 0
          %2555 = vmatpush1.bf16.xpose.msra.mxu0 %v2552
          %2556 = vmatprep.subr.bf16.mxu0 0
          %2557 = vmatpush1.bf16.xpose.msra.mxu0 0
          %2558 = vmatprep.subr.bf16.mxu0 0
          %2559 = vmatpush1.bf16.xpose.msra.mxu0 0
          %2560 = vmatprep.subr.bf16.mxu0 0
          %2561 = vmatpush1.bf16.xpose.msra.mxu0 0
          %2562 = vmatprep.subr.bf16.mxu0 0
          %2563 = vmatpush1.bf16.xpose.msra.mxu0 0
          %2564 = vmatprep.subr.bf16.mxu0 0
          %2565 = vmatpush1.bf16.xpose.msra.mxu0 0
          %2566 = vmatprep.subr.bf16.mxu0 0
          %2567 = vmatpush1.bf16.xpose.msra.mxu0 0
          %2568 = vmatprep.subr.bf16.mxu0 0
          %2569 = vmatpush1.bf16.xpose.msra.mxu0 0
          %2570 = vmatprep.subr.bf16.mxu0 0
          %2571 = vmatpush1.bf16.xpose.msra.mxu0 0
          %2572 = vmatprep.subr.bf16.mxu0 0
          %2573 = vmatpush1.bf16.xpose.msra.mxu0 0
          %2574 = vmatprep.subr.bf16.mxu0 0
          %2575 = vmatpush1.bf16.xpose.msra.mxu0 0
          %2576 = vmatprep.subr.bf16.mxu0 0
          %2577 = vmatpush1.bf16.xpose.msra.mxu0 0
          %2578 = vmatprep.subr.bf16.mxu0 0
          %2579 = vmatpush1.bf16.xpose.msra.mxu0 0
          %2580 = vmatprep.subr.bf16.mxu0 0
          %2581 = vmatpush1.bf16.xpose.msra.mxu0 0
          %2582 = vmatprep.subr.bf16.mxu0 0
          %2583 = vmatpush1.bf16.xpose.msra.mxu0 0
          %2584 = vmatprep.subr.bf16.mxu0 0
          %2585 = vmatpush1.bf16.xpose.msra.mxu0 0
          %2586 = vmatprep.mubr.bf16.mxu0 0
          %2587 = vmatmul.mubr.bf16.gmra.mrb[0].mxu0 %v2549
          %v2588 = vpop.f32.mrb[0].mxu0
          %v2589 = vadd.f32 0.0, %v2588
          %v2590 = vpop.f32.mrb[0].mxu0
          %v2591 = vpop.f32.mrb[0].mxu0
          %v2592 = vpop.f32.mrb[0].mxu0
          %2593 = vdwg.mxu0
          %2594 = vrot.lane.b32.xlu0 %v2113, 112
          %v2595 = vpop.permute.xlu0 %2594
          %2596 = vrot.lane.b32.xlu0 %v2115, 112
          %v2597 = vpop.permute.xlu0 %2596
          %v2599 = vsel %vm2118, %v2595, 0
          %v2602 = vsel %vm2118, %v2597, 0
          %2604 = vmatprep.subr.bf16.mxu0 0
          %2605 = vmatpush1.bf16.xpose.msra.mxu0 %v2602
          %2606 = vmatprep.subr.bf16.mxu0 0
          %2607 = vmatpush1.bf16.xpose.msra.mxu0 0
          %2608 = vmatprep.subr.bf16.mxu0 0
          %2609 = vmatpush1.bf16.xpose.msra.mxu0 0
          %2610 = vmatprep.subr.bf16.mxu0 0
          %2611 = vmatpush1.bf16.xpose.msra.mxu0 0
          %2612 = vmatprep.subr.bf16.mxu0 0
          %2613 = vmatpush1.bf16.xpose.msra.mxu0 0
          %2614 = vmatprep.subr.bf16.mxu0 0
          %2615 = vmatpush1.bf16.xpose.msra.mxu0 0
          %2616 = vmatprep.subr.bf16.mxu0 0
          %2617 = vmatpush1.bf16.xpose.msra.mxu0 0
          %2618 = vmatprep.subr.bf16.mxu0 0
          %2619 = vmatpush1.bf16.xpose.msra.mxu0 0
          %2620 = vmatprep.subr.bf16.mxu0 0
          %2621 = vmatpush1.bf16.xpose.msra.mxu0 0
          %2622 = vmatprep.subr.bf16.mxu0 0
          %2623 = vmatpush1.bf16.xpose.msra.mxu0 0
          %2624 = vmatprep.subr.bf16.mxu0 0
          %2625 = vmatpush1.bf16.xpose.msra.mxu0 0
          %2626 = vmatprep.subr.bf16.mxu0 0
          %2627 = vmatpush1.bf16.xpose.msra.mxu0 0
          %2628 = vmatprep.subr.bf16.mxu0 0
          %2629 = vmatpush1.bf16.xpose.msra.mxu0 0
          %2630 = vmatprep.subr.bf16.mxu0 0
          %2631 = vmatpush1.bf16.xpose.msra.mxu0 0
          %2632 = vmatprep.subr.bf16.mxu0 0
          %2633 = vmatpush1.bf16.xpose.msra.mxu0 0
          %2634 = vmatprep.subr.bf16.mxu0 0
          %2635 = vmatpush1.bf16.xpose.msra.mxu0 0
          %2636 = vmatprep.mubr.bf16.mxu0 0
          %2637 = vmatmul.mubr.bf16.gmra.mrb[0].mxu0 %v2599
          %v2638 = vpop.f32.mrb[0].mxu0
          %v2639 = vadd.f32 0.0, %v2638
          %v2640 = vpop.f32.mrb[0].mxu0
          %v2641 = vpop.f32.mrb[0].mxu0
          %v2642 = vpop.f32.mrb[0].mxu0
          %2643 = vdwg.mxu0
          %v2644 = vsel %vm2211, %v2589, -inf
          %2645 = vmax.xlane.f32.xlu0 %v2644
          %v2646 = vpop.xlane.xlu0 %2645
          %v2647 = vsel %vm2211, %v2639, -inf
          %2648 = vmax.xlane.f32.xlu0 %v2647
          %v2649 = vpop.xlane.xlu0 %2648
          %v2650 = vsub.f32 %v2589, %v2646
          %v2651 = vsub.f32 %v2639, %v2649
          %v2652 = vmul.f32 %v2650, 1.442695
          %v2653 = vpow.pop %v2652
          %v2654 = vmul.f32 %v2651, 1.442695
          %v2655 = vpow.pop %v2654
          %v2656 = vsel %vm2211, %v2653, 0.0
          %2657 = vadd.xlane.f32.xlu0 %v2656
          %v2658 = vpop.xlane.xlu0 %2657
          %v2659 = vsel %vm2211, %v2655, 0.0
          %2660 = vadd.xlane.f32.xlu0 %v2659
          %v2661 = vpop.xlane.xlu0 %2660
          %v2662 = vrcp.pop %v2658
          %v2663 = vrcp.pop %v2661
          %v2664 = vmul.f32 %v2653, %v2662
          %v2665 = vmul.f32 %v2655, %v2663
          %v2666 = vpack.c.bf16 %v2664, %v2664
          %v2667 = vpack.c.bf16 %v2665, %v2665
          %2668 = vrot.lane.b32.xlu0 %v2116, 112
          %v2669 = vpop.permute.xlu0 %2668
          %v2672 = vsel %vm2211, %v2666, 0
          %2674 = vmatprep.subr.bf16.mxu0 0
          %2675 = vmatpush1.bf16.msra.mxu0 %v2669
          %2676 = vmatprep.subr.bf16.mxu0 0
          %2677 = vmatpush1.bf16.msra.mxu0 0
          %2678 = vmatprep.subr.bf16.mxu0 0
          %2679 = vmatpush1.bf16.msra.mxu0 0
          %2680 = vmatprep.subr.bf16.mxu0 0
          %2681 = vmatpush1.bf16.msra.mxu0 0
          %2682 = vmatprep.subr.bf16.mxu0 0
          %2683 = vmatpush1.bf16.msra.mxu0 0
          %2684 = vmatprep.subr.bf16.mxu0 0
          %2685 = vmatpush1.bf16.msra.mxu0 0
          %2686 = vmatprep.subr.bf16.mxu0 0
          %2687 = vmatpush1.bf16.msra.mxu0 0
          %2688 = vmatprep.subr.bf16.mxu0 0
          %2689 = vmatpush1.bf16.msra.mxu0 0
          %2690 = vmatprep.subr.bf16.mxu0 0
          %2691 = vmatpush1.bf16.msra.mxu0 0
          %2692 = vmatprep.subr.bf16.mxu0 0
          %2693 = vmatpush1.bf16.msra.mxu0 0
          %2694 = vmatprep.subr.bf16.mxu0 0
          %2695 = vmatpush1.bf16.msra.mxu0 0
          %2696 = vmatprep.subr.bf16.mxu0 0
          %2697 = vmatpush1.bf16.msra.mxu0 0
          %2698 = vmatprep.subr.bf16.mxu0 0
          %2699 = vmatpush1.bf16.msra.mxu0 0
          %2700 = vmatprep.subr.bf16.mxu0 0
          %2701 = vmatpush1.bf16.msra.mxu0 0
          %2702 = vmatprep.subr.bf16.mxu0 0
          %2703 = vmatpush1.bf16.msra.mxu0 0
          %2704 = vmatprep.subr.bf16.mxu0 0
          %2705 = vmatpush1.bf16.msra.mxu0 0
          %2706 = vmatprep.mubr.bf16.mxu0 0
          %2707 = vmatmul.mubr.bf16.gmra.mrb[0].mxu0 %v2672
          %v2708 = vpop.f32.mrb[0].mxu0
          %v2709 = vadd.f32 0.0, %v2708
          %v2710 = vpop.f32.mrb[0].mxu0
          %v2711 = vpop.f32.mrb[0].mxu0
          %v2712 = vpop.f32.mrb[0].mxu0
          %2713 = vdwg.mxu0
          %2714 = vrot.lane.b32.xlu0 %v2117, 112
          %v2715 = vpop.permute.xlu0 %2714
          %v2718 = vsel %vm2211, %v2667, 0
          %2720 = vmatprep.subr.bf16.mxu0 0
          %2721 = vmatpush1.bf16.msra.mxu0 %v2715
          %2722 = vmatprep.subr.bf16.mxu0 0
          %2723 = vmatpush1.bf16.msra.mxu0 0
          %2724 = vmatprep.subr.bf16.mxu0 0
          %2725 = vmatpush1.bf16.msra.mxu0 0
          %2726 = vmatprep.subr.bf16.mxu0 0
          %2727 = vmatpush1.bf16.msra.mxu0 0
          %2728 = vmatprep.subr.bf16.mxu0 0
          %2729 = vmatpush1.bf16.msra.mxu0 0
          %2730 = vmatprep.subr.bf16.mxu0 0
          %2731 = vmatpush1.bf16.msra.mxu0 0
          %2732 = vmatprep.subr.bf16.mxu0 0
          %2733 = vmatpush1.bf16.msra.mxu0 0
          %2734 = vmatprep.subr.bf16.mxu0 0
          %2735 = vmatpush1.bf16.msra.mxu0 0
          %2736 = vmatprep.subr.bf16.mxu0 0
          %2737 = vmatpush1.bf16.msra.mxu0 0
          %2738 = vmatprep.subr.bf16.mxu0 0
          %2739 = vmatpush1.bf16.msra.mxu0 0
          %2740 = vmatprep.subr.bf16.mxu0 0
          %2741 = vmatpush1.bf16.msra.mxu0 0
          %2742 = vmatprep.subr.bf16.mxu0 0
          %2743 = vmatpush1.bf16.msra.mxu0 0
          %2744 = vmatprep.subr.bf16.mxu0 0
          %2745 = vmatpush1.bf16.msra.mxu0 0
          %2746 = vmatprep.subr.bf16.mxu0 0
          %2747 = vmatpush1.bf16.msra.mxu0 0
          %2748 = vmatprep.subr.bf16.mxu0 0
          %2749 = vmatpush1.bf16.msra.mxu0 0
          %2750 = vmatprep.subr.bf16.mxu0 0
          %2751 = vmatpush1.bf16.msra.mxu0 0
          %2752 = vmatprep.mubr.bf16.mxu0 0
          %2753 = vmatmul.mubr.bf16.gmra.mrb[0].mxu0 %v2718
          %v2754 = vpop.f32.mrb[0].mxu0
          %v2755 = vadd.f32 0.0, %v2754
          %v2756 = vpop.f32.mrb[0].mxu0
          %v2757 = vpop.f32.mrb[0].mxu0
          %v2758 = vpop.f32.mrb[0].mxu0
          %2759 = vdwg.mxu0
          %2760 = vrot.lane.b32.xlu0 %v2112, 104
          %v2761 = vpop.permute.xlu0 %2760
          %2762 = vrot.lane.b32.xlu0 %v2114, 104
          %v2763 = vpop.permute.xlu0 %2762
          %v2765 = vsel %vm2118, %v2761, 0
          %v2768 = vsel %vm2118, %v2763, 0
          %2770 = vmatprep.subr.bf16.mxu0 0
          %2771 = vmatpush1.bf16.xpose.msra.mxu0 %v2768
          %2772 = vmatprep.subr.bf16.mxu0 0
          %2773 = vmatpush1.bf16.xpose.msra.mxu0 0
          %2774 = vmatprep.subr.bf16.mxu0 0
          %2775 = vmatpush1.bf16.xpose.msra.mxu0 0
          %2776 = vmatprep.subr.bf16.mxu0 0
          %2777 = vmatpush1.bf16.xpose.msra.mxu0 0
          %2778 = vmatprep.subr.bf16.mxu0 0
          %2779 = vmatpush1.bf16.xpose.msra.mxu0 0
          %2780 = vmatprep.subr.bf16.mxu0 0
          %2781 = vmatpush1.bf16.xpose.msra.mxu0 0
          %2782 = vmatprep.subr.bf16.mxu0 0
          %2783 = vmatpush1.bf16.xpose.msra.mxu0 0
          %2784 = vmatprep.subr.bf16.mxu0 0
          %2785 = vmatpush1.bf16.xpose.msra.mxu0 0
          %2786 = vmatprep.subr.bf16.mxu0 0
          %2787 = vmatpush1.bf16.xpose.msra.mxu0 0
          %2788 = vmatprep.subr.bf16.mxu0 0
          %2789 = vmatpush1.bf16.xpose.msra.mxu0 0
          %2790 = vmatprep.subr.bf16.mxu0 0
          %2791 = vmatpush1.bf16.xpose.msra.mxu0 0
          %2792 = vmatprep.subr.bf16.mxu0 0
          %2793 = vmatpush1.bf16.xpose.msra.mxu0 0
          %2794 = vmatprep.subr.bf16.mxu0 0
          %2795 = vmatpush1.bf16.xpose.msra.mxu0 0
          %2796 = vmatprep.subr.bf16.mxu0 0
          %2797 = vmatpush1.bf16.xpose.msra.mxu0 0
          %2798 = vmatprep.subr.bf16.mxu0 0
          %2799 = vmatpush1.bf16.xpose.msra.mxu0 0
          %2800 = vmatprep.subr.bf16.mxu0 0
          %2801 = vmatpush1.bf16.xpose.msra.mxu0 0
          %2802 = vmatprep.mubr.bf16.mxu0 0
          %2803 = vmatmul.mubr.bf16.gmra.mrb[0].mxu0 %v2765
          %v2804 = vpop.f32.mrb[0].mxu0
          %v2805 = vadd.f32 0.0, %v2804
          %v2806 = vpop.f32.mrb[0].mxu0
          %v2807 = vpop.f32.mrb[0].mxu0
          %v2808 = vpop.f32.mrb[0].mxu0
          %2809 = vdwg.mxu0
          %2810 = vrot.lane.b32.xlu0 %v2113, 104
          %v2811 = vpop.permute.xlu0 %2810
          %2812 = vrot.lane.b32.xlu0 %v2115, 104
          %v2813 = vpop.permute.xlu0 %2812
          %v2815 = vsel %vm2118, %v2811, 0
          %v2818 = vsel %vm2118, %v2813, 0
          %2820 = vmatprep.subr.bf16.mxu0 0
          %2821 = vmatpush1.bf16.xpose.msra.mxu0 %v2818
          %2822 = vmatprep.subr.bf16.mxu0 0
          %2823 = vmatpush1.bf16.xpose.msra.mxu0 0
          %2824 = vmatprep.subr.bf16.mxu0 0
          %2825 = vmatpush1.bf16.xpose.msra.mxu0 0
          %2826 = vmatprep.subr.bf16.mxu0 0
          %2827 = vmatpush1.bf16.xpose.msra.mxu0 0
          %2828 = vmatprep.subr.bf16.mxu0 0
          %2829 = vmatpush1.bf16.xpose.msra.mxu0 0
          %2830 = vmatprep.subr.bf16.mxu0 0
          %2831 = vmatpush1.bf16.xpose.msra.mxu0 0
          %2832 = vmatprep.subr.bf16.mxu0 0
          %2833 = vmatpush1.bf16.xpose.msra.mxu0 0
          %2834 = vmatprep.subr.bf16.mxu0 0
          %2835 = vmatpush1.bf16.xpose.msra.mxu0 0
          %2836 = vmatprep.subr.bf16.mxu0 0
          %2837 = vmatpush1.bf16.xpose.msra.mxu0 0
          %2838 = vmatprep.subr.bf16.mxu0 0
          %2839 = vmatpush1.bf16.xpose.msra.mxu0 0
          %2840 = vmatprep.subr.bf16.mxu0 0
          %2841 = vmatpush1.bf16.xpose.msra.mxu0 0
          %2842 = vmatprep.subr.bf16.mxu0 0
          %2843 = vmatpush1.bf16.xpose.msra.mxu0 0
          %2844 = vmatprep.subr.bf16.mxu0 0
          %2845 = vmatpush1.bf16.xpose.msra.mxu0 0
          %2846 = vmatprep.subr.bf16.mxu0 0
          %2847 = vmatpush1.bf16.xpose.msra.mxu0 0
          %2848 = vmatprep.subr.bf16.mxu0 0
          %2849 = vmatpush1.bf16.xpose.msra.mxu0 0
          %2850 = vmatprep.subr.bf16.mxu0 0
          %2851 = vmatpush1.bf16.xpose.msra.mxu0 0
          %2852 = vmatprep.mubr.bf16.mxu0 0
          %2853 = vmatmul.mubr.bf16.gmra.mrb[0].mxu0 %v2815
          %v2854 = vpop.f32.mrb[0].mxu0
          %v2855 = vadd.f32 0.0, %v2854
          %v2856 = vpop.f32.mrb[0].mxu0
          %v2857 = vpop.f32.mrb[0].mxu0
          %v2858 = vpop.f32.mrb[0].mxu0
          %2859 = vdwg.mxu0
          %v2860 = vsel %vm2211, %v2805, -inf
          %2861 = vmax.xlane.f32.xlu0 %v2860
          %v2862 = vpop.xlane.xlu0 %2861
          %v2863 = vsel %vm2211, %v2855, -inf
          %2864 = vmax.xlane.f32.xlu0 %v2863
          %v2865 = vpop.xlane.xlu0 %2864
          %v2866 = vsub.f32 %v2805, %v2862
          %v2867 = vsub.f32 %v2855, %v2865
          %v2868 = vmul.f32 %v2866, 1.442695
          %v2869 = vpow.pop %v2868
          %v2870 = vmul.f32 %v2867, 1.442695
          %v2871 = vpow.pop %v2870
          %v2872 = vsel %vm2211, %v2869, 0.0
          %2873 = vadd.xlane.f32.xlu0 %v2872
          %v2874 = vpop.xlane.xlu0 %2873
          %v2875 = vsel %vm2211, %v2871, 0.0
          %2876 = vadd.xlane.f32.xlu0 %v2875
          %v2877 = vpop.xlane.xlu0 %2876
          %v2878 = vrcp.pop %v2874
          %v2879 = vrcp.pop %v2877
          %v2880 = vmul.f32 %v2869, %v2878
          %v2881 = vmul.f32 %v2871, %v2879
          %v2882 = vpack.c.bf16 %v2880, %v2880
          %v2883 = vpack.c.bf16 %v2881, %v2881
          %2884 = vrot.lane.b32.xlu0 %v2116, 104
          %v2885 = vpop.permute.xlu0 %2884
          %v2888 = vsel %vm2211, %v2882, 0
          %2890 = vmatprep.subr.bf16.mxu0 0
          %2891 = vmatpush1.bf16.msra.mxu0 %v2885
          %2892 = vmatprep.subr.bf16.mxu0 0
          %2893 = vmatpush1.bf16.msra.mxu0 0
          %2894 = vmatprep.subr.bf16.mxu0 0
          %2895 = vmatpush1.bf16.msra.mxu0 0
          %2896 = vmatprep.subr.bf16.mxu0 0
          %2897 = vmatpush1.bf16.msra.mxu0 0
          %2898 = vmatprep.subr.bf16.mxu0 0
          %2899 = vmatpush1.bf16.msra.mxu0 0
          %2900 = vmatprep.subr.bf16.mxu0 0
          %2901 = vmatpush1.bf16.msra.mxu0 0
          %2902 = vmatprep.subr.bf16.mxu0 0
          %2903 = vmatpush1.bf16.msra.mxu0 0
          %2904 = vmatprep.subr.bf16.mxu0 0
          %2905 = vmatpush1.bf16.msra.mxu0 0
          %2906 = vmatprep.subr.bf16.mxu0 0
          %2907 = vmatpush1.bf16.msra.mxu0 0
          %2908 = vmatprep.subr.bf16.mxu0 0
          %2909 = vmatpush1.bf16.msra.mxu0 0
          %2910 = vmatprep.subr.bf16.mxu0 0
          %2911 = vmatpush1.bf16.msra.mxu0 0
          %2912 = vmatprep.subr.bf16.mxu0 0
          %2913 = vmatpush1.bf16.msra.mxu0 0
          %2914 = vmatprep.subr.bf16.mxu0 0
          %2915 = vmatpush1.bf16.msra.mxu0 0
          %2916 = vmatprep.subr.bf16.mxu0 0
          %2917 = vmatpush1.bf16.msra.mxu0 0
          %2918 = vmatprep.subr.bf16.mxu0 0
          %2919 = vmatpush1.bf16.msra.mxu0 0
          %2920 = vmatprep.subr.bf16.mxu0 0
          %2921 = vmatpush1.bf16.msra.mxu0 0
          %2922 = vmatprep.mubr.bf16.mxu0 0
          %2923 = vmatmul.mubr.bf16.gmra.mrb[0].mxu0 %v2888
          %v2924 = vpop.f32.mrb[0].mxu0
          %v2925 = vadd.f32 0.0, %v2924
          %v2926 = vpop.f32.mrb[0].mxu0
          %v2927 = vpop.f32.mrb[0].mxu0
          %v2928 = vpop.f32.mrb[0].mxu0
          %2929 = vdwg.mxu0
          %2930 = vrot.lane.b32.xlu0 %v2117, 104
          %v2931 = vpop.permute.xlu0 %2930
          %v2934 = vsel %vm2211, %v2883, 0
          %2936 = vmatprep.subr.bf16.mxu0 0
          %2937 = vmatpush1.bf16.msra.mxu0 %v2931
          %2938 = vmatprep.subr.bf16.mxu0 0
          %2939 = vmatpush1.bf16.msra.mxu0 0
          %2940 = vmatprep.subr.bf16.mxu0 0
          %2941 = vmatpush1.bf16.msra.mxu0 0
          %2942 = vmatprep.subr.bf16.mxu0 0
          %2943 = vmatpush1.bf16.msra.mxu0 0
          %2944 = vmatprep.subr.bf16.mxu0 0
          %2945 = vmatpush1.bf16.msra.mxu0 0
          %2946 = vmatprep.subr.bf16.mxu0 0
          %2947 = vmatpush1.bf16.msra.mxu0 0
          %2948 = vmatprep.subr.bf16.mxu0 0
          %2949 = vmatpush1.bf16.msra.mxu0 0
          %2950 = vmatprep.subr.bf16.mxu0 0
          %2951 = vmatpush1.bf16.msra.mxu0 0
          %2952 = vmatprep.subr.bf16.mxu0 0
          %2953 = vmatpush1.bf16.msra.mxu0 0
          %2954 = vmatprep.subr.bf16.mxu0 0
          %2955 = vmatpush1.bf16.msra.mxu0 0
          %2956 = vmatprep.subr.bf16.mxu0 0
          %2957 = vmatpush1.bf16.msra.mxu0 0
          %2958 = vmatprep.subr.bf16.mxu0 0
          %2959 = vmatpush1.bf16.msra.mxu0 0
          %2960 = vmatprep.subr.bf16.mxu0 0
          %2961 = vmatpush1.bf16.msra.mxu0 0
          %2962 = vmatprep.subr.bf16.mxu0 0
          %2963 = vmatpush1.bf16.msra.mxu0 0
          %2964 = vmatprep.subr.bf16.mxu0 0
          %2965 = vmatpush1.bf16.msra.mxu0 0
          %2966 = vmatprep.subr.bf16.mxu0 0
          %2967 = vmatpush1.bf16.msra.mxu0 0
          %2968 = vmatprep.mubr.bf16.mxu0 0
          %2969 = vmatmul.mubr.bf16.gmra.mrb[0].mxu0 %v2934
          %v2970 = vpop.f32.mrb[0].mxu0
          %v2971 = vadd.f32 0.0, %v2970
          %v2972 = vpop.f32.mrb[0].mxu0
          %v2973 = vpop.f32.mrb[0].mxu0
          %v2974 = vpop.f32.mrb[0].mxu0
          %2975 = vdwg.mxu0
          %2978 = vrot.lane.b32.xlu0 %v2492, 8
          %v2979 = vpop.permute.xlu0 %2978
          %2980 = vrot.lane.b32.xlu0 %v2539, 8
          %v2981 = vpop.permute.xlu0 %2980
          %2986 = vrot.lane.b32.xlu0 %v2709, 16
          %v2987 = vpop.permute.xlu0 %2986
          %2988 = vrot.lane.b32.xlu0 %v2755, 16
          %v2989 = vpop.permute.xlu0 %2988
          %2994 = vrot.lane.b32.xlu0 %v2925, 24
          %v2995 = vpop.permute.xlu0 %2994
          %2996 = vrot.lane.b32.xlu0 %v2971, 24
          %v2997 = vpop.permute.xlu0 %2996
          %v3000 = vsel %vm2118, %v2274, %v2979
          %v3001 = vsel %vm2118, %v2317, %v2981
          %v3002 = vsel %vm2211, %v3000, %v2987
          %v3003 = vsel %vm2211, %v3001, %v2989
          %vm3004 = vcmask 195584
          %v3005 = vsel %vm3004, %v3002, %v2995
          %v3006 = vsel %vm3004, %v3003, %v2997
          %v3007 = vpack.c.bf16 %v3006, %v3005
          %v3009 = vlaneseq
          %v3010 = vshrl.u32 %v3009, 7
          %v3011 = vsub.s32 0, %v3010
          %v3012 = vrot.slane %v1756, %v3011
          %v3018 = vunpack.c.l.b16 %v1752
          %v3019 = vunpack.c.l.b16 %v1753
          %v3020 = vunpack.c.l.b16 %v1754
          %v3021 = vunpack.c.l.b16 %v1755
          %v3022 = vpack.c.b16 %v3019, %v3018
          %v3023 = vpack.c.b16 %v3021, %v3020
          %v3027 = vsel %vm1781, %v3007, 0
          %3029 = vmatprep.subr.bf16.mxu0 0
          %3030 = vmatpush1.bf16.msra.mxu0 %v3022
          %3031 = vmatprep.subr.bf16.mxu0 0
          %3032 = vmatpush1.bf16.msra.mxu0 %v3023
          %3033 = vmatprep.subr.bf16.mxu0 0
          %3034 = vmatpush1.bf16.msra.mxu0 0
          %3035 = vmatprep.subr.bf16.mxu0 0
          %3036 = vmatpush1.bf16.msra.mxu0 0
          %3037 = vmatprep.subr.bf16.mxu0 0
          %3038 = vmatpush1.bf16.msra.mxu0 0
          %3039 = vmatprep.subr.bf16.mxu0 0
          %3040 = vmatpush1.bf16.msra.mxu0 0
          %3041 = vmatprep.subr.bf16.mxu0 0
          %3042 = vmatpush1.bf16.msra.mxu0 0
          %3043 = vmatprep.subr.bf16.mxu0 0
          %3044 = vmatpush1.bf16.msra.mxu0 0
          %3045 = vmatprep.subr.bf16.mxu0 0
          %3046 = vmatpush1.bf16.msra.mxu0 0
          %3047 = vmatprep.subr.bf16.mxu0 0
          %3048 = vmatpush1.bf16.msra.mxu0 0
          %3049 = vmatprep.subr.bf16.mxu0 0
          %3050 = vmatpush1.bf16.msra.mxu0 0
          %3051 = vmatprep.subr.bf16.mxu0 0
          %3052 = vmatpush1.bf16.msra.mxu0 0
          %3053 = vmatprep.subr.bf16.mxu0 0
          %3054 = vmatpush1.bf16.msra.mxu0 0
          %3055 = vmatprep.subr.bf16.mxu0 0
          %3056 = vmatpush1.bf16.msra.mxu0 0
          %3057 = vmatprep.subr.bf16.mxu0 0
          %3058 = vmatpush1.bf16.msra.mxu0 0
          %3059 = vmatprep.subr.bf16.mxu0 0
          %3060 = vmatpush1.bf16.msra.mxu0 0
          %3061 = vmatprep.mubr.bf16.mxu0 0
          %3062 = vmatmul.mubr.bf16.gmra.mrb[0].mxu0 %v3027
          %v3063 = vpop.f32.mrb[0].mxu0
          %v3064 = vadd.f32 %v3012, %v3063
          %v3065 = vpop.f32.mrb[0].mxu0
          %v3066 = vpop.f32.mrb[0].mxu0
          %v3067 = vadd.f32 %v3012, %v3066
          %v3068 = vpop.f32.mrb[0].mxu0
          %3069 = vdwg.mxu0
          %v3070 = vadd.f32 %v1722, %v3064
          %v3071 = vadd.f32 %v1723, %v3067
          %v3072 = vsel %vm1781, %v3070, 0.0
          %3073 = vadd.xlane.f32.xlu0 %v3072
          %v3074 = vpop.xlane.xlu0 %3073
          %v3075 = vsel %vm1781, %v3071, 0.0
          %3076 = vadd.xlane.f32.xlu0 %v3075
          %v3077 = vpop.xlane.xlu0 %3076
          %v3078 = vmul.f32 %v3074, %v1788
          %v3079 = vmul.f32 %v3077, %v1788
          %v3080 = vsub.f32 %v3070, %v3078
          %v3081 = vsub.f32 %v3071, %v3079
          %v3082 = vmul.f32 %v3080, %v3080
          %v3083 = vmul.f32 %v3081, %v3081
          %v3084 = vsel %vm1781, %v3082, 0.0
          %3085 = vadd.xlane.f32.xlu0 %v3084
          %v3086 = vpop.xlane.xlu0 %3085
          %v3087 = vsel %vm1781, %v3083, 0.0
          %3088 = vadd.xlane.f32.xlu0 %v3087
          %v3089 = vpop.xlane.xlu0 %3088
          %v3090 = vmul.f32 %v3086, %v1788
          %v3091 = vmul.f32 %v3089, %v1788
          %v3092 = vadd.f32 %v3090, 1e-05
          %v3093 = vadd.f32 %v3091, 1e-05
          %v3094 = vrsqrt.pop %v3092
          %v3095 = vrsqrt.pop %v3093
          %v3096 = vmul.f32 %v3080, %v3094
          %v3097 = vmul.f32 %v3081, %v3095
          %v3099 = vlaneseq
          %v3100 = vshrl.u32 %v3099, 7
          %v3101 = vsub.s32 0, %v3100
          %v3102 = vrot.slane %v1757, %v3101
          %v3104 = vmul.f32 %v3096, %v3102
          %v3105 = vmul.f32 %v3097, %v3102
          %v3107 = vlaneseq
          %v3108 = vshrl.u32 %v3107, 7
          %v3109 = vsub.s32 0, %v3108
          %v3110 = vrot.slane %v1758, %v3109
          %v3112 = vadd.f32 %v3104, %v3110
          %v3113 = vadd.f32 %v3105, %v3110
          %v3114 = vpack.c.bf16 %v3113, %v3112
          %v3116 = vlaneseq
          %v3117 = vshrl.u32 %v3116, 7
          %v3118 = vsub.s32 0, %v3117
          %v3119 = vrot.slane %v1763, %v3118
          %v3125 = vunpack.c.l.b16 %v1759
          %v3126 = vunpack.c.l.b16 %v1760
          %v3127 = vunpack.c.l.b16 %v1761
          %v3128 = vunpack.c.l.b16 %v1762
          %v3129 = vpack.c.b16 %v3126, %v3125
          %v3130 = vpack.c.b16 %v3128, %v3127
          %v3134 = vsel %vm1781, %v3114, 0
          %3136 = vmatprep.subr.bf16.mxu0 0
          %3137 = vmatpush1.bf16.msra.mxu0 %v3129
          %3138 = vmatprep.subr.bf16.mxu0 0
          %3139 = vmatpush1.bf16.msra.mxu0 %v3130
          %3140 = vmatprep.subr.bf16.mxu0 0
          %3141 = vmatpush1.bf16.msra.mxu0 0
          %3142 = vmatprep.subr.bf16.mxu0 0
          %3143 = vmatpush1.bf16.msra.mxu0 0
          %3144 = vmatprep.subr.bf16.mxu0 0
          %3145 = vmatpush1.bf16.msra.mxu0 0
          %3146 = vmatprep.subr.bf16.mxu0 0
          %3147 = vmatpush1.bf16.msra.mxu0 0
          %3148 = vmatprep.subr.bf16.mxu0 0
          %3149 = vmatpush1.bf16.msra.mxu0 0
          %3150 = vmatprep.subr.bf16.mxu0 0
          %3151 = vmatpush1.bf16.msra.mxu0 0
          %3152 = vmatprep.subr.bf16.mxu0 0
          %3153 = vmatpush1.bf16.msra.mxu0 0
          %3154 = vmatprep.subr.bf16.mxu0 0
          %3155 = vmatpush1.bf16.msra.mxu0 0
          %3156 = vmatprep.subr.bf16.mxu0 0
          %3157 = vmatpush1.bf16.msra.mxu0 0
          %3158 = vmatprep.subr.bf16.mxu0 0
          %3159 = vmatpush1.bf16.msra.mxu0 0
          %3160 = vmatprep.subr.bf16.mxu0 0
          %3161 = vmatpush1.bf16.msra.mxu0 0
          %3162 = vmatprep.subr.bf16.mxu0 0
          %3163 = vmatpush1.bf16.msra.mxu0 0
          %3164 = vmatprep.subr.bf16.mxu0 0
          %3165 = vmatpush1.bf16.msra.mxu0 0
          %3166 = vmatprep.subr.bf16.mxu0 0
          %3167 = vmatpush1.bf16.msra.mxu0 0
          %3168 = vmatprep.mubr.bf16.mxu0 0
          %3169 = vmatmul.mubr.bf16.gmra.mrb[0].mxu0 %v3134
          %v3170 = vpop.f32.mrb[0].mxu0
          %v3171 = vadd.f32 %v3119, %v3170
          %v3172 = vpop.f32.mrb[0].mxu0
          %v3173 = vpop.f32.mrb[0].mxu0
          %v3174 = vadd.f32 %v3119, %v3173
          %v3175 = vpop.f32.mrb[0].mxu0
          %3176 = vdwg.mxu0
          %v3177 = vmul.f32 %v3171, 0.5
          %v3178 = vmul.f32 %v3174, 0.5
          %v3179 = vmul.f32 %v3171, 0.70710677
          %v3180 = vmul.f32 %v3174, 0.70710677
          %v3181 = vand.u32 2147483647, %v3179
          %v3182 = vand.u32 2147483647, %v3180
          %v3183 = vmul.f32 %v3181, 0.3275911
          %v3184 = vmul.f32 %v3182, 0.3275911
          %v3185 = vadd.f32 %v3183, 1.0
          %v3186 = vadd.f32 %v3184, 1.0
          %v3187 = vrcp.pop %v3185
          %v3188 = vmul.f32 1.0, %v3187
          %v3189 = vrcp.pop %v3186
          %v3190 = vmul.f32 1.0, %v3189
          %v3191 = vmul.f32 %v3188, 1.0614054
          %v3192 = vmul.f32 %v3190, 1.0614054
          %v3193 = vadd.f32 %v3191, -1.4531521
          %v3194 = vadd.f32 %v3192, -1.4531521
          %v3195 = vmul.f32 %v3193, %v3188
          %v3196 = vmul.f32 %v3194, %v3190
          %v3197 = vadd.f32 %v3195, 1.4214138
          %v3198 = vadd.f32 %v3196, 1.4214138
          %v3199 = vmul.f32 %v3197, %v3188
          %v3200 = vmul.f32 %v3198, %v3190
          %v3201 = vadd.f32 %v3199, -0.28449672
          %v3202 = vadd.f32 %v3200, -0.28449672
          %v3203 = vmul.f32 %v3201, %v3188
          %v3204 = vmul.f32 %v3202, %v3190
          %v3205 = vadd.f32 %v3203, 0.2548296
          %v3206 = vadd.f32 %v3204, 0.2548296
          %v3207 = vmul.f32 %v3205, %v3188
          %v3208 = vmul.f32 %v3206, %v3190
          %v3209 = vsub.f32 0.0, %v3181
          %v3210 = vsub.f32 0.0, %v3182
          %v3211 = vmul.f32 %v3209, %v3181
          %v3212 = vmul.f32 %v3210, %v3182
          %v3213 = vmul.f32 %v3211, 1.442695
          %v3214 = vpow.pop %v3213
          %v3215 = vmul.f32 %v3212, 1.442695
          %v3216 = vpow.pop %v3215
          %v3217 = vmul.f32 %v3207, %v3214
          %v3218 = vmul.f32 %v3208, %v3216
          %v3219 = vsub.f32 1.0, %v3217
          %v3220 = vsub.f32 1.0, %v3218
          %vm3221 = vcmp.lt.f32.partialorder %v3179, 0.0
          %vm3222 = vcmp.lt.f32.partialorder %v3180, 0.0
          %v3223 = vsub.f32 0.0, %v3219
          %v3224 = vsub.f32 0.0, %v3220
          %v3225 = vsel %vm3221, %v3223, %v3219
          %v3226 = vsel %vm3222, %v3224, %v3220
          %v3227 = vadd.f32 %v3225, 1.0
          %v3228 = vadd.f32 %v3226, 1.0
          %v3229 = vmul.f32 %v3177, %v3227
          %v3230 = vmul.f32 %v3178, %v3228
          %v3231 = vpack.c.bf16 %v3230, %v3229
          %v3233 = vlaneseq
          %v3234 = vshrl.u32 %v3233, 7
          %v3235 = vsub.s32 0, %v3234
          %v3236 = vrot.slane %v1780, %v3235
          %v3254 = vunpack.c.l.b16 %v1764
          %v3255 = vunpack.c.l.b16 %v1765
          %v3256 = vunpack.c.l.b16 %v1766
          %v3257 = vunpack.c.l.b16 %v1767
          %v3258 = vunpack.c.l.b16 %v1768
          %v3259 = vunpack.c.l.b16 %v1769
          %v3260 = vunpack.c.l.b16 %v1770
          %v3261 = vunpack.c.l.b16 %v1771
          %v3262 = vunpack.c.l.b16 %v1772
          %v3263 = vunpack.c.l.b16 %v1773
          %v3264 = vunpack.c.l.b16 %v1774
          %v3265 = vunpack.c.l.b16 %v1775
          %v3266 = vunpack.c.l.b16 %v1776
          %v3267 = vunpack.c.l.b16 %v1777
          %v3268 = vunpack.c.l.b16 %v1778
          %v3269 = vunpack.c.l.b16 %v1779
          %v3270 = vpack.c.b16 %v3255, %v3254
          %v3271 = vpack.c.b16 %v3257, %v3256
          %v3272 = vpack.c.b16 %v3259, %v3258
          %v3273 = vpack.c.b16 %v3261, %v3260
          %v3274 = vpack.c.b16 %v3263, %v3262
          %v3275 = vpack.c.b16 %v3265, %v3264
          %v3276 = vpack.c.b16 %v3267, %v3266
          %v3277 = vpack.c.b16 %v3269, %v3268
          %3286 = vmatprep.subr.bf16.mxu0 0
          %3287 = vmatpush1.bf16.msra.mxu0 %v3270
          %3288 = vmatprep.subr.bf16.mxu0 0
          %3289 = vmatpush1.bf16.msra.mxu0 %v3271
          %3290 = vmatprep.subr.bf16.mxu0 0
          %3291 = vmatpush1.bf16.msra.mxu0 %v3272
          %3292 = vmatprep.subr.bf16.mxu0 0
          %3293 = vmatpush1.bf16.msra.mxu0 %v3273
          %3294 = vmatprep.subr.bf16.mxu0 0
          %3295 = vmatpush1.bf16.msra.mxu0 %v3274
          %3296 = vmatprep.subr.bf16.mxu0 0
          %3297 = vmatpush1.bf16.msra.mxu0 %v3275
          %3298 = vmatprep.subr.bf16.mxu0 0
          %3299 = vmatpush1.bf16.msra.mxu0 %v3276
          %3300 = vmatprep.subr.bf16.mxu0 0
          %3301 = vmatpush1.bf16.msra.mxu0 %v3277
          %3302 = vmatprep.subr.bf16.mxu0 0
          %3303 = vmatpush1.bf16.msra.mxu0 0
          %3304 = vmatprep.subr.bf16.mxu0 0
          %3305 = vmatpush1.bf16.msra.mxu0 0
          %3306 = vmatprep.subr.bf16.mxu0 0
          %3307 = vmatpush1.bf16.msra.mxu0 0
          %3308 = vmatprep.subr.bf16.mxu0 0
          %3309 = vmatpush1.bf16.msra.mxu0 0
          %3310 = vmatprep.subr.bf16.mxu0 0
          %3311 = vmatpush1.bf16.msra.mxu0 0
          %3312 = vmatprep.subr.bf16.mxu0 0
          %3313 = vmatpush1.bf16.msra.mxu0 0
          %3314 = vmatprep.subr.bf16.mxu0 0
          %3315 = vmatpush1.bf16.msra.mxu0 0
          %3316 = vmatprep.subr.bf16.mxu0 0
          %3317 = vmatpush1.bf16.msra.mxu0 0
          %3318 = vmatprep.mubr.bf16.mxu0 0
          %3319 = vmatmul.mubr.bf16.gmra.mrb[0].mxu0 %v3231
          %v3320 = vpop.f32.mrb[0].mxu0
          %v3321 = vadd.f32 %v3236, %v3320
          %v3322 = vpop.f32.mrb[0].mxu0
          %v3323 = vpop.f32.mrb[0].mxu0
          %v3324 = vadd.f32 %v3236, %v3323
          %v3325 = vpop.f32.mrb[0].mxu0
          %3326 = vdwg.mxu0
          %v3327 = vadd.f32 %v3070, %v3321
          %v3328 = vadd.f32 %v3071, %v3324
          %3329 = vst.msk [vmem:[#allocation2] sm:$0xff] %vm1781, %v3327
          %3330 = vst.msk [vmem:[#allocation2 + $0x8] sm:$0xff] %vm1781, %v3328
        $region212: #{rcw_forward.1} parent=207 // pred_fallthru
          _
        %v3331 = vld [vmem:[#allocation2] sm:$0xff]
        %v3332 = vld [vmem:[#allocation2 + $0x8] sm:$0xff]
        %v3333 = vld [vmem:[%s1660] sm:$0x1]
        %v3334 = vld [vmem:[%s1663] sm:$0x1]
        %v3335 = vld [vmem:[%s1674] sm:$0xf]
        %v3336 = vld [vmem:[%s1674 + $0x4] sm:$0xf]
        %v3337 = vld [vmem:[%s1674 + $0x8] sm:$0xf]
        %v3338 = vld [vmem:[%s1674 + $0xc] sm:$0xf]
        %v3339 = vld [vmem:[%s1679] sm:$0xf]
        %v3340 = vld [vmem:[%s1679 + $0x4] sm:$0xf]
        %v3341 = vld [vmem:[%s1679 + $0x8] sm:$0xf]
        %v3342 = vld [vmem:[%s1679 + $0xc] sm:$0xf]
        %v3343 = vld [vmem:[%s1684] sm:$0xf]
        %v3344 = vld [vmem:[%s1684 + $0x4] sm:$0xf]
        %v3345 = vld [vmem:[%s1684 + $0x8] sm:$0xf]
        %v3346 = vld [vmem:[%s1684 + $0xc] sm:$0xf]
        %v3347 = vld [vmem:[%s1689] sm:$0xf]
        %v3348 = vld [vmem:[%s1689 + $0x4] sm:$0xf]
        %v3349 = vld [vmem:[%s1689 + $0x8] sm:$0xf]
        %v3350 = vld [vmem:[%s1689 + $0xc] sm:$0xf]
        %v3351 = vld [vmem:[%s1692] sm:$0x1]
        %v3352 = vld [vmem:[%s1695] sm:$0x1]
        %v3353 = vld [vmem:[%s1698] sm:$0x1]
        %v3354 = vld [vmem:[%s1703] sm:$0xf]
        %v3355 = vld [vmem:[%s1703 + $0x4] sm:$0xf]
        %v3356 = vld [vmem:[%s1703 + $0x8] sm:$0xf]
        %v3357 = vld [vmem:[%s1703 + $0xc] sm:$0xf]
        %v3358 = vld [vmem:[%s1706] sm:$0x1]
        %v3359 = vld [vmem:[%s1711] sm:$0xf]
        %v3360 = vld [vmem:[%s1711 + $0x4] sm:$0xf]
        %v3361 = vld [vmem:[%s1711 + $0x8] sm:$0xf]
        %v3362 = vld [vmem:[%s1711 + $0xc] sm:$0xf]
        %v3363 = vld [vmem:[%s1711 + $0x10] sm:$0xf]
        %v3364 = vld [vmem:[%s1711 + $0x14] sm:$0xf]
        %v3365 = vld [vmem:[%s1711 + $0x18] sm:$0xf]
        %v3366 = vld [vmem:[%s1711 + $0x1c] sm:$0xf]
        %v3367 = vld [vmem:[%s1711 + $0x20] sm:$0xf]
        %v3368 = vld [vmem:[%s1711 + $0x24] sm:$0xf]
        %v3369 = vld [vmem:[%s1711 + $0x28] sm:$0xf]
        %v3370 = vld [vmem:[%s1711 + $0x2c] sm:$0xf]
        %v3371 = vld [vmem:[%s1711 + $0x30] sm:$0xf]
        %v3372 = vld [vmem:[%s1711 + $0x34] sm:$0xf]
        %v3373 = vld [vmem:[%s1711 + $0x38] sm:$0xf]
        %v3374 = vld [vmem:[%s1711 + $0x3c] sm:$0xf]
        %v3375 = vld [vmem:[%s1714] sm:$0x1]
        %vm3376 = vcmask 261120
        %v3377 = vsel %vm3376, %v3331, 0.0
        %3378 = vadd.xlane.f32.xlu0 %v3377
        %v3379 = vpop.xlane.xlu0 %3378
        %v3380 = vsel %vm3376, %v3332, 0.0
        %3381 = vadd.xlane.f32.xlu0 %v3380
        %v3382 = vpop.xlane.xlu0 %3381
        %v3383 = vrcp.pop 32.0
        %v3384 = vmul.f32 %v3379, %v3383
        %v3385 = vmul.f32 %v3382, %v3383
        %v3386 = vsub.f32 %v3331, %v3384
        %v3387 = vsub.f32 %v3332, %v3385
        %v3388 = vmul.f32 %v3386, %v3386
        %v3389 = vmul.f32 %v3387, %v3387
        %v3390 = vsel %vm3376, %v3388, 0.0
        %3391 = vadd.xlane.f32.xlu0 %v3390
        %v3392 = vpop.xlane.xlu0 %3391
        %v3393 = vsel %vm3376, %v3389, 0.0
        %3394 = vadd.xlane.f32.xlu0 %v3393
        %v3395 = vpop.xlane.xlu0 %3394
        %v3396 = vmul.f32 %v3392, %v3383
        %v3397 = vmul.f32 %v3395, %v3383
        %v3398 = vadd.f32 %v3396, 1e-05
        %v3399 = vadd.f32 %v3397, 1e-05
        %v3400 = vrsqrt.pop %v3398
        %v3401 = vrsqrt.pop %v3399
        %v3402 = vmul.f32 %v3386, %v3400
        %v3403 = vmul.f32 %v3387, %v3401
        %v3405 = vlaneseq
        %v3406 = vshrl.u32 %v3405, 7
        %v3407 = vsub.s32 0, %v3406
        %v3408 = vrot.slane %v3333, %v3407
        %v3410 = vmul.f32 %v3402, %v3408
        %v3411 = vmul.f32 %v3403, %v3408
        %v3413 = vlaneseq
        %v3414 = vshrl.u32 %v3413, 7
        %v3415 = vsub.s32 0, %v3414
        %v3416 = vrot.slane %v3334, %v3415
        %v3418 = vadd.f32 %v3410, %v3416
        %v3419 = vadd.f32 %v3411, %v3416
        %v3420 = vpack.c.bf16 %v3419, %v3418
        %v3425 = vunpack.c.l.b16 %v3335
        %v3426 = vunpack.c.l.b16 %v3336
        %v3427 = vunpack.c.l.b16 %v3337
        %v3428 = vunpack.c.l.b16 %v3338
        %v3429 = vpack.c.b16 %v3426, %v3425
        %v3430 = vpack.c.b16 %v3428, %v3427
        %v3434 = vsel %vm3376, %v3420, 0
        %3436 = vmatprep.subr.bf16.mxu0 0
        %3437 = vmatpush1.bf16.msra.mxu0 %v3429
        %3438 = vmatprep.subr.bf16.mxu0 0
        %3439 = vmatpush1.bf16.msra.mxu0 %v3430
        %3440 = vmatprep.subr.bf16.mxu0 0
        %3441 = vmatpush1.bf16.msra.mxu0 0
        %3442 = vmatprep.subr.bf16.mxu0 0
        %3443 = vmatpush1.bf16.msra.mxu0 0
        %3444 = vmatprep.subr.bf16.mxu0 0
        %3445 = vmatpush1.bf16.msra.mxu0 0
        %3446 = vmatprep.subr.bf16.mxu0 0
        %3447 = vmatpush1.bf16.msra.mxu0 0
        %3448 = vmatprep.subr.bf16.mxu0 0
        %3449 = vmatpush1.bf16.msra.mxu0 0
        %3450 = vmatprep.subr.bf16.mxu0 0
        %3451 = vmatpush1.bf16.msra.mxu0 0
        %3452 = vmatprep.subr.bf16.mxu0 0
        %3453 = vmatpush1.bf16.msra.mxu0 0
        %3454 = vmatprep.subr.bf16.mxu0 0
        %3455 = vmatpush1.bf16.msra.mxu0 0
        %3456 = vmatprep.subr.bf16.mxu0 0
        %3457 = vmatpush1.bf16.msra.mxu0 0
        %3458 = vmatprep.subr.bf16.mxu0 0
        %3459 = vmatpush1.bf16.msra.mxu0 0
        %3460 = vmatprep.subr.bf16.mxu0 0
        %3461 = vmatpush1.bf16.msra.mxu0 0
        %3462 = vmatprep.subr.bf16.mxu0 0
        %3463 = vmatpush1.bf16.msra.mxu0 0
        %3464 = vmatprep.subr.bf16.mxu0 0
        %3465 = vmatpush1.bf16.msra.mxu0 0
        %3466 = vmatprep.subr.bf16.mxu0 0
        %3467 = vmatpush1.bf16.msra.mxu0 0
        %3468 = vmatprep.mubr.bf16.mxu0 0
        %3469 = vmatmul.mubr.bf16.gmra.mrb[0].mxu0 %v3434
        %v3470 = vpop.f32.mrb[0].mxu0
        %v3471 = vadd.f32 0.0, %v3470
        %v3472 = vpop.f32.mrb[0].mxu0
        %v3473 = vpop.f32.mrb[0].mxu0
        %v3474 = vadd.f32 0.0, %v3473
        %v3475 = vpop.f32.mrb[0].mxu0
        %3476 = vdwg.mxu0
        %v3477 = vmul.f32 %v3471, 0.35355338
        %v3478 = vmul.f32 %v3474, 0.35355338
        %v3483 = vunpack.c.l.b16 %v3339
        %v3484 = vunpack.c.l.b16 %v3340
        %v3485 = vunpack.c.l.b16 %v3341
        %v3486 = vunpack.c.l.b16 %v3342
        %v3487 = vpack.c.b16 %v3484, %v3483
        %v3488 = vpack.c.b16 %v3486, %v3485
        %3491 = vmatprep.subr.bf16.mxu0 0
        %3492 = vmatpush1.bf16.msra.mxu0 %v3487
        %3493 = vmatprep.subr.bf16.mxu0 0
        %3494 = vmatpush1.bf16.msra.mxu0 %v3488
        %3495 = vmatprep.subr.bf16.mxu0 0
        %3496 = vmatpush1.bf16.msra.mxu0 0
        %3497 = vmatprep.subr.bf16.mxu0 0
        %3498 = vmatpush1.bf16.msra.mxu0 0
        %3499 = vmatprep.subr.bf16.mxu0 0
        %3500 = vmatpush1.bf16.msra.mxu0 0
        %3501 = vmatprep.subr.bf16.mxu0 0
        %3502 = vmatpush1.bf16.msra.mxu0 0
        %3503 = vmatprep.subr.bf16.mxu0 0
        %3504 = vmatpush1.bf16.msra.mxu0 0
        %3505 = vmatprep.subr.bf16.mxu0 0
        %3506 = vmatpush1.bf16.msra.mxu0 0
        %3507 = vmatprep.subr.bf16.mxu0 0
        %3508 = vmatpush1.bf16.msra.mxu0 0
        %3509 = vmatprep.subr.bf16.mxu0 0
        %3510 = vmatpush1.bf16.msra.mxu0 0
        %3511 = vmatprep.subr.bf16.mxu0 0
        %3512 = vmatpush1.bf16.msra.mxu0 0
        %3513 = vmatprep.subr.bf16.mxu0 0
        %3514 = vmatpush1.bf16.msra.mxu0 0
        %3515 = vmatprep.subr.bf16.mxu0 0
        %3516 = vmatpush1.bf16.msra.mxu0 0
        %3517 = vmatprep.subr.bf16.mxu0 0
        %3518 = vmatpush1.bf16.msra.mxu0 0
        %3519 = vmatprep.subr.bf16.mxu0 0
        %3520 = vmatpush1.bf16.msra.mxu0 0
        %3521 = vmatprep.subr.bf16.mxu0 0
        %3522 = vmatpush1.bf16.msra.mxu0 0
        %3523 = vmatprep.mubr.bf16.mxu0 0
        %3524 = vmatmul.mubr.bf16.gmra.mrb[0].mxu0 %v3434
        %v3525 = vpop.f32.mrb[0].mxu0
        %v3526 = vadd.f32 0.0, %v3525
        %v3527 = vpop.f32.mrb[0].mxu0
        %v3528 = vpop.f32.mrb[0].mxu0
        %v3529 = vadd.f32 0.0, %v3528
        %v3530 = vpop.f32.mrb[0].mxu0
        %3531 = vdwg.mxu0
        %v3536 = vunpack.c.l.b16 %v3343
        %v3537 = vunpack.c.l.b16 %v3344
        %v3538 = vunpack.c.l.b16 %v3345
        %v3539 = vunpack.c.l.b16 %v3346
        %v3540 = vpack.c.b16 %v3537, %v3536
        %v3541 = vpack.c.b16 %v3539, %v3538
        %3544 = vmatprep.subr.bf16.mxu0 0
        %3545 = vmatpush1.bf16.msra.mxu0 %v3540
        %3546 = vmatprep.subr.bf16.mxu0 0
        %3547 = vmatpush1.bf16.msra.mxu0 %v3541
        %3548 = vmatprep.subr.bf16.mxu0 0
        %3549 = vmatpush1.bf16.msra.mxu0 0
        %3550 = vmatprep.subr.bf16.mxu0 0
        %3551 = vmatpush1.bf16.msra.mxu0 0
        %3552 = vmatprep.subr.bf16.mxu0 0
        %3553 = vmatpush1.bf16.msra.mxu0 0
        %3554 = vmatprep.subr.bf16.mxu0 0
        %3555 = vmatpush1.bf16.msra.mxu0 0
        %3556 = vmatprep.subr.bf16.mxu0 0
        %3557 = vmatpush1.bf16.msra.mxu0 0
        %3558 = vmatprep.subr.bf16.mxu0 0
        %3559 = vmatpush1.bf16.msra.mxu0 0
        %3560 = vmatprep.subr.bf16.mxu0 0
        %3561 = vmatpush1.bf16.msra.mxu0 0
        %3562 = vmatprep.subr.bf16.mxu0 0
        %3563 = vmatpush1.bf16.msra.mxu0 0
        %3564 = vmatprep.subr.bf16.mxu0 0
        %3565 = vmatpush1.bf16.msra.mxu0 0
        %3566 = vmatprep.subr.bf16.mxu0 0
        %3567 = vmatpush1.bf16.msra.mxu0 0
        %3568 = vmatprep.subr.bf16.mxu0 0
        %3569 = vmatpush1.bf16.msra.mxu0 0
        %3570 = vmatprep.subr.bf16.mxu0 0
        %3571 = vmatpush1.bf16.msra.mxu0 0
        %3572 = vmatprep.subr.bf16.mxu0 0
        %3573 = vmatpush1.bf16.msra.mxu0 0
        %3574 = vmatprep.subr.bf16.mxu0 0
        %3575 = vmatpush1.bf16.msra.mxu0 0
        %3576 = vmatprep.mubr.bf16.mxu0 0
        %3577 = vmatmul.mubr.bf16.gmra.mrb[0].mxu0 %v3434
        %v3578 = vpop.f32.mrb[0].mxu0
        %v3579 = vadd.f32 0.0, %v3578
        %v3580 = vpop.f32.mrb[0].mxu0
        %v3581 = vpop.f32.mrb[0].mxu0
        %v3582 = vadd.f32 0.0, %v3581
        %v3583 = vpop.f32.mrb[0].mxu0
        %3584 = vdwg.mxu0
        %v3585 = vpack.c.bf16 %v3477, %v3477
        %v3586 = vpack.c.bf16 %v3478, %v3478
        %v3587 = vpack.c.bf16 %v3526, %v3526
        %v3588 = vpack.c.bf16 %v3529, %v3529
        %v3589 = vpack.c.bf16 %v3579, %v3579
        %v3590 = vpack.c.bf16 %v3582, %v3582
        %vm3591 = vcmask 64512
        %v3593 = vsel %vm3591, %v3585, 0
        %v3596 = vsel %vm3591, %v3587, 0
        %3598 = vmatprep.subr.bf16.mxu0 0
        %3599 = vmatpush1.bf16.xpose.msra.mxu0 %v3596
        %3600 = vmatprep.subr.bf16.mxu0 0
        %3601 = vmatpush1.bf16.xpose.msra.mxu0 0
        %3602 = vmatprep.subr.bf16.mxu0 0
        %3603 = vmatpush1.bf16.xpose.msra.mxu0 0
        %3604 = vmatprep.subr.bf16.mxu0 0
        %3605 = vmatpush1.bf16.xpose.msra.mxu0 0
        %3606 = vmatprep.subr.bf16.mxu0 0
        %3607 = vmatpush1.bf16.xpose.msra.mxu0 0
        %3608 = vmatprep.subr.bf16.mxu0 0
        %3609 = vmatpush1.bf16.xpose.msra.mxu0 0
        %3610 = vmatprep.subr.bf16.mxu0 0
        %3611 = vmatpush1.bf16.xpose.msra.mxu0 0
        %3612 = vmatprep.subr.bf16.mxu0 0
        %3613 = vmatpush1.bf16.xpose.msra.mxu0 0
        %3614 = vmatprep.subr.bf16.mxu0 0
        %3615 = vmatpush1.bf16.xpose.msra.mxu0 0
        %3616 = vmatprep.subr.bf16.mxu0 0
        %3617 = vmatpush1.bf16.xpose.msra.mxu0 0
        %3618 = vmatprep.subr.bf16.mxu0 0
        %3619 = vmatpush1.bf16.xpose.msra.mxu0 0
        %3620 = vmatprep.subr.bf16.mxu0 0
        %3621 = vmatpush1.bf16.xpose.msra.mxu0 0
        %3622 = vmatprep.subr.bf16.mxu0 0
        %3623 = vmatpush1.bf16.xpose.msra.mxu0 0
        %3624 = vmatprep.subr.bf16.mxu0 0
        %3625 = vmatpush1.bf16.xpose.msra.mxu0 0
        %3626 = vmatprep.subr.bf16.mxu0 0
        %3627 = vmatpush1.bf16.xpose.msra.mxu0 0
        %3628 = vmatprep.subr.bf16.mxu0 0
        %3629 = vmatpush1.bf16.xpose.msra.mxu0 0
        %3630 = vmatprep.mubr.bf16.mxu0 0
        %3631 = vmatmul.mubr.bf16.gmra.mrb[0].mxu0 %v3593
        %v3632 = vpop.f32.mrb[0].mxu0
        %v3633 = vadd.f32 0.0, %v3632
        %v3634 = vpop.f32.mrb[0].mxu0
        %v3635 = vpop.f32.mrb[0].mxu0
        %v3636 = vpop.f32.mrb[0].mxu0
        %3637 = vdwg.mxu0
        %v3639 = vsel %vm3591, %v3586, 0
        %v3642 = vsel %vm3591, %v3588, 0
        %3644 = vmatprep.subr.bf16.mxu0 0
        %3645 = vmatpush1.bf16.xpose.msra.mxu0 %v3642
        %3646 = vmatprep.subr.bf16.mxu0 0
        %3647 = vmatpush1.bf16.xpose.msra.mxu0 0
        %3648 = vmatprep.subr.bf16.mxu0 0
        %3649 = vmatpush1.bf16.xpose.msra.mxu0 0
        %3650 = vmatprep.subr.bf16.mxu0 0
        %3651 = vmatpush1.bf16.xpose.msra.mxu0 0
        %3652 = vmatprep.subr.bf16.mxu0 0
        %3653 = vmatpush1.bf16.xpose.msra.mxu0 0
        %3654 = vmatprep.subr.bf16.mxu0 0
        %3655 = vmatpush1.bf16.xpose.msra.mxu0 0
        %3656 = vmatprep.subr.bf16.mxu0 0
        %3657 = vmatpush1.bf16.xpose.msra.mxu0 0
        %3658 = vmatprep.subr.bf16.mxu0 0
        %3659 = vmatpush1.bf16.xpose.msra.mxu0 0
        %3660 = vmatprep.subr.bf16.mxu0 0
        %3661 = vmatpush1.bf16.xpose.msra.mxu0 0
        %3662 = vmatprep.subr.bf16.mxu0 0
        %3663 = vmatpush1.bf16.xpose.msra.mxu0 0
        %3664 = vmatprep.subr.bf16.mxu0 0
        %3665 = vmatpush1.bf16.xpose.msra.mxu0 0
        %3666 = vmatprep.subr.bf16.mxu0 0
        %3667 = vmatpush1.bf16.xpose.msra.mxu0 0
        %3668 = vmatprep.subr.bf16.mxu0 0
        %3669 = vmatpush1.bf16.xpose.msra.mxu0 0
        %3670 = vmatprep.subr.bf16.mxu0 0
        %3671 = vmatpush1.bf16.xpose.msra.mxu0 0
        %3672 = vmatprep.subr.bf16.mxu0 0
        %3673 = vmatpush1.bf16.xpose.msra.mxu0 0
        %3674 = vmatprep.subr.bf16.mxu0 0
        %3675 = vmatpush1.bf16.xpose.msra.mxu0 0
        %3676 = vmatprep.mubr.bf16.mxu0 0
        %3677 = vmatmul.mubr.bf16.gmra.mrb[0].mxu0 %v3639
        %v3678 = vpop.f32.mrb[0].mxu0
        %v3679 = vadd.f32 0.0, %v3678
        %v3680 = vpop.f32.mrb[0].mxu0
        %v3681 = vpop.f32.mrb[0].mxu0
        %v3682 = vpop.f32.mrb[0].mxu0
        %3683 = vdwg.mxu0
        %v3684 = vsel %vm3591, %v3633, -inf
        %3685 = vmax.xlane.f32.xlu0 %v3684
        %v3686 = vpop.xlane.xlu0 %3685
        %v3687 = vsel %vm3591, %v3679, -inf
        %3688 = vmax.xlane.f32.xlu0 %v3687
        %v3689 = vpop.xlane.xlu0 %3688
        %v3690 = vsub.f32 %v3633, %v3686
        %v3691 = vsub.f32 %v3679, %v3689
        %v3692 = vmul.f32 %v3690, 1.442695
        %v3693 = vpow.pop %v3692
        %v3694 = vmul.f32 %v3691, 1.442695
        %v3695 = vpow.pop %v3694
        %v3696 = vsel %vm3591, %v3693, 0.0
        %3697 = vadd.xlane.f32.xlu0 %v3696
        %v3698 = vpop.xlane.xlu0 %3697
        %v3699 = vsel %vm3591, %v3695, 0.0
        %3700 = vadd.xlane.f32.xlu0 %v3699
        %v3701 = vpop.xlane.xlu0 %3700
        %v3702 = vrcp.pop %v3698
        %v3703 = vrcp.pop %v3701
        %v3704 = vmul.f32 %v3693, %v3702
        %v3705 = vmul.f32 %v3695, %v3703
        %v3706 = vpack.c.bf16 %v3704, %v3704
        %v3707 = vpack.c.bf16 %v3705, %v3705
        %v3709 = vsel %vm3591, %v3706, 0
        %vm3711 = vcmask 1043456
        %v3713 = vsel %vm3711, %v3589, 0
        %3715 = vmatprep.subr.bf16.mxu0 0
        %3716 = vmatpush1.bf16.msra.mxu0 %v3713
        %3717 = vmatprep.subr.bf16.mxu0 0
        %3718 = vmatpush1.bf16.msra.mxu0 0
        %3719 = vmatprep.subr.bf16.mxu0 0
        %3720 = vmatpush1.bf16.msra.mxu0 0
        %3721 = vmatprep.subr.bf16.mxu0 0
        %3722 = vmatpush1.bf16.msra.mxu0 0
        %3723 = vmatprep.subr.bf16.mxu0 0
        %3724 = vmatpush1.bf16.msra.mxu0 0
        %3725 = vmatprep.subr.bf16.mxu0 0
        %3726 = vmatpush1.bf16.msra.mxu0 0
        %3727 = vmatprep.subr.bf16.mxu0 0
        %3728 = vmatpush1.bf16.msra.mxu0 0
        %3729 = vmatprep.subr.bf16.mxu0 0
        %3730 = vmatpush1.bf16.msra.mxu0 0
        %3731 = vmatprep.subr.bf16.mxu0 0
        %3732 = vmatpush1.bf16.msra.mxu0 0
        %3733 = vmatprep.subr.bf16.mxu0 0
        %3734 = vmatpush1.bf16.msra.mxu0 0
        %3735 = vmatprep.subr.bf16.mxu0 0
        %3736 = vmatpush1.bf16.msra.mxu0 0
        %3737 = vmatprep.subr.bf16.mxu0 0
        %3738 = vmatpush1.bf16.msra.mxu0 0
        %3739 = vmatprep.subr.bf16.mxu0 0
        %3740 = vmatpush1.bf16.msra.mxu0 0
        %3741 = vmatprep.subr.bf16.mxu0 0
        %3742 = vmatpush1.bf16.msra.mxu0 0
        %3743 = vmatprep.subr.bf16.mxu0 0
        %3744 = vmatpush1.bf16.msra.mxu0 0
        %3745 = vmatprep.subr.bf16.mxu0 0
        %3746 = vmatpush1.bf16.msra.mxu0 0
        %3747 = vmatprep.mubr.bf16.mxu0 0
        %3748 = vmatmul.mubr.bf16.gmra.mrb[0].mxu0 %v3709
        %v3749 = vpop.f32.mrb[0].mxu0
        %v3750 = vadd.f32 0.0, %v3749
        %v3751 = vpop.f32.mrb[0].mxu0
        %v3752 = vpop.f32.mrb[0].mxu0
        %v3753 = vpop.f32.mrb[0].mxu0
        %3754 = vdwg.mxu0
        %v3756 = vsel %vm3591, %v3707, 0
        %v3759 = vsel %vm3711, %v3590, 0
        %3761 = vmatprep.subr.bf16.mxu0 0
        %3762 = vmatpush1.bf16.msra.mxu0 %v3759
        %3763 = vmatprep.subr.bf16.mxu0 0
        %3764 = vmatpush1.bf16.msra.mxu0 0
        %3765 = vmatprep.subr.bf16.mxu0 0
        %3766 = vmatpush1.bf16.msra.mxu0 0
        %3767 = vmatprep.subr.bf16.mxu0 0
        %3768 = vmatpush1.bf16.msra.mxu0 0
        %3769 = vmatprep.subr.bf16.mxu0 0
        %3770 = vmatpush1.bf16.msra.mxu0 0
        %3771 = vmatprep.subr.bf16.mxu0 0
        %3772 = vmatpush1.bf16.msra.mxu0 0
        %3773 = vmatprep.subr.bf16.mxu0 0
        %3774 = vmatpush1.bf16.msra.mxu0 0
        %3775 = vmatprep.subr.bf16.mxu0 0
        %3776 = vmatpush1.bf16.msra.mxu0 0
        %3777 = vmatprep.subr.bf16.mxu0 0
        %3778 = vmatpush1.bf16.msra.mxu0 0
        %3779 = vmatprep.subr.bf16.mxu0 0
        %3780 = vmatpush1.bf16.msra.mxu0 0
        %3781 = vmatprep.subr.bf16.mxu0 0
        %3782 = vmatpush1.bf16.msra.mxu0 0
        %3783 = vmatprep.subr.bf16.mxu0 0
        %3784 = vmatpush1.bf16.msra.mxu0 0
        %3785 = vmatprep.subr.bf16.mxu0 0
        %3786 = vmatpush1.bf16.msra.mxu0 0
        %3787 = vmatprep.subr.bf16.mxu0 0
        %3788 = vmatpush1.bf16.msra.mxu0 0
        %3789 = vmatprep.subr.bf16.mxu0 0
        %3790 = vmatpush1.bf16.msra.mxu0 0
        %3791 = vmatprep.subr.bf16.mxu0 0
        %3792 = vmatpush1.bf16.msra.mxu0 0
        %3793 = vmatprep.mubr.bf16.mxu0 0
        %3794 = vmatmul.mubr.bf16.gmra.mrb[0].mxu0 %v3756
        %v3795 = vpop.f32.mrb[0].mxu0
        %v3796 = vadd.f32 0.0, %v3795
        %v3797 = vpop.f32.mrb[0].mxu0
        %v3798 = vpop.f32.mrb[0].mxu0
        %v3799 = vpop.f32.mrb[0].mxu0
        %3800 = vdwg.mxu0
        %3802 = vrot.lane.b32.xlu0 %v3585, 120
        %v3803 = vpop.permute.xlu0 %3802
        %3805 = vrot.lane.b32.xlu0 %v3587, 120
        %v3806 = vpop.permute.xlu0 %3805
        %v3808 = vsel %vm3591, %v3803, 0
        %v3811 = vsel %vm3591, %v3806, 0
        %3813 = vmatprep.subr.bf16.mxu0 0
        %3814 = vmatpush1.bf16.xpose.msra.mxu0 %v3811
        %3815 = vmatprep.subr.bf16.mxu0 0
        %3816 = vmatpush1.bf16.xpose.msra.mxu0 0
        %3817 = vmatprep.subr.bf16.mxu0 0
        %3818 = vmatpush1.bf16.xpose.msra.mxu0 0
        %3819 = vmatprep.subr.bf16.mxu0 0
        %3820 = vmatpush1.bf16.xpose.msra.mxu0 0
        %3821 = vmatprep.subr.bf16.mxu0 0
        %3822 = vmatpush1.bf16.xpose.msra.mxu0 0
        %3823 = vmatprep.subr.bf16.mxu0 0
        %3824 = vmatpush1.bf16.xpose.msra.mxu0 0
        %3825 = vmatprep.subr.bf16.mxu0 0
        %3826 = vmatpush1.bf16.xpose.msra.mxu0 0
        %3827 = vmatprep.subr.bf16.mxu0 0
        %3828 = vmatpush1.bf16.xpose.msra.mxu0 0
        %3829 = vmatprep.subr.bf16.mxu0 0
        %3830 = vmatpush1.bf16.xpose.msra.mxu0 0
        %3831 = vmatprep.subr.bf16.mxu0 0
        %3832 = vmatpush1.bf16.xpose.msra.mxu0 0
        %3833 = vmatprep.subr.bf16.mxu0 0
        %3834 = vmatpush1.bf16.xpose.msra.mxu0 0
        %3835 = vmatprep.subr.bf16.mxu0 0
        %3836 = vmatpush1.bf16.xpose.msra.mxu0 0
        %3837 = vmatprep.subr.bf16.mxu0 0
        %3838 = vmatpush1.bf16.xpose.msra.mxu0 0
        %3839 = vmatprep.subr.bf16.mxu0 0
        %3840 = vmatpush1.bf16.xpose.msra.mxu0 0
        %3841 = vmatprep.subr.bf16.mxu0 0
        %3842 = vmatpush1.bf16.xpose.msra.mxu0 0
        %3843 = vmatprep.subr.bf16.mxu0 0
        %3844 = vmatpush1.bf16.xpose.msra.mxu0 0
        %3845 = vmatprep.mubr.bf16.mxu0 0
        %3846 = vmatmul.mubr.bf16.gmra.mrb[0].mxu0 %v3808
        %v3847 = vpop.f32.mrb[0].mxu0
        %v3848 = vadd.f32 0.0, %v3847
        %v3849 = vpop.f32.mrb[0].mxu0
        %v3850 = vpop.f32.mrb[0].mxu0
        %v3851 = vpop.f32.mrb[0].mxu0
        %3852 = vdwg.mxu0
        %3854 = vrot.lane.b32.xlu0 %v3586, 120
        %v3855 = vpop.permute.xlu0 %3854
        %3857 = vrot.lane.b32.xlu0 %v3588, 120
        %v3858 = vpop.permute.xlu0 %3857
        %v3860 = vsel %vm3591, %v3855, 0
        %v3863 = vsel %vm3591, %v3858, 0
        %3865 = vmatprep.subr.bf16.mxu0 0
        %3866 = vmatpush1.bf16.xpose.msra.mxu0 %v3863
        %3867 = vmatprep.subr.bf16.mxu0 0
        %3868 = vmatpush1.bf16.xpose.msra.mxu0 0
        %3869 = vmatprep.subr.bf16.mxu0 0
        %3870 = vmatpush1.bf16.xpose.msra.mxu0 0
        %3871 = vmatprep.subr.bf16.mxu0 0
        %3872 = vmatpush1.bf16.xpose.msra.mxu0 0
        %3873 = vmatprep.subr.bf16.mxu0 0
        %3874 = vmatpush1.bf16.xpose.msra.mxu0 0
        %3875 = vmatprep.subr.bf16.mxu0 0
        %3876 = vmatpush1.bf16.xpose.msra.mxu0 0
        %3877 = vmatprep.subr.bf16.mxu0 0
        %3878 = vmatpush1.bf16.xpose.msra.mxu0 0
        %3879 = vmatprep.subr.bf16.mxu0 0
        %3880 = vmatpush1.bf16.xpose.msra.mxu0 0
        %3881 = vmatprep.subr.bf16.mxu0 0
        %3882 = vmatpush1.bf16.xpose.msra.mxu0 0
        %3883 = vmatprep.subr.bf16.mxu0 0
        %3884 = vmatpush1.bf16.xpose.msra.mxu0 0
        %3885 = vmatprep.subr.bf16.mxu0 0
        %3886 = vmatpush1.bf16.xpose.msra.mxu0 0
        %3887 = vmatprep.subr.bf16.mxu0 0
        %3888 = vmatpush1.bf16.xpose.msra.mxu0 0
        %3889 = vmatprep.subr.bf16.mxu0 0
        %3890 = vmatpush1.bf16.xpose.msra.mxu0 0
        %3891 = vmatprep.subr.bf16.mxu0 0
        %3892 = vmatpush1.bf16.xpose.msra.mxu0 0
        %3893 = vmatprep.subr.bf16.mxu0 0
        %3894 = vmatpush1.bf16.xpose.msra.mxu0 0
        %3895 = vmatprep.subr.bf16.mxu0 0
        %3896 = vmatpush1.bf16.xpose.msra.mxu0 0
        %3897 = vmatprep.mubr.bf16.mxu0 0
        %3898 = vmatmul.mubr.bf16.gmra.mrb[0].mxu0 %v3860
        %v3899 = vpop.f32.mrb[0].mxu0
        %v3900 = vadd.f32 0.0, %v3899
        %v3901 = vpop.f32.mrb[0].mxu0
        %v3902 = vpop.f32.mrb[0].mxu0
        %v3903 = vpop.f32.mrb[0].mxu0
        %3904 = vdwg.mxu0
        %v3905 = vsel %vm3591, %v3848, -inf
        %3906 = vmax.xlane.f32.xlu0 %v3905
        %v3907 = vpop.xlane.xlu0 %3906
        %v3908 = vsel %vm3591, %v3900, -inf
        %3909 = vmax.xlane.f32.xlu0 %v3908
        %v3910 = vpop.xlane.xlu0 %3909
        %v3911 = vsub.f32 %v3848, %v3907
        %v3912 = vsub.f32 %v3900, %v3910
        %v3913 = vmul.f32 %v3911, 1.442695
        %v3914 = vpow.pop %v3913
        %v3915 = vmul.f32 %v3912, 1.442695
        %v3916 = vpow.pop %v3915
        %v3917 = vsel %vm3591, %v3914, 0.0
        %3918 = vadd.xlane.f32.xlu0 %v3917
        %v3919 = vpop.xlane.xlu0 %3918
        %v3920 = vsel %vm3591, %v3916, 0.0
        %3921 = vadd.xlane.f32.xlu0 %v3920
        %v3922 = vpop.xlane.xlu0 %3921
        %v3923 = vrcp.pop %v3919
        %v3924 = vrcp.pop %v3922
        %v3925 = vmul.f32 %v3914, %v3923
        %v3926 = vmul.f32 %v3916, %v3924
        %v3927 = vpack.c.bf16 %v3925, %v3925
        %v3928 = vpack.c.bf16 %v3926, %v3926
        %3930 = vrot.lane.b32.xlu0 %v3589, 120
        %v3931 = vpop.permute.xlu0 %3930
        %v3933 = vsel %vm3591, %v3927, 0
        %v3936 = vsel %vm3711, %v3931, 0
        %3938 = vmatprep.subr.bf16.mxu0 0
        %3939 = vmatpush1.bf16.msra.mxu0 %v3936
        %3940 = vmatprep.subr.bf16.mxu0 0
        %3941 = vmatpush1.bf16.msra.mxu0 0
        %3942 = vmatprep.subr.bf16.mxu0 0
        %3943 = vmatpush1.bf16.msra.mxu0 0
        %3944 = vmatprep.subr.bf16.mxu0 0
        %3945 = vmatpush1.bf16.msra.mxu0 0
        %3946 = vmatprep.subr.bf16.mxu0 0
        %3947 = vmatpush1.bf16.msra.mxu0 0
        %3948 = vmatprep.subr.bf16.mxu0 0
        %3949 = vmatpush1.bf16.msra.mxu0 0
        %3950 = vmatprep.subr.bf16.mxu0 0
        %3951 = vmatpush1.bf16.msra.mxu0 0
        %3952 = vmatprep.subr.bf16.mxu0 0
        %3953 = vmatpush1.bf16.msra.mxu0 0
        %3954 = vmatprep.subr.bf16.mxu0 0
        %3955 = vmatpush1.bf16.msra.mxu0 0
        %3956 = vmatprep.subr.bf16.mxu0 0
        %3957 = vmatpush1.bf16.msra.mxu0 0
        %3958 = vmatprep.subr.bf16.mxu0 0
        %3959 = vmatpush1.bf16.msra.mxu0 0
        %3960 = vmatprep.subr.bf16.mxu0 0
        %3961 = vmatpush1.bf16.msra.mxu0 0
        %3962 = vmatprep.subr.bf16.mxu0 0
        %3963 = vmatpush1.bf16.msra.mxu0 0
        %3964 = vmatprep.subr.bf16.mxu0 0
        %3965 = vmatpush1.bf16.msra.mxu0 0
        %3966 = vmatprep.subr.bf16.mxu0 0
        %3967 = vmatpush1.bf16.msra.mxu0 0
        %3968 = vmatprep.subr.bf16.mxu0 0
        %3969 = vmatpush1.bf16.msra.mxu0 0
        %3970 = vmatprep.mubr.bf16.mxu0 0
        %3971 = vmatmul.mubr.bf16.gmra.mrb[0].mxu0 %v3933
        %v3972 = vpop.f32.mrb[0].mxu0
        %v3973 = vadd.f32 0.0, %v3972
        %v3974 = vpop.f32.mrb[0].mxu0
        %v3975 = vpop.f32.mrb[0].mxu0
        %v3976 = vpop.f32.mrb[0].mxu0
        %3977 = vdwg.mxu0
        %3979 = vrot.lane.b32.xlu0 %v3590, 120
        %v3980 = vpop.permute.xlu0 %3979
        %v3982 = vsel %vm3591, %v3928, 0
        %v3985 = vsel %vm3711, %v3980, 0
        %3987 = vmatprep.subr.bf16.mxu0 0
        %3988 = vmatpush1.bf16.msra.mxu0 %v3985
        %3989 = vmatprep.subr.bf16.mxu0 0
        %3990 = vmatpush1.bf16.msra.mxu0 0
        %3991 = vmatprep.subr.bf16.mxu0 0
        %3992 = vmatpush1.bf16.msra.mxu0 0
        %3993 = vmatprep.subr.bf16.mxu0 0
        %3994 = vmatpush1.bf16.msra.mxu0 0
        %3995 = vmatprep.subr.bf16.mxu0 0
        %3996 = vmatpush1.bf16.msra.mxu0 0
        %3997 = vmatprep.subr.bf16.mxu0 0
        %3998 = vmatpush1.bf16.msra.mxu0 0
        %3999 = vmatprep.subr.bf16.mxu0 0
        %4000 = vmatpush1.bf16.msra.mxu0 0
        %4001 = vmatprep.subr.bf16.mxu0 0
        %4002 = vmatpush1.bf16.msra.mxu0 0
        %4003 = vmatprep.subr.bf16.mxu0 0
        %4004 = vmatpush1.bf16.msra.mxu0 0
        %4005 = vmatprep.subr.bf16.mxu0 0
        %4006 = vmatpush1.bf16.msra.mxu0 0
        %4007 = vmatprep.subr.bf16.mxu0 0
        %4008 = vmatpush1.bf16.msra.mxu0 0
        %4009 = vmatprep.subr.bf16.mxu0 0
        %4010 = vmatpush1.bf16.msra.mxu0 0
        %4011 = vmatprep.subr.bf16.mxu0 0
        %4012 = vmatpush1.bf16.msra.mxu0 0
        %4013 = vmatprep.subr.bf16.mxu0 0
        %4014 = vmatpush1.bf16.msra.mxu0 0
        %4015 = vmatprep.subr.bf16.mxu0 0
        %4016 = vmatpush1.bf16.msra.mxu0 0
        %4017 = vmatprep.subr.bf16.mxu0 0
        %4018 = vmatpush1.bf16.msra.mxu0 0
        %4019 = vmatprep.mubr.bf16.mxu0 0
        %4020 = vmatmul.mubr.bf16.gmra.mrb[0].mxu0 %v3982
        %v4021 = vpop.f32.mrb[0].mxu0
        %v4022 = vadd.f32 0.0, %v4021
        %v4023 = vpop.f32.mrb[0].mxu0
        %v4024 = vpop.f32.mrb[0].mxu0
        %v4025 = vpop.f32.mrb[0].mxu0
        %4026 = vdwg.mxu0
        %4027 = vrot.lane.b32.xlu0 %v3585, 112
        %v4028 = vpop.permute.xlu0 %4027
        %4029 = vrot.lane.b32.xlu0 %v3587, 112
        %v4030 = vpop.permute.xlu0 %4029
        %v4032 = vsel %vm3591, %v4028, 0
        %v4035 = vsel %vm3591, %v4030, 0
        %4037 = vmatprep.subr.bf16.mxu0 0
        %4038 = vmatpush1.bf16.xpose.msra.mxu0 %v4035
        %4039 = vmatprep.subr.bf16.mxu0 0
        %4040 = vmatpush1.bf16.xpose.msra.mxu0 0
        %4041 = vmatprep.subr.bf16.mxu0 0
        %4042 = vmatpush1.bf16.xpose.msra.mxu0 0
        %4043 = vmatprep.subr.bf16.mxu0 0
        %4044 = vmatpush1.bf16.xpose.msra.mxu0 0
        %4045 = vmatprep.subr.bf16.mxu0 0
        %4046 = vmatpush1.bf16.xpose.msra.mxu0 0
        %4047 = vmatprep.subr.bf16.mxu0 0
        %4048 = vmatpush1.bf16.xpose.msra.mxu0 0
        %4049 = vmatprep.subr.bf16.mxu0 0
        %4050 = vmatpush1.bf16.xpose.msra.mxu0 0
        %4051 = vmatprep.subr.bf16.mxu0 0
        %4052 = vmatpush1.bf16.xpose.msra.mxu0 0
        %4053 = vmatprep.subr.bf16.mxu0 0
        %4054 = vmatpush1.bf16.xpose.msra.mxu0 0
        %4055 = vmatprep.subr.bf16.mxu0 0
        %4056 = vmatpush1.bf16.xpose.msra.mxu0 0
        %4057 = vmatprep.subr.bf16.mxu0 0
        %4058 = vmatpush1.bf16.xpose.msra.mxu0 0
        %4059 = vmatprep.subr.bf16.mxu0 0
        %4060 = vmatpush1.bf16.xpose.msra.mxu0 0
        %4061 = vmatprep.subr.bf16.mxu0 0
        %4062 = vmatpush1.bf16.xpose.msra.mxu0 0
        %4063 = vmatprep.subr.bf16.mxu0 0
        %4064 = vmatpush1.bf16.xpose.msra.mxu0 0
        %4065 = vmatprep.subr.bf16.mxu0 0
        %4066 = vmatpush1.bf16.xpose.msra.mxu0 0
        %4067 = vmatprep.subr.bf16.mxu0 0
        %4068 = vmatpush1.bf16.xpose.msra.mxu0 0
        %4069 = vmatprep.mubr.bf16.mxu0 0
        %4070 = vmatmul.mubr.bf16.gmra.mrb[0].mxu0 %v4032
        %v4071 = vpop.f32.mrb[0].mxu0
        %v4072 = vadd.f32 0.0, %v4071
        %v4073 = vpop.f32.mrb[0].mxu0
        %v4074 = vpop.f32.mrb[0].mxu0
        %v4075 = vpop.f32.mrb[0].mxu0
        %4076 = vdwg.mxu0
        %4077 = vrot.lane.b32.xlu0 %v3586, 112
        %v4078 = vpop.permute.xlu0 %4077
        %4079 = vrot.lane.b32.xlu0 %v3588, 112
        %v4080 = vpop.permute.xlu0 %4079
        %v4082 = vsel %vm3591, %v4078, 0
        %v4085 = vsel %vm3591, %v4080, 0
        %4087 = vmatprep.subr.bf16.mxu0 0
        %4088 = vmatpush1.bf16.xpose.msra.mxu0 %v4085
        %4089 = vmatprep.subr.bf16.mxu0 0
        %4090 = vmatpush1.bf16.xpose.msra.mxu0 0
        %4091 = vmatprep.subr.bf16.mxu0 0
        %4092 = vmatpush1.bf16.xpose.msra.mxu0 0
        %4093 = vmatprep.subr.bf16.mxu0 0
        %4094 = vmatpush1.bf16.xpose.msra.mxu0 0
        %4095 = vmatprep.subr.bf16.mxu0 0
        %4096 = vmatpush1.bf16.xpose.msra.mxu0 0
        %4097 = vmatprep.subr.bf16.mxu0 0
        %4098 = vmatpush1.bf16.xpose.msra.mxu0 0
        %4099 = vmatprep.subr.bf16.mxu0 0
        %4100 = vmatpush1.bf16.xpose.msra.mxu0 0
        %4101 = vmatprep.subr.bf16.mxu0 0
        %4102 = vmatpush1.bf16.xpose.msra.mxu0 0
        %4103 = vmatprep.subr.bf16.mxu0 0
        %4104 = vmatpush1.bf16.xpose.msra.mxu0 0
        %4105 = vmatprep.subr.bf16.mxu0 0
        %4106 = vmatpush1.bf16.xpose.msra.mxu0 0
        %4107 = vmatprep.subr.bf16.mxu0 0
        %4108 = vmatpush1.bf16.xpose.msra.mxu0 0
        %4109 = vmatprep.subr.bf16.mxu0 0
        %4110 = vmatpush1.bf16.xpose.msra.mxu0 0
        %4111 = vmatprep.subr.bf16.mxu0 0
        %4112 = vmatpush1.bf16.xpose.msra.mxu0 0
        %4113 = vmatprep.subr.bf16.mxu0 0
        %4114 = vmatpush1.bf16.xpose.msra.mxu0 0
        %4115 = vmatprep.subr.bf16.mxu0 0
        %4116 = vmatpush1.bf16.xpose.msra.mxu0 0
        %4117 = vmatprep.subr.bf16.mxu0 0
        %4118 = vmatpush1.bf16.xpose.msra.mxu0 0
        %4119 = vmatprep.mubr.bf16.mxu0 0
        %4120 = vmatmul.mubr.bf16.gmra.mrb[0].mxu0 %v4082
        %v4121 = vpop.f32.mrb[0].mxu0
        %v4122 = vadd.f32 0.0, %v4121
        %v4123 = vpop.f32.mrb[0].mxu0
        %v4124 = vpop.f32.mrb[0].mxu0
        %v4125 = vpop.f32.mrb[0].mxu0
        %4126 = vdwg.mxu0
        %v4127 = vsel %vm3591, %v4072, -inf
        %4128 = vmax.xlane.f32.xlu0 %v4127
        %v4129 = vpop.xlane.xlu0 %4128
        %v4130 = vsel %vm3591, %v4122, -inf
        %4131 = vmax.xlane.f32.xlu0 %v4130
        %v4132 = vpop.xlane.xlu0 %4131
        %v4133 = vsub.f32 %v4072, %v4129
        %v4134 = vsub.f32 %v4122, %v4132
        %v4135 = vmul.f32 %v4133, 1.442695
        %v4136 = vpow.pop %v4135
        %v4137 = vmul.f32 %v4134, 1.442695
        %v4138 = vpow.pop %v4137
        %v4139 = vsel %vm3591, %v4136, 0.0
        %4140 = vadd.xlane.f32.xlu0 %v4139
        %v4141 = vpop.xlane.xlu0 %4140
        %v4142 = vsel %vm3591, %v4138, 0.0
        %4143 = vadd.xlane.f32.xlu0 %v4142
        %v4144 = vpop.xlane.xlu0 %4143
        %v4145 = vrcp.pop %v4141
        %v4146 = vrcp.pop %v4144
        %v4147 = vmul.f32 %v4136, %v4145
        %v4148 = vmul.f32 %v4138, %v4146
        %v4149 = vpack.c.bf16 %v4147, %v4147
        %v4150 = vpack.c.bf16 %v4148, %v4148
        %4151 = vrot.lane.b32.xlu0 %v3589, 112
        %v4152 = vpop.permute.xlu0 %4151
        %v4154 = vsel %vm3591, %v4149, 0
        %v4157 = vsel %vm3711, %v4152, 0
        %4159 = vmatprep.subr.bf16.mxu0 0
        %4160 = vmatpush1.bf16.msra.mxu0 %v4157
        %4161 = vmatprep.subr.bf16.mxu0 0
        %4162 = vmatpush1.bf16.msra.mxu0 0
        %4163 = vmatprep.subr.bf16.mxu0 0
        %4164 = vmatpush1.bf16.msra.mxu0 0
        %4165 = vmatprep.subr.bf16.mxu0 0
        %4166 = vmatpush1.bf16.msra.mxu0 0
        %4167 = vmatprep.subr.bf16.mxu0 0
        %4168 = vmatpush1.bf16.msra.mxu0 0
        %4169 = vmatprep.subr.bf16.mxu0 0
        %4170 = vmatpush1.bf16.msra.mxu0 0
        %4171 = vmatprep.subr.bf16.mxu0 0
        %4172 = vmatpush1.bf16.msra.mxu0 0
        %4173 = vmatprep.subr.bf16.mxu0 0
        %4174 = vmatpush1.bf16.msra.mxu0 0
        %4175 = vmatprep.subr.bf16.mxu0 0
        %4176 = vmatpush1.bf16.msra.mxu0 0
        %4177 = vmatprep.subr.bf16.mxu0 0
        %4178 = vmatpush1.bf16.msra.mxu0 0
        %4179 = vmatprep.subr.bf16.mxu0 0
        %4180 = vmatpush1.bf16.msra.mxu0 0
        %4181 = vmatprep.subr.bf16.mxu0 0
        %4182 = vmatpush1.bf16.msra.mxu0 0
        %4183 = vmatprep.subr.bf16.mxu0 0
        %4184 = vmatpush1.bf16.msra.mxu0 0
        %4185 = vmatprep.subr.bf16.mxu0 0
        %4186 = vmatpush1.bf16.msra.mxu0 0
        %4187 = vmatprep.subr.bf16.mxu0 0
        %4188 = vmatpush1.bf16.msra.mxu0 0
        %4189 = vmatprep.subr.bf16.mxu0 0
        %4190 = vmatpush1.bf16.msra.mxu0 0
        %4191 = vmatprep.mubr.bf16.mxu0 0
        %4192 = vmatmul.mubr.bf16.gmra.mrb[0].mxu0 %v4154
        %v4193 = vpop.f32.mrb[0].mxu0
        %v4194 = vadd.f32 0.0, %v4193
        %v4195 = vpop.f32.mrb[0].mxu0
        %v4196 = vpop.f32.mrb[0].mxu0
        %v4197 = vpop.f32.mrb[0].mxu0
        %4198 = vdwg.mxu0
        %4199 = vrot.lane.b32.xlu0 %v3590, 112
        %v4200 = vpop.permute.xlu0 %4199
        %v4202 = vsel %vm3591, %v4150, 0
        %v4205 = vsel %vm3711, %v4200, 0
        %4207 = vmatprep.subr.bf16.mxu0 0
        %4208 = vmatpush1.bf16.msra.mxu0 %v4205
        %4209 = vmatprep.subr.bf16.mxu0 0
        %4210 = vmatpush1.bf16.msra.mxu0 0
        %4211 = vmatprep.subr.bf16.mxu0 0
        %4212 = vmatpush1.bf16.msra.mxu0 0
        %4213 = vmatprep.subr.bf16.mxu0 0
        %4214 = vmatpush1.bf16.msra.mxu0 0
        %4215 = vmatprep.subr.bf16.mxu0 0
        %4216 = vmatpush1.bf16.msra.mxu0 0
        %4217 = vmatprep.subr.bf16.mxu0 0
        %4218 = vmatpush1.bf16.msra.mxu0 0
        %4219 = vmatprep.subr.bf16.mxu0 0
        %4220 = vmatpush1.bf16.msra.mxu0 0
        %4221 = vmatprep.subr.bf16.mxu0 0
        %4222 = vmatpush1.bf16.msra.mxu0 0
        %4223 = vmatprep.subr.bf16.mxu0 0
        %4224 = vmatpush1.bf16.msra.mxu0 0
        %4225 = vmatprep.subr.bf16.mxu0 0
        %4226 = vmatpush1.bf16.msra.mxu0 0
        %4227 = vmatprep.subr.bf16.mxu0 0
        %4228 = vmatpush1.bf16.msra.mxu0 0
        %4229 = vmatprep.subr.bf16.mxu0 0
        %4230 = vmatpush1.bf16.msra.mxu0 0
        %4231 = vmatprep.subr.bf16.mxu0 0
        %4232 = vmatpush1.bf16.msra.mxu0 0
        %4233 = vmatprep.subr.bf16.mxu0 0
        %4234 = vmatpush1.bf16.msra.mxu0 0
        %4235 = vmatprep.subr.bf16.mxu0 0
        %4236 = vmatpush1.bf16.msra.mxu0 0
        %4237 = vmatprep.subr.bf16.mxu0 0
        %4238 = vmatpush1.bf16.msra.mxu0 0
        %4239 = vmatprep.mubr.bf16.mxu0 0
        %4240 = vmatmul.mubr.bf16.gmra.mrb[0].mxu0 %v4202
        %v4241 = vpop.f32.mrb[0].mxu0
        %v4242 = vadd.f32 0.0, %v4241
        %v4243 = vpop.f32.mrb[0].mxu0
        %v4244 = vpop.f32.mrb[0].mxu0
        %v4245 = vpop.f32.mrb[0].mxu0
        %4246 = vdwg.mxu0
        %4247 = vrot.lane.b32.xlu0 %v3585, 104
        %v4248 = vpop.permute.xlu0 %4247
        %4249 = vrot.lane.b32.xlu0 %v3587, 104
        %v4250 = vpop.permute.xlu0 %4249
        %v4252 = vsel %vm3591, %v4248, 0
        %v4255 = vsel %vm3591, %v4250, 0
        %4257 = vmatprep.subr.bf16.mxu0 0
        %4258 = vmatpush1.bf16.xpose.msra.mxu0 %v4255
        %4259 = vmatprep.subr.bf16.mxu0 0
        %4260 = vmatpush1.bf16.xpose.msra.mxu0 0
        %4261 = vmatprep.subr.bf16.mxu0 0
        %4262 = vmatpush1.bf16.xpose.msra.mxu0 0
        %4263 = vmatprep.subr.bf16.mxu0 0
        %4264 = vmatpush1.bf16.xpose.msra.mxu0 0
        %4265 = vmatprep.subr.bf16.mxu0 0
        %4266 = vmatpush1.bf16.xpose.msra.mxu0 0
        %4267 = vmatprep.subr.bf16.mxu0 0
        %4268 = vmatpush1.bf16.xpose.msra.mxu0 0
        %4269 = vmatprep.subr.bf16.mxu0 0
        %4270 = vmatpush1.bf16.xpose.msra.mxu0 0
        %4271 = vmatprep.subr.bf16.mxu0 0
        %4272 = vmatpush1.bf16.xpose.msra.mxu0 0
        %4273 = vmatprep.subr.bf16.mxu0 0
        %4274 = vmatpush1.bf16.xpose.msra.mxu0 0
        %4275 = vmatprep.subr.bf16.mxu0 0
        %4276 = vmatpush1.bf16.xpose.msra.mxu0 0
        %4277 = vmatprep.subr.bf16.mxu0 0
        %4278 = vmatpush1.bf16.xpose.msra.mxu0 0
        %4279 = vmatprep.subr.bf16.mxu0 0
        %4280 = vmatpush1.bf16.xpose.msra.mxu0 0
        %4281 = vmatprep.subr.bf16.mxu0 0
        %4282 = vmatpush1.bf16.xpose.msra.mxu0 0
        %4283 = vmatprep.subr.bf16.mxu0 0
        %4284 = vmatpush1.bf16.xpose.msra.mxu0 0
        %4285 = vmatprep.subr.bf16.mxu0 0
        %4286 = vmatpush1.bf16.xpose.msra.mxu0 0
        %4287 = vmatprep.subr.bf16.mxu0 0
        %4288 = vmatpush1.bf16.xpose.msra.mxu0 0
        %4289 = vmatprep.mubr.bf16.mxu0 0
        %4290 = vmatmul.mubr.bf16.gmra.mrb[0].mxu0 %v4252
        %v4291 = vpop.f32.mrb[0].mxu0
        %v4292 = vadd.f32 0.0, %v4291
        %v4293 = vpop.f32.mrb[0].mxu0
        %v4294 = vpop.f32.mrb[0].mxu0
        %v4295 = vpop.f32.mrb[0].mxu0
        %4296 = vdwg.mxu0
        %4297 = vrot.lane.b32.xlu0 %v3586, 104
        %v4298 = vpop.permute.xlu0 %4297
        %4299 = vrot.lane.b32.xlu0 %v3588, 104
        %v4300 = vpop.permute.xlu0 %4299
        %v4302 = vsel %vm3591, %v4298, 0
        %v4305 = vsel %vm3591, %v4300, 0
        %4307 = vmatprep.subr.bf16.mxu0 0
        %4308 = vmatpush1.bf16.xpose.msra.mxu0 %v4305
        %4309 = vmatprep.subr.bf16.mxu0 0
        %4310 = vmatpush1.bf16.xpose.msra.mxu0 0
        %4311 = vmatprep.subr.bf16.mxu0 0
        %4312 = vmatpush1.bf16.xpose.msra.mxu0 0
        %4313 = vmatprep.subr.bf16.mxu0 0
        %4314 = vmatpush1.bf16.xpose.msra.mxu0 0
        %4315 = vmatprep.subr.bf16.mxu0 0
        %4316 = vmatpush1.bf16.xpose.msra.mxu0 0
        %4317 = vmatprep.subr.bf16.mxu0 0
        %4318 = vmatpush1.bf16.xpose.msra.mxu0 0
        %4319 = vmatprep.subr.bf16.mxu0 0
        %4320 = vmatpush1.bf16.xpose.msra.mxu0 0
        %4321 = vmatprep.subr.bf16.mxu0 0
        %4322 = vmatpush1.bf16.xpose.msra.mxu0 0
        %4323 = vmatprep.subr.bf16.mxu0 0
        %4324 = vmatpush1.bf16.xpose.msra.mxu0 0
        %4325 = vmatprep.subr.bf16.mxu0 0
        %4326 = vmatpush1.bf16.xpose.msra.mxu0 0
        %4327 = vmatprep.subr.bf16.mxu0 0
        %4328 = vmatpush1.bf16.xpose.msra.mxu0 0
        %4329 = vmatprep.subr.bf16.mxu0 0
        %4330 = vmatpush1.bf16.xpose.msra.mxu0 0
        %4331 = vmatprep.subr.bf16.mxu0 0
        %4332 = vmatpush1.bf16.xpose.msra.mxu0 0
        %4333 = vmatprep.subr.bf16.mxu0 0
        %4334 = vmatpush1.bf16.xpose.msra.mxu0 0
        %4335 = vmatprep.subr.bf16.mxu0 0
        %4336 = vmatpush1.bf16.xpose.msra.mxu0 0
        %4337 = vmatprep.subr.bf16.mxu0 0
        %4338 = vmatpush1.bf16.xpose.msra.mxu0 0
        %4339 = vmatprep.mubr.bf16.mxu0 0
        %4340 = vmatmul.mubr.bf16.gmra.mrb[0].mxu0 %v4302
        %v4341 = vpop.f32.mrb[0].mxu0
        %v4342 = vadd.f32 0.0, %v4341
        %v4343 = vpop.f32.mrb[0].mxu0
        %v4344 = vpop.f32.mrb[0].mxu0
        %v4345 = vpop.f32.mrb[0].mxu0
        %4346 = vdwg.mxu0
        %v4347 = vsel %vm3591, %v4292, -inf
        %4348 = vmax.xlane.f32.xlu0 %v4347
        %v4349 = vpop.xlane.xlu0 %4348
        %v4350 = vsel %vm3591, %v4342, -inf
        %4351 = vmax.xlane.f32.xlu0 %v4350
        %v4352 = vpop.xlane.xlu0 %4351
        %v4353 = vsub.f32 %v4292, %v4349
        %v4354 = vsub.f32 %v4342, %v4352
        %v4355 = vmul.f32 %v4353, 1.442695
        %v4356 = vpow.pop %v4355
        %v4357 = vmul.f32 %v4354, 1.442695
        %v4358 = vpow.pop %v4357
        %v4359 = vsel %vm3591, %v4356, 0.0
        %4360 = vadd.xlane.f32.xlu0 %v4359
        %v4361 = vpop.xlane.xlu0 %4360
        %v4362 = vsel %vm3591, %v4358, 0.0
        %4363 = vadd.xlane.f32.xlu0 %v4362
        %v4364 = vpop.xlane.xlu0 %4363
        %v4365 = vrcp.pop %v4361
        %v4366 = vrcp.pop %v4364
        %v4367 = vmul.f32 %v4356, %v4365
        %v4368 = vmul.f32 %v4358, %v4366
        %v4369 = vpack.c.bf16 %v4367, %v4367
        %v4370 = vpack.c.bf16 %v4368, %v4368
        %4371 = vrot.lane.b32.xlu0 %v3589, 104
        %v4372 = vpop.permute.xlu0 %4371
        %v4374 = vsel %vm3591, %v4369, 0
        %v4377 = vsel %vm3711, %v4372, 0
        %4379 = vmatprep.subr.bf16.mxu0 0
        %4380 = vmatpush1.bf16.msra.mxu0 %v4377
        %4381 = vmatprep.subr.bf16.mxu0 0
        %4382 = vmatpush1.bf16.msra.mxu0 0
        %4383 = vmatprep.subr.bf16.mxu0 0
        %4384 = vmatpush1.bf16.msra.mxu0 0
        %4385 = vmatprep.subr.bf16.mxu0 0
        %4386 = vmatpush1.bf16.msra.mxu0 0
        %4387 = vmatprep.subr.bf16.mxu0 0
        %4388 = vmatpush1.bf16.msra.mxu0 0
        %4389 = vmatprep.subr.bf16.mxu0 0
        %4390 = vmatpush1.bf16.msra.mxu0 0
        %4391 = vmatprep.subr.bf16.mxu0 0
        %4392 = vmatpush1.bf16.msra.mxu0 0
        %4393 = vmatprep.subr.bf16.mxu0 0
        %4394 = vmatpush1.bf16.msra.mxu0 0
        %4395 = vmatprep.subr.bf16.mxu0 0
        %4396 = vmatpush1.bf16.msra.mxu0 0
        %4397 = vmatprep.subr.bf16.mxu0 0
        %4398 = vmatpush1.bf16.msra.mxu0 0
        %4399 = vmatprep.subr.bf16.mxu0 0
        %4400 = vmatpush1.bf16.msra.mxu0 0
        %4401 = vmatprep.subr.bf16.mxu0 0
        %4402 = vmatpush1.bf16.msra.mxu0 0
        %4403 = vmatprep.subr.bf16.mxu0 0
        %4404 = vmatpush1.bf16.msra.mxu0 0
        %4405 = vmatprep.subr.bf16.mxu0 0
        %4406 = vmatpush1.bf16.msra.mxu0 0
        %4407 = vmatprep.subr.bf16.mxu0 0
        %4408 = vmatpush1.bf16.msra.mxu0 0
        %4409 = vmatprep.subr.bf16.mxu0 0
        %4410 = vmatpush1.bf16.msra.mxu0 0
        %4411 = vmatprep.mubr.bf16.mxu0 0
        %4412 = vmatmul.mubr.bf16.gmra.mrb[0].mxu0 %v4374
        %v4413 = vpop.f32.mrb[0].mxu0
        %v4414 = vadd.f32 0.0, %v4413
        %v4415 = vpop.f32.mrb[0].mxu0
        %v4416 = vpop.f32.mrb[0].mxu0
        %v4417 = vpop.f32.mrb[0].mxu0
        %4418 = vdwg.mxu0
        %4419 = vrot.lane.b32.xlu0 %v3590, 104
        %v4420 = vpop.permute.xlu0 %4419
        %v4422 = vsel %vm3591, %v4370, 0
        %v4425 = vsel %vm3711, %v4420, 0
        %4427 = vmatprep.subr.bf16.mxu0 0
        %4428 = vmatpush1.bf16.msra.mxu0 %v4425
        %4429 = vmatprep.subr.bf16.mxu0 0
        %4430 = vmatpush1.bf16.msra.mxu0 0
        %4431 = vmatprep.subr.bf16.mxu0 0
        %4432 = vmatpush1.bf16.msra.mxu0 0
        %4433 = vmatprep.subr.bf16.mxu0 0
        %4434 = vmatpush1.bf16.msra.mxu0 0
        %4435 = vmatprep.subr.bf16.mxu0 0
        %4436 = vmatpush1.bf16.msra.mxu0 0
        %4437 = vmatprep.subr.bf16.mxu0 0
        %4438 = vmatpush1.bf16.msra.mxu0 0
        %4439 = vmatprep.subr.bf16.mxu0 0
        %4440 = vmatpush1.bf16.msra.mxu0 0
        %4441 = vmatprep.subr.bf16.mxu0 0
        %4442 = vmatpush1.bf16.msra.mxu0 0
        %4443 = vmatprep.subr.bf16.mxu0 0
        %4444 = vmatpush1.bf16.msra.mxu0 0
        %4445 = vmatprep.subr.bf16.mxu0 0
        %4446 = vmatpush1.bf16.msra.mxu0 0
        %4447 = vmatprep.subr.bf16.mxu0 0
        %4448 = vmatpush1.bf16.msra.mxu0 0
        %4449 = vmatprep.subr.bf16.mxu0 0
        %4450 = vmatpush1.bf16.msra.mxu0 0
        %4451 = vmatprep.subr.bf16.mxu0 0
        %4452 = vmatpush1.bf16.msra.mxu0 0
        %4453 = vmatprep.subr.bf16.mxu0 0
        %4454 = vmatpush1.bf16.msra.mxu0 0
        %4455 = vmatprep.subr.bf16.mxu0 0
        %4456 = vmatpush1.bf16.msra.mxu0 0
        %4457 = vmatprep.subr.bf16.mxu0 0
        %4458 = vmatpush1.bf16.msra.mxu0 0
        %4459 = vmatprep.mubr.bf16.mxu0 0
        %4460 = vmatmul.mubr.bf16.gmra.mrb[0].mxu0 %v4422
        %v4461 = vpop.f32.mrb[0].mxu0
        %v4462 = vadd.f32 0.0, %v4461
        %v4463 = vpop.f32.mrb[0].mxu0
        %v4464 = vpop.f32.mrb[0].mxu0
        %v4465 = vpop.f32.mrb[0].mxu0
        %4466 = vdwg.mxu0
        %4469 = vrot.lane.b32.xlu0 %v3973, 8
        %v4470 = vpop.permute.xlu0 %4469
        %4471 = vrot.lane.b32.xlu0 %v4022, 8
        %v4472 = vpop.permute.xlu0 %4471
        %4477 = vrot.lane.b32.xlu0 %v4194, 16
        %v4478 = vpop.permute.xlu0 %4477
        %4479 = vrot.lane.b32.xlu0 %v4242, 16
        %v4480 = vpop.permute.xlu0 %4479
        %4485 = vrot.lane.b32.xlu0 %v4414, 24
        %v4486 = vpop.permute.xlu0 %4485
        %4487 = vrot.lane.b32.xlu0 %v4462, 24
        %v4488 = vpop.permute.xlu0 %4487
        %v4491 = vsel %vm3591, %v3750, %v4470
        %v4492 = vsel %vm3591, %v3796, %v4472
        %vm4493 = vcmask 130048
        %v4494 = vsel %vm4493, %v4491, %v4478
        %v4495 = vsel %vm4493, %v4492, %v4480
        %vm4496 = vcmask 195584
        %v4497 = vsel %vm4496, %v4494, %v4486
        %v4498 = vsel %vm4496, %v4495, %v4488
        %v4499 = vpack.c.bf16 %v4498, %v4497
        %v4501 = vlaneseq
        %v4502 = vshrl.u32 %v4501, 7
        %v4503 = vsub.s32 0, %v4502
        %v4504 = vrot.slane %v3351, %v4503
        %v4510 = vunpack.c.l.b16 %v3347
        %v4511 = vunpack.c.l.b16 %v3348
        %v4512 = vunpack.c.l.b16 %v3349
        %v4513 = vunpack.c.l.b16 %v3350
        %v4514 = vpack.c.b16 %v4511, %v4510
        %v4515 = vpack.c.b16 %v4513, %v4512
        %v4519 = vsel %vm3376, %v4499, 0
        %4521 = vmatprep.subr.bf16.mxu0 0
        %4522 = vmatpush1.bf16.msra.mxu0 %v4514
        %4523 = vmatprep.subr.bf16.mxu0 0
        %4524 = vmatpush1.bf16.msra.mxu0 %v4515
        %4525 = vmatprep.subr.bf16.mxu0 0
        %4526 = vmatpush1.bf16.msra.mxu0 0
        %4527 = vmatprep.subr.bf16.mxu0 0
        %4528 = vmatpush1.bf16.msra.mxu0 0
        %4529 = vmatprep.subr.bf16.mxu0 0
        %4530 = vmatpush1.bf16.msra.mxu0 0
        %4531 = vmatprep.subr.bf16.mxu0 0
        %4532 = vmatpush1.bf16.msra.mxu0 0
        %4533 = vmatprep.subr.bf16.mxu0 0
        %4534 = vmatpush1.bf16.msra.mxu0 0
        %4535 = vmatprep.subr.bf16.mxu0 0
        %4536 = vmatpush1.bf16.msra.mxu0 0
        %4537 = vmatprep.subr.bf16.mxu0 0
        %4538 = vmatpush1.bf16.msra.mxu0 0
        %4539 = vmatprep.subr.bf16.mxu0 0
        %4540 = vmatpush1.bf16.msra.mxu0 0
        %4541 = vmatprep.subr.bf16.mxu0 0
        %4542 = vmatpush1.bf16.msra.mxu0 0
        %4543 = vmatprep.subr.bf16.mxu0 0
        %4544 = vmatpush1.bf16.msra.mxu0 0
        %4545 = vmatprep.subr.bf16.mxu0 0
        %4546 = vmatpush1.bf16.msra.mxu0 0
        %4547 = vmatprep.subr.bf16.mxu0 0
        %4548 = vmatpush1.bf16.msra.mxu0 0
        %4549 = vmatprep.subr.bf16.mxu0 0
        %4550 = vmatpush1.bf16.msra.mxu0 0
        %4551 = vmatprep.subr.bf16.mxu0 0
        %4552 = vmatpush1.bf16.msra.mxu0 0
        %4553 = vmatprep.mubr.bf16.mxu0 0
        %4554 = vmatmul.mubr.bf16.gmra.mrb[0].mxu0 %v4519
        %v4555 = vpop.f32.mrb[0].mxu0
        %v4556 = vadd.f32 %v4504, %v4555
        %v4557 = vpop.f32.mrb[0].mxu0
        %v4558 = vpop.f32.mrb[0].mxu0
        %v4559 = vadd.f32 %v4504, %v4558
        %v4560 = vpop.f32.mrb[0].mxu0
        %4561 = vdwg.mxu0
        %v4562 = vadd.f32 %v3331, %v4556
        %v4563 = vadd.f32 %v3332, %v4559
        %v4564 = vsel %vm3376, %v4562, 0.0
        %4565 = vadd.xlane.f32.xlu0 %v4564
        %v4566 = vpop.xlane.xlu0 %4565
        %v4567 = vsel %vm3376, %v4563, 0.0
        %4568 = vadd.xlane.f32.xlu0 %v4567
        %v4569 = vpop.xlane.xlu0 %4568
        %v4570 = vmul.f32 %v4566, %v3383
        %v4571 = vmul.f32 %v4569, %v3383
        %v4572 = vsub.f32 %v4562, %v4570
        %v4573 = vsub.f32 %v4563, %v4571
        %v4574 = vmul.f32 %v4572, %v4572
        %v4575 = vmul.f32 %v4573, %v4573
        %v4576 = vsel %vm3376, %v4574, 0.0
        %4577 = vadd.xlane.f32.xlu0 %v4576
        %v4578 = vpop.xlane.xlu0 %4577
        %v4579 = vsel %vm3376, %v4575, 0.0
        %4580 = vadd.xlane.f32.xlu0 %v4579
        %v4581 = vpop.xlane.xlu0 %4580
        %v4582 = vmul.f32 %v4578, %v3383
        %v4583 = vmul.f32 %v4581, %v3383
        %v4584 = vadd.f32 %v4582, 1e-05
        %v4585 = vadd.f32 %v4583, 1e-05
        %v4586 = vrsqrt.pop %v4584
        %v4587 = vrsqrt.pop %v4585
        %v4588 = vmul.f32 %v4572, %v4586
        %v4589 = vmul.f32 %v4573, %v4587
        %v4591 = vlaneseq
        %v4592 = vshrl.u32 %v4591, 7
        %v4593 = vsub.s32 0, %v4592
        %v4594 = vrot.slane %v3352, %v4593
        %v4596 = vmul.f32 %v4588, %v4594
        %v4597 = vmul.f32 %v4589, %v4594
        %v4599 = vlaneseq
        %v4600 = vshrl.u32 %v4599, 7
        %v4601 = vsub.s32 0, %v4600
        %v4602 = vrot.slane %v3353, %v4601
        %v4604 = vadd.f32 %v4596, %v4602
        %v4605 = vadd.f32 %v4597, %v4602
        %v4606 = vpack.c.bf16 %v4605, %v4604
        %v4608 = vlaneseq
        %v4609 = vshrl.u32 %v4608, 7
        %v4610 = vsub.s32 0, %v4609
        %v4611 = vrot.slane %v3358, %v4610
        %v4617 = vunpack.c.l.b16 %v3354
        %v4618 = vunpack.c.l.b16 %v3355
        %v4619 = vunpack.c.l.b16 %v3356
        %v4620 = vunpack.c.l.b16 %v3357
        %v4621 = vpack.c.b16 %v4618, %v4617
        %v4622 = vpack.c.b16 %v4620, %v4619
        %v4626 = vsel %vm3376, %v4606, 0
        %4628 = vmatprep.subr.bf16.mxu0 0
        %4629 = vmatpush1.bf16.msra.mxu0 %v4621
        %4630 = vmatprep.subr.bf16.mxu0 0
        %4631 = vmatpush1.bf16.msra.mxu0 %v4622
        %4632 = vmatprep.subr.bf16.mxu0 0
        %4633 = vmatpush1.bf16.msra.mxu0 0
        %4634 = vmatprep.subr.bf16.mxu0 0
        %4635 = vmatpush1.bf16.msra.mxu0 0
        %4636 = vmatprep.subr.bf16.mxu0 0
        %4637 = vmatpush1.bf16.msra.mxu0 0
        %4638 = vmatprep.subr.bf16.mxu0 0
        %4639 = vmatpush1.bf16.msra.mxu0 0
        %4640 = vmatprep.subr.bf16.mxu0 0
        %4641 = vmatpush1.bf16.msra.mxu0 0
        %4642 = vmatprep.subr.bf16.mxu0 0
        %4643 = vmatpush1.bf16.msra.mxu0 0
        %4644 = vmatprep.subr.bf16.mxu0 0
        %4645 = vmatpush1.bf16.msra.mxu0 0
        %4646 = vmatprep.subr.bf16.mxu0 0
        %4647 = vmatpush1.bf16.msra.mxu0 0
        %4648 = vmatprep.subr.bf16.mxu0 0
        %4649 = vmatpush1.bf16.msra.mxu0 0
        %4650 = vmatprep.subr.bf16.mxu0 0
        %4651 = vmatpush1.bf16.msra.mxu0 0
        %4652 = vmatprep.subr.bf16.mxu0 0
        %4653 = vmatpush1.bf16.msra.mxu0 0
        %4654 = vmatprep.subr.bf16.mxu0 0
        %4655 = vmatpush1.bf16.msra.mxu0 0
        %4656 = vmatprep.subr.bf16.mxu0 0
        %4657 = vmatpush1.bf16.msra.mxu0 0
        %4658 = vmatprep.subr.bf16.mxu0 0
        %4659 = vmatpush1.bf16.msra.mxu0 0
        %4660 = vmatprep.mubr.bf16.mxu0 0
        %4661 = vmatmul.mubr.bf16.gmra.mrb[0].mxu0 %v4626
        %v4662 = vpop.f32.mrb[0].mxu0
        %v4663 = vadd.f32 %v4611, %v4662
        %v4664 = vpop.f32.mrb[0].mxu0
        %v4665 = vpop.f32.mrb[0].mxu0
        %v4666 = vadd.f32 %v4611, %v4665
        %v4667 = vpop.f32.mrb[0].mxu0
        %4668 = vdwg.mxu0
        %v4669 = vmul.f32 %v4663, 0.5
        %v4670 = vmul.f32 %v4666, 0.5
        %v4671 = vmul.f32 %v4663, 0.70710677
        %v4672 = vmul.f32 %v4666, 0.70710677
        %v4673 = vand.u32 2147483647, %v4671
        %v4674 = vand.u32 2147483647, %v4672
        %v4675 = vmul.f32 %v4673, 0.3275911
        %v4676 = vmul.f32 %v4674, 0.3275911
        %v4677 = vadd.f32 %v4675, 1.0
        %v4678 = vadd.f32 %v4676, 1.0
        %v4679 = vrcp.pop %v4677
        %v4680 = vmul.f32 1.0, %v4679
        %v4681 = vrcp.pop %v4678
        %v4682 = vmul.f32 1.0, %v4681
        %v4683 = vmul.f32 %v4680, 1.0614054
        %v4684 = vmul.f32 %v4682, 1.0614054
        %v4685 = vadd.f32 %v4683, -1.4531521
        %v4686 = vadd.f32 %v4684, -1.4531521
        %v4687 = vmul.f32 %v4685, %v4680
        %v4688 = vmul.f32 %v4686, %v4682
        %v4689 = vadd.f32 %v4687, 1.4214138
        %v4690 = vadd.f32 %v4688, 1.4214138
        %v4691 = vmul.f32 %v4689, %v4680
        %v4692 = vmul.f32 %v4690, %v4682
        %v4693 = vadd.f32 %v4691, -0.28449672
        %v4694 = vadd.f32 %v4692, -0.28449672
        %v4695 = vmul.f32 %v4693, %v4680
        %v4696 = vmul.f32 %v4694, %v4682
        %v4697 = vadd.f32 %v4695, 0.2548296
        %v4698 = vadd.f32 %v4696, 0.2548296
        %v4699 = vmul.f32 %v4697, %v4680
        %v4700 = vmul.f32 %v4698, %v4682
        %v4701 = vsub.f32 0.0, %v4673
        %v4702 = vsub.f32 0.0, %v4674
        %v4703 = vmul.f32 %v4701, %v4673
        %v4704 = vmul.f32 %v4702, %v4674
        %v4705 = vmul.f32 %v4703, 1.442695
        %v4706 = vpow.pop %v4705
        %v4707 = vmul.f32 %v4704, 1.442695
        %v4708 = vpow.pop %v4707
        %v4709 = vmul.f32 %v4699, %v4706
        %v4710 = vmul.f32 %v4700, %v4708
        %v4711 = vsub.f32 1.0, %v4709
        %v4712 = vsub.f32 1.0, %v4710
        %vm4713 = vcmp.lt.f32.partialorder %v4671, 0.0
        %vm4714 = vcmp.lt.f32.partialorder %v4672, 0.0
        %v4715 = vsub.f32 0.0, %v4711
        %v4716 = vsub.f32 0.0, %v4712
        %v4717 = vsel %vm4713, %v4715, %v4711
        %v4718 = vsel %vm4714, %v4716, %v4712
        %v4719 = vadd.f32 %v4717, 1.0
        %v4720 = vadd.f32 %v4718, 1.0
        %v4721 = vmul.f32 %v4669, %v4719
        %v4722 = vmul.f32 %v4670, %v4720
        %v4723 = vpack.c.bf16 %v4722, %v4721
        %v4725 = vlaneseq
        %v4726 = vshrl.u32 %v4725, 7
        %v4727 = vsub.s32 0, %v4726
        %v4728 = vrot.slane %v3375, %v4727
        %v4746 = vunpack.c.l.b16 %v3359
        %v4747 = vunpack.c.l.b16 %v3360
        %v4748 = vunpack.c.l.b16 %v3361
        %v4749 = vunpack.c.l.b16 %v3362
        %v4750 = vunpack.c.l.b16 %v3363
        %v4751 = vunpack.c.l.b16 %v3364
        %v4752 = vunpack.c.l.b16 %v3365
        %v4753 = vunpack.c.l.b16 %v3366
        %v4754 = vunpack.c.l.b16 %v3367
        %v4755 = vunpack.c.l.b16 %v3368
        %v4756 = vunpack.c.l.b16 %v3369
        %v4757 = vunpack.c.l.b16 %v3370
        %v4758 = vunpack.c.l.b16 %v3371
        %v4759 = vunpack.c.l.b16 %v3372
        %v4760 = vunpack.c.l.b16 %v3373
        %v4761 = vunpack.c.l.b16 %v3374
        %v4762 = vpack.c.b16 %v4747, %v4746
        %v4763 = vpack.c.b16 %v4749, %v4748
        %v4764 = vpack.c.b16 %v4751, %v4750
        %v4765 = vpack.c.b16 %v4753, %v4752
        %v4766 = vpack.c.b16 %v4755, %v4754
        %v4767 = vpack.c.b16 %v4757, %v4756
        %v4768 = vpack.c.b16 %v4759, %v4758
        %v4769 = vpack.c.b16 %v4761, %v4760
        %4778 = vmatprep.subr.bf16.mxu0 0
        %4779 = vmatpush1.bf16.msra.mxu0 %v4762
        %4780 = vmatprep.subr.bf16.mxu0 0
        %4781 = vmatpush1.bf16.msra.mxu0 %v4763
        %4782 = vmatprep.subr.bf16.mxu0 0
        %4783 = vmatpush1.bf16.msra.mxu0 %v4764
        %4784 = vmatprep.subr.bf16.mxu0 0
        %4785 = vmatpush1.bf16.msra.mxu0 %v4765
        %4786 = vmatprep.subr.bf16.mxu0 0
        %4787 = vmatpush1.bf16.msra.mxu0 %v4766
        %4788 = vmatprep.subr.bf16.mxu0 0
        %4789 = vmatpush1.bf16.msra.mxu0 %v4767
        %4790 = vmatprep.subr.bf16.mxu0 0
        %4791 = vmatpush1.bf16.msra.mxu0 %v4768
        %4792 = vmatprep.subr.bf16.mxu0 0
        %4793 = vmatpush1.bf16.msra.mxu0 %v4769
        %4794 = vmatprep.subr.bf16.mxu0 0
        %4795 = vmatpush1.bf16.msra.mxu0 0
        %4796 = vmatprep.subr.bf16.mxu0 0
        %4797 = vmatpush1.bf16.msra.mxu0 0
        %4798 = vmatprep.subr.bf16.mxu0 0
        %4799 = vmatpush1.bf16.msra.mxu0 0
        %4800 = vmatprep.subr.bf16.mxu0 0
        %4801 = vmatpush1.bf16.msra.mxu0 0
        %4802 = vmatprep.subr.bf16.mxu0 0
        %4803 = vmatpush1.bf16.msra.mxu0 0
        %4804 = vmatprep.subr.bf16.mxu0 0
        %4805 = vmatpush1.bf16.msra.mxu0 0
        %4806 = vmatprep.subr.bf16.mxu0 0
        %4807 = vmatpush1.bf16.msra.mxu0 0
        %4808 = vmatprep.subr.bf16.mxu0 0
        %4809 = vmatpush1.bf16.msra.mxu0 0
        %4810 = vmatprep.mubr.bf16.mxu0 0
        %4811 = vmatmul.mubr.bf16.gmra.mrb[0].mxu0 %v4723
        %v4812 = vpop.f32.mrb[0].mxu0
        %v4813 = vadd.f32 %v4728, %v4812
        %v4814 = vpop.f32.mrb[0].mxu0
        %v4815 = vpop.f32.mrb[0].mxu0
        %v4816 = vadd.f32 %v4728, %v4815
        %v4817 = vpop.f32.mrb[0].mxu0
        %4818 = vdwg.mxu0
        %v4819 = vadd.f32 %v4562, %v4813
        %v4820 = vadd.f32 %v4563, %v4816
        %4821 = vst.msk [vmem:[#allocation2] sm:$0xff] %vm3376, %v4819
        %4822 = vst.msk [vmem:[#allocation2 + $0x8] sm:$0xff] %vm3376, %v4820
        %p4823 = scmp.eq.s32.totalorder %s116, 3
        // Predicated region
        $region213: #{rcw_forward.1} parent=207 // pred_check
          %p4824 = pneg %p4823
        $region214: #{rcw_forward.1} parent=207 // pred_check_branch
          %4826 = sbr.rel (%p4824) target = $region216
        $region215: #{rcw_forward.1} parent=207 // pred_region
          %v4827 = vld [vmem:[#allocation2] sm:$0xff]
          %v4828 = vld [vmem:[#allocation2 + $0x8] sm:$0xff]
          %v4829 = vld [vmem:[%s1656] sm:$0xff]
          %v4830 = vld [vmem:[%s1656 + $0x8] sm:$0xff]
          %v4831 = vld [vmem:[%s1656 + $0x10] sm:$0xff]
          %v4832 = vld [vmem:[%s1656 + $0x18] sm:$0xff]
          %v4833 = vld [vmem:[%s65] sm:$0x1]
          %v4834 = vld [vmem:[%s67] sm:$0x1]
          %v4835 = vld [vmem:[%s69] sm:$0x1]
          %v4836 = vld [vmem:[%s71] sm:$0x1]
          %v4837 = vld [vmem:[%s73] sm:$0xf]
          %v4838 = vld [vmem:[%s73 + $0x4] sm:$0xf]
          %v4839 = vld [vmem:[%s73 + $0x8] sm:$0xf]
          %v4840 = vld [vmem:[%s73 + $0xc] sm:$0xf]
          %v4841 = vld [vmem:[%s73 + $0x10] sm:$0xf]
          %v4842 = vld [vmem:[%s73 + $0x14] sm:$0xf]
          %v4843 = vld [vmem:[%s73 + $0x18] sm:$0xf]
          %v4844 = vld [vmem:[%s73 + $0x1c] sm:$0xf]
          %v4845 = vld [vmem:[%s75] sm:$0xf]
          %v4846 = vld [vmem:[%s75 + $0x4] sm:$0xf]
          %v4847 = vld [vmem:[%s75 + $0x8] sm:$0xf]
          %v4848 = vld [vmem:[%s75 + $0xc] sm:$0xf]
          %v4849 = vld [vmem:[%s77] sm:$0xf]
          %v4850 = vld [vmem:[%s77 + $0x4] sm:$0xf]
          %v4851 = vld [vmem:[%s77 + $0x8] sm:$0xf]
          %v4852 = vld [vmem:[%s77 + $0xc] sm:$0xf]
          %v4853 = vld [vmem:[%s79] sm:$0xf]
          %v4854 = vld [vmem:[%s79 + $0x4] sm:$0xf]
          %v4855 = vld [vmem:[%s79 + $0x8] sm:$0xf]
          %v4856 = vld [vmem:[%s79 + $0xc] sm:$0xf]
          %v4857 = vld [vmem:[%s79 + $0x10] sm:$0xf]
          %v4858 = vld [vmem:[%s79 + $0x14] sm:$0xf]
          %v4859 = vld [vmem:[%s79 + $0x18] sm:$0xf]
          %v4860 = vld [vmem:[%s79 + $0x1c] sm:$0xf]
          %v4861 = vld [vmem:[%s81] sm:$0x1]
          %v4862 = vld [vmem:[%s83] sm:$0x1]
          %v4863 = vld [vmem:[%s85] sm:$0x1]
          %v4864 = vld [vmem:[%s87] sm:$0xff]
          %v4865 = vld [vmem:[%s87 + $0x8] sm:$0xff]
          %v4866 = vld [vmem:[%s87 + $0x10] sm:$0xff]
          %v4867 = vld [vmem:[%s87 + $0x18] sm:$0xff]
          %v4868 = vld [vmem:[%s87 + $0x20] sm:$0xff]
          %v4869 = vld [vmem:[%s87 + $0x28] sm:$0xff]
          %v4870 = vld [vmem:[%s87 + $0x30] sm:$0xff]
          %v4871 = vld [vmem:[%s87 + $0x38] sm:$0xff]
          %v4872 = vld [vmem:[%s89] sm:$0x3]
          %v4873 = vld [vmem:[%s91] sm:$0xf]
          %v4874 = vld [vmem:[%s91 + $0x4] sm:$0xf]
          %v4875 = vld [vmem:[%s91 + $0x8] sm:$0xf]
          %v4876 = vld [vmem:[%s91 + $0xc] sm:$0xf]
          %v4877 = vld [vmem:[%s91 + $0x10] sm:$0xf]
          %v4878 = vld [vmem:[%s91 + $0x14] sm:$0xf]
          %v4879 = vld [vmem:[%s91 + $0x18] sm:$0xf]
          %v4880 = vld [vmem:[%s91 + $0x1c] sm:$0xf]
          %v4881 = vld [vmem:[%s91 + $0x20] sm:$0xf]
          %v4882 = vld [vmem:[%s91 + $0x24] sm:$0xf]
          %v4883 = vld [vmem:[%s91 + $0x28] sm:$0xf]
          %v4884 = vld [vmem:[%s91 + $0x2c] sm:$0xf]
          %v4885 = vld [vmem:[%s91 + $0x30] sm:$0xf]
          %v4886 = vld [vmem:[%s91 + $0x34] sm:$0xf]
          %v4887 = vld [vmem:[%s91 + $0x38] sm:$0xf]
          %v4888 = vld [vmem:[%s91 + $0x3c] sm:$0xf]
          %v4889 = vld [vmem:[%s91 + $0x40] sm:$0xf]
          %v4890 = vld [vmem:[%s91 + $0x44] sm:$0xf]
          %v4891 = vld [vmem:[%s91 + $0x48] sm:$0xf]
          %v4892 = vld [vmem:[%s91 + $0x4c] sm:$0xf]
          %v4893 = vld [vmem:[%s91 + $0x50] sm:$0xf]
          %v4894 = vld [vmem:[%s91 + $0x54] sm:$0xf]
          %v4895 = vld [vmem:[%s91 + $0x58] sm:$0xf]
          %v4896 = vld [vmem:[%s91 + $0x5c] sm:$0xf]
          %v4897 = vld [vmem:[%s91 + $0x60] sm:$0xf]
          %v4898 = vld [vmem:[%s91 + $0x64] sm:$0xf]
          %v4899 = vld [vmem:[%s91 + $0x68] sm:$0xf]
          %v4900 = vld [vmem:[%s91 + $0x6c] sm:$0xf]
          %v4901 = vld [vmem:[%s91 + $0x70] sm:$0xf]
          %v4902 = vld [vmem:[%s91 + $0x74] sm:$0xf]
          %v4903 = vld [vmem:[%s91 + $0x78] sm:$0xf]
          %v4904 = vld [vmem:[%s91 + $0x7c] sm:$0xf]
          %v4905 = vld [vmem:[%s93] sm:$0x1]
          %vm4906 = vcmask 523264
          %v4907 = vsel %vm4906, %v4829, 0.0
          %4908 = vadd.xlane.f32.xlu0 %v4907
          %v4909 = vpop.xlane.xlu0 %4908
          %v4910 = vsel %vm4906, %v4830, 0.0
          %4911 = vadd.xlane.f32.xlu0 %v4910
          %v4912 = vpop.xlane.xlu0 %4911
          %v4913 = vsel %vm4906, %v4831, 0.0
          %4914 = vadd.xlane.f32.xlu0 %v4913
          %v4915 = vpop.xlane.xlu0 %4914
          %v4916 = vsel %vm4906, %v4832, 0.0
          %4917 = vadd.xlane.f32.xlu0 %v4916
          %v4918 = vpop.xlane.xlu0 %4917
          %v4919 = vrcp.pop 64.0
          %v4920 = vmul.f32 %v4909, %v4919
          %v4921 = vmul.f32 %v4912, %v4919
          %v4922 = vmul.f32 %v4915, %v4919
          %v4923 = vmul.f32 %v4918, %v4919
          %v4924 = vsub.f32 %v4829, %v4920
          %v4925 = vsub.f32 %v4830, %v4921
          %v4926 = vsub.f32 %v4831, %v4922
          %v4927 = vsub.f32 %v4832, %v4923
          %v4928 = vmul.f32 %v4924, %v4924
          %v4929 = vmul.f32 %v4925, %v4925
          %v4930 = vmul.f32 %v4926, %v4926
          %v4931 = vmul.f32 %v4927, %v4927
          %v4932 = vsel %vm4906, %v4928, 0.0
          %4933 = vadd.xlane.f32.xlu0 %v4932
          %v4934 = vpop.xlane.xlu0 %4933
          %v4935 = vsel %vm4906, %v4929, 0.0
          %4936 = vadd.xlane.f32.xlu0 %v4935
          %v4937 = vpop.xlane.xlu0 %4936
          %v4938 = vsel %vm4906, %v4930, 0.0
          %4939 = vadd.xlane.f32.xlu0 %v4938
          %v4940 = vpop.xlane.xlu0 %4939
          %v4941 = vsel %vm4906, %v4931, 0.0
          %4942 = vadd.xlane.f32.xlu0 %v4941
          %v4943 = vpop.xlane.xlu0 %4942
          %v4944 = vmul.f32 %v4934, %v4919
          %v4945 = vmul.f32 %v4937, %v4919
          %v4946 = vmul.f32 %v4940, %v4919
          %v4947 = vmul.f32 %v4943, %v4919
          %v4948 = vadd.f32 %v4944, 1e-05
          %v4949 = vadd.f32 %v4945, 1e-05
          %v4950 = vadd.f32 %v4946, 1e-05
          %v4951 = vadd.f32 %v4947, 1e-05
          %v4952 = vrsqrt.pop %v4948
          %v4953 = vrsqrt.pop %v4949
          %v4954 = vrsqrt.pop %v4950
          %v4955 = vrsqrt.pop %v4951
          %v4956 = vmul.f32 %v4924, %v4952
          %v4957 = vmul.f32 %v4925, %v4953
          %v4958 = vmul.f32 %v4926, %v4954
          %v4959 = vmul.f32 %v4927, %v4955
          %v4961 = vlaneseq
          %v4962 = vshrl.u32 %v4961, 7
          %v4963 = vsub.s32 0, %v4962
          %v4964 = vrot.slane %v4833, %v4963
          %v4966 = vmul.f32 %v4956, %v4964
          %v4967 = vmul.f32 %v4957, %v4964
          %v4968 = vmul.f32 %v4958, %v4964
          %v4969 = vmul.f32 %v4959, %v4964
          %v4971 = vlaneseq
          %v4972 = vshrl.u32 %v4971, 7
          %v4973 = vsub.s32 0, %v4972
          %v4974 = vrot.slane %v4834, %v4973
          %v4976 = vadd.f32 %v4966, %v4974
          %v4977 = vadd.f32 %v4967, %v4974
          %v4978 = vadd.f32 %v4968, %v4974
          %v4979 = vadd.f32 %v4969, %v4974
          %v4980 = vsel %vm3376, %v4827, 0.0
          %4981 = vadd.xlane.f32.xlu0 %v4980
          %v4982 = vpop.xlane.xlu0 %4981
          %v4983 = vsel %vm3376, %v4828, 0.0
          %4984 = vadd.xlane.f32.xlu0 %v4983
          %v4985 = vpop.xlane.xlu0 %4984
          %v4986 = vmul.f32 %v4982, %v3383
          %v4987 = vmul.f32 %v4985, %v3383
          %v4988 = vsub.f32 %v4827, %v4986
          %v4989 = vsub.f32 %v4828, %v4987
          %v4990 = vmul.f32 %v4988, %v4988
          %v4991 = vmul.f32 %v4989, %v4989
          %v4992 = vsel %vm3376, %v4990, 0.0
          %4993 = vadd.xlane.f32.xlu0 %v4992
          %v4994 = vpop.xlane.xlu0 %4993
          %v4995 = vsel %vm3376, %v4991, 0.0
          %4996 = vadd.xlane.f32.xlu0 %v4995
          %v4997 = vpop.xlane.xlu0 %4996
          %v4998 = vmul.f32 %v4994, %v3383
          %v4999 = vmul.f32 %v4997, %v3383
          %v5000 = vadd.f32 %v4998, 1e-05
          %v5001 = vadd.f32 %v4999, 1e-05
          %v5002 = vrsqrt.pop %v5000
          %v5003 = vrsqrt.pop %v5001
          %v5004 = vmul.f32 %v4988, %v5002
          %v5005 = vmul.f32 %v4989, %v5003
          %v5007 = vlaneseq
          %v5008 = vshrl.u32 %v5007, 7
          %v5009 = vsub.s32 0, %v5008
          %v5010 = vrot.slane %v4835, %v5009
          %v5012 = vmul.f32 %v5004, %v5010
          %v5013 = vmul.f32 %v5005, %v5010
          %v5015 = vlaneseq
          %v5016 = vshrl.u32 %v5015, 7
          %v5017 = vsub.s32 0, %v5016
          %v5018 = vrot.slane %v4836, %v5017
          %v5020 = vadd.f32 %v5012, %v5018
          %v5021 = vadd.f32 %v5013, %v5018
          %v5022 = vpack.c.bf16 %v4977, %v4976
          %v5023 = vpack.c.bf16 %v4979, %v4978
          %v5032 = vunpack.c.l.b16 %v4837
          %v5033 = vunpack.c.l.b16 %v4838
          %v5034 = vunpack.c.l.b16 %v4839
          %v5035 = vunpack.c.l.b16 %v4840
          %v5036 = vunpack.c.l.b16 %v4841
          %v5037 = vunpack.c.l.b16 %v4842
          %v5038 = vunpack.c.l.b16 %v4843
          %v5039 = vunpack.c.l.b16 %v4844
          %v5040 = vpack.c.b16 %v5033, %v5032
          %v5041 = vpack.c.b16 %v5035, %v5034
          %v5042 = vpack.c.b16 %v5037, %v5036
          %v5043 = vpack.c.b16 %v5039, %v5038
          %v5049 = vsel %vm4906, %v5022, 0
          %v5052 = vsel %vm4906, %v5023, 0
          %5054 = vmatprep.subr.bf16.mxu0 0
          %5055 = vmatpush1.bf16.msra.mxu0 %v5040
          %5056 = vmatprep.subr.bf16.mxu0 0
          %5057 = vmatpush1.bf16.msra.mxu0 %v5041
          %5058 = vmatprep.subr.bf16.mxu0 0
          %5059 = vmatpush1.bf16.msra.mxu0 %v5042
          %5060 = vmatprep.subr.bf16.mxu0 0
          %5061 = vmatpush1.bf16.msra.mxu0 %v5043
          %5062 = vmatprep.subr.bf16.mxu0 0
          %5063 = vmatpush1.bf16.msra.mxu0 0
          %5064 = vmatprep.subr.bf16.mxu0 0
          %5065 = vmatpush1.bf16.msra.mxu0 0
          %5066 = vmatprep.subr.bf16.mxu0 0
          %5067 = vmatpush1.bf16.msra.mxu0 0
          %5068 = vmatprep.subr.bf16.mxu0 0
          %5069 = vmatpush1.bf16.msra.mxu0 0
          %5070 = vmatprep.subr.bf16.mxu0 0
          %5071 = vmatpush1.bf16.msra.mxu0 0
          %5072 = vmatprep.subr.bf16.mxu0 0
          %5073 = vmatpush1.bf16.msra.mxu0 0
          %5074 = vmatprep.subr.bf16.mxu0 0
          %5075 = vmatpush1.bf16.msra.mxu0 0
          %5076 = vmatprep.subr.bf16.mxu0 0
          %5077 = vmatpush1.bf16.msra.mxu0 0
          %5078 = vmatprep.subr.bf16.mxu0 0
          %5079 = vmatpush1.bf16.msra.mxu0 0
          %5080 = vmatprep.subr.bf16.mxu0 0
          %5081 = vmatpush1.bf16.msra.mxu0 0
          %5082 = vmatprep.subr.bf16.mxu0 0
          %5083 = vmatpush1.bf16.msra.mxu0 0
          %5084 = vmatprep.subr.bf16.mxu0 0
          %5085 = vmatpush1.bf16.msra.mxu0 0
          %5086 = vmatprep.mubr.bf16.mxu0 0
          %5087 = vmatmul.mubr.bf16.gmra.mrb[0].mxu0 %v5049
          %v5088 = vpop.f32.mrb[0].mxu0
          %v5089 = vadd.f32 0.0, %v5088
          %v5090 = vpop.f32.mrb[0].mxu0
          %v5091 = vpop.f32.mrb[0].mxu0
          %v5092 = vadd.f32 0.0, %v5091
          %v5093 = vpop.f32.mrb[0].mxu0
          %5094 = vmatprep.mubr.bf16.mxu0 0
          %5095 = vmatmul.mubr.bf16.gmra.mrb[0].mxu0 %v5052
          %v5096 = vpop.f32.mrb[0].mxu0
          %v5097 = vadd.f32 0.0, %v5096
          %v5098 = vpop.f32.mrb[0].mxu0
          %v5099 = vpop.f32.mrb[0].mxu0
          %v5100 = vadd.f32 0.0, %v5099
          %v5101 = vpop.f32.mrb[0].mxu0
          %5102 = vdwg.mxu0
          %v5103 = vmul.f32 %v5089, 0.25
          %v5104 = vmul.f32 %v5092, 0.25
          %v5105 = vmul.f32 %v5097, 0.25
          %v5106 = vmul.f32 %v5100, 0.25
          %v5107 = vpack.c.bf16 %v5021, %v5020
          %v5112 = vunpack.c.l.b16 %v4845
          %v5113 = vunpack.c.l.b16 %v4846
          %v5114 = vunpack.c.l.b16 %v4847
          %v5115 = vunpack.c.l.b16 %v4848
          %v5116 = vpack.c.b16 %v5113, %v5112
          %v5117 = vpack.c.b16 %v5115, %v5114
          %v5121 = vsel %vm3376, %v5107, 0
          %5123 = vmatprep.subr.bf16.mxu0 0
          %5124 = vmatpush1.bf16.msra.mxu0 %v5116
          %5125 = vmatprep.subr.bf16.mxu0 0
          %5126 = vmatpush1.bf16.msra.mxu0 %v5117
          %5127 = vmatprep.subr.bf16.mxu0 0
          %5128 = vmatpush1.bf16.msra.mxu0 0
          %5129 = vmatprep.subr.bf16.mxu0 0
          %5130 = vmatpush1.bf16.msra.mxu0 0
          %5131 = vmatprep.subr.bf16.mxu0 0
          %5132 = vmatpush1.bf16.msra.mxu0 0
          %5133 = vmatprep.subr.bf16.mxu0 0
          %5134 = vmatpush1.bf16.msra.mxu0 0
          %5135 = vmatprep.subr.bf16.mxu0 0
          %5136 = vmatpush1.bf16.msra.mxu0 0
          %5137 = vmatprep.subr.bf16.mxu0 0
          %5138 = vmatpush1.bf16.msra.mxu0 0
          %5139 = vmatprep.subr.bf16.mxu0 0
          %5140 = vmatpush1.bf16.msra.mxu0 0
          %5141 = vmatprep.subr.bf16.mxu0 0
          %5142 = vmatpush1.bf16.msra.mxu0 0
          %5143 = vmatprep.subr.bf16.mxu0 0
          %5144 = vmatpush1.bf16.msra.mxu0 0
          %5145 = vmatprep.subr.bf16.mxu0 0
          %5146 = vmatpush1.bf16.msra.mxu0 0
          %5147 = vmatprep.subr.bf16.mxu0 0
          %5148 = vmatpush1.bf16.msra.mxu0 0
          %5149 = vmatprep.subr.bf16.mxu0 0
          %5150 = vmatpush1.bf16.msra.mxu0 0
          %5151 = vmatprep.subr.bf16.mxu0 0
          %5152 = vmatpush1.bf16.msra.mxu0 0
          %5153 = vmatprep.subr.bf16.mxu0 0
          %5154 = vmatpush1.bf16.msra.mxu0 0
          %5155 = vmatprep.mubr.bf16.mxu0 0
          %5156 = vmatmul.mubr.bf16.gmra.mrb[0].mxu0 %v5121
          %v5157 = vpop.f32.mrb[0].mxu0
          %v5158 = vadd.f32 0.0, %v5157
          %v5159 = vpop.f32.mrb[0].mxu0
          %v5160 = vpop.f32.mrb[0].mxu0
          %v5161 = vadd.f32 0.0, %v5160
          %v5162 = vpop.f32.mrb[0].mxu0
          %5163 = vdwg.mxu0
          %v5168 = vunpack.c.l.b16 %v4849
          %v5169 = vunpack.c.l.b16 %v4850
          %v5170 = vunpack.c.l.b16 %v4851
          %v5171 = vunpack.c.l.b16 %v4852
          %v5172 = vpack.c.b16 %v5169, %v5168
          %v5173 = vpack.c.b16 %v5171, %v5170
          %5176 = vmatprep.subr.bf16.mxu0 0
          %5177 = vmatpush1.bf16.msra.mxu0 %v5172
          %5178 = vmatprep.subr.bf16.mxu0 0
          %5179 = vmatpush1.bf16.msra.mxu0 %v5173
          %5180 = vmatprep.subr.bf16.mxu0 0
          %5181 = vmatpush1.bf16.msra.mxu0 0
          %5182 = vmatprep.subr.bf16.mxu0 0
          %5183 = vmatpush1.bf16.msra.mxu0 0
          %5184 = vmatprep.subr.bf16.mxu0 0
          %5185 = vmatpush1.bf16.msra.mxu0 0
          %5186 = vmatprep.subr.bf16.mxu0 0
          %5187 = vmatpush1.bf16.msra.mxu0 0
          %5188 = vmatprep.subr.bf16.mxu0 0
          %5189 = vmatpush1.bf16.msra.mxu0 0
          %5190 = vmatprep.subr.bf16.mxu0 0
          %5191 = vmatpush1.bf16.msra.mxu0 0
          %5192 = vmatprep.subr.bf16.mxu0 0
          %5193 = vmatpush1.bf16.msra.mxu0 0
          %5194 = vmatprep.subr.bf16.mxu0 0
          %5195 = vmatpush1.bf16.msra.mxu0 0
          %5196 = vmatprep.subr.bf16.mxu0 0
          %5197 = vmatpush1.bf16.msra.mxu0 0
          %5198 = vmatprep.subr.bf16.mxu0 0
          %5199 = vmatpush1.bf16.msra.mxu0 0
          %5200 = vmatprep.subr.bf16.mxu0 0
          %5201 = vmatpush1.bf16.msra.mxu0 0
          %5202 = vmatprep.subr.bf16.mxu0 0
          %5203 = vmatpush1.bf16.msra.mxu0 0
          %5204 = vmatprep.subr.bf16.mxu0 0
          %5205 = vmatpush1.bf16.msra.mxu0 0
          %5206 = vmatprep.subr.bf16.mxu0 0
          %5207 = vmatpush1.bf16.msra.mxu0 0
          %5208 = vmatprep.mubr.bf16.mxu0 0
          %5209 = vmatmul.mubr.bf16.gmra.mrb[0].mxu0 %v5121
          %v5210 = vpop.f32.mrb[0].mxu0
          %v5211 = vadd.f32 0.0, %v5210
          %v5212 = vpop.f32.mrb[0].mxu0
          %v5213 = vpop.f32.mrb[0].mxu0
          %v5214 = vadd.f32 0.0, %v5213
          %v5215 = vpop.f32.mrb[0].mxu0
          %5216 = vdwg.mxu0
          %v5217 = vpack.c.bf16 %v5104, %v5103
          %v5218 = vpack.c.bf16 %v5106, %v5105
          %v5219 = vpack.c.bf16 %v5158, %v5158
          %v5220 = vpack.c.bf16 %v5161, %v5161
          %v5221 = vpack.c.bf16 %v5211, %v5211
          %v5222 = vpack.c.bf16 %v5214, %v5214
          %v5224 = vsel %vm4493, %v5217, 0
          %v5227 = vsel %vm4493, %v5219, 0
          %5229 = vmatprep.subr.bf16.mxu0 0
          %5230 = vmatpush1.bf16.xpose.msra.mxu0 %v5227
          %5231 = vmatprep.subr.bf16.mxu0 0
          %5232 = vmatpush1.bf16.xpose.msra.mxu0 0
          %5233 = vmatprep.subr.bf16.mxu0 0
          %5234 = vmatpush1.bf16.xpose.msra.mxu0 0
          %5235 = vmatprep.subr.bf16.mxu0 0
          %5236 = vmatpush1.bf16.xpose.msra.mxu0 0
          %5237 = vmatprep.subr.bf16.mxu0 0
          %5238 = vmatpush1.bf16.xpose.msra.mxu0 0
          %5239 = vmatprep.subr.bf16.mxu0 0
          %5240 = vmatpush1.bf16.xpose.msra.mxu0 0
          %5241 = vmatprep.subr.bf16.mxu0 0
          %5242 = vmatpush1.bf16.xpose.msra.mxu0 0
          %5243 = vmatprep.subr.bf16.mxu0 0
          %5244 = vmatpush1.bf16.xpose.msra.mxu0 0
          %5245 = vmatprep.subr.bf16.mxu0 0
          %5246 = vmatpush1.bf16.xpose.msra.mxu0 0
          %5247 = vmatprep.subr.bf16.mxu0 0
          %5248 = vmatpush1.bf16.xpose.msra.mxu0 0
          %5249 = vmatprep.subr.bf16.mxu0 0
          %5250 = vmatpush1.bf16.xpose.msra.mxu0 0
          %5251 = vmatprep.subr.bf16.mxu0 0
          %5252 = vmatpush1.bf16.xpose.msra.mxu0 0
          %5253 = vmatprep.subr.bf16.mxu0 0
          %5254 = vmatpush1.bf16.xpose.msra.mxu0 0
          %5255 = vmatprep.subr.bf16.mxu0 0
          %5256 = vmatpush1.bf16.xpose.msra.mxu0 0
          %5257 = vmatprep.subr.bf16.mxu0 0
          %5258 = vmatpush1.bf16.xpose.msra.mxu0 0
          %5259 = vmatprep.subr.bf16.mxu0 0
          %5260 = vmatpush1.bf16.xpose.msra.mxu0 0
          %5261 = vmatprep.mubr.bf16.mxu0 0
          %5262 = vmatmul.mubr.bf16.gmra.mrb[0].mxu0 %v5224
          %v5263 = vpop.f32.mrb[0].mxu0
          %v5264 = vadd.f32 0.0, %v5263
          %v5265 = vpop.f32.mrb[0].mxu0
          %v5266 = vpop.f32.mrb[0].mxu0
          %v5267 = vadd.f32 0.0, %v5266
          %v5268 = vpop.f32.mrb[0].mxu0
          %5269 = vdwg.mxu0
          %v5271 = vsel %vm4493, %v5218, 0
          %v5274 = vsel %vm4493, %v5220, 0
          %5276 = vmatprep.subr.bf16.mxu0 0
          %5277 = vmatpush1.bf16.xpose.msra.mxu0 %v5274
          %5278 = vmatprep.subr.bf16.mxu0 0
          %5279 = vmatpush1.bf16.xpose.msra.mxu0 0
          %5280 = vmatprep.subr.bf16.mxu0 0
          %5281 = vmatpush1.bf16.xpose.msra.mxu0 0
          %5282 = vmatprep.subr.bf16.mxu0 0
          %5283 = vmatpush1.bf16.xpose.msra.mxu0 0
          %5284 = vmatprep.subr.bf16.mxu0 0
          %5285 = vmatpush1.bf16.xpose.msra.mxu0 0
          %5286 = vmatprep.subr.bf16.mxu0 0
          %5287 = vmatpush1.bf16.xpose.msra.mxu0 0
          %5288 = vmatprep.subr.bf16.mxu0 0
          %5289 = vmatpush1.bf16.xpose.msra.mxu0 0
          %5290 = vmatprep.subr.bf16.mxu0 0
          %5291 = vmatpush1.bf16.xpose.msra.mxu0 0
          %5292 = vmatprep.subr.bf16.mxu0 0
          %5293 = vmatpush1.bf16.xpose.msra.mxu0 0
          %5294 = vmatprep.subr.bf16.mxu0 0
          %5295 = vmatpush1.bf16.xpose.msra.mxu0 0
          %5296 = vmatprep.subr.bf16.mxu0 0
          %5297 = vmatpush1.bf16.xpose.msra.mxu0 0
          %5298 = vmatprep.subr.bf16.mxu0 0
          %5299 = vmatpush1.bf16.xpose.msra.mxu0 0
          %5300 = vmatprep.subr.bf16.mxu0 0
          %5301 = vmatpush1.bf16.xpose.msra.mxu0 0
          %5302 = vmatprep.subr.bf16.mxu0 0
          %5303 = vmatpush1.bf16.xpose.msra.mxu0 0
          %5304 = vmatprep.subr.bf16.mxu0 0
          %5305 = vmatpush1.bf16.xpose.msra.mxu0 0
          %5306 = vmatprep.subr.bf16.mxu0 0
          %5307 = vmatpush1.bf16.xpose.msra.mxu0 0
          %5308 = vmatprep.mubr.bf16.mxu0 0
          %5309 = vmatmul.mubr.bf16.gmra.mrb[0].mxu0 %v5271
          %v5310 = vpop.f32.mrb[0].mxu0
          %v5311 = vadd.f32 0.0, %v5310
          %v5312 = vpop.f32.mrb[0].mxu0
          %v5313 = vpop.f32.mrb[0].mxu0
          %v5314 = vadd.f32 0.0, %v5313
          %v5315 = vpop.f32.mrb[0].mxu0
          %5316 = vdwg.mxu0
          %v5317 = vsel %vm3591, %v5264, -inf
          %5318 = vmax.xlane.f32.xlu0 %v5317
          %v5319 = vpop.xlane.xlu0 %5318
          %v5320 = vsel %vm3591, %v5267, -inf
          %5321 = vmax.xlane.f32.xlu0 %v5320
          %v5322 = vpop.xlane.xlu0 %5321
          %v5323 = vsel %vm3591, %v5311, -inf
          %5324 = vmax.xlane.f32.xlu0 %v5323
          %v5325 = vpop.xlane.xlu0 %5324
          %v5326 = vsel %vm3591, %v5314, -inf
          %5327 = vmax.xlane.f32.xlu0 %v5326
          %v5328 = vpop.xlane.xlu0 %5327
          %v5329 = vsub.f32 %v5264, %v5319
          %v5330 = vsub.f32 %v5267, %v5322
          %v5331 = vsub.f32 %v5311, %v5325
          %v5332 = vsub.f32 %v5314, %v5328
          %v5333 = vmul.f32 %v5329, 1.442695
          %v5334 = vpow.pop %v5333
          %v5335 = vmul.f32 %v5330, 1.442695
          %v5336 = vpow.pop %v5335
          %v5337 = vmul.f32 %v5331, 1.442695
          %v5338 = vpow.pop %v5337
          %v5339 = vmul.f32 %v5332, 1.442695
          %v5340 = vpow.pop %v5339
          %v5341 = vsel %vm3591, %v5334, 0.0
          %5342 = vadd.xlane.f32.xlu0 %v5341
          %v5343 = vpop.xlane.xlu0 %5342
          %v5344 = vsel %vm3591, %v5336, 0.0
          %5345 = vadd.xlane.f32.xlu0 %v5344
          %v5346 = vpop.xlane.xlu0 %5345
          %v5347 = vsel %vm3591, %v5338, 0.0
          %5348 = vadd.xlane.f32.xlu0 %v5347
          %v5349 = vpop.xlane.xlu0 %5348
          %v5350 = vsel %vm3591, %v5340, 0.0
          %5351 = vadd.xlane.f32.xlu0 %v5350
          %v5352 = vpop.xlane.xlu0 %5351
          %v5353 = vrcp.pop %v5343
          %v5354 = vrcp.pop %v5346
          %v5355 = vrcp.pop %v5349
          %v5356 = vrcp.pop %v5352
          %v5357 = vmul.f32 %v5334, %v5353
          %v5358 = vmul.f32 %v5336, %v5354
          %v5359 = vmul.f32 %v5338, %v5355
          %v5360 = vmul.f32 %v5340, %v5356
          %v5361 = vpack.c.bf16 %v5358, %v5357
          %v5362 = vpack.c.bf16 %v5360, %v5359
          %v5364 = vsel %vm3591, %v5361, 0
          %v5367 = vsel %vm3711, %v5221, 0
          %5369 = vmatprep.subr.bf16.mxu0 0
          %5370 = vmatpush1.bf16.msra.mxu0 %v5367
          %5371 = vmatprep.subr.bf16.mxu0 0
          %5372 = vmatpush1.bf16.msra.mxu0 0
          %5373 = vmatprep.subr.bf16.mxu0 0
          %5374 = vmatpush1.bf16.msra.mxu0 0
          %5375 = vmatprep.subr.bf16.mxu0 0
          %5376 = vmatpush1.bf16.msra.mxu0 0
          %5377 = vmatprep.subr.bf16.mxu0 0
          %5378 = vmatpush1.bf16.msra.mxu0 0
          %5379 = vmatprep.subr.bf16.mxu0 0
          %5380 = vmatpush1.bf16.msra.mxu0 0
          %5381 = vmatprep.subr.bf16.mxu0 0
          %5382 = vmatpush1.bf16.msra.mxu0 0
          %5383 = vmatprep.subr.bf16.mxu0 0
          %5384 = vmatpush1.bf16.msra.mxu0 0
          %5385 = vmatprep.subr.bf16.mxu0 0
          %5386 = vmatpush1.bf16.msra.mxu0 0
          %5387 = vmatprep.subr.bf16.mxu0 0
          %5388 = vmatpush1.bf16.msra.mxu0 0
          %5389 = vmatprep.subr.bf16.mxu0 0
          %5390 = vmatpush1.bf16.msra.mxu0 0
          %5391 = vmatprep.subr.bf16.mxu0 0
          %5392 = vmatpush1.bf16.msra.mxu0 0
          %5393 = vmatprep.subr.bf16.mxu0 0
          %5394 = vmatpush1.bf16.msra.mxu0 0
          %5395 = vmatprep.subr.bf16.mxu0 0
          %5396 = vmatpush1.bf16.msra.mxu0 0
          %5397 = vmatprep.subr.bf16.mxu0 0
          %5398 = vmatpush1.bf16.msra.mxu0 0
          %5399 = vmatprep.subr.bf16.mxu0 0
          %5400 = vmatpush1.bf16.msra.mxu0 0
          %5401 = vmatprep.mubr.bf16.mxu0 0
          %5402 = vmatmul.mubr.bf16.gmra.mrb[0].mxu0 %v5364
          %v5403 = vpop.f32.mrb[0].mxu0
          %v5404 = vadd.f32 0.0, %v5403
          %v5405 = vpop.f32.mrb[0].mxu0
          %v5406 = vpop.f32.mrb[0].mxu0
          %v5407 = vadd.f32 0.0, %v5406
          %v5408 = vpop.f32.mrb[0].mxu0
          %5409 = vdwg.mxu0
          %v5411 = vsel %vm3591, %v5362, 0
          %v5414 = vsel %vm3711, %v5222, 0
          %5416 = vmatprep.subr.bf16.mxu0 0
          %5417 = vmatpush1.bf16.msra.mxu0 %v5414
          %5418 = vmatprep.subr.bf16.mxu0 0
          %5419 = vmatpush1.bf16.msra.mxu0 0
          %5420 = vmatprep.subr.bf16.mxu0 0
          %5421 = vmatpush1.bf16.msra.mxu0 0
          %5422 = vmatprep.subr.bf16.mxu0 0
          %5423 = vmatpush1.bf16.msra.mxu0 0
          %5424 = vmatprep.subr.bf16.mxu0 0
          %5425 = vmatpush1.bf16.msra.mxu0 0
          %5426 = vmatprep.subr.bf16.mxu0 0
          %5427 = vmatpush1.bf16.msra.mxu0 0
          %5428 = vmatprep.subr.bf16.mxu0 0
          %5429 = vmatpush1.bf16.msra.mxu0 0
          %5430 = vmatprep.subr.bf16.mxu0 0
          %5431 = vmatpush1.bf16.msra.mxu0 0
          %5432 = vmatprep.subr.bf16.mxu0 0
          %5433 = vmatpush1.bf16.msra.mxu0 0
          %5434 = vmatprep.subr.bf16.mxu0 0
          %5435 = vmatpush1.bf16.msra.mxu0 0
          %5436 = vmatprep.subr.bf16.mxu0 0
          %5437 = vmatpush1.bf16.msra.mxu0 0
          %5438 = vmatprep.subr.bf16.mxu0 0
          %5439 = vmatpush1.bf16.msra.mxu0 0
          %5440 = vmatprep.subr.bf16.mxu0 0
          %5441 = vmatpush1.bf16.msra.mxu0 0
          %5442 = vmatprep.subr.bf16.mxu0 0
          %5443 = vmatpush1.bf16.msra.mxu0 0
          %5444 = vmatprep.subr.bf16.mxu0 0
          %5445 = vmatpush1.bf16.msra.mxu0 0
          %5446 = vmatprep.subr.bf16.mxu0 0
          %5447 = vmatpush1.bf16.msra.mxu0 0
          %5448 = vmatprep.mubr.bf16.mxu0 0
          %5449 = vmatmul.mubr.bf16.gmra.mrb[0].mxu0 %v5411
          %v5450 = vpop.f32.mrb[0].mxu0
          %v5451 = vadd.f32 0.0, %v5450
          %v5452 = vpop.f32.mrb[0].mxu0
          %v5453 = vpop.f32.mrb[0].mxu0
          %v5454 = vadd.f32 0.0, %v5453
          %v5455 = vpop.f32.mrb[0].mxu0
          %5456 = vdwg.mxu0
          %5458 = vrot.lane.b32.xlu0 %v5217, 112
          %v5459 = vpop.permute.xlu0 %5458
          %5461 = vrot.lane.b32.xlu0 %v5219, 112
          %v5462 = vpop.permute.xlu0 %5461
          %v5464 = vsel %vm4493, %v5459, 0
          %v5467 = vsel %vm4493, %v5462, 0
          %5469 = vmatprep.subr.bf16.mxu0 0
          %5470 = vmatpush1.bf16.xpose.msra.mxu0 %v5467
          %5471 = vmatprep.subr.bf16.mxu0 0
          %5472 = vmatpush1.bf16.xpose.msra.mxu0 0
          %5473 = vmatprep.subr.bf16.mxu0 0
          %5474 = vmatpush1.bf16.xpose.msra.mxu0 0
          %5475 = vmatprep.subr.bf16.mxu0 0
          %5476 = vmatpush1.bf16.xpose.msra.mxu0 0
          %5477 = vmatprep.subr.bf16.mxu0 0
          %5478 = vmatpush1.bf16.xpose.msra.mxu0 0
          %5479 = vmatprep.subr.bf16.mxu0 0
          %5480 = vmatpush1.bf16.xpose.msra.mxu0 0
          %5481 = vmatprep.subr.bf16.mxu0 0
          %5482 = vmatpush1.bf16.xpose.msra.mxu0 0
          %5483 = vmatprep.subr.bf16.mxu0 0
          %5484 = vmatpush1.bf16.xpose.msra.mxu0 0
          %5485 = vmatprep.subr.bf16.mxu0 0
          %5486 = vmatpush1.bf16.xpose.msra.mxu0 0
          %5487 = vmatprep.subr.bf16.mxu0 0
          %5488 = vmatpush1.bf16.xpose.msra.mxu0 0
          %5489 = vmatprep.subr.bf16.mxu0 0
          %5490 = vmatpush1.bf16.xpose.msra.mxu0 0
          %5491 = vmatprep.subr.bf16.mxu0 0
          %5492 = vmatpush1.bf16.xpose.msra.mxu0 0
          %5493 = vmatprep.subr.bf16.mxu0 0
          %5494 = vmatpush1.bf16.xpose.msra.mxu0 0
          %5495 = vmatprep.subr.bf16.mxu0 0
          %5496 = vmatpush1.bf16.xpose.msra.mxu0 0
          %5497 = vmatprep.subr.bf16.mxu0 0
          %5498 = vmatpush1.bf16.xpose.msra.mxu0 0
          %5499 = vmatprep.subr.bf16.mxu0 0
          %5500 = vmatpush1.bf16.xpose.msra.mxu0 0
          %5501 = vmatprep.mubr.bf16.mxu0 0
          %5502 = vmatmul.mubr.bf16.gmra.mrb[0].mxu0 %v5464
          %v5503 = vpop.f32.mrb[0].mxu0
          %v5504 = vadd.f32 0.0, %v5503
          %v5505 = vpop.f32.mrb[0].mxu0
          %v5506 = vpop.f32.mrb[0].mxu0
          %v5507 = vadd.f32 0.0, %v5506
          %v5508 = vpop.f32.mrb[0].mxu0
          %5509 = vdwg.mxu0
          %5511 = vrot.lane.b32.xlu0 %v5218, 112
          %v5512 = vpop.permute.xlu0 %5511
          %5514 = vrot.lane.b32.xlu0 %v5220, 112
          %v5515 = vpop.permute.xlu0 %5514
          %v5517 = vsel %vm4493, %v5512, 0
          %v5520 = vsel %vm4493, %v5515, 0
          %5522 = vmatprep.subr.bf16.mxu0 0
          %5523 = vmatpush1.bf16.xpose.msra.mxu0 %v5520
          %5524 = vmatprep.subr.bf16.mxu0 0
          %5525 = vmatpush1.bf16.xpose.msra.mxu0 0
          %5526 = vmatprep.subr.bf16.mxu0 0
          %5527 = vmatpush1.bf16.xpose.msra.mxu0 0
          %5528 = vmatprep.subr.bf16.mxu0 0
          %5529 = vmatpush1.bf16.xpose.msra.mxu0 0
          %5530 = vmatprep.subr.bf16.mxu0 0
          %5531 = vmatpush1.bf16.xpose.msra.mxu0 0
          %5532 = vmatprep.subr.bf16.mxu0 0
          %5533 = vmatpush1.bf16.xpose.msra.mxu0 0
          %5534 = vmatprep.subr.bf16.mxu0 0
          %5535 = vmatpush1.bf16.xpose.msra.mxu0 0
          %5536 = vmatprep.subr.bf16.mxu0 0
          %5537 = vmatpush1.bf16.xpose.msra.mxu0 0
          %5538 = vmatprep.subr.bf16.mxu0 0
          %5539 = vmatpush1.bf16.xpose.msra.mxu0 0
          %5540 = vmatprep.subr.bf16.mxu0 0
          %5541 = vmatpush1.bf16.xpose.msra.mxu0 0
          %5542 = vmatprep.subr.bf16.mxu0 0
          %5543 = vmatpush1.bf16.xpose.msra.mxu0 0
          %5544 = vmatprep.subr.bf16.mxu0 0
          %5545 = vmatpush1.bf16.xpose.msra.mxu0 0
          %5546 = vmatprep.subr.bf16.mxu0 0
          %5547 = vmatpush1.bf16.xpose.msra.mxu0 0
          %5548 = vmatprep.subr.bf16.mxu0 0
          %5549 = vmatpush1.bf16.xpose.msra.mxu0 0
          %5550 = vmatprep.subr.bf16.mxu0 0
          %5551 = vmatpush1.bf16.xpose.msra.mxu0 0
          %5552 = vmatprep.subr.bf16.mxu0 0
          %5553 = vmatpush1.bf16.xpose.msra.mxu0 0
          %5554 = vmatprep.mubr.bf16.mxu0 0
          %5555 = vmatmul.mubr.bf16.gmra.mrb[0].mxu0 %v5517
          %v5556 = vpop.f32.mrb[0].mxu0
          %v5557 = vadd.f32 0.0, %v5556
          %v5558 = vpop.f32.mrb[0].mxu0
          %v5559 = vpop.f32.mrb[0].mxu0
          %v5560 = vadd.f32 0.0, %v5559
          %v5561 = vpop.f32.mrb[0].mxu0
          %5562 = vdwg.mxu0
          %v5563 = vsel %vm3591, %v5504, -inf
          %5564 = vmax.xlane.f32.xlu0 %v5563
          %v5565 = vpop.xlane.xlu0 %5564
          %v5566 = vsel %vm3591, %v5507, -inf
          %5567 = vmax.xlane.f32.xlu0 %v5566
          %v5568 = vpop.xlane.xlu0 %5567
          %v5569 = vsel %vm3591, %v5557, -inf
          %5570 = vmax.xlane.f32.xlu0 %v5569
          %v5571 = vpop.xlane.xlu0 %5570
          %v5572 = vsel %vm3591, %v5560, -inf
          %5573 = vmax.xlane.f32.xlu0 %v5572
          %v5574 = vpop.xlane.xlu0 %5573
          %v5575 = vsub.f32 %v5504, %v5565
          %v5576 = vsub.f32 %v5507, %v5568
          %v5577 = vsub.f32 %v5557, %v5571
          %v5578 = vsub.f32 %v5560, %v5574
          %v5579 = vmul.f32 %v5575, 1.442695
          %v5580 = vpow.pop %v5579
          %v5581 = vmul.f32 %v5576, 1.442695
          %v5582 = vpow.pop %v5581
          %v5583 = vmul.f32 %v5577, 1.442695
          %v5584 = vpow.pop %v5583
          %v5585 = vmul.f32 %v5578, 1.442695
          %v5586 = vpow.pop %v5585
          %v5587 = vsel %vm3591, %v5580, 0.0
          %5588 = vadd.xlane.f32.xlu0 %v5587
          %v5589 = vpop.xlane.xlu0 %5588
          %v5590 = vsel %vm3591, %v5582, 0.0
          %5591 = vadd.xlane.f32.xlu0 %v5590
          %v5592 = vpop.xlane.xlu0 %5591
          %v5593 = vsel %vm3591, %v5584, 0.0
          %5594 = vadd.xlane.f32.xlu0 %v5593
          %v5595 = vpop.xlane.xlu0 %5594
          %v5596 = vsel %vm3591, %v5586, 0.0
          %5597 = vadd.xlane.f32.xlu0 %v5596
          %v5598 = vpop.xlane.xlu0 %5597
          %v5599 = vrcp.pop %v5589
          %v5600 = vrcp.pop %v5592
          %v5601 = vrcp.pop %v5595
          %v5602 = vrcp.pop %v5598
          %v5603 = vmul.f32 %v5580, %v5599
          %v5604 = vmul.f32 %v5582, %v5600
          %v5605 = vmul.f32 %v5584, %v5601
          %v5606 = vmul.f32 %v5586, %v5602
          %v5607 = vpack.c.bf16 %v5604, %v5603
          %v5608 = vpack.c.bf16 %v5606, %v5605
          %5610 = vrot.lane.b32.xlu0 %v5221, 112
          %v5611 = vpop.permute.xlu0 %5610
          %v5613 = vsel %vm3591, %v5607, 0
          %v5616 = vsel %vm3711, %v5611, 0
          %5618 = vmatprep.subr.bf16.mxu0 0
          %5619 = vmatpush1.bf16.msra.mxu0 %v5616
          %5620 = vmatprep.subr.bf16.mxu0 0
          %5621 = vmatpush1.bf16.msra.mxu0 0
          %5622 = vmatprep.subr.bf16.mxu0 0
          %5623 = vmatpush1.bf16.msra.mxu0 0
          %5624 = vmatprep.subr.bf16.mxu0 0
          %5625 = vmatpush1.bf16.msra.mxu0 0
          %5626 = vmatprep.subr.bf16.mxu0 0
          %5627 = vmatpush1.bf16.msra.mxu0 0
          %5628 = vmatprep.subr.bf16.mxu0 0
          %5629 = vmatpush1.bf16.msra.mxu0 0
          %5630 = vmatprep.subr.bf16.mxu0 0
          %5631 = vmatpush1.bf16.msra.mxu0 0
          %5632 = vmatprep.subr.bf16.mxu0 0
          %5633 = vmatpush1.bf16.msra.mxu0 0
          %5634 = vmatprep.subr.bf16.mxu0 0
          %5635 = vmatpush1.bf16.msra.mxu0 0
          %5636 = vmatprep.subr.bf16.mxu0 0
          %5637 = vmatpush1.bf16.msra.mxu0 0
          %5638 = vmatprep.subr.bf16.mxu0 0
          %5639 = vmatpush1.bf16.msra.mxu0 0
          %5640 = vmatprep.subr.bf16.mxu0 0
          %5641 = vmatpush1.bf16.msra.mxu0 0
          %5642 = vmatprep.subr.bf16.mxu0 0
          %5643 = vmatpush1.bf16.msra.mxu0 0
          %5644 = vmatprep.subr.bf16.mxu0 0
          %5645 = vmatpush1.bf16.msra.mxu0 0
          %5646 = vmatprep.subr.bf16.mxu0 0
          %5647 = vmatpush1.bf16.msra.mxu0 0
          %5648 = vmatprep.subr.bf16.mxu0 0
          %5649 = vmatpush1.bf16.msra.mxu0 0
          %5650 = vmatprep.mubr.bf16.mxu0 0
          %5651 = vmatmul.mubr.bf16.gmra.mrb[0].mxu0 %v5613
          %v5652 = vpop.f32.mrb[0].mxu0
          %v5653 = vadd.f32 0.0, %v5652
          %v5654 = vpop.f32.mrb[0].mxu0
          %v5655 = vpop.f32.mrb[0].mxu0
          %v5656 = vadd.f32 0.0, %v5655
          %v5657 = vpop.f32.mrb[0].mxu0
          %5658 = vdwg.mxu0
          %5660 = vrot.lane.b32.xlu0 %v5222, 112
          %v5661 = vpop.permute.xlu0 %5660
          %v5663 = vsel %vm3591, %v5608, 0
          %v5666 = vsel %vm3711, %v5661, 0
          %5668 = vmatprep.subr.bf16.mxu0 0
          %5669 = vmatpush1.bf16.msra.mxu0 %v5666
          %5670 = vmatprep.subr.bf16.mxu0 0
          %5671 = vmatpush1.bf16.msra.mxu0 0
          %5672 = vmatprep.subr.bf16.mxu0 0
          %5673 = vmatpush1.bf16.msra.mxu0 0
          %5674 = vmatprep.subr.bf16.mxu0 0
          %5675 = vmatpush1.bf16.msra.mxu0 0
          %5676 = vmatprep.subr.bf16.mxu0 0
          %5677 = vmatpush1.bf16.msra.mxu0 0
          %5678 = vmatprep.subr.bf16.mxu0 0
          %5679 = vmatpush1.bf16.msra.mxu0 0
          %5680 = vmatprep.subr.bf16.mxu0 0
          %5681 = vmatpush1.bf16.msra.mxu0 0
          %5682 = vmatprep.subr.bf16.mxu0 0
          %5683 = vmatpush1.bf16.msra.mxu0 0
          %5684 = vmatprep.subr.bf16.mxu0 0
          %5685 = vmatpush1.bf16.msra.mxu0 0
          %5686 = vmatprep.subr.bf16.mxu0 0
          %5687 = vmatpush1.bf16.msra.mxu0 0
          %5688 = vmatprep.subr.bf16.mxu0 0
          %5689 = vmatpush1.bf16.msra.mxu0 0
          %5690 = vmatprep.subr.bf16.mxu0 0
          %5691 = vmatpush1.bf16.msra.mxu0 0
          %5692 = vmatprep.subr.bf16.mxu0 0
          %5693 = vmatpush1.bf16.msra.mxu0 0
          %5694 = vmatprep.subr.bf16.mxu0 0
          %5695 = vmatpush1.bf16.msra.mxu0 0
          %5696 = vmatprep.subr.bf16.mxu0 0
          %5697 = vmatpush1.bf16.msra.mxu0 0
          %5698 = vmatprep.subr.bf16.mxu0 0
          %5699 = vmatpush1.bf16.msra.mxu0 0
          %5700 = vmatprep.mubr.bf16.mxu0 0
          %5701 = vmatmul.mubr.bf16.gmra.mrb[0].mxu0 %v5663
          %v5702 = vpop.f32.mrb[0].mxu0
          %v5703 = vadd.f32 0.0, %v5702
          %v5704 = vpop.f32.mrb[0].mxu0
          %v5705 = vpop.f32.mrb[0].mxu0
          %v5706 = vadd.f32 0.0, %v5705
          %v5707 = vpop.f32.mrb[0].mxu0
          %5708 = vdwg.mxu0
          %5709 = vrot.lane.b32.xlu0 %v5217, 96
          %v5710 = vpop.permute.xlu0 %5709
          %5711 = vrot.lane.b32.xlu0 %v5219, 96
          %v5712 = vpop.permute.xlu0 %5711
          %v5714 = vsel %vm4493, %v5710, 0
          %v5717 = vsel %vm4493, %v5712, 0
          %5719 = vmatprep.subr.bf16.mxu0 0
          %5720 = vmatpush1.bf16.xpose.msra.mxu0 %v5717
          %5721 = vmatprep.subr.bf16.mxu0 0
          %5722 = vmatpush1.bf16.xpose.msra.mxu0 0
          %5723 = vmatprep.subr.bf16.mxu0 0
          %5724 = vmatpush1.bf16.xpose.msra.mxu0 0
          %5725 = vmatprep.subr.bf16.mxu0 0
          %5726 = vmatpush1.bf16.xpose.msra.mxu0 0
          %5727 = vmatprep.subr.bf16.mxu0 0
          %5728 = vmatpush1.bf16.xpose.msra.mxu0 0
          %5729 = vmatprep.subr.bf16.mxu0 0
          %5730 = vmatpush1.bf16.xpose.msra.mxu0 0
          %5731 = vmatprep.subr.bf16.mxu0 0
          %5732 = vmatpush1.bf16.xpose.msra.mxu0 0
          %5733 = vmatprep.subr.bf16.mxu0 0
          %5734 = vmatpush1.bf16.xpose.msra.mxu0 0
          %5735 = vmatprep.subr.bf16.mxu0 0
          %5736 = vmatpush1.bf16.xpose.msra.mxu0 0
          %5737 = vmatprep.subr.bf16.mxu0 0
          %5738 = vmatpush1.bf16.xpose.msra.mxu0 0
          %5739 = vmatprep.subr.bf16.mxu0 0
          %5740 = vmatpush1.bf16.xpose.msra.mxu0 0
          %5741 = vmatprep.subr.bf16.mxu0 0
          %5742 = vmatpush1.bf16.xpose.msra.mxu0 0
          %5743 = vmatprep.subr.bf16.mxu0 0
          %5744 = vmatpush1.bf16.xpose.msra.mxu0 0
          %5745 = vmatprep.subr.bf16.mxu0 0
          %5746 = vmatpush1.bf16.xpose.msra.mxu0 0
          %5747 = vmatprep.subr.bf16.mxu0 0
          %5748 = vmatpush1.bf16.xpose.msra.mxu0 0
          %5749 = vmatprep.subr.bf16.mxu0 0
          %5750 = vmatpush1.bf16.xpose.msra.mxu0 0
          %5751 = vmatprep.mubr.bf16.mxu0 0
          %5752 = vmatmul.mubr.bf16.gmra.mrb[0].mxu0 %v5714
          %v5753 = vpop.f32.mrb[0].mxu0
          %v5754 = vadd.f32 0.0, %v5753
          %v5755 = vpop.f32.mrb[0].mxu0
          %v5756 = vpop.f32.mrb[0].mxu0
          %v5757 = vadd.f32 0.0, %v5756
          %v5758 = vpop.f32.mrb[0].mxu0
          %5759 = vdwg.mxu0
          %5760 = vrot.lane.b32.xlu0 %v5218, 96
          %v5761 = vpop.permute.xlu0 %5760
          %5762 = vrot.lane.b32.xlu0 %v5220, 96
          %v5763 = vpop.permute.xlu0 %5762
          %v5765 = vsel %vm4493, %v5761, 0
          %v5768 = vsel %vm4493, %v5763, 0
          %5770 = vmatprep.subr.bf16.mxu0 0
          %5771 = vmatpush1.bf16.xpose.msra.mxu0 %v5768
          %5772 = vmatprep.subr.bf16.mxu0 0
          %5773 = vmatpush1.bf16.xpose.msra.mxu0 0
          %5774 = vmatprep.subr.bf16.mxu0 0
          %5775 = vmatpush1.bf16.xpose.msra.mxu0 0
          %5776 = vmatprep.subr.bf16.mxu0 0
          %5777 = vmatpush1.bf16.xpose.msra.mxu0 0
          %5778 = vmatprep.subr.bf16.mxu0 0
          %5779 = vmatpush1.bf16.xpose.msra.mxu0 0
          %5780 = vmatprep.subr.bf16.mxu0 0
          %5781 = vmatpush1.bf16.xpose.msra.mxu0 0
          %5782 = vmatprep.subr.bf16.mxu0 0
          %5783 = vmatpush1.bf16.xpose.msra.mxu0 0
          %5784 = vmatprep.subr.bf16.mxu0 0
          %5785 = vmatpush1.bf16.xpose.msra.mxu0 0
          %5786 = vmatprep.subr.bf16.mxu0 0
          %5787 = vmatpush1.bf16.xpose.msra.mxu0 0
          %5788 = vmatprep.subr.bf16.mxu0 0
          %5789 = vmatpush1.bf16.xpose.msra.mxu0 0
          %5790 = vmatprep.subr.bf16.mxu0 0
          %5791 = vmatpush1.bf16.xpose.msra.mxu0 0
          %5792 = vmatprep.subr.bf16.mxu0 0
          %5793 = vmatpush1.bf16.xpose.msra.mxu0 0
          %5794 = vmatprep.subr.bf16.mxu0 0
          %5795 = vmatpush1.bf16.xpose.msra.mxu0 0
          %5796 = vmatprep.subr.bf16.mxu0 0
          %5797 = vmatpush1.bf16.xpose.msra.mxu0 0
          %5798 = vmatprep.subr.bf16.mxu0 0
          %5799 = vmatpush1.bf16.xpose.msra.mxu0 0
          %5800 = vmatprep.subr.bf16.mxu0 0
          %5801 = vmatpush1.bf16.xpose.msra.mxu0 0
          %5802 = vmatprep.mubr.bf16.mxu0 0
          %5803 = vmatmul.mubr.bf16.gmra.mrb[0].mxu0 %v5765
          %v5804 = vpop.f32.mrb[0].mxu0
          %v5805 = vadd.f32 0.0, %v5804
          %v5806 = vpop.f32.mrb[0].mxu0
          %v5807 = vpop.f32.mrb[0].mxu0
          %v5808 = vadd.f32 0.0, %v5807
          %v5809 = vpop.f32.mrb[0].mxu0
          %5810 = vdwg.mxu0
          %v5811 = vsel %vm3591, %v5754, -inf
          %5812 = vmax.xlane.f32.xlu0 %v5811
          %v5813 = vpop.xlane.xlu0 %5812
          %v5814 = vsel %vm3591, %v5757, -inf
          %5815 = vmax.xlane.f32.xlu0 %v5814
          %v5816 = vpop.xlane.xlu0 %5815
          %v5817 = vsel %vm3591, %v5805, -inf
          %5818 = vmax.xlane.f32.xlu0 %v5817
          %v5819 = vpop.xlane.xlu0 %5818
          %v5820 = vsel %vm3591, %v5808, -inf
          %5821 = vmax.xlane.f32.xlu0 %v5820
          %v5822 = vpop.xlane.xlu0 %5821
          %v5823 = vsub.f32 %v5754, %v5813
          %v5824 = vsub.f32 %v5757, %v5816
          %v5825 = vsub.f32 %v5805, %v5819
          %v5826 = vsub.f32 %v5808, %v5822
          %v5827 = vmul.f32 %v5823, 1.442695
          %v5828 = vpow.pop %v5827
          %v5829 = vmul.f32 %v5824, 1.442695
          %v5830 = vpow.pop %v5829
          %v5831 = vmul.f32 %v5825, 1.442695
          %v5832 = vpow.pop %v5831
          %v5833 = vmul.f32 %v5826, 1.442695
          %v5834 = vpow.pop %v5833
          %v5835 = vsel %vm3591, %v5828, 0.0
          %5836 = vadd.xlane.f32.xlu0 %v5835
          %v5837 = vpop.xlane.xlu0 %5836
          %v5838 = vsel %vm3591, %v5830, 0.0
          %5839 = vadd.xlane.f32.xlu0 %v5838
          %v5840 = vpop.xlane.xlu0 %5839
          %v5841 = vsel %vm3591, %v5832, 0.0
          %5842 = vadd.xlane.f32.xlu0 %v5841
          %v5843 = vpop.xlane.xlu0 %5842
          %v5844 = vsel %vm3591, %v5834, 0.0
          %5845 = vadd.xlane.f32.xlu0 %v5844
          %v5846 = vpop.xlane.xlu0 %5845
          %v5847 = vrcp.pop %v5837
          %v5848 = vrcp.pop %v5840
          %v5849 = vrcp.pop %v5843
          %v5850 = vrcp.pop %v5846
          %v5851 = vmul.f32 %v5828, %v5847
          %v5852 = vmul.f32 %v5830, %v5848
          %v5853 = vmul.f32 %v5832, %v5849
          %v5854 = vmul.f32 %v5834, %v5850
          %v5855 = vpack.c.bf16 %v5852, %v5851
          %v5856 = vpack.c.bf16 %v5854, %v5853
          %5857 = vrot.lane.b32.xlu0 %v5221, 96
          %v5858 = vpop.permute.xlu0 %5857
          %v5860 = vsel %vm3591, %v5855, 0
          %v5863 = vsel %vm3711, %v5858, 0
          %5865 = vmatprep.subr.bf16.mxu0 0
          %5866 = vmatpush1.bf16.msra.mxu0 %v5863
          %5867 = vmatprep.subr.bf16.mxu0 0
          %5868 = vmatpush1.bf16.msra.mxu0 0
          %5869 = vmatprep.subr.bf16.mxu0 0
          %5870 = vmatpush1.bf16.msra.mxu0 0
          %5871 = vmatprep.subr.bf16.mxu0 0
          %5872 = vmatpush1.bf16.msra.mxu0 0
          %5873 = vmatprep.subr.bf16.mxu0 0
          %5874 = vmatpush1.bf16.msra.mxu0 0
          %5875 = vmatprep.subr.bf16.mxu0 0
          %5876 = vmatpush1.bf16.msra.mxu0 0
          %5877 = vmatprep.subr.bf16.mxu0 0
          %5878 = vmatpush1.bf16.msra.mxu0 0
          %5879 = vmatprep.subr.bf16.mxu0 0
          %5880 = vmatpush1.bf16.msra.mxu0 0
          %5881 = vmatprep.subr.bf16.mxu0 0
          %5882 = vmatpush1.bf16.msra.mxu0 0
          %5883 = vmatprep.subr.bf16.mxu0 0
          %5884 = vmatpush1.bf16.msra.mxu0 0
          %5885 = vmatprep.subr.bf16.mxu0 0
          %5886 = vmatpush1.bf16.msra.mxu0 0
          %5887 = vmatprep.subr.bf16.mxu0 0
          %5888 = vmatpush1.bf16.msra.mxu0 0
          %5889 = vmatprep.subr.bf16.mxu0 0
          %5890 = vmatpush1.bf16.msra.mxu0 0
          %5891 = vmatprep.subr.bf16.mxu0 0
          %5892 = vmatpush1.bf16.msra.mxu0 0
          %5893 = vmatprep.subr.bf16.mxu0 0
          %5894 = vmatpush1.bf16.msra.mxu0 0
          %5895 = vmatprep.subr.bf16.mxu0 0
          %5896 = vmatpush1.bf16.msra.mxu0 0
          %5897 = vmatprep.mubr.bf16.mxu0 0
          %5898 = vmatmul.mubr.bf16.gmra.mrb[0].mxu0 %v5860
          %v5899 = vpop.f32.mrb[0].mxu0
          %v5900 = vadd.f32 0.0, %v5899
          %v5901 = vpop.f32.mrb[0].mxu0
          %v5902 = vpop.f32.mrb[0].mxu0
          %v5903 = vadd.f32 0.0, %v5902
          %v5904 = vpop.f32.mrb[0].mxu0
          %5905 = vdwg.mxu0
          %5906 = vrot.lane.b32.xlu0 %v5222, 96
          %v5907 = vpop.permute.xlu0 %5906
          %v5909 = vsel %vm3591, %v5856, 0
          %v5912 = vsel %vm3711, %v5907, 0
          %5914 = vmatprep.subr.bf16.mxu0 0
          %5915 = vmatpush1.bf16.msra.mxu0 %v5912
          %5916 = vmatprep.subr.bf16.mxu0 0
          %5917 = vmatpush1.bf16.msra.mxu0 0
          %5918 = vmatprep.subr.bf16.mxu0 0
          %5919 = vmatpush1.bf16.msra.mxu0 0
          %5920 = vmatprep.subr.bf16.mxu0 0
          %5921 = vmatpush1.bf16.msra.mxu0 0
          %5922 = vmatprep.subr.bf16.mxu0 0
          %5923 = vmatpush1.bf16.msra.mxu0 0
          %5924 = vmatprep.subr.bf16.mxu0 0
          %5925 = vmatpush1.bf16.msra.mxu0 0
          %5926 = vmatprep.subr.bf16.mxu0 0
          %5927 = vmatpush1.bf16.msra.mxu0 0
          %5928 = vmatprep.subr.bf16.mxu0 0
          %5929 = vmatpush1.bf16.msra.mxu0 0
          %5930 = vmatprep.subr.bf16.mxu0 0
          %5931 = vmatpush1.bf16.msra.mxu0 0
          %5932 = vmatprep.subr.bf16.mxu0 0
          %5933 = vmatpush1.bf16.msra.mxu0 0
          %5934 = vmatprep.subr.bf16.mxu0 0
          %5935 = vmatpush1.bf16.msra.mxu0 0
          %5936 = vmatprep.subr.bf16.mxu0 0
          %5937 = vmatpush1.bf16.msra.mxu0 0
          %5938 = vmatprep.subr.bf16.mxu0 0
          %5939 = vmatpush1.bf16.msra.mxu0 0
          %5940 = vmatprep.subr.bf16.mxu0 0
          %5941 = vmatpush1.bf16.msra.mxu0 0
          %5942 = vmatprep.subr.bf16.mxu0 0
          %5943 = vmatpush1.bf16.msra.mxu0 0
          %5944 = vmatprep.subr.bf16.mxu0 0
          %5945 = vmatpush1.bf16.msra.mxu0 0
          %5946 = vmatprep.mubr.bf16.mxu0 0
          %5947 = vmatmul.mubr.bf16.gmra.mrb[0].mxu0 %v5909
          %v5948 = vpop.f32.mrb[0].mxu0
          %v5949 = vadd.f32 0.0, %v5948
          %v5950 = vpop.f32.mrb[0].mxu0
          %v5951 = vpop.f32.mrb[0].mxu0
          %v5952 = vadd.f32 0.0, %v5951
          %v5953 = vpop.f32.mrb[0].mxu0
          %5954 = vdwg.mxu0
          %5955 = vrot.lane.b32.xlu0 %v5217, 80
          %v5956 = vpop.permute.xlu0 %5955
          %5957 = vrot.lane.b32.xlu0 %v5219, 80
          %v5958 = vpop.permute.xlu0 %5957
          %v5960 = vsel %vm4493, %v5956, 0
          %v5963 = vsel %vm4493, %v5958, 0
          %5965 = vmatprep.subr.bf16.mxu0 0
          %5966 = vmatpush1.bf16.xpose.msra.mxu0 %v5963
          %5967 = vmatprep.subr.bf16.mxu0 0
          %5968 = vmatpush1.bf16.xpose.msra.mxu0 0
          %5969 = vmatprep.subr.bf16.mxu0 0
          %5970 = vmatpush1.bf16.xpose.msra.mxu0 0
          %5971 = vmatprep.subr.bf16.mxu0 0
          %5972 = vmatpush1.bf16.xpose.msra.mxu0 0
          %5973 = vmatprep.subr.bf16.mxu0 0
          %5974 = vmatpush1.bf16.xpose.msra.mxu0 0
          %5975 = vmatprep.subr.bf16.mxu0 0
          %5976 = vmatpush1.bf16.xpose.msra.mxu0 0
          %5977 = vmatprep.subr.bf16.mxu0 0
          %5978 = vmatpush1.bf16.xpose.msra.mxu0 0
          %5979 = vmatprep.subr.bf16.mxu0 0
          %5980 = vmatpush1.bf16.xpose.msra.mxu0 0
          %5981 = vmatprep.subr.bf16.mxu0 0
          %5982 = vmatpush1.bf16.xpose.msra.mxu0 0
          %5983 = vmatprep.subr.bf16.mxu0 0
          %5984 = vmatpush1.bf16.xpose.msra.mxu0 0
          %5985 = vmatprep.subr.bf16.mxu0 0
          %5986 = vmatpush1.bf16.xpose.msra.mxu0 0
          %5987 = vmatprep.subr.bf16.mxu0 0
          %5988 = vmatpush1.bf16.xpose.msra.mxu0 0
          %5989 = vmatprep.subr.bf16.mxu0 0
          %5990 = vmatpush1.bf16.xpose.msra.mxu0 0
          %5991 = vmatprep.subr.bf16.mxu0 0
          %5992 = vmatpush1.bf16.xpose.msra.mxu0 0
          %5993 = vmatprep.subr.bf16.mxu0 0
          %5994 = vmatpush1.bf16.xpose.msra.mxu0 0
          %5995 = vmatprep.subr.bf16.mxu0 0
          %5996 = vmatpush1.bf16.xpose.msra.mxu0 0
          %5997 = vmatprep.mubr.bf16.mxu0 0
          %5998 = vmatmul.mubr.bf16.gmra.mrb[0].mxu0 %v5960
          %v5999 = vpop.f32.mrb[0].mxu0
          %v6000 = vadd.f32 0.0, %v5999
          %v6001 = vpop.f32.mrb[0].mxu0
          %v6002 = vpop.f32.mrb[0].mxu0
          %v6003 = vadd.f32 0.0, %v6002
          %v6004 = vpop.f32.mrb[0].mxu0
          %6005 = vdwg.mxu0
          %6006 = vrot.lane.b32.xlu0 %v5218, 80
          %v6007 = vpop.permute.xlu0 %6006
          %6008 = vrot.lane.b32.xlu0 %v5220, 80
          %v6009 = vpop.permute.xlu0 %6008
          %v6011 = vsel %vm4493, %v6007, 0
          %v6014 = vsel %vm4493, %v6009, 0
          %6016 = vmatprep.subr.bf16.mxu0 0
          %6017 = vmatpush1.bf16.xpose.msra.mxu0 %v6014
          %6018 = vmatprep.subr.bf16.mxu0 0
          %6019 = vmatpush1.bf16.xpose.msra.mxu0 0
          %6020 = vmatprep.subr.bf16.mxu0 0
          %6021 = vmatpush1.bf16.xpose.msra.mxu0 0
          %6022 = vmatprep.subr.bf16.mxu0 0
          %6023 = vmatpush1.bf16.xpose.msra.mxu0 0
          %6024 = vmatprep.subr.bf16.mxu0 0
          %6025 = vmatpush1.bf16.xpose.msra.mxu0 0
          %6026 = vmatprep.subr.bf16.mxu0 0
          %6027 = vmatpush1.bf16.xpose.msra.mxu0 0
          %6028 = vmatprep.subr.bf16.mxu0 0
          %6029 = vmatpush1.bf16.xpose.msra.mxu0 0
          %6030 = vmatprep.subr.bf16.mxu0 0
          %6031 = vmatpush1.bf16.xpose.msra.mxu0 0
          %6032 = vmatprep.subr.bf16.mxu0 0
          %6033 = vmatpush1.bf16.xpose.msra.mxu0 0
          %6034 = vmatprep.subr.bf16.mxu0 0
          %6035 = vmatpush1.bf16.xpose.msra.mxu0 0
          %6036 = vmatprep.subr.bf16.mxu0 0
          %6037 = vmatpush1.bf16.xpose.msra.mxu0 0
          %6038 = vmatprep.subr.bf16.mxu0 0
          %6039 = vmatpush1.bf16.xpose.msra.mxu0 0
          %6040 = vmatprep.subr.bf16.mxu0 0
          %6041 = vmatpush1.bf16.xpose.msra.mxu0 0
          %6042 = vmatprep.subr.bf16.mxu0 0
          %6043 = vmatpush1.bf16.xpose.msra.mxu0 0
          %6044 = vmatprep.subr.bf16.mxu0 0
          %6045 = vmatpush1.bf16.xpose.msra.mxu0 0
          %6046 = vmatprep.subr.bf16.mxu0 0
          %6047 = vmatpush1.bf16.xpose.msra.mxu0 0
          %6048 = vmatprep.mubr.bf16.mxu0 0
          %6049 = vmatmul.mubr.bf16.gmra.mrb[0].mxu0 %v6011
          %v6050 = vpop.f32.mrb[0].mxu0
          %v6051 = vadd.f32 0.0, %v6050
          %v6052 = vpop.f32.mrb[0].mxu0
          %v6053 = vpop.f32.mrb[0].mxu0
          %v6054 = vadd.f32 0.0, %v6053
          %v6055 = vpop.f32.mrb[0].mxu0
          %6056 = vdwg.mxu0
          %v6057 = vsel %vm3591, %v6000, -inf
          %6058 = vmax.xlane.f32.xlu0 %v6057
          %v6059 = vpop.xlane.xlu0 %6058
          %v6060 = vsel %vm3591, %v6003, -inf
          %6061 = vmax.xlane.f32.xlu0 %v6060
          %v6062 = vpop.xlane.xlu0 %6061
          %v6063 = vsel %vm3591, %v6051, -inf
          %6064 = vmax.xlane.f32.xlu0 %v6063
          %v6065 = vpop.xlane.xlu0 %6064
          %v6066 = vsel %vm3591, %v6054, -inf
          %6067 = vmax.xlane.f32.xlu0 %v6066
          %v6068 = vpop.xlane.xlu0 %6067
          %v6069 = vsub.f32 %v6000, %v6059
          %v6070 = vsub.f32 %v6003, %v6062
          %v6071 = vsub.f32 %v6051, %v6065
          %v6072 = vsub.f32 %v6054, %v6068
          %v6073 = vmul.f32 %v6069, 1.442695
          %v6074 = vpow.pop %v6073
          %v6075 = vmul.f32 %v6070, 1.442695
          %v6076 = vpow.pop %v6075
          %v6077 = vmul.f32 %v6071, 1.442695
          %v6078 = vpow.pop %v6077
          %v6079 = vmul.f32 %v6072, 1.442695
          %v6080 = vpow.pop %v6079
          %v6081 = vsel %vm3591, %v6074, 0.0
          %6082 = vadd.xlane.f32.xlu0 %v6081
          %v6083 = vpop.xlane.xlu0 %6082
          %v6084 = vsel %vm3591, %v6076, 0.0
          %6085 = vadd.xlane.f32.xlu0 %v6084
          %v6086 = vpop.xlane.xlu0 %6085
          %v6087 = vsel %vm3591, %v6078, 0.0
          %6088 = vadd.xlane.f32.xlu0 %v6087
          %v6089 = vpop.xlane.xlu0 %6088
          %v6090 = vsel %vm3591, %v6080, 0.0
          %6091 = vadd.xlane.f32.xlu0 %v6090
          %v6092 = vpop.xlane.xlu0 %6091
          %v6093 = vrcp.pop %v6083
          %v6094 = vrcp.pop %v6086
          %v6095 = vrcp.pop %v6089
          %v6096 = vrcp.pop %v6092
          %v6097 = vmul.f32 %v6074, %v6093
          %v6098 = vmul.f32 %v6076, %v6094
          %v6099 = vmul.f32 %v6078, %v6095
          %v6100 = vmul.f32 %v6080, %v6096
          %v6101 = vpack.c.bf16 %v6098, %v6097
          %v6102 = vpack.c.bf16 %v6100, %v6099
          %6103 = vrot.lane.b32.xlu0 %v5221, 80
          %v6104 = vpop.permute.xlu0 %6103
          %v6106 = vsel %vm3591, %v6101, 0
          %v6109 = vsel %vm3711, %v6104, 0
          %6111 = vmatprep.subr.bf16.mxu0 0
          %6112 = vmatpush1.bf16.msra.mxu0 %v6109
          %6113 = vmatprep.subr.bf16.mxu0 0
          %6114 = vmatpush1.bf16.msra.mxu0 0
          %6115 = vmatprep.subr.bf16.mxu0 0
          %6116 = vmatpush1.bf16.msra.mxu0 0
          %6117 = vmatprep.subr.bf16.mxu0 0
          %6118 = vmatpush1.bf16.msra.mxu0 0
          %6119 = vmatprep.subr.bf16.mxu0 0
          %6120 = vmatpush1.bf16.msra.mxu0 0
          %6121 = vmatprep.subr.bf16.mxu0 0
          %6122 = vmatpush1.bf16.msra.mxu0 0
          %6123 = vmatprep.subr.bf16.mxu0 0
          %6124 = vmatpush1.bf16.msra.mxu0 0
          %6125 = vmatprep.subr.bf16.mxu0 0
          %6126 = vmatpush1.bf16.msra.mxu0 0
          %6127 = vmatprep.subr.bf16.mxu0 0
          %6128 = vmatpush1.bf16.msra.mxu0 0
          %6129 = vmatprep.subr.bf16.mxu0 0
          %6130 = vmatpush1.bf16.msra.mxu0 0
          %6131 = vmatprep.subr.bf16.mxu0 0
          %6132 = vmatpush1.bf16.msra.mxu0 0
          %6133 = vmatprep.subr.bf16.mxu0 0
          %6134 = vmatpush1.bf16.msra.mxu0 0
          %6135 = vmatprep.subr.bf16.mxu0 0
          %6136 = vmatpush1.bf16.msra.mxu0 0
          %6137 = vmatprep.subr.bf16.mxu0 0
          %6138 = vmatpush1.bf16.msra.mxu0 0
          %6139 = vmatprep.subr.bf16.mxu0 0
          %6140 = vmatpush1.bf16.msra.mxu0 0
          %6141 = vmatprep.subr.bf16.mxu0 0
          %6142 = vmatpush1.bf16.msra.mxu0 0
          %6143 = vmatprep.mubr.bf16.mxu0 0
          %6144 = vmatmul.mubr.bf16.gmra.mrb[0].mxu0 %v6106
          %v6145 = vpop.f32.mrb[0].mxu0
          %v6146 = vadd.f32 0.0, %v6145
          %v6147 = vpop.f32.mrb[0].mxu0
          %v6148 = vpop.f32.mrb[0].mxu0
          %v6149 = vadd.f32 0.0, %v6148
          %v6150 = vpop.f32.mrb[0].mxu0
          %6151 = vdwg.mxu0
          %6152 = vrot.lane.b32.xlu0 %v5222, 80
          %v6153 = vpop.permute.xlu0 %6152
          %v6155 = vsel %vm3591, %v6102, 0
          %v6158 = vsel %vm3711, %v6153, 0
          %6160 = vmatprep.subr.bf16.mxu0 0
          %6161 = vmatpush1.bf16.msra.mxu0 %v6158
          %6162 = vmatprep.subr.bf16.mxu0 0
          %6163 = vmatpush1.bf16.msra.mxu0 0
          %6164 = vmatprep.subr.bf16.mxu0 0
          %6165 = vmatpush1.bf16.msra.mxu0 0
          %6166 = vmatprep.subr.bf16.mxu0 0
          %6167 = vmatpush1.bf16.msra.mxu0 0
          %6168 = vmatprep.subr.bf16.mxu0 0
          %6169 = vmatpush1.bf16.msra.mxu0 0
          %6170 = vmatprep.subr.bf16.mxu0 0
          %6171 = vmatpush1.bf16.msra.mxu0 0
          %6172 = vmatprep.subr.bf16.mxu0 0
          %6173 = vmatpush1.bf16.msra.mxu0 0
          %6174 = vmatprep.subr.bf16.mxu0 0
          %6175 = vmatpush1.bf16.msra.mxu0 0
          %6176 = vmatprep.subr.bf16.mxu0 0
          %6177 = vmatpush1.bf16.msra.mxu0 0
          %6178 = vmatprep.subr.bf16.mxu0 0
          %6179 = vmatpush1.bf16.msra.mxu0 0
          %6180 = vmatprep.subr.bf16.mxu0 0
          %6181 = vmatpush1.bf16.msra.mxu0 0
          %6182 = vmatprep.subr.bf16.mxu0 0
          %6183 = vmatpush1.bf16.msra.mxu0 0
          %6184 = vmatprep.subr.bf16.mxu0 0
          %6185 = vmatpush1.bf16.msra.mxu0 0
          %6186 = vmatprep.subr.bf16.mxu0 0
          %6187 = vmatpush1.bf16.msra.mxu0 0
          %6188 = vmatprep.subr.bf16.mxu0 0
          %6189 = vmatpush1.bf16.msra.mxu0 0
          %6190 = vmatprep.subr.bf16.mxu0 0
          %6191 = vmatpush1.bf16.msra.mxu0 0
          %6192 = vmatprep.mubr.bf16.mxu0 0
          %6193 = vmatmul.mubr.bf16.gmra.mrb[0].mxu0 %v6155
          %v6194 = vpop.f32.mrb[0].mxu0
          %v6195 = vadd.f32 0.0, %v6194
          %v6196 = vpop.f32.mrb[0].mxu0
          %v6197 = vpop.f32.mrb[0].mxu0
          %v6198 = vadd.f32 0.0, %v6197
          %v6199 = vpop.f32.mrb[0].mxu0
          %6200 = vdwg.mxu0
          %6205 = vrot.lane.b32.xlu0 %v5653, 16
          %v6206 = vpop.permute.xlu0 %6205
          %6207 = vrot.lane.b32.xlu0 %v5656, 16
          %v6208 = vpop.permute.xlu0 %6207
          %6209 = vrot.lane.b32.xlu0 %v5703, 16
          %v6210 = vpop.permute.xlu0 %6209
          %6211 = vrot.lane.b32.xlu0 %v5706, 16
          %v6212 = vpop.permute.xlu0 %6211
          %6221 = vrot.lane.b32.xlu0 %v5900, 32
          %v6222 = vpop.permute.xlu0 %6221
          %6223 = vrot.lane.b32.xlu0 %v5903, 32
          %v6224 = vpop.permute.xlu0 %6223
          %6225 = vrot.lane.b32.xlu0 %v5949, 32
          %v6226 = vpop.permute.xlu0 %6225
          %6227 = vrot.lane.b32.xlu0 %v5952, 32
          %v6228 = vpop.permute.xlu0 %6227
          %6237 = vrot.lane.b32.xlu0 %v6146, 48
          %v6238 = vpop.permute.xlu0 %6237
          %6239 = vrot.lane.b32.xlu0 %v6149, 48
          %v6240 = vpop.permute.xlu0 %6239
          %6241 = vrot.lane.b32.xlu0 %v6195, 48
          %v6242 = vpop.permute.xlu0 %6241
          %6243 = vrot.lane.b32.xlu0 %v6198, 48
          %v6244 = vpop.permute.xlu0 %6243
          %v6249 = vsel %vm4493, %v5404, %v6206
          %v6250 = vsel %vm4493, %v5407, %v6208
          %v6251 = vsel %vm4493, %v5451, %v6210
          %v6252 = vsel %vm4493, %v5454, %v6212
          %v6253 = vsel %vm3376, %v6249, %v6222
          %v6254 = vsel %vm3376, %v6250, %v6224
          %v6255 = vsel %vm3376, %v6251, %v6226
          %v6256 = vsel %vm3376, %v6252, %v6228
          %vm6257 = vcmask 392192
          %v6258 = vsel %vm6257, %v6253, %v6238
          %v6259 = vsel %vm6257, %v6254, %v6240
          %v6260 = vsel %vm6257, %v6255, %v6242
          %v6261 = vsel %vm6257, %v6256, %v6244
          %v6262 = vpack.c.bf16 %v6259, %v6258
          %v6263 = vpack.c.bf16 %v6261, %v6260
          %v6265 = vlaneseq
          %v6266 = vshrl.u32 %v6265, 7
          %v6267 = vsub.s32 0, %v6266
          %v6268 = vrot.slane %v4861, %v6267
          %v6278 = vunpack.c.l.b16 %v4853
          %v6279 = vunpack.c.l.b16 %v4854
          %v6280 = vunpack.c.l.b16 %v4855
          %v6281 = vunpack.c.l.b16 %v4856
          %v6282 = vunpack.c.l.b16 %v4857
          %v6283 = vunpack.c.l.b16 %v4858
          %v6284 = vunpack.c.l.b16 %v4859
          %v6285 = vunpack.c.l.b16 %v4860
          %v6286 = vpack.c.b16 %v6279, %v6278
          %v6287 = vpack.c.b16 %v6281, %v6280
          %v6288 = vpack.c.b16 %v6283, %v6282
          %v6289 = vpack.c.b16 %v6285, %v6284
          %v6295 = vsel %vm4906, %v6262, 0
          %v6298 = vsel %vm4906, %v6263, 0
          %6300 = vmatprep.subr.bf16.mxu0 0
          %6301 = vmatpush1.bf16.msra.mxu0 %v6286
          %6302 = vmatprep.subr.bf16.mxu0 0
          %6303 = vmatpush1.bf16.msra.mxu0 %v6287
          %6304 = vmatprep.subr.bf16.mxu0 0
          %6305 = vmatpush1.bf16.msra.mxu0 %v6288
          %6306 = vmatprep.subr.bf16.mxu0 0
          %6307 = vmatpush1.bf16.msra.mxu0 %v6289
          %6308 = vmatprep.subr.bf16.mxu0 0
          %6309 = vmatpush1.bf16.msra.mxu0 0
          %6310 = vmatprep.subr.bf16.mxu0 0
          %6311 = vmatpush1.bf16.msra.mxu0 0
          %6312 = vmatprep.subr.bf16.mxu0 0
          %6313 = vmatpush1.bf16.msra.mxu0 0
          %6314 = vmatprep.subr.bf16.mxu0 0
          %6315 = vmatpush1.bf16.msra.mxu0 0
          %6316 = vmatprep.subr.bf16.mxu0 0
          %6317 = vmatpush1.bf16.msra.mxu0 0
          %6318 = vmatprep.subr.bf16.mxu0 0
          %6319 = vmatpush1.bf16.msra.mxu0 0
          %6320 = vmatprep.subr.bf16.mxu0 0
          %6321 = vmatpush1.bf16.msra.mxu0 0
          %6322 = vmatprep.subr.bf16.mxu0 0
          %6323 = vmatpush1.bf16.msra.mxu0 0
          %6324 = vmatprep.subr.bf16.mxu0 0
          %6325 = vmatpush1.bf16.msra.mxu0 0
          %6326 = vmatprep.subr.bf16.mxu0 0
          %6327 = vmatpush1.bf16.msra.mxu0 0
          %6328 = vmatprep.subr.bf16.mxu0 0
          %6329 = vmatpush1.bf16.msra.mxu0 0
          %6330 = vmatprep.subr.bf16.mxu0 0
          %6331 = vmatpush1.bf16.msra.mxu0 0
          %6332 = vmatprep.mubr.bf16.mxu0 0
          %6333 = vmatmul.mubr.bf16.gmra.mrb[0].mxu0 %v6295
          %v6334 = vpop.f32.mrb[0].mxu0
          %v6335 = vadd.f32 %v6268, %v6334
          %v6336 = vpop.f32.mrb[0].mxu0
          %v6337 = vpop.f32.mrb[0].mxu0
          %v6338 = vadd.f32 %v6268, %v6337
          %v6339 = vpop.f32.mrb[0].mxu0
          %6340 = vmatprep.mubr.bf16.mxu0 0
          %6341 = vmatmul.mubr.bf16.gmra.mrb[0].mxu0 %v6298
          %v6342 = vpop.f32.mrb[0].mxu0
          %v6343 = vadd.f32 %v6268, %v6342
          %v6344 = vpop.f32.mrb[0].mxu0
          %v6345 = vpop.f32.mrb[0].mxu0
          %v6346 = vadd.f32 %v6268, %v6345
          %v6347 = vpop.f32.mrb[0].mxu0
          %6348 = vdwg.mxu0
          %v6349 = vadd.f32 %v4829, %v6335
          %v6350 = vadd.f32 %v4830, %v6338
          %v6351 = vadd.f32 %v4831, %v6343
          %v6352 = vadd.f32 %v4832, %v6346
          %v6353 = vsel %vm4906, %v6349, 0.0
          %6354 = vadd.xlane.f32.xlu0 %v6353
          %v6355 = vpop.xlane.xlu0 %6354
          %v6356 = vsel %vm4906, %v6350, 0.0
          %6357 = vadd.xlane.f32.xlu0 %v6356
          %v6358 = vpop.xlane.xlu0 %6357
          %v6359 = vsel %vm4906, %v6351, 0.0
          %6360 = vadd.xlane.f32.xlu0 %v6359
          %v6361 = vpop.xlane.xlu0 %6360
          %v6362 = vsel %vm4906, %v6352, 0.0
          %6363 = vadd.xlane.f32.xlu0 %v6362
          %v6364 = vpop.xlane.xlu0 %6363
          %v6365 = vmul.f32 %v6355, %v4919
          %v6366 = vmul.f32 %v6358, %v4919
          %v6367 = vmul.f32 %v6361, %v4919
          %v6368 = vmul.f32 %v6364, %v4919
          %v6369 = vsub.f32 %v6349, %v6365
          %v6370 = vsub.f32 %v6350, %v6366
          %v6371 = vsub.f32 %v6351, %v6367
          %v6372 = vsub.f32 %v6352, %v6368
          %v6373 = vmul.f32 %v6369, %v6369
          %v6374 = vmul.f32 %v6370, %v6370
          %v6375 = vmul.f32 %v6371, %v6371
          %v6376 = vmul.f32 %v6372, %v6372
          %v6377 = vsel %vm4906, %v6373, 0.0
          %6378 = vadd.xlane.f32.xlu0 %v6377
          %v6379 = vpop.xlane.xlu0 %6378
          %v6380 = vsel %vm4906, %v6374, 0.0
          %6381 = vadd.xlane.f32.xlu0 %v6380
          %v6382 = vpop.xlane.xlu0 %6381
          %v6383 = vsel %vm4906, %v6375, 0.0
          %6384 = vadd.xlane.f32.xlu0 %v6383
          %v6385 = vpop.xlane.xlu0 %6384
          %v6386 = vsel %vm4906, %v6376, 0.0
          %6387 = vadd.xlane.f32.xlu0 %v6386
          %v6388 = vpop.xlane.xlu0 %6387
          %v6389 = vmul.f32 %v6379, %v4919
          %v6390 = vmul.f32 %v6382, %v4919
          %v6391 = vmul.f32 %v6385, %v4919
          %v6392 = vmul.f32 %v6388, %v4919
          %v6393 = vadd.f32 %v6389, 1e-05
          %v6394 = vadd.f32 %v6390, 1e-05
          %v6395 = vadd.f32 %v6391, 1e-05
          %v6396 = vadd.f32 %v6392, 1e-05
          %v6397 = vrsqrt.pop %v6393
          %v6398 = vrsqrt.pop %v6394
          %v6399 = vrsqrt.pop %v6395
          %v6400 = vrsqrt.pop %v6396
          %v6401 = vmul.f32 %v6369, %v6397
          %v6402 = vmul.f32 %v6370, %v6398
          %v6403 = vmul.f32 %v6371, %v6399
          %v6404 = vmul.f32 %v6372, %v6400
          %v6406 = vlaneseq
          %v6407 = vshrl.u32 %v6406, 7
          %v6408 = vsub.s32 0, %v6407
          %v6409 = vrot.slane %v4862, %v6408
          %v6411 = vmul.f32 %v6401, %v6409
          %v6412 = vmul.f32 %v6402, %v6409
          %v6413 = vmul.f32 %v6403, %v6409
          %v6414 = vmul.f32 %v6404, %v6409
          %v6416 = vlaneseq
          %v6417 = vshrl.u32 %v6416, 7
          %v6418 = vsub.s32 0, %v6417
          %v6419 = vrot.slane %v4863, %v6418
          %v6421 = vadd.f32 %v6411, %v6419
          %v6422 = vadd.f32 %v6412, %v6419
          %v6423 = vadd.f32 %v6413, %v6419
          %v6424 = vadd.f32 %v6414, %v6419
          %v6425 = vpack.c.bf16 %v6422, %v6421
          %v6426 = vpack.c.bf16 %v6424, %v6423
          %v6428 = vlaneseq
          %v6429 = vshrl.u32 %v6428, 7
          %v6430 = vsub.s32 0, %v6429
          %v6431 = vrot.slane %v4872, %v6430
          %v6432 = vlaneseq
          %v6433 = vshrl.u32 %v6432, 7
          %v6434 = vsub.s32 1, %v6433
          %v6435 = vrot.slane %v4872, %v6434
          %v6446 = vunpack.c.l.b16 %v4864
          %v6447 = vunpack.c.h.b16 %v4864
          %v6448 = vunpack.c.l.b16 %v4865
          %v6449 = vunpack.c.h.b16 %v4865
          %v6450 = vunpack.c.l.b16 %v4866
          %v6451 = vunpack.c.h.b16 %v4866
          %v6452 = vunpack.c.l.b16 %v4867
          %v6453 = vunpack.c.h.b16 %v4867
          %v6454 = vunpack.c.l.b16 %v4868
          %v6455 = vunpack.c.h.b16 %v4868
          %v6456 = vunpack.c.l.b16 %v4869
          %v6457 = vunpack.c.h.b16 %v4869
          %v6458 = vunpack.c.l.b16 %v4870
          %v6459 = vunpack.c.h.b16 %v4870
          %v6460 = vunpack.c.l.b16 %v4871
          %v6461 = vunpack.c.h.b16 %v4871
          %v6462 = vpack.c.b16 %v6448, %v6446
          %v6463 = vpack.c.b16 %v6449, %v6447
          %v6464 = vpack.c.b16 %v6452, %v6450
          %v6465 = vpack.c.b16 %v6453, %v6451
          %v6466 = vpack.c.b16 %v6456, %v6454
          %v6467 = vpack.c.b16 %v6457, %v6455
          %v6468 = vpack.c.b16 %v6460, %v6458
          %v6469 = vpack.c.b16 %v6461, %v6459
          %v6479 = vsel %vm4906, %v6425, 0
          %v6482 = vsel %vm4906, %v6426, 0
          %6484 = vmatprep.subr.bf16.mxu0 %v6463
          %6485 = vmatpush1.bf16.msra.mxu0 %v6462
          %6486 = vmatprep.subr.bf16.mxu0 %v6465
          %6487 = vmatpush1.bf16.msra.mxu0 %v6464
          %6488 = vmatprep.subr.bf16.mxu0 %v6467
          %6489 = vmatpush1.bf16.msra.mxu0 %v6466
          %6490 = vmatprep.subr.bf16.mxu0 %v6469
          %6491 = vmatpush1.bf16.msra.mxu0 %v6468
          %6492 = vmatprep.subr.bf16.mxu0 0
          %6493 = vmatpush1.bf16.msra.mxu0 0
          %6494 = vmatprep.subr.bf16.mxu0 0
          %6495 = vmatpush1.bf16.msra.mxu0 0
          %6496 = vmatprep.subr.bf16.mxu0 0
          %6497 = vmatpush1.bf16.msra.mxu0 0
          %6498 = vmatprep.subr.bf16.mxu0 0
          %6499 = vmatpush1.bf16.msra.mxu0 0
          %6500 = vmatprep.subr.bf16.mxu0 0
          %6501 = vmatpush1.bf16.msra.mxu0 0
          %6502 = vmatprep.subr.bf16.mxu0 0
          %6503 = vmatpush1.bf16.msra.mxu0 0
          %6504 = vmatprep.subr.bf16.mxu0 0
          %6505 = vmatpush1.bf16.msra.mxu0 0
          %6506 = vmatprep.subr.bf16.mxu0 0
          %6507 = vmatpush1.bf16.msra.mxu0 0
          %6508 = vmatprep.subr.bf16.mxu0 0
          %6509 = vmatpush1.bf16.msra.mxu0 0
          %6510 = vmatprep.subr.bf16.mxu0 0
          %6511 = vmatpush1.bf16.msra.mxu0 0
          %6512 = vmatprep.subr.bf16.mxu0 0
          %6513 = vmatpush1.bf16.msra.mxu0 0
          %6514 = vmatprep.subr.bf16.mxu0 0
          %6515 = vmatpush1.bf16.msra.mxu0 0
          %6516 = vmatprep.mubr.bf16.mxu0 0
          %6517 = vmatmul.mubr.bf16.gmra.mrb[0].mxu0 %v6479
          %v6518 = vpop.f32.mrb[0].mxu0
          %v6519 = vadd.f32 %v6431, %v6518
          %v6520 = vpop.f32.mrb[0].mxu0
          %v6521 = vadd.f32 %v6435, %v6520
          %v6522 = vpop.f32.mrb[0].mxu0
          %v6523 = vadd.f32 %v6431, %v6522
          %v6524 = vpop.f32.mrb[0].mxu0
          %v6525 = vadd.f32 %v6435, %v6524
          %6526 = vmatprep.mubr.bf16.mxu0 0
          %6527 = vmatmul.mubr.bf16.gmra.mrb[0].mxu0 %v6482
          %v6528 = vpop.f32.mrb[0].mxu0
          %v6529 = vadd.f32 %v6431, %v6528
          %v6530 = vpop.f32.mrb[0].mxu0
          %v6531 = vadd.f32 %v6435, %v6530
          %v6532 = vpop.f32.mrb[0].mxu0
          %v6533 = vadd.f32 %v6431, %v6532
          %v6534 = vpop.f32.mrb[0].mxu0
          %v6535 = vadd.f32 %v6435, %v6534
          %6536 = vdwg.mxu0
          %v6537 = vmul.f32 %v6519, 0.5
          %v6538 = vmul.f32 %v6521, 0.5
          %v6539 = vmul.f32 %v6523, 0.5
          %v6540 = vmul.f32 %v6525, 0.5
          %v6541 = vmul.f32 %v6529, 0.5
          %v6542 = vmul.f32 %v6531, 0.5
          %v6543 = vmul.f32 %v6533, 0.5
          %v6544 = vmul.f32 %v6535, 0.5
          %v6545 = vmul.f32 %v6519, 0.70710677
          %v6546 = vmul.f32 %v6521, 0.70710677
          %v6547 = vmul.f32 %v6523, 0.70710677
          %v6548 = vmul.f32 %v6525, 0.70710677
          %v6549 = vmul.f32 %v6529, 0.70710677
          %v6550 = vmul.f32 %v6531, 0.70710677
          %v6551 = vmul.f32 %v6533, 0.70710677
          %v6552 = vmul.f32 %v6535, 0.70710677
          %v6553 = vand.u32 2147483647, %v6545
          %v6554 = vand.u32 2147483647, %v6546
          %v6555 = vand.u32 2147483647, %v6547
          %v6556 = vand.u32 2147483647, %v6548
          %v6557 = vand.u32 2147483647, %v6549
          %v6558 = vand.u32 2147483647, %v6550
          %v6559 = vand.u32 2147483647, %v6551
          %v6560 = vand.u32 2147483647, %v6552
          %v6561 = vmul.f32 %v6553, 0.3275911
          %v6562 = vmul.f32 %v6554, 0.3275911
          %v6563 = vmul.f32 %v6555, 0.3275911
          %v6564 = vmul.f32 %v6556, 0.3275911
          %v6565 = vmul.f32 %v6557, 0.3275911
          %v6566 = vmul.f32 %v6558, 0.3275911
          %v6567 = vmul.f32 %v6559, 0.3275911
          %v6568 = vmul.f32 %v6560, 0.3275911
          %v6569 = vadd.f32 %v6561, 1.0
          %v6570 = vadd.f32 %v6562, 1.0
          %v6571 = vadd.f32 %v6563, 1.0
          %v6572 = vadd.f32 %v6564, 1.0
          %v6573 = vadd.f32 %v6565, 1.0
          %v6574 = vadd.f32 %v6566, 1.0
          %v6575 = vadd.f32 %v6567, 1.0
          %v6576 = vadd.f32 %v6568, 1.0
          %v6577 = vrcp.pop %v6569
          %v6578 = vmul.f32 1.0, %v6577
          %v6579 = vrcp.pop %v6570
          %v6580 = vmul.f32 1.0, %v6579
          %v6581 = vrcp.pop %v6571
          %v6582 = vmul.f32 1.0, %v6581
          %v6583 = vrcp.pop %v6572
          %v6584 = vmul.f32 1.0, %v6583
          %v6585 = vrcp.pop %v6573
          %v6586 = vmul.f32 1.0, %v6585
          %v6587 = vrcp.pop %v6574
          %v6588 = vmul.f32 1.0, %v6587
          %v6589 = vrcp.pop %v6575
          %v6590 = vmul.f32 1.0, %v6589
          %v6591 = vrcp.pop %v6576
          %v6592 = vmul.f32 1.0, %v6591
          %v6593 = vmul.f32 %v6578, 1.0614054
          %v6594 = vmul.f32 %v6580, 1.0614054
          %v6595 = vmul.f32 %v6582, 1.0614054
          %v6596 = vmul.f32 %v6584, 1.0614054
          %v6597 = vmul.f32 %v6586, 1.0614054
          %v6598 = vmul.f32 %v6588, 1.0614054
          %v6599 = vmul.f32 %v6590, 1.0614054
          %v6600 = vmul.f32 %v6592, 1.0614054
          %v6601 = vadd.f32 %v6593, -1.4531521
          %v6602 = vadd.f32 %v6594, -1.4531521
          %v6603 = vadd.f32 %v6595, -1.4531521
          %v6604 = vadd.f32 %v6596, -1.4531521
          %v6605 = vadd.f32 %v6597, -1.4531521
          %v6606 = vadd.f32 %v6598, -1.4531521
          %v6607 = vadd.f32 %v6599, -1.4531521
          %v6608 = vadd.f32 %v6600, -1.4531521
          %v6609 = vmul.f32 %v6601, %v6578
          %v6610 = vmul.f32 %v6602, %v6580
          %v6611 = vmul.f32 %v6603, %v6582
          %v6612 = vmul.f32 %v6604, %v6584
          %v6613 = vmul.f32 %v6605, %v6586
          %v6614 = vmul.f32 %v6606, %v6588
          %v6615 = vmul.f32 %v6607, %v6590
          %v6616 = vmul.f32 %v6608, %v6592
          %v6617 = vadd.f32 %v6609, 1.4214138
          %v6618 = vadd.f32 %v6610, 1.4214138
          %v6619 = vadd.f32 %v6611, 1.4214138
          %v6620 = vadd.f32 %v6612, 1.4214138
          %v6621 = vadd.f32 %v6613, 1.4214138
          %v6622 = vadd.f32 %v6614, 1.4214138
          %v6623 = vadd.f32 %v6615, 1.4214138
          %v6624 = vadd.f32 %v6616, 1.4214138
          %v6625 = vmul.f32 %v6617, %v6578
          %v6626 = vmul.f32 %v6618, %v6580
          %v6627 = vmul.f32 %v6619, %v6582
          %v6628 = vmul.f32 %v6620, %v6584
          %v6629 = vmul.f32 %v6621, %v6586
          %v6630 = vmul.f32 %v6622, %v6588
          %v6631 = vmul.f32 %v6623, %v6590
          %v6632 = vmul.f32 %v6624, %v6592
          %v6633 = vadd.f32 %v6625, -0.28449672
          %v6634 = vadd.f32 %v6626, -0.28449672
          %v6635 = vadd.f32 %v6627, -0.28449672
          %v6636 = vadd.f32 %v6628, -0.28449672
          %v6637 = vadd.f32 %v6629, -0.28449672
          %v6638 = vadd.f32 %v6630, -0.28449672
          %v6639 = vadd.f32 %v6631, -0.28449672
          %v6640 = vadd.f32 %v6632, -0.28449672
          %v6641 = vmul.f32 %v6633, %v6578
          %v6642 = vmul.f32 %v6634, %v6580
          %v6643 = vmul.f32 %v6635, %v6582
          %v6644 = vmul.f32 %v6636, %v6584
          %v6645 = vmul.f32 %v6637, %v6586
          %v6646 = vmul.f32 %v6638, %v6588
          %v6647 = vmul.f32 %v6639, %v6590
          %v6648 = vmul.f32 %v6640, %v6592
          %v6649 = vadd.f32 %v6641, 0.2548296
          %v6650 = vadd.f32 %v6642, 0.2548296
          %v6651 = vadd.f32 %v6643, 0.2548296
          %v6652 = vadd.f32 %v6644, 0.2548296
          %v6653 = vadd.f32 %v6645, 0.2548296
          %v6654 = vadd.f32 %v6646, 0.2548296
          %v6655 = vadd.f32 %v6647, 0.2548296
          %v6656 = vadd.f32 %v6648, 0.2548296
          %v6657 = vmul.f32 %v6649, %v6578
          %v6658 = vmul.f32 %v6650, %v6580
          %v6659 = vmul.f32 %v6651, %v6582
          %v6660 = vmul.f32 %v6652, %v6584
          %v6661 = vmul.f32 %v6653, %v6586
          %v6662 = vmul.f32 %v6654, %v6588
          %v6663 = vmul.f32 %v6655, %v6590
          %v6664 = vmul.f32 %v6656, %v6592
          %v6665 = vsub.f32 0.0, %v6553
          %v6666 = vsub.f32 0.0, %v6554
          %v6667 = vsub.f32 0.0, %v6555
          %v6668 = vsub.f32 0.0, %v6556
          %v6669 = vsub.f32 0.0, %v6557
          %v6670 = vsub.f32 0.0, %v6558
          %v6671 = vsub.f32 0.0, %v6559
          %v6672 = vsub.f32 0.0, %v6560
          %v6673 = vmul.f32 %v6665, %v6553
          %v6674 = vmul.f32 %v6666, %v6554
          %v6675 = vmul.f32 %v6667, %v6555
          %v6676 = vmul.f32 %v6668, %v6556
          %v6677 = vmul.f32 %v6669, %v6557
          %v6678 = vmul.f32 %v6670, %v6558
          %v6679 = vmul.f32 %v6671, %v6559
          %v6680 = vmul.f32 %v6672, %v6560
          %v6681 = vmul.f32 %v6673, 1.442695
          %v6682 = vpow.pop %v6681
          %v6683 = vmul.f32 %v6674, 1.442695
          %v6684 = vpow.pop %v6683
          %v6685 = vmul.f32 %v6675, 1.442695
          %v6686 = vpow.pop %v6685
          %v6687 = vmul.f32 %v6676, 1.442695
          %v6688 = vpow.pop %v6687
          %v6689 = vmul.f32 %v6677, 1.442695
          %v6690 = vpow.pop %v6689
          %v6691 = vmul.f32 %v6678, 1.442695
          %v6692 = vpow.pop %v6691
          %v6693 = vmul.f32 %v6679, 1.442695
          %v6694 = vpow.pop %v6693
          %v6695 = vmul.f32 %v6680, 1.442695
          %v6696 = vpow.pop %v6695
          %v6697 = vmul.f32 %v6657, %v6682
          %v6698 = vmul.f32 %v6658, %v6684
          %v6699 = vmul.f32 %v6659, %v6686
          %v6700 = vmul.f32 %v6660, %v6688
          %v6701 = vmul.f32 %v6661, %v6690
          %v6702 = vmul.f32 %v6662, %v6692
          %v6703 = vmul.f32 %v6663, %v6694
          %v6704 = vmul.f32 %v6664, %v6696
          %v6705 = vsub.f32 1.0, %v6697
          %v6706 = vsub.f32 1.0, %v6698
          %v6707 = vsub.f32 1.0, %v6699
          %v6708 = vsub.f32 1.0, %v6700
          %v6709 = vsub.f32 1.0, %v6701
          %v6710 = vsub.f32 1.0, %v6702
          %v6711 = vsub.f32 1.0, %v6703
          %v6712 = vsub.f32 1.0, %v6704
          %vm6713 = vcmp.lt.f32.partialorder %v6545, 0.0
          %vm6714 = vcmp.lt.f32.partialorder %v6546, 0.0
          %vm6715 = vcmp.lt.f32.partialorder %v6547, 0.0
          %vm6716 = vcmp.lt.f32.partialorder %v6548, 0.0
          %vm6717 = vcmp.lt.f32.partialorder %v6549, 0.0
          %vm6718 = vcmp.lt.f32.partialorder %v6550, 0.0
          %vm6719 = vcmp.lt.f32.partialorder %v6551, 0.0
          %vm6720 = vcmp.lt.f32.partialorder %v6552, 0.0
          %v6721 = vsub.f32 0.0, %v6705
          %v6722 = vsub.f32 0.0, %v6706
          %v6723 = vsub.f32 0.0, %v6707
          %v6724 = vsub.f32 0.0, %v6708
          %v6725 = vsub.f32 0.0, %v6709
          %v6726 = vsub.f32 0.0, %v6710
          %v6727 = vsub.f32 0.0, %v6711
          %v6728 = vsub.f32 0.0, %v6712
          %v6729 = vsel %vm6713, %v6721, %v6705
          %v6730 = vsel %vm6714, %v6722, %v6706
          %v6731 = vsel %vm6715, %v6723, %v6707
          %v6732 = vsel %vm6716, %v6724, %v6708
          %v6733 = vsel %vm6717, %v6725, %v6709
          %v6734 = vsel %vm6718, %v6726, %v6710
          %v6735 = vsel %vm6719, %v6727, %v6711
          %v6736 = vsel %vm6720, %v6728, %v6712
          %v6737 = vadd.f32 %v6729, 1.0
          %v6738 = vadd.f32 %v6730, 1.0
          %v6739 = vadd.f32 %v6731, 1.0
          %v6740 = vadd.f32 %v6732, 1.0
          %v6741 = vadd.f32 %v6733, 1.0
          %v6742 = vadd.f32 %v6734, 1.0
          %v6743 = vadd.f32 %v6735, 1.0
          %v6744 = vadd.f32 %v6736, 1.0
          %v6745 = vmul.f32 %v6537, %v6737
          %v6746 = vmul.f32 %v6538, %v6738
          %v6747 = vmul.f32 %v6539, %v6739
          %v6748 = vmul.f32 %v6540, %v6740
          %v6749 = vmul.f32 %v6541, %v6741
          %v6750 = vmul.f32 %v6542, %v6742
          %v6751 = vmul.f32 %v6543, %v6743
          %v6752 = vmul.f32 %v6544, %v6744
          %v6753 = vpack.c.bf16 %v6747, %v6745
          %v6754 = vpack.c.bf16 %v6748, %v6746
          %v6755 = vpack.c.bf16 %v6751, %v6749
          %v6756 = vpack.c.bf16 %v6752, %v6750
          %v6758 = vlaneseq
          %v6759 = vshrl.u32 %v6758, 7
          %v6760 = vsub.s32 0, %v6759
          %v6761 = vrot.slane %v4905, %v6760
          %v6795 = vunpack.c.l.b16 %v4873
          %v6796 = vunpack.c.l.b16 %v4874
          %v6797 = vunpack.c.l.b16 %v4875
          %v6798 = vunpack.c.l.b16 %v4876
          %v6799 = vunpack.c.l.b16 %v4877
          %v6800 = vunpack.c.l.b16 %v4878
          %v6801 = vunpack.c.l.b16 %v4879
          %v6802 = vunpack.c.l.b16 %v4880
          %v6803 = vunpack.c.l.b16 %v4881
          %v6804 = vunpack.c.l.b16 %v4882
          %v6805 = vunpack.c.l.b16 %v4883
          %v6806 = vunpack.c.l.b16 %v4884
          %v6807 = vunpack.c.l.b16 %v4885
          %v6808 = vunpack.c.l.b16 %v4886
          %v6809 = vunpack.c.l.b16 %v4887
          %v6810 = vunpack.c.l.b16 %v4888
          %v6811 = vunpack.c.l.b16 %v4889
          %v6812 = vunpack.c.l.b16 %v4890
          %v6813 = vunpack.c.l.b16 %v4891
          %v6814 = vunpack.c.l.b16 %v4892
          %v6815 = vunpack.c.l.b16 %v4893
          %v6816 = vunpack.c.l.b16 %v4894
          %v6817 = vunpack.c.l.b16 %v4895
          %v6818 = vunpack.c.l.b16 %v4896
          %v6819 = vunpack.c.l.b16 %v4897
          %v6820 = vunpack.c.l.b16 %v4898
          %v6821 = vunpack.c.l.b16 %v4899
          %v6822 = vunpack.c.l.b16 %v4900
          %v6823 = vunpack.c.l.b16 %v4901
          %v6824 = vunpack.c.l.b16 %v4902
          %v6825 = vunpack.c.l.b16 %v4903
          %v6826 = vunpack.c.l.b16 %v4904
          %v6827 = vpack.c.b16 %v6796, %v6795
          %v6828 = vpack.c.b16 %v6798, %v6797
          %v6829 = vpack.c.b16 %v6800, %v6799
          %v6830 = vpack.c.b16 %v6802, %v6801
          %v6831 = vpack.c.b16 %v6804, %v6803
          %v6832 = vpack.c.b16 %v6806, %v6805
          %v6833 = vpack.c.b16 %v6808, %v6807
          %v6834 = vpack.c.b16 %v6810, %v6809
          %v6835 = vpack.c.b16 %v6812, %v6811
          %v6836 = vpack.c.b16 %v6814, %v6813
          %v6837 = vpack.c.b16 %v6816, %v6815
          %v6838 = vpack.c.b16 %v6818, %v6817
          %v6839 = vpack.c.b16 %v6820, %v6819
          %v6840 = vpack.c.b16 %v6822, %v6821
          %v6841 = vpack.c.b16 %v6824, %v6823
          %v6842 = vpack.c.b16 %v6826, %v6825
          %6859 = vmatprep.subr.bf16.mxu0 0
          %6860 = vmatpush1.bf16.msra.mxu0 %v6827
          %6861 = vmatprep.subr.bf16.mxu0 0
          %6862 = vmatpush1.bf16.msra.mxu0 %v6828
          %6863 = vmatprep.subr.bf16.mxu0 0
          %6864 = vmatpush1.bf16.msra.mxu0 %v6829
          %6865 = vmatprep.subr.bf16.mxu0 0
          %6866 = vmatpush1.bf16.msra.mxu0 %v6830
          %6867 = vmatprep.subr.bf16.mxu0 0
          %6868 = vmatpush1.bf16.msra.mxu0 %v6831
          %6869 = vmatprep.subr.bf16.mxu0 0
          %6870 = vmatpush1.bf16.msra.mxu0 %v6832
          %6871 = vmatprep.subr.bf16.mxu0 0
          %6872 = vmatpush1.bf16.msra.mxu0 %v6833
          %6873 = vmatprep.subr.bf16.mxu0 0
          %6874 = vmatpush1.bf16.msra.mxu0 %v6834
          %6875 = vmatprep.subr.bf16.mxu0 0
          %6876 = vmatpush1.bf16.msra.mxu0 %v6835
          %6877 = vmatprep.subr.bf16.mxu0 0
          %6878 = vmatpush1.bf16.msra.mxu0 %v6836
          %6879 = vmatprep.subr.bf16.mxu0 0
          %6880 = vmatpush1.bf16.msra.mxu0 %v6837
          %6881 = vmatprep.subr.bf16.mxu0 0
          %6882 = vmatpush1.bf16.msra.mxu0 %v6838
          %6883 = vmatprep.subr.bf16.mxu0 0
          %6884 = vmatpush1.bf16.msra.mxu0 %v6839
          %6885 = vmatprep.subr.bf16.mxu0 0
          %6886 = vmatpush1.bf16.msra.mxu0 %v6840
          %6887 = vmatprep.subr.bf16.mxu0 0
          %6888 = vmatpush1.bf16.msra.mxu0 %v6841
          %6889 = vmatprep.subr.bf16.mxu0 0
          %6890 = vmatpush1.bf16.msra.mxu0 %v6842
          %6891 = vmatprep.mubr.bf16.mxu0 %v6754
          %6892 = vmatmul.mubr.bf16.gmra.mrb[0].mxu0 %v6753
          %v6893 = vpop.f32.mrb[0].mxu0
          %v6894 = vadd.f32 %v6761, %v6893
          %v6895 = vpop.f32.mrb[0].mxu0
          %v6896 = vpop.f32.mrb[0].mxu0
          %v6897 = vadd.f32 %v6761, %v6896
          %v6898 = vpop.f32.mrb[0].mxu0
          %6899 = vmatprep.mubr.bf16.mxu0 %v6756
          %6900 = vmatmul.mubr.bf16.gmra.mrb[0].mxu0 %v6755
          %v6901 = vpop.f32.mrb[0].mxu0
          %v6902 = vadd.f32 %v6761, %v6901
          %v6903 = vpop.f32.mrb[0].mxu0
          %v6904 = vpop.f32.mrb[0].mxu0
          %v6905 = vadd.f32 %v6761, %v6904
          %v6906 = vpop.f32.mrb[0].mxu0
          %6907 = vdwg.mxu0
          %v6908 = vadd.f32 %v6349, %v6894
          %v6909 = vadd.f32 %v6350, %v6897
          %v6910 = vadd.f32 %v6351, %v6902
          %v6911 = vadd.f32 %v6352, %v6905
          %6912 = vst.msk [vmem:[#allocation3] sm:$0xff] %vm3376, %v4827
          %6913 = vst.msk [vmem:[#allocation3 + $0x8] sm:$0xff] %vm3376, %v4828
          %6914 = vst.msk [vmem:[#allocation5] sm:$0xff] %vm4906, %v6908
          %6915 = vst.msk [vmem:[#allocation5 + $0x8] sm:$0xff] %vm4906, %v6909
          %6916 = vst.msk [vmem:[#allocation5 + $0x10] sm:$0xff] %vm4906, %v6910
          %6917 = vst.msk [vmem:[#allocation5 + $0x18] sm:$0xff] %vm4906, %v6911
        $region216: #{rcw_forward.1} parent=207 // pred_fallthru
          _
        // Predicated region
        $region217: #{rcw_forward.1} parent=207 // pred_check
          %p6918 = pneg %p1213
        $region218: #{rcw_forward.1} parent=207 // pred_check_branch
          %6920 = sbr.rel (%p6918) target = $region220
        $region219: #{rcw_forward.1} parent=207 // pred_region
          %s6921 = smul.u32 2, %s115
          %s6923 = ssub.s32 256, 256
          %6924 = vsyncadd [#allocation4], %s6923
          %s6925 = smul.addr %s6921, 128
          %s6926 = scalar_lea.hbm %s95, %s6925
          %s6927 = sshll.u32 [#allocation3], 4
          %s6928 = int_to_ptr.vmem [resolvable:$true] %s6927
          %6933 = dma.vmem_to_hbm [thread:$0]  %s6928, 256, %s6926, [#allocation4], 128, 128, 8
        $region220: #{rcw_forward.1} parent=207 // pred_fallthru
          _
        // Predicated region
        $region221: #{rcw_forward.1} parent=207 // pred_check
          %p6934 = pneg %p1239
        $region222: #{rcw_forward.1} parent=207 // pred_check_branch
          %6936 = sbr.rel (%p6934) target = $region224
        $region223: #{rcw_forward.1} parent=207 // pred_region
          %s6937 = smul.u32 2, %s115
          %s6939 = ssub.s32 512, 512
          %6940 = vsyncadd [#allocation6], %s6939
          %s6941 = smul.addr %s6937, 2
          %s6942 = smul.addr %s6941, 128
          %s6943 = scalar_lea.hbm %s97, %s6942
          %s6944 = sshll.u32 [#allocation5], 4
          %s6945 = int_to_ptr.vmem [resolvable:$true] %s6944
          %6950 = dma.vmem_to_hbm [thread:$0]  %s6945, 512, %s6943, [#allocation6], 128, 128, 8
        $region224: #{rcw_forward.1} parent=207 // pred_fallthru
          _
        // Predicated region
        $region225: #{rcw_forward.1} parent=207 // pred_check
          %p6951 = pneg %p1213
        $region226: #{rcw_forward.1} parent=207 // pred_check_branch
          %6953 = sbr.rel (%p6951) target = $region228
        $region227: #{rcw_forward.1} parent=207 // pred_region
          %6954 = dma.done [#allocation4], 256
        $region228: #{rcw_forward.1} parent=207 // pred_fallthru
          _
        // Predicated region
        $region229: #{rcw_forward.1} parent=207 // pred_check
          %p6955 = pneg %p1239
        $region230: #{rcw_forward.1} parent=207 // pred_check_branch
          %6957 = sbr.rel (%p6955) target = $region232
        $region231: #{rcw_forward.1} parent=207 // pred_region
          %6958 = dma.done [#allocation6], 512
        $region232: #{rcw_forward.1} parent=207 // pred_fallthru
          _
      $region208: #{rcw_forward.1} parent=5 // pred_fallthru
        _
      %p6959 = scmp.le.s32.totalorder 2, %s106
      // Predicated region
      $region233: #{rcw_forward.1} parent=5 // pred_check
        %p6960 = pneg %p6959
      $region234: #{rcw_forward.1} parent=5 // pred_check_branch
        %6962 = sbr.rel (%p6960) target = $region236
      $region235: #{rcw_forward.1} parent=5 // pred_region
        %s6963 = ssub.s32 %s106, 2
      $region236: #{rcw_forward.1} parent=5 // pred_fallthru
        _
    $region6: #{rcw_forward.1} parent=1 // loop_footer
      %s110 = sadd.s32 1, %s106
    $region7: #{rcw_forward.1} parent=1 // loop_footer_branch
      %105 = sbr.rel target = $region3
    $region8: #{rcw_forward.1} parent=1 // loop_exit
      _
    %6964 = vsyncpa [#allocation4], 1
    %s6965 = scalar_lea.sflag [#allocation4], 1
    %6966 = vsyncpa %s6965, 1
    %6967 = vsyncpa [#allocation6], 1

</llo_original>
